<compile_context>
chip_gen: v6e
topology: v6e:2x2x1
jax: 0.10.0
libtpu: 0.0.40
codegen_flags: <defaults>
</compile_context>

<pallas_src>
import jax
import jax.numpy as jnp
from jax.experimental import pallas as pl
from jax.experimental.pallas import tpu as pltpu


def _round_up(v, m):
    return (v + m - 1) // m * m


# --------------------------------------------------------------------------
# Pallas MXU matmul kernel with fused bias epilogue.
#   a: (tm, tk) bf16, b: (tk, tn) bf16, bias: (1, tn) f32 -> o: (tm, tn) f32
# Accumulates in f32 VMEM scratch; writes the output tile only on the last
# K step (frees the store slot on every earlier K iteration).
# --------------------------------------------------------------------------
def _matmul_bias_kernel(a_ref, b_ref, bias_ref, o_ref, acc_ref):
    @pl.when(pl.program_id(2) == 0)
    def _():
        acc_ref[...] = jnp.zeros_like(acc_ref)

    acc_ref[...] += jnp.dot(a_ref[...], b_ref[...],
                            preferred_element_type=jnp.float32)

    @pl.when(pl.program_id(2) == pl.num_programs(2) - 1)
    def _():
        o_ref[...] = (acc_ref[...] + bias_ref[...]).astype(o_ref.dtype)


def pallas_matmul_bias(a, b, bias):
    """a: (Mp, Kp) bf16, b: (Kp, Np) bf16, bias: (1, Np) f32 -> (Mp, Np) f32."""
    Mp, Kp = a.shape
    Kp2, Np = b.shape
    assert Kp == Kp2 and bias.shape == (1, Np)
    tm = min(256, Mp)
    tk = min(1024, Kp)
    tn = min(512, Np)
    assert Mp % tm == 0 and Kp % tk == 0 and Np % tn == 0
    grid = (Mp // tm, Np // tn, Kp // tk)
    return pl.pallas_call(
        _matmul_bias_kernel,
        out_shape=jax.ShapeDtypeStruct((Mp, Np), jnp.float32),
        grid=grid,
        in_specs=[
            pl.BlockSpec((tm, tk), lambda i, j, k: (i, k)),
            pl.BlockSpec((tk, tn), lambda i, j, k: (k, j)),
            pl.BlockSpec((1, tn), lambda i, j, k: (0, j)),
        ],
        out_specs=pl.BlockSpec((tm, tn), lambda i, j, k: (i, j)),
        scratch_shapes=[pltpu.VMEM((tm, tn), jnp.float32)],
        compiler_params=pltpu.CompilerParams(
            dimension_semantics=("parallel", "parallel", "arbitrary")),
    )(a, b, bias)


# --------------------------------------------------------------------------
# Weight pre-packing (done once, outside the forward pass).
# --------------------------------------------------------------------------
def _kn_tiles(K, N):
    tk = min(1024, _round_up(K, 128))
    tn = min(512, _round_up(N, 128))
    return _round_up(K, tk), _round_up(N, tn)


def prepack_conv(w, b):
    """w: torch layout (Cout, Cin, 3, 3) f32, b: (Cout,) f32.

    Returns (wm, bias) with wm: (Kp, Np) bf16 in (ky, kx, ci) row order and
    bias: (1, Np) f32, both padded to MXU-friendly tile multiples.
    """
    cout, cin, kh, kw = w.shape
    K = kh * kw * cin
    Kp, Np = _kn_tiles(K, cout)
    wm = jnp.transpose(w, (2, 3, 1, 0)).reshape(K, cout)      # (ky,kx,ci) x co
    wm = jnp.pad(wm, ((0, Kp - K), (0, Np - cout))).astype(jnp.bfloat16)
    bias = jnp.pad(b, (0, Np - cout)).reshape(1, Np).astype(jnp.float32)
    return wm, bias


# --------------------------------------------------------------------------
# Conv2d(k=3, p=1, stride in {1,2}, bias=True): im2col glue + Pallas matmul.
# --------------------------------------------------------------------------
def conv3x3(x, wm, bias, *, stride, cout):
    """x: NHWC f32; wm/bias pre-packed.  Returns NHWC f32 with `cout` channels."""
    N, H, W, Cin = x.shape
    Ho = (H + 2 - 3) // stride + 1
    Wo = (W + 2 - 3) // stride + 1
    xp = jnp.pad(x, ((0, 0), (1, 1), (1, 1), (0, 0)))
    cols = []
    for ky in range(3):
        for kx in range(3):
            cols.append(xp[:, ky:ky + (Ho - 1) * stride + 1:stride,
                            kx:kx + (Wo - 1) * stride + 1:stride, :])
    patches = jnp.concatenate(cols, axis=-1).reshape(N * Ho * Wo, 9 * Cin)
    M, K = patches.shape
    Kp, Np = wm.shape
    tm = 256 if M >= 256 else _round_up(M, 16)
    Mp = _round_up(M, tm)
    a = jnp.pad(patches, ((0, Mp - M), (0, Kp - K))).astype(jnp.bfloat16)
    out = pallas_matmul_bias(a, wm, bias)          # (Mp, Np) f32
    return out[:M, :cout].reshape(N, Ho, Wo, cout)


# --------------------------------------------------------------------------
# Attention.forward
# --------------------------------------------------------------------------
@jax.jit
def attention_forward(params, X):
    """X: NCHW f32 -> NCHW f32 (conv1 -> conv2 -> conv3 -> conv4)."""
    x = jnp.transpose(X, (0, 2, 3, 1))                                 # NHWC
    x = conv3x3(x, params["w1"], params["b1"], stride=1, cout=1024)
    x = conv3x3(x, params["w2"], params["b2"], stride=2, cout=512)
    x = conv3x3(x, params["w3"], params["b3"], stride=1, cout=256)
    x = conv3x3(x, params["w4"], params["b4"], stride=1, cout=64)
    return jnp.transpose(x, (0, 3, 1, 2))                              # NCHW


def init_params(key, cin):
    ks = jax.random.split(key, 4)

    def mk(k, cout, cin_):
        k1, k2 = jax.random.split(k)
        w = 0.05 * jax.random.normal(k1, (cout, cin_, 3, 3), jnp.float32)
        b = 0.05 * jax.random.normal(k2, (cout,), jnp.float32)
        return prepack_conv(w, b)

    params = {}
    layer_defs = [(1024, cin), (512, 1024), (256, 512), (64, 256)]
    for i, (cout, ci) in enumerate(layer_defs, start=1):
        wm, bias = mk(ks[i - 1], cout, ci)
        params[f"w{i}"] = wm
        params[f"b{i}"] = bias
    return params


if __name__ == "__main__":
    key = jax.random.PRNGKey(0)
    pkey, xkey = jax.random.split(key)

    N, C, H, W = 2, 4, 16, 16
    X = jax.random.normal(xkey, (N, C, H, W), jnp.float32)
    params = init_params(pkey, C)

    out = attention_forward(params, X)
    out = jax.block_until_ready(out)

    assert out.shape == (N, 64, H // 2, W // 2), out.shape
    assert out.dtype == jnp.float32
    assert bool(jnp.all(jnp.isfinite(out)))
    print("KERNEL_OK")
</pallas_src>

<mosaic_0001>
module attributes {stable_mosaic.version = 11 : i64} {
  func.func @_matmul_bias_kernel(%arg0: i32, %arg1: i32, %arg2: i32, %arg3: memref<256x128xbf16, #tpu.memory_space<vmem>>, %arg4: memref<128x512xbf16, #tpu.memory_space<vmem>>, %arg5: memref<1x512xf32, #tpu.memory_space<vmem>>, %arg6: memref<256x512xf32, #tpu.memory_space<vmem>>, %arg7: memref<256x512xf32, #tpu.memory_space<vmem>>) attributes {dimension_semantics = [#tpu.dimension_semantics<parallel>, #tpu.dimension_semantics<parallel>, #tpu.dimension_semantics<arbitrary>], iteration_bounds = array<i64: 2, 2, 1>, scalar_prefetch = 0 : i64, scratch_operands = 1 : i64, tpu.core_type = #tpu.core_type<tc>, window_params = [{transform_indices = @transform_0, window_bounds = array<i64: 256, 128>}, {transform_indices = @transform_1, window_bounds = array<i64: 128, 512>}, {transform_indices = @transform_2, window_bounds = array<i64: 1, 512>}, {transform_indices = @transform_3, window_bounds = array<i64: 256, 512>}]} {
    %c0_i32 = arith.constant 0 : i32
    %0 = arith.cmpi eq, %arg2, %c0_i32 : i32
    %1 = arith.extui %0 : i1 to i32
    %c0_i32_0 = arith.constant 0 : i32
    %2 = arith.cmpi ne, %1, %c0_i32_0 : i32
    scf.if %2 {
      %cst_10 = arith.constant 0.000000e+00 : f32
      %12 = vector.broadcast %cst_10 : f32 to vector<256x512xf32>
      %c0_11 = arith.constant 0 : index
      %c0_12 = arith.constant 0 : index
      %13 = vector.load %arg7[%c0_11, %c0_12] : memref<256x512xf32, #tpu.memory_space<vmem>>, vector<256x512xf32>
      tpu.vector_store %arg7[%c0_11, %c0_12], %12 {strides = array<i32>} : memref<256x512xf32, #tpu.memory_space<vmem>>, vector<256x512xf32>,
    } else {
    }
    %c0 = arith.constant 0 : index
    %c0_1 = arith.constant 0 : index
    %3 = vector.load %arg7[%c0, %c0_1] : memref<256x512xf32, #tpu.memory_space<vmem>>, vector<256x512xf32>
    %c0_2 = arith.constant 0 : index
    %c0_3 = arith.constant 0 : index
    %4 = vector.load %arg3[%c0_2, %c0_3] : memref<256x128xbf16, #tpu.memory_space<vmem>>, vector<256x128xbf16>
    %c0_4 = arith.constant 0 : index
    %c0_5 = arith.constant 0 : index
    %5 = vector.load %arg4[%c0_4, %c0_5] : memref<128x512xbf16, #tpu.memory_space<vmem>>, vector<128x512xbf16>
    %cst = arith.constant dense<0.000000e+00> : vector<256x512xf32>
    %6 = tpu.matmul %4, %5, %cst {dimension_numbers = #tpu.dot_dimension_numbers<[1], [0], [0], [1], [0, 0, 1, 1], [], []>} : vector<256x128xbf16>, vector<128x512xbf16>, vector<256x512xf32> -> vector<256x512xf32>
    %7 = arith.addf %3, %6 : vector<256x512xf32>
    %c0_6 = arith.constant 0 : index
    %c0_7 = arith.constant 0 : index
    %8 = vector.load %arg7[%c0_6, %c0_7] : memref<256x512xf32, #tpu.memory_space<vmem>>, vector<256x512xf32>
    tpu.vector_store %arg7[%c0_6, %c0_7], %7 {strides = array<i32>} : memref<256x512xf32, #tpu.memory_space<vmem>>, vector<256x512xf32>,
    %c0_i32_8 = arith.constant 0 : i32
    %9 = arith.cmpi eq, %arg2, %c0_i32_8 : i32
    %10 = arith.extui %9 : i1 to i32
    %c0_i32_9 = arith.constant 0 : i32
    %11 = arith.cmpi ne, %10, %c0_i32_9 : i32
    scf.if %11 {
      %c0_10 = arith.constant 0 : index
      %c0_11 = arith.constant 0 : index
      %12 = vector.load %arg7[%c0_10, %c0_11] : memref<256x512xf32, #tpu.memory_space<vmem>>, vector<256x512xf32>
      %c0_12 = arith.constant 0 : index
      %c0_13 = arith.constant 0 : index
      %13 = vector.load %arg5[%c0_12, %c0_13] : memref<1x512xf32, #tpu.memory_space<vmem>>, vector<1x512xf32>
      %14 = vector.broadcast %13 : vector<1x512xf32> to vector<256x512xf32>
      %15 = arith.addf %12, %14 : vector<256x512xf32>
      %c0_14 = arith.constant 0 : index
      %c0_15 = arith.constant 0 : index
      %16 = vector.load %arg6[%c0_14, %c0_15] : memref<256x512xf32, #tpu.memory_space<vmem>>, vector<256x512xf32>
      tpu.vector_store %arg6[%c0_14, %c0_15], %15 {strides = array<i32>} : memref<256x512xf32, #tpu.memory_space<vmem>>, vector<256x512xf32>,
    } else {
    }
    return
  }
  func.func @transform_0(%arg0: i32, %arg1: i32, %arg2: i32) -> (i32, i32) {
    %c0_i32 = arith.constant 0 : i32
    return %arg0, %arg2 : i32, i32
  }
  func.func @transform_1(%arg0: i32, %arg1: i32, %arg2: i32) -> (i32, i32) {
    %c0_i32 = arith.constant 0 : i32
    return %arg2, %arg1 : i32, i32
  }
  func.func @transform_2(%arg0: i32, %arg1: i32, %arg2: i32) -> (i32, i32) {
    %c0_i32 = arith.constant 0 : i32
    %c0_i32_0 = arith.constant 0 : i32
    return %c0_i32, %arg1 : i32, i32
  }
  func.func @transform_3(%arg0: i32, %arg1: i32, %arg2: i32) -> (i32, i32) {
    %c0_i32 = arith.constant 0 : i32
    return %arg0, %arg1 : i32, i32
  }
}

module attributes {stable_mosaic.version = 11 : i64} {
  func.func @_matmul_bias_kernel(%arg0: i32, %arg1: i32, %arg2: i32, %arg3: memref<128x1024xbf16, #tpu.memory_space<vmem>>, %arg4: memref<1024x512xbf16, #tpu.memory_space<vmem>>, %arg5: memref<1x512xf32, #tpu.memory_space<vmem>>, %arg6: memref<128x512xf32, #tpu.memory_space<vmem>>, %arg7: memref<128x512xf32, #tpu.memory_space<vmem>>) attributes {dimension_semantics = [#tpu.dimension_semantics<parallel>, #tpu.dimension_semantics<parallel>, #tpu.dimension_semantics<arbitrary>], iteration_bounds = array<i64: 1, 1, 9>, scalar_prefetch = 0 : i64, scratch_operands = 1 : i64, tpu.core_type = #tpu.core_type<tc>, window_params = [{transform_indices = @transform_0, window_bounds = array<i64: 128, 1024>}, {transform_indices = @transform_1, window_bounds = array<i64: 1024, 512>}, {transform_indices = @transform_2, window_bounds = array<i64: 1, 512>}, {transform_indices = @transform_3, window_bounds = array<i64: 128, 512>}]} {
    %c0_i32 = arith.constant 0 : i32
    %0 = arith.cmpi eq, %arg2, %c0_i32 : i32
    %1 = arith.extui %0 : i1 to i32
    %c0_i32_0 = arith.constant 0 : i32
    %2 = arith.cmpi ne, %1, %c0_i32_0 : i32
    scf.if %2 {
      %cst_9 = arith.constant 0.000000e+00 : f32
      %12 = vector.broadcast %cst_9 : f32 to vector<128x512xf32>
      %c0_10 = arith.constant 0 : index
      %c0_11 = arith.constant 0 : index
      %13 = vector.load %arg7[%c0_10, %c0_11] : memref<128x512xf32, #tpu.memory_space<vmem>>, vector<128x512xf32>
      tpu.vector_store %arg7[%c0_10, %c0_11], %12 {strides = array<i32>} : memref<128x512xf32, #tpu.memory_space<vmem>>, vector<128x512xf32>,
    } else {
    }
    %c0 = arith.constant 0 : index
    %c0_1 = arith.constant 0 : index
    %3 = vector.load %arg7[%c0, %c0_1] : memref<128x512xf32, #tpu.memory_space<vmem>>, vector<128x512xf32>
    %c0_2 = arith.constant 0 : index
    %c0_3 = arith.constant 0 : index
    %4 = vector.load %arg3[%c0_2, %c0_3] : memref<128x1024xbf16, #tpu.memory_space<vmem>>, vector<128x1024xbf16>
    %c0_4 = arith.constant 0 : index
    %c0_5 = arith.constant 0 : index
    %5 = vector.load %arg4[%c0_4, %c0_5] : memref<1024x512xbf16, #tpu.memory_space<vmem>>, vector<1024x512xbf16>
    %cst = arith.constant dense<0.000000e+00> : vector<128x512xf32>
    %6 = tpu.matmul %4, %5, %cst {dimension_numbers = #tpu.dot_dimension_numbers<[1], [0], [0], [1], [0, 0, 1, 1], [], []>} : vector<128x1024xbf16>, vector<1024x512xbf16>, vector<128x512xf32> -> vector<128x512xf32>
    %7 = arith.addf %3, %6 : vector<128x512xf32>
    %c0_6 = arith.constant 0 : index
    %c0_7 = arith.constant 0 : index
    %8 = vector.load %arg7[%c0_6, %c0_7] : memref<128x512xf32, #tpu.memory_space<vmem>>, vector<128x512xf32>
    tpu.vector_store %arg7[%c0_6, %c0_7], %7 {strides = array<i32>} : memref<128x512xf32, #tpu.memory_space<vmem>>, vector<128x512xf32>,
    %c8_i32 = arith.constant 8 : i32
    %9 = arith.cmpi eq, %arg2, %c8_i32 : i32
    %10 = arith.extui %9 : i1 to i32
    %c0_i32_8 = arith.constant 0 : i32
    %11 = arith.cmpi ne, %10, %c0_i32_8 : i32
    scf.if %11 {
      %c0_9 = arith.constant 0 : index
      %c0_10 = arith.constant 0 : index
      %12 = vector.load %arg7[%c0_9, %c0_10] : memref<128x512xf32, #tpu.memory_space<vmem>>, vector<128x512xf32>
      %c0_11 = arith.constant 0 : index
      %c0_12 = arith.constant 0 : index
      %13 = vector.load %arg5[%c0_11, %c0_12] : memref<1x512xf32, #tpu.memory_space<vmem>>, vector<1x512xf32>
      %14 = vector.broadcast %13 : vector<1x512xf32> to vector<128x512xf32>
      %15 = arith.addf %12, %14 : vector<128x512xf32>
      %c0_13 = arith.constant 0 : index
      %c0_14 = arith.constant 0 : index
      %16 = vector.load %arg6[%c0_13, %c0_14] : memref<128x512xf32, #tpu.memory_space<vmem>>, vector<128x512xf32>
      tpu.vector_store %arg6[%c0_13, %c0_14], %15 {strides = array<i32>} : memref<128x512xf32, #tpu.memory_space<vmem>>, vector<128x512xf32>,
    } else {
    }
    return
  }
  func.func @transform_0(%arg0: i32, %arg1: i32, %arg2: i32) -> (i32, i32) {
    %c0_i32 = arith.constant 0 : i32
    return %arg0, %arg2 : i32, i32
  }
  func.func @transform_1(%arg0: i32, %arg1: i32, %arg2: i32) -> (i32, i32) {
    %c0_i32 = arith.constant 0 : i32
    return %arg2, %arg1 : i32, i32
  }
  func.func @transform_2(%arg0: i32, %arg1: i32, %arg2: i32) -> (i32, i32) {
    %c0_i32 = arith.constant 0 : i32
    %c0_i32_0 = arith.constant 0 : i32
    return %c0_i32, %arg1 : i32, i32
  }
  func.func @transform_3(%arg0: i32, %arg1: i32, %arg2: i32) -> (i32, i32) {
    %c0_i32 = arith.constant 0 : i32
    return %arg0, %arg1 : i32, i32
  }
}

module attributes {stable_mosaic.version = 11 : i64} {
  func.func @_matmul_bias_kernel(%arg0: i32, %arg1: i32, %arg2: i32, %arg3: memref<128x1024xbf16, #tpu.memory_space<vmem>>, %arg4: memref<1024x256xbf16, #tpu.memory_space<vmem>>, %arg5: memref<1x256xf32, #tpu.memory_space<vmem>>, %arg6: memref<128x256xf32, #tpu.memory_space<vmem>>, %arg7: memref<128x256xf32, #tpu.memory_space<vmem>>) attributes {dimension_semantics = [#tpu.dimension_semantics<parallel>, #tpu.dimension_semantics<parallel>, #tpu.dimension_semantics<arbitrary>], iteration_bounds = array<i64: 1, 1, 5>, scalar_prefetch = 0 : i64, scratch_operands = 1 : i64, tpu.core_type = #tpu.core_type<tc>, window_params = [{transform_indices = @transform_0, window_bounds = array<i64: 128, 1024>}, {transform_indices = @transform_1, window_bounds = array<i64: 1024, 256>}, {transform_indices = @transform_2, window_bounds = array<i64: 1, 256>}, {transform_indices = @transform_3, window_bounds = array<i64: 128, 256>}]} {
    %c0_i32 = arith.constant 0 : i32
    %0 = arith.cmpi eq, %arg2, %c0_i32 : i32
    %1 = arith.extui %0 : i1 to i32
    %c0_i32_0 = arith.constant 0 : i32
    %2 = arith.cmpi ne, %1, %c0_i32_0 : i32
    scf.if %2 {
      %cst_9 = arith.constant 0.000000e+00 : f32
      %12 = vector.broadcast %cst_9 : f32 to vector<128x256xf32>
      %c0_10 = arith.constant 0 : index
      %c0_11 = arith.constant 0 : index
      %13 = vector.load %arg7[%c0_10, %c0_11] : memref<128x256xf32, #tpu.memory_space<vmem>>, vector<128x256xf32>
      tpu.vector_store %arg7[%c0_10, %c0_11], %12 {strides = array<i32>} : memref<128x256xf32, #tpu.memory_space<vmem>>, vector<128x256xf32>,
    } else {
    }
    %c0 = arith.constant 0 : index
    %c0_1 = arith.constant 0 : index
    %3 = vector.load %arg7[%c0, %c0_1] : memref<128x256xf32, #tpu.memory_space<vmem>>, vector<128x256xf32>
    %c0_2 = arith.constant 0 : index
    %c0_3 = arith.constant 0 : index
    %4 = vector.load %arg3[%c0_2, %c0_3] : memref<128x1024xbf16, #tpu.memory_space<vmem>>, vector<128x1024xbf16>
    %c0_4 = arith.constant 0 : index
    %c0_5 = arith.constant 0 : index
    %5 = vector.load %arg4[%c0_4, %c0_5] : memref<1024x256xbf16, #tpu.memory_space<vmem>>, vector<1024x256xbf16>
    %cst = arith.constant dense<0.000000e+00> : vector<128x256xf32>
    %6 = tpu.matmul %4, %5, %cst {dimension_numbers = #tpu.dot_dimension_numbers<[1], [0], [0], [1], [0, 0, 1, 1], [], []>} : vector<128x1024xbf16>, vector<1024x256xbf16>, vector<128x256xf32> -> vector<128x256xf32>
    %7 = arith.addf %3, %6 : vector<128x256xf32>
    %c0_6 = arith.constant 0 : index
    %c0_7 = arith.constant 0 : index
    %8 = vector.load %arg7[%c0_6, %c0_7] : memref<128x256xf32, #tpu.memory_space<vmem>>, vector<128x256xf32>
    tpu.vector_store %arg7[%c0_6, %c0_7], %7 {strides = array<i32>} : memref<128x256xf32, #tpu.memory_space<vmem>>, vector<128x256xf32>,
    %c4_i32 = arith.constant 4 : i32
    %9 = arith.cmpi eq, %arg2, %c4_i32 : i32
    %10 = arith.extui %9 : i1 to i32
    %c0_i32_8 = arith.constant 0 : i32
    %11 = arith.cmpi ne, %10, %c0_i32_8 : i32
    scf.if %11 {
      %c0_9 = arith.constant 0 : index
      %c0_10 = arith.constant 0 : index
      %12 = vector.load %arg7[%c0_9, %c0_10] : memref<128x256xf32, #tpu.memory_space<vmem>>, vector<128x256xf32>
      %c0_11 = arith.constant 0 : index
      %c0_12 = arith.constant 0 : index
      %13 = vector.load %arg5[%c0_11, %c0_12] : memref<1x256xf32, #tpu.memory_space<vmem>>, vector<1x256xf32>
      %14 = vector.broadcast %13 : vector<1x256xf32> to vector<128x256xf32>
      %15 = arith.addf %12, %14 : vector<128x256xf32>
      %c0_13 = arith.constant 0 : index
      %c0_14 = arith.constant 0 : index
      %16 = vector.load %arg6[%c0_13, %c0_14] : memref<128x256xf32, #tpu.memory_space<vmem>>, vector<128x256xf32>
      tpu.vector_store %arg6[%c0_13, %c0_14], %15 {strides = array<i32>} : memref<128x256xf32, #tpu.memory_space<vmem>>, vector<128x256xf32>,
    } else {
    }
    return
  }
  func.func @transform_0(%arg0: i32, %arg1: i32, %arg2: i32) -> (i32, i32) {
    %c0_i32 = arith.constant 0 : i32
    return %arg0, %arg2 : i32, i32
  }
  func.func @transform_1(%arg0: i32, %arg1: i32, %arg2: i32) -> (i32, i32) {
    %c0_i32 = arith.constant 0 : i32
    return %arg2, %arg1 : i32, i32
  }
  func.func @transform_2(%arg0: i32, %arg1: i32, %arg2: i32) -> (i32, i32) {
    %c0_i32 = arith.constant 0 : i32
    %c0_i32_0 = arith.constant 0 : i32
    return %c0_i32, %arg1 : i32, i32
  }
  func.func @transform_3(%arg0: i32, %arg1: i32, %arg2: i32) -> (i32, i32) {
    %c0_i32 = arith.constant 0 : i32
    return %arg0, %arg1 : i32, i32
  }
}

module attributes {stable_mosaic.version = 11 : i64} {
  func.func @_matmul_bias_kernel(%arg0: i32, %arg1: i32, %arg2: i32, %arg3: memref<128x1024xbf16, #tpu.memory_space<vmem>>, %arg4: memref<1024x128xbf16, #tpu.memory_space<vmem>>, %arg5: memref<1x128xf32, #tpu.memory_space<vmem>>, %arg6: memref<128x128xf32, #tpu.memory_space<vmem>>, %arg7: memref<128x128xf32, #tpu.memory_space<vmem>>) attributes {dimension_semantics = [#tpu.dimension_semantics<parallel>, #tpu.dimension_semantics<parallel>, #tpu.dimension_semantics<arbitrary>], iteration_bounds = array<i64: 1, 1, 3>, scalar_prefetch = 0 : i64, scratch_operands = 1 : i64, tpu.core_type = #tpu.core_type<tc>, window_params = [{transform_indices = @transform_0, window_bounds = array<i64: 128, 1024>}, {transform_indices = @transform_1, window_bounds = array<i64: 1024, 128>}, {transform_indices = @transform_2, window_bounds = array<i64: 1, 128>}, {transform_indices = @transform_3, window_bounds = array<i64: 128, 128>}]} {
    %c0_i32 = arith.constant 0 : i32
    %0 = arith.cmpi eq, %arg2, %c0_i32 : i32
    %1 = arith.extui %0 : i1 to i32
    %c0_i32_0 = arith.constant 0 : i32
    %2 = arith.cmpi ne, %1, %c0_i32_0 : i32
    scf.if %2 {
      %cst_9 = arith.constant 0.000000e+00 : f32
      %12 = vector.broadcast %cst_9 : f32 to vector<128x128xf32>
      %c0_10 = arith.constant 0 : index
      %c0_11 = arith.constant 0 : index
      %13 = vector.load %arg7[%c0_10, %c0_11] : memref<128x128xf32, #tpu.memory_space<vmem>>, vector<128x128xf32>
      tpu.vector_store %arg7[%c0_10, %c0_11], %12 {strides = array<i32>} : memref<128x128xf32, #tpu.memory_space<vmem>>, vector<128x128xf32>,
    } else {
    }
    %c0 = arith.constant 0 : index
    %c0_1 = arith.constant 0 : index
    %3 = vector.load %arg7[%c0, %c0_1] : memref<128x128xf32, #tpu.memory_space<vmem>>, vector<128x128xf32>
    %c0_2 = arith.constant 0 : index
    %c0_3 = arith.constant 0 : index
    %4 = vector.load %arg3[%c0_2, %c0_3] : memref<128x1024xbf16, #tpu.memory_space<vmem>>, vector<128x1024xbf16>
    %c0_4 = arith.constant 0 : index
    %c0_5 = arith.constant 0 : index
    %5 = vector.load %arg4[%c0_4, %c0_5] : memref<1024x128xbf16, #tpu.memory_space<vmem>>, vector<1024x128xbf16>
    %cst = arith.constant dense<0.000000e+00> : vector<128x128xf32>
    %6 = tpu.matmul %4, %5, %cst {dimension_numbers = #tpu.dot_dimension_numbers<[1], [0], [0], [1], [0, 0, 1, 1], [], []>} : vector<128x1024xbf16>, vector<1024x128xbf16>, vector<128x128xf32> -> vector<128x128xf32>
    %7 = arith.addf %3, %6 : vector<128x128xf32>
    %c0_6 = arith.constant 0 : index
    %c0_7 = arith.constant 0 : index
    %8 = vector.load %arg7[%c0_6, %c0_7] : memref<128x128xf32, #tpu.memory_space<vmem>>, vector<128x128xf32>
    tpu.vector_store %arg7[%c0_6, %c0_7], %7 {strides = array<i32>} : memref<128x128xf32, #tpu.memory_space<vmem>>, vector<128x128xf32>,
    %c2_i32 = arith.constant 2 : i32
    %9 = arith.cmpi eq, %arg2, %c2_i32 : i32
    %10 = arith.extui %9 : i1 to i32
    %c0_i32_8 = arith.constant 0 : i32
    %11 = arith.cmpi ne, %10, %c0_i32_8 : i32
    scf.if %11 {
      %c0_9 = arith.constant 0 : index
      %c0_10 = arith.constant 0 : index
      %12 = vector.load %arg7[%c0_9, %c0_10] : memref<128x128xf32, #tpu.memory_space<vmem>>, vector<128x128xf32>
      %c0_11 = arith.constant 0 : index
      %c0_12 = arith.constant 0 : index
      %13 = vector.load %arg5[%c0_11, %c0_12] : memref<1x128xf32, #tpu.memory_space<vmem>>, vector<1x128xf32>
      %14 = vector.broadcast %13 : vector<1x128xf32> to vector<128x128xf32>
      %15 = arith.addf %12, %14 : vector<128x128xf32>
      %c0_13 = arith.constant 0 : index
      %c0_14 = arith.constant 0 : index
      %16 = vector.load %arg6[%c0_13, %c0_14] : memref<128x128xf32, #tpu.memory_space<vmem>>, vector<128x128xf32>
      tpu.vector_store %arg6[%c0_13, %c0_14], %15 {strides = array<i32>} : memref<128x128xf32, #tpu.memory_space<vmem>>, vector<128x128xf32>,
    } else {
    }
    return
  }
  func.func @transform_0(%arg0: i32, %arg1: i32, %arg2: i32) -> (i32, i32) {
    %c0_i32 = arith.constant 0 : i32
    return %arg0, %arg2 : i32, i32
  }
  func.func @transform_1(%arg0: i32, %arg1: i32, %arg2: i32) -> (i32, i32) {
    %c0_i32 = arith.constant 0 : i32
    return %arg2, %arg1 : i32, i32
  }
  func.func @transform_2(%arg0: i32, %arg1: i32, %arg2: i32) -> (i32, i32) {
    %c0_i32 = arith.constant 0 : i32
    %c0_i32_0 = arith.constant 0 : i32
    return %c0_i32, %arg1 : i32, i32
  }
  func.func @transform_3(%arg0: i32, %arg1: i32, %arg2: i32) -> (i32, i32) {
    %c0_i32 = arith.constant 0 : i32
    return %arg0, %arg1 : i32, i32
  }
}

</mosaic_0001>

<llo_original>
// kernel: attention_forward.4
$region0: #{attention_forward.4}
  #allocation0 [shape = 'u32[]', space=smem, size = 0x4, offset = 0x4, fixed_abs, tag = 'smem constant byte address 0x4 - core index']
  #allocation1 [shape = 'u32[144,128]{1,0:T(1,128)}', space=vmem, size = 0x12000, scoped, tag = 'internal scratch']
  #allocation2 [shape = 'f32[256,512]{1,0:T(8,128)}', space=vmem, size = 0x80000, scoped, tag = 'scratch operand']
  %s0 = inlined_call_operand.vmem [shape: bf16[512,128], index: 0, kind: input, shape index: {}]
  %s1 = inlined_call_operand.vmem [shape: bf16[128,1024], index: 1, kind: input, shape index: {}]
  %s2 = inlined_call_operand.vmem [shape: f32[1,1024], index: 2, kind: input, shape index: {}]
  %s3 = inlined_call_operand.vmem [shape: f32[512,1024], index: 3, kind: output, shape index: {}]
  %s4 = sld [smem:[#allocation0]]
  $region95: #{attention_forward.4} parent=0
    _
  %s6 = ssub.s32 1, %s4
  %s7 = scalar_select 0, %s6, %s4
  $region1: #{attention_forward.4} parent=0
    #allocation3 [shape = 'u8[262144]{0}', space=vmem, size = 0x40000, scoped, tag = 'input window, operand 1']
    #allocation4 [shape = 'u8[1048576]{0}', space=vmem, size = 0x100000, scoped, tag = 'output window, operand 0']
    loop: start=0, step=1, limit=6
    $region2: #{attention_forward.4} parent=1 // loop_pre_header
      _
    $region3: #{attention_forward.4} parent=1 // loop_header
      %s9 = sphi 0, %s13
      %p10 = scmp.ge.s32.totalorder %s9, 6
      %s16 = sphi 0, %s35
      %s17 = sphi 0, %s31
      %s18 = sphi 0, %s27
      %s19 = sphi 0, %s16
      %s20 = sphi 0, %s17
      %s21 = sphi 0, %s18
      %s22 = sphi 0, %s19
      %s23 = sphi 0, %s20
      %s24 = sphi 0, %s21
      %s40 = sphi 0, %s42
      %s43 = sphi 0, %s40
      %s44 = sphi 0, %s43
      %s60 = sphi 0, %s44
      %s68 = sphi 0, %s70
      %s71 = sphi 0, %s68
      %s72 = sphi 0, %s71
      %s88 = sphi 0, %s72
      %s94 = sphi 0, %s96
      %s97 = sphi 0, %s94
      %s98 = sphi 0, %s97
      %s114 = sphi 0, %s98
      %s122 = sphi 0, %s124
      %s125 = sphi 0, %s122
      %s126 = sphi 0, %s125
      %s142 = sphi 0, %s126
    $region4: #{attention_forward.4} parent=1 // loop_header_branch
      %12 = sbr.rel (%p10) target = $region8
    $region5: #{attention_forward.4} parent=1 // loop_body
      %s14 = ssub.s32 %s9, 1
      %s15 = ssub.s32 %s9, 2
      %s25 = sadd.s32 1, %s18
      %p26 = scmp.ge.s32.totalorder %s25, 1
      %s27 = scalar_select %p26, 0, %s25
      %s28 = sadd.s32 1, %s17
      %s29 = scalar_select %p26, %s28, %s17
      %p30 = scmp.ge.s32.totalorder %s29, 2
      %s31 = scalar_select %p30, 0, %s29
      %s32 = sadd.s32 1, %s16
      %s33 = scalar_select %p30, %s32, %s16
      %p34 = scmp.ge.s32.totalorder %s33, 2
      %s35 = scalar_select %p34, 0, %s33
      %s36 = ssub.s32 %s16, %s35
      %s37 = ssub.s32 %s18, %s27
      %s38 = sor.u32 %s36, %s37
      %p39 = scmp.eq.s32.totalorder %s38, 0
      %s41 = sadd.s32 %s40, 1
      %s42 = scalar_select %p39, %s40, %s41
      %p45 = pneg %p39
      %p46 = scmp.eq.s32.totalorder %s9, 3
      %p47 = por %p45, %p46
      %p48 = scmp.ne.s32.totalorder %s40, %s43
      %p49 = scmp.eq.s32.totalorder %s9, 0
      %p50 = por %p48, %p49
      %p51 = scmp.ne.s32.totalorder %s40, %s43
      %p52 = scmp.eq.s32.totalorder %s14, 3
      %p53 = por %p51, %p52
      %p54 = scmp.ne.s32.totalorder %s43, %s44
      %p55 = scmp.eq.s32.totalorder %s14, 0
      %p56 = por %p54, %p55
      %p57 = scmp.ne.s32.totalorder %s43, %s44
      %p58 = scmp.eq.s32.totalorder %s15, 3
      %p59 = por %p57, %p58
      %p61 = scmp.ne.s32.totalorder %s44, %s60
      %p62 = scmp.eq.s32.totalorder %s15, 0
      %p63 = por %p61, %p62
      %s64 = ssub.s32 %s18, %s27
      %s65 = ssub.s32 %s17, %s31
      %s66 = sor.u32 %s64, %s65
      %p67 = scmp.eq.s32.totalorder %s66, 0
      %s69 = sadd.s32 %s68, 1
      %s70 = scalar_select %p67, %s68, %s69
      %p73 = pneg %p67
      %p74 = scmp.eq.s32.totalorder %s9, 3
      %p75 = por %p73, %p74
      %p76 = scmp.ne.s32.totalorder %s68, %s71
      %p77 = scmp.eq.s32.totalorder %s9, 0
      %p78 = por %p76, %p77
      %p79 = scmp.ne.s32.totalorder %s68, %s71
      %p80 = scmp.eq.s32.totalorder %s14, 3
      %p81 = por %p79, %p80
      %p82 = scmp.ne.s32.totalorder %s71, %s72
      %p83 = scmp.eq.s32.totalorder %s14, 0
      %p84 = por %p82, %p83
      %p85 = scmp.ne.s32.totalorder %s71, %s72
      %p86 = scmp.eq.s32.totalorder %s15, 3
      %p87 = por %p85, %p86
      %p89 = scmp.ne.s32.totalorder %s72, %s88
      %p90 = scmp.eq.s32.totalorder %s15, 0
      %p91 = por %p89, %p90
      %s92 = ssub.s32 %s17, %s31
      %p93 = scmp.eq.s32.totalorder %s92, 0
      %s95 = sadd.s32 %s94, 1
      %s96 = scalar_select %p93, %s94, %s95
      %p99 = pneg %p93
      %p100 = scmp.eq.s32.totalorder %s9, 3
      %p101 = por %p99, %p100
      %p102 = scmp.ne.s32.totalorder %s94, %s97
      %p103 = scmp.eq.s32.totalorder %s9, 0
      %p104 = por %p102, %p103
      %p105 = scmp.ne.s32.totalorder %s94, %s97
      %p106 = scmp.eq.s32.totalorder %s14, 3
      %p107 = por %p105, %p106
      %p108 = scmp.ne.s32.totalorder %s97, %s98
      %p109 = scmp.eq.s32.totalorder %s14, 0
      %p110 = por %p108, %p109
      %p111 = scmp.ne.s32.totalorder %s97, %s98
      %p112 = scmp.eq.s32.totalorder %s15, 3
      %p113 = por %p111, %p112
      %p115 = scmp.ne.s32.totalorder %s98, %s114
      %p116 = scmp.eq.s32.totalorder %s15, 0
      %p117 = por %p115, %p116
      %s118 = ssub.s32 %s16, %s35
      %s119 = ssub.s32 %s17, %s31
      %s120 = sor.u32 %s118, %s119
      %p121 = scmp.eq.s32.totalorder %s120, 0
      %s123 = sadd.s32 %s122, 1
      %s124 = scalar_select %p121, %s122, %s123
      %p127 = pneg %p121
      %p128 = scmp.eq.s32.totalorder %s9, 3
      %p129 = por %p127, %p128
      %p130 = scmp.ne.s32.totalorder %s122, %s125
      %p131 = scmp.eq.s32.totalorder %s9, 0
      %p132 = por %p130, %p131
      %p133 = scmp.ne.s32.totalorder %s122, %s125
      %p134 = scmp.eq.s32.totalorder %s14, 3
      %p135 = por %p133, %p134
      %p136 = scmp.ne.s32.totalorder %s125, %s126
      %p137 = scmp.eq.s32.totalorder %s14, 0
      %p138 = por %p136, %p137
      %p139 = scmp.ne.s32.totalorder %s125, %s126
      %p140 = scmp.eq.s32.totalorder %s15, 3
      %p141 = por %p139, %p140
      %p143 = scmp.ne.s32.totalorder %s126, %s142
      %p144 = scmp.eq.s32.totalorder %s15, 0
      %p145 = por %p143, %p144
      %p146 = scmp.le.s32.totalorder 1, %s9
      %p147 = scmp.lt.s32.totalorder %s9, 5
      %p148 = pnand %p146, %p147
      %p149 = pneg %p148
      // Predicated region
      $region9: #{attention_forward.4} parent=5 // pred_check
        _
      $region10: #{attention_forward.4} parent=5 // pred_check_branch
        %151 = sbr.rel (%p148) target = $region12
      $region11: #{attention_forward.4} parent=5 // pred_region
        %s152 = ssub.s32 %s9, 1
      $region12: #{attention_forward.4} parent=5 // pred_fallthru
        _
      %p153 = scmp.lt.s32.totalorder %s9, 4
      // Predicated region
      $region13: #{attention_forward.4} parent=5 // pred_check
        %p154 = pneg %p153
      $region14: #{attention_forward.4} parent=5 // pred_check_branch
        %156 = sbr.rel (%p154) target = $region16
      $region15: #{attention_forward.4} parent=5 // pred_region
        // Predicated region
        $region17: #{attention_forward.4} parent=15 // pred_check
          %p157 = pneg %p50
        $region18: #{attention_forward.4} parent=15 // pred_check_branch
          %159 = sbr.rel (%p157) target = $region20
        $region19: #{attention_forward.4} parent=15 // pred_region
          %s160 = smul.u32 32, %s16
          %p161 = scmp.lt.s32.totalorder %s160, 63
          %s162 = scalar_select %p161, %s160, 63
          %p163 = scmp.lt.s32.totalorder %s18, 0
          %s164 = scalar_select %p163, %s18, 0
          %s165 = sadd.s32 %s164, %s162
          %s166 = smul.addr %s165, 4
          %s167 = scalar_lea.vmem %s0, %s166
          %s168 = smul.u32 32, %s16
        $region20: #{attention_forward.4} parent=15 // pred_fallthru
          _
        // Predicated region
        $region21: #{attention_forward.4} parent=15 // pred_check
          %p169 = pneg %p78
        $region22: #{attention_forward.4} parent=15 // pred_check_branch
          %171 = sbr.rel (%p169) target = $region24
        $region23: #{attention_forward.4} parent=15 // pred_region
          %s172 = sand.u32 %s68, 1
          %s173 = sand.u32 %s68, 1
          %s174 = smul.addr %s173, 256
          %s175 = scalar_lea.vmem [#allocation3], %s174
          %s176 = smul.u32 16, %s18
          %s177 = smul.u32 4, %s17
          %s178 = smul.addr %s176, 8
          %s179 = sadd.s32 %s177, %s178
          %s180 = smul.addr %s179, 4
          %s181 = scalar_lea.vmem %s1, %s180
          // Predicated region
          $region25: #{attention_forward.4} parent=23 // pred_check
            _
          $region26: #{attention_forward.4} parent=23 // pred_check_branch
            %183 = sbr.rel (0) target = $region28
          $region27: #{attention_forward.4} parent=23 // pred_region
            // Predicated region
            $region29: #{attention_forward.4} parent=27 // pred_check
              _
            $region30: #{attention_forward.4} parent=27 // pred_check_branch
              %185 = sbr.rel (0) target = $region32
            $region31: #{attention_forward.4} parent=27 // pred_region
              loop: start=0, step=1, limit=1
              $region33: #{attention_forward.4} parent=31 // loop_pre_header
                _
              $region34: #{attention_forward.4} parent=31 // loop_header
                %s187 = sphi 0, %s191
                %p188 = scmp.ge.s32.totalorder %s187, 1
                %s192 = sphi %s181, %s181
                %s193 = sphi %s175, %s175
              $region35: #{attention_forward.4} parent=31 // loop_header_branch
                %190 = sbr.rel (%p188) target = $region39
              $region36: #{attention_forward.4} parent=31 // loop_body
                %v194 = vld [vmem:[%s192] sm:$0xff]
                %195 = vst [vmem:[%s193] sm:$0xff] %v194
                %v196 = vld [vmem:[%s192 + $0x8] sm:$0xff]
                %197 = vst [vmem:[%s193 + $0x8] sm:$0xff] %v196
                %v198 = vld [vmem:[%s192 + $0x20] sm:$0xff]
                %199 = vst [vmem:[%s193 + $0x10] sm:$0xff] %v198
                %v200 = vld [vmem:[%s192 + $0x28] sm:$0xff]
                %201 = vst [vmem:[%s193 + $0x18] sm:$0xff] %v200
                %v202 = vld [vmem:[%s192 + $0x40] sm:$0xff]
                %203 = vst [vmem:[%s193 + $0x20] sm:$0xff] %v202
                %v204 = vld [vmem:[%s192 + $0x48] sm:$0xff]
                %205 = vst [vmem:[%s193 + $0x28] sm:$0xff] %v204
                %v206 = vld [vmem:[%s192 + $0x60] sm:$0xff]
                %207 = vst [vmem:[%s193 + $0x30] sm:$0xff] %v206
                %v208 = vld [vmem:[%s192 + $0x68] sm:$0xff]
                %209 = vst [vmem:[%s193 + $0x38] sm:$0xff] %v208
                %v210 = vld [vmem:[%s192 + $0x80] sm:$0xff]
                %211 = vst [vmem:[%s193 + $0x40] sm:$0xff] %v210
                %v212 = vld [vmem:[%s192 + $0x88] sm:$0xff]
                %213 = vst [vmem:[%s193 + $0x48] sm:$0xff] %v212
                %v214 = vld [vmem:[%s192 + $0xa0] sm:$0xff]
                %215 = vst [vmem:[%s193 + $0x50] sm:$0xff] %v214
                %v216 = vld [vmem:[%s192 + $0xa8] sm:$0xff]
                %217 = vst [vmem:[%s193 + $0x58] sm:$0xff] %v216
                %v218 = vld [vmem:[%s192 + $0xc0] sm:$0xff]
                %219 = vst [vmem:[%s193 + $0x60] sm:$0xff] %v218
                %v220 = vld [vmem:[%s192 + $0xc8] sm:$0xff]
                %221 = vst [vmem:[%s193 + $0x68] sm:$0xff] %v220
                %v222 = vld [vmem:[%s192 + $0xe0] sm:$0xff]
                %223 = vst [vmem:[%s193 + $0x70] sm:$0xff] %v222
                %v224 = vld [vmem:[%s192 + $0xe8] sm:$0xff]
                %225 = vst [vmem:[%s193 + $0x78] sm:$0xff] %v224
                %v226 = vld [vmem:[%s192 + $0x100] sm:$0xff]
                %227 = vst [vmem:[%s193 + $0x80] sm:$0xff] %v226
                %v228 = vld [vmem:[%s192 + $0x108] sm:$0xff]
                %229 = vst [vmem:[%s193 + $0x88] sm:$0xff] %v228
                %v230 = vld [vmem:[%s192 + $0x120] sm:$0xff]
                %231 = vst [vmem:[%s193 + $0x90] sm:$0xff] %v230
                %v232 = vld [vmem:[%s192 + $0x128] sm:$0xff]
                %233 = vst [vmem:[%s193 + $0x98] sm:$0xff] %v232
                %v234 = vld [vmem:[%s192 + $0x140] sm:$0xff]
                %235 = vst [vmem:[%s193 + $0xa0] sm:$0xff] %v234
                %v236 = vld [vmem:[%s192 + $0x148] sm:$0xff]
                %237 = vst [vmem:[%s193 + $0xa8] sm:$0xff] %v236
                %v238 = vld [vmem:[%s192 + $0x160] sm:$0xff]
                %239 = vst [vmem:[%s193 + $0xb0] sm:$0xff] %v238
                %v240 = vld [vmem:[%s192 + $0x168] sm:$0xff]
                %241 = vst [vmem:[%s193 + $0xb8] sm:$0xff] %v240
                %v242 = vld [vmem:[%s192 + $0x180] sm:$0xff]
                %243 = vst [vmem:[%s193 + $0xc0] sm:$0xff] %v242
                %v244 = vld [vmem:[%s192 + $0x188] sm:$0xff]
                %245 = vst [vmem:[%s193 + $0xc8] sm:$0xff] %v244
                %v246 = vld [vmem:[%s192 + $0x1a0] sm:$0xff]
                %247 = vst [vmem:[%s193 + $0xd0] sm:$0xff] %v246
                %v248 = vld [vmem:[%s192 + $0x1a8] sm:$0xff]
                %249 = vst [vmem:[%s193 + $0xd8] sm:$0xff] %v248
                %v250 = vld [vmem:[%s192 + $0x1c0] sm:$0xff]
                %251 = vst [vmem:[%s193 + $0xe0] sm:$0xff] %v250
                %v252 = vld [vmem:[%s192 + $0x1c8] sm:$0xff]
                %253 = vst [vmem:[%s193 + $0xe8] sm:$0xff] %v252
                %v254 = vld [vmem:[%s192 + $0x1e0] sm:$0xff]
                %255 = vst [vmem:[%s193 + $0xf0] sm:$0xff] %v254
                %v256 = vld [vmem:[%s192 + $0x1e8] sm:$0xff]
                %257 = vst [vmem:[%s193 + $0xf8] sm:$0xff] %v256
              $region37: #{attention_forward.4} parent=31 // loop_footer
                %s191 = sadd.s32 1, %s187
              $region38: #{attention_forward.4} parent=31 // loop_footer_branch
                %186 = sbr.rel target = $region34
              $region39: #{attention_forward.4} parent=31 // loop_exit
                _
            $region32: #{attention_forward.4} parent=27 // pred_fallthru
              _
            // Predicated region
            $region40: #{attention_forward.4} parent=27 // pred_check
              _
            $region41: #{attention_forward.4} parent=27 // pred_check_branch
              %259 = sbr.rel target = $region43
            $region42: #{attention_forward.4} parent=27 // pred_region
              _
            $region43: #{attention_forward.4} parent=27 // pred_fallthru
              _
          $region28: #{attention_forward.4} parent=23 // pred_fallthru
            _
          %260 = vnop
        $region24: #{attention_forward.4} parent=15 // pred_fallthru
          _
        // Predicated region
        $region44: #{attention_forward.4} parent=15 // pred_check
          %p261 = pneg %p104
        $region45: #{attention_forward.4} parent=15 // pred_check_branch
          %263 = sbr.rel (%p261) target = $region47
        $region46: #{attention_forward.4} parent=15 // pred_region
          %s264 = smul.u32 4, %s17
          %p265 = scmp.lt.s32.totalorder %s264, 7
          %s266 = scalar_select %p265, %s264, 7
          %s267 = scalar_lea.vmem %s2, %s266
          %s268 = smul.u32 4, %s17
        $region47: #{attention_forward.4} parent=15 // pred_fallthru
          _
      $region16: #{attention_forward.4} parent=5 // pred_fallthru
        _
      %p269 = scmp.le.s32.totalorder 1, %s9
      %p270 = scmp.lt.s32.totalorder %s9, 5
      %p271 = pnand %p269, %p270
      %p272 = pneg %p271
      // Predicated region
      $region48: #{attention_forward.4} parent=5 // pred_check
        _
      $region49: #{attention_forward.4} parent=5 // pred_check_branch
        %274 = sbr.rel (%p271) target = $region51
      $region50: #{attention_forward.4} parent=5 // pred_region
        %s275 = ssub.s32 %s9, 1
        %s276 = sand.u32 %s71, 1
        %s277 = sand.u32 %s71, 1
        %s278 = smul.addr %s277, 256
        %s279 = scalar_lea.vmem [#allocation3], %s278
        // Predicated region
        $region52: #{attention_forward.4} parent=50 // pred_check
          %p280 = pneg %p84
        $region53: #{attention_forward.4} parent=50 // pred_check_branch
          %282 = sbr.rel (%p280) target = $region55
        $region54: #{attention_forward.4} parent=50 // pred_region
          _
        $region55: #{attention_forward.4} parent=50 // pred_fallthru
          _
        %s283 = smul.u32 32, %s19
        %p284 = scmp.lt.s32.totalorder %s283, 63
        %s285 = scalar_select %p284, %s283, 63
        %p286 = scmp.lt.s32.totalorder %s21, 0
        %s287 = scalar_select %p286, %s21, 0
        %s288 = sadd.s32 %s287, %s285
        %s289 = smul.addr %s288, 4
        %s290 = scalar_lea.vmem %s0, %s289
        %p291 = pneg %p56
        %p292 = pneg %p53
        %s293 = sand.u32 %s71, 1
        %s294 = sand.u32 %s71, 1
        %s295 = smul.addr %s294, 256
        %s296 = scalar_lea.vmem [#allocation3], %s295
        %p297 = pneg %p84
        %p298 = pneg %p81
        %s299 = smul.u32 4, %s20
        %p300 = scmp.lt.s32.totalorder %s299, 7
        %s301 = scalar_select %p300, %s299, 7
        %s302 = scalar_lea.vmem %s2, %s301
        %p303 = pneg %p110
        %p304 = pneg %p107
        %p305 = pneg %p138
        %p306 = pneg %p135
        %s307 = sand.u32 %s125, 1
        %s308 = sand.u32 %s125, 1
        %s309 = smul.addr %s308, 1024
        %s310 = scalar_lea.vmem [#allocation4], %s309
        %s311 = smul.u32 32, %s19
        %p312 = scmp.lt.s32.totalorder %s311, 63
        %s313 = scalar_select %p312, %s311, 63
        %p314 = scmp.lt.s32.totalorder %s21, 0
        %s315 = scalar_select %p314, %s21, 0
        %s316 = sadd.s32 %s315, %s313
        %s317 = smul.addr %s316, 4
        %s318 = scalar_lea.vmem %s0, %s317
        %s319 = smul.u32 32, %s19
        %s320 = smul.u32 16, %s21
        %s321 = smul.u32 4, %s20
        %s322 = smul.u32 4, %s20
        %p323 = scmp.lt.s32.totalorder %s322, 7
        %s324 = scalar_select %p323, %s322, 7
        %s325 = scalar_lea.vmem %s2, %s324
        %s326 = smul.u32 4, %s20
        %s327 = smul.u32 32, %s19
        %s328 = smul.u32 4, %s20
        %p330 = scmp.eq.s32.totalorder %s21, 0
        // Predicated region
        $region56: #{attention_forward.4} parent=50 // pred_check
          %p331 = pneg %p330
        $region57: #{attention_forward.4} parent=50 // pred_check_branch
          %333 = sbr.rel (%p331) target = $region59
        $region58: #{attention_forward.4} parent=50 // pred_region
          %334 = vst [vmem:[#allocation2] sm:$0xff] 0.0
          %335 = vst [vmem:[#allocation2 + $0x8] sm:$0xff] 0.0
          %336 = vst [vmem:[#allocation2 + $0x10] sm:$0xff] 0.0
          %337 = vst [vmem:[#allocation2 + $0x18] sm:$0xff] 0.0
          %338 = vst [vmem:[#allocation2 + $0x20] sm:$0xff] 0.0
          %339 = vst [vmem:[#allocation2 + $0x28] sm:$0xff] 0.0
          %340 = vst [vmem:[#allocation2 + $0x30] sm:$0xff] 0.0
          %341 = vst [vmem:[#allocation2 + $0x38] sm:$0xff] 0.0
          %342 = vst [vmem:[#allocation2 + $0x40] sm:$0xff] 0.0
          %343 = vst [vmem:[#allocation2 + $0x48] sm:$0xff] 0.0
          %344 = vst [vmem:[#allocation2 + $0x50] sm:$0xff] 0.0
          %345 = vst [vmem:[#allocation2 + $0x58] sm:$0xff] 0.0
          %346 = vst [vmem:[#allocation2 + $0x60] sm:$0xff] 0.0
          %347 = vst [vmem:[#allocation2 + $0x68] sm:$0xff] 0.0
          %348 = vst [vmem:[#allocation2 + $0x70] sm:$0xff] 0.0
          %349 = vst [vmem:[#allocation2 + $0x78] sm:$0xff] 0.0
          %350 = vst [vmem:[#allocation2 + $0x80] sm:$0xff] 0.0
          %351 = vst [vmem:[#allocation2 + $0x88] sm:$0xff] 0.0
          %352 = vst [vmem:[#allocation2 + $0x90] sm:$0xff] 0.0
          %353 = vst [vmem:[#allocation2 + $0x98] sm:$0xff] 0.0
          %354 = vst [vmem:[#allocation2 + $0xa0] sm:$0xff] 0.0
          %355 = vst [vmem:[#allocation2 + $0xa8] sm:$0xff] 0.0
          %356 = vst [vmem:[#allocation2 + $0xb0] sm:$0xff] 0.0
          %357 = vst [vmem:[#allocation2 + $0xb8] sm:$0xff] 0.0
          %358 = vst [vmem:[#allocation2 + $0xc0] sm:$0xff] 0.0
          %359 = vst [vmem:[#allocation2 + $0xc8] sm:$0xff] 0.0
          %360 = vst [vmem:[#allocation2 + $0xd0] sm:$0xff] 0.0
          %361 = vst [vmem:[#allocation2 + $0xd8] sm:$0xff] 0.0
          %362 = vst [vmem:[#allocation2 + $0xe0] sm:$0xff] 0.0
          %363 = vst [vmem:[#allocation2 + $0xe8] sm:$0xff] 0.0
          %364 = vst [vmem:[#allocation2 + $0xf0] sm:$0xff] 0.0
          %365 = vst [vmem:[#allocation2 + $0xf8] sm:$0xff] 0.0
          %366 = vst [vmem:[#allocation2 + $0x100] sm:$0xff] 0.0
          %367 = vst [vmem:[#allocation2 + $0x108] sm:$0xff] 0.0
          %368 = vst [vmem:[#allocation2 + $0x110] sm:$0xff] 0.0
          %369 = vst [vmem:[#allocation2 + $0x118] sm:$0xff] 0.0
          %370 = vst [vmem:[#allocation2 + $0x120] sm:$0xff] 0.0
          %371 = vst [vmem:[#allocation2 + $0x128] sm:$0xff] 0.0
          %372 = vst [vmem:[#allocation2 + $0x130] sm:$0xff] 0.0
          %373 = vst [vmem:[#allocation2 + $0x138] sm:$0xff] 0.0
          %374 = vst [vmem:[#allocation2 + $0x140] sm:$0xff] 0.0
          %375 = vst [vmem:[#allocation2 + $0x148] sm:$0xff] 0.0
          %376 = vst [vmem:[#allocation2 + $0x150] sm:$0xff] 0.0
          %377 = vst [vmem:[#allocation2 + $0x158] sm:$0xff] 0.0
          %378 = vst [vmem:[#allocation2 + $0x160] sm:$0xff] 0.0
          %379 = vst [vmem:[#allocation2 + $0x168] sm:$0xff] 0.0
          %380 = vst [vmem:[#allocation2 + $0x170] sm:$0xff] 0.0
          %381 = vst [vmem:[#allocation2 + $0x178] sm:$0xff] 0.0
          %382 = vst [vmem:[#allocation2 + $0x180] sm:$0xff] 0.0
          %383 = vst [vmem:[#allocation2 + $0x188] sm:$0xff] 0.0
          %384 = vst [vmem:[#allocation2 + $0x190] sm:$0xff] 0.0
          %385 = vst [vmem:[#allocation2 + $0x198] sm:$0xff] 0.0
          %386 = vst [vmem:[#allocation2 + $0x1a0] sm:$0xff] 0.0
          %387 = vst [vmem:[#allocation2 + $0x1a8] sm:$0xff] 0.0
          %388 = vst [vmem:[#allocation2 + $0x1b0] sm:$0xff] 0.0
          %389 = vst [vmem:[#allocation2 + $0x1b8] sm:$0xff] 0.0
          %390 = vst [vmem:[#allocation2 + $0x1c0] sm:$0xff] 0.0
          %391 = vst [vmem:[#allocation2 + $0x1c8] sm:$0xff] 0.0
          %392 = vst [vmem:[#allocation2 + $0x1d0] sm:$0xff] 0.0
          %393 = vst [vmem:[#allocation2 + $0x1d8] sm:$0xff] 0.0
          %394 = vst [vmem:[#allocation2 + $0x1e0] sm:$0xff] 0.0
          %395 = vst [vmem:[#allocation2 + $0x1e8] sm:$0xff] 0.0
          %396 = vst [vmem:[#allocation2 + $0x1f0] sm:$0xff] 0.0
          %397 = vst [vmem:[#allocation2 + $0x1f8] sm:$0xff] 0.0
          %398 = vst [vmem:[#allocation2 + $0x200] sm:$0xff] 0.0
          %399 = vst [vmem:[#allocation2 + $0x208] sm:$0xff] 0.0
          %400 = vst [vmem:[#allocation2 + $0x210] sm:$0xff] 0.0
          %401 = vst [vmem:[#allocation2 + $0x218] sm:$0xff] 0.0
          %402 = vst [vmem:[#allocation2 + $0x220] sm:$0xff] 0.0
          %403 = vst [vmem:[#allocation2 + $0x228] sm:$0xff] 0.0
          %404 = vst [vmem:[#allocation2 + $0x230] sm:$0xff] 0.0
          %405 = vst [vmem:[#allocation2 + $0x238] sm:$0xff] 0.0
          %406 = vst [vmem:[#allocation2 + $0x240] sm:$0xff] 0.0
          %407 = vst [vmem:[#allocation2 + $0x248] sm:$0xff] 0.0
          %408 = vst [vmem:[#allocation2 + $0x250] sm:$0xff] 0.0
          %409 = vst [vmem:[#allocation2 + $0x258] sm:$0xff] 0.0
          %410 = vst [vmem:[#allocation2 + $0x260] sm:$0xff] 0.0
          %411 = vst [vmem:[#allocation2 + $0x268] sm:$0xff] 0.0
          %412 = vst [vmem:[#allocation2 + $0x270] sm:$0xff] 0.0
          %413 = vst [vmem:[#allocation2 + $0x278] sm:$0xff] 0.0
          %414 = vst [vmem:[#allocation2 + $0x280] sm:$0xff] 0.0
          %415 = vst [vmem:[#allocation2 + $0x288] sm:$0xff] 0.0
          %416 = vst [vmem:[#allocation2 + $0x290] sm:$0xff] 0.0
          %417 = vst [vmem:[#allocation2 + $0x298] sm:$0xff] 0.0
          %418 = vst [vmem:[#allocation2 + $0x2a0] sm:$0xff] 0.0
          %419 = vst [vmem:[#allocation2 + $0x2a8] sm:$0xff] 0.0
          %420 = vst [vmem:[#allocation2 + $0x2b0] sm:$0xff] 0.0
          %421 = vst [vmem:[#allocation2 + $0x2b8] sm:$0xff] 0.0
          %422 = vst [vmem:[#allocation2 + $0x2c0] sm:$0xff] 0.0
          %423 = vst [vmem:[#allocation2 + $0x2c8] sm:$0xff] 0.0
          %424 = vst [vmem:[#allocation2 + $0x2d0] sm:$0xff] 0.0
          %425 = vst [vmem:[#allocation2 + $0x2d8] sm:$0xff] 0.0
          %426 = vst [vmem:[#allocation2 + $0x2e0] sm:$0xff] 0.0
          %427 = vst [vmem:[#allocation2 + $0x2e8] sm:$0xff] 0.0
          %428 = vst [vmem:[#allocation2 + $0x2f0] sm:$0xff] 0.0
          %429 = vst [vmem:[#allocation2 + $0x2f8] sm:$0xff] 0.0
          %430 = vst [vmem:[#allocation2 + $0x300] sm:$0xff] 0.0
          %431 = vst [vmem:[#allocation2 + $0x308] sm:$0xff] 0.0
          %432 = vst [vmem:[#allocation2 + $0x310] sm:$0xff] 0.0
          %433 = vst [vmem:[#allocation2 + $0x318] sm:$0xff] 0.0
          %434 = vst [vmem:[#allocation2 + $0x320] sm:$0xff] 0.0
          %435 = vst [vmem:[#allocation2 + $0x328] sm:$0xff] 0.0
          %436 = vst [vmem:[#allocation2 + $0x330] sm:$0xff] 0.0
          %437 = vst [vmem:[#allocation2 + $0x338] sm:$0xff] 0.0
          %438 = vst [vmem:[#allocation2 + $0x340] sm:$0xff] 0.0
          %439 = vst [vmem:[#allocation2 + $0x348] sm:$0xff] 0.0
          %440 = vst [vmem:[#allocation2 + $0x350] sm:$0xff] 0.0
          %441 = vst [vmem:[#allocation2 + $0x358] sm:$0xff] 0.0
          %442 = vst [vmem:[#allocation2 + $0x360] sm:$0xff] 0.0
          %443 = vst [vmem:[#allocation2 + $0x368] sm:$0xff] 0.0
          %444 = vst [vmem:[#allocation2 + $0x370] sm:$0xff] 0.0
          %445 = vst [vmem:[#allocation2 + $0x378] sm:$0xff] 0.0
          %446 = vst [vmem:[#allocation2 + $0x380] sm:$0xff] 0.0
          %447 = vst [vmem:[#allocation2 + $0x388] sm:$0xff] 0.0
          %448 = vst [vmem:[#allocation2 + $0x390] sm:$0xff] 0.0
          %449 = vst [vmem:[#allocation2 + $0x398] sm:$0xff] 0.0
          %450 = vst [vmem:[#allocation2 + $0x3a0] sm:$0xff] 0.0
          %451 = vst [vmem:[#allocation2 + $0x3a8] sm:$0xff] 0.0
          %452 = vst [vmem:[#allocation2 + $0x3b0] sm:$0xff] 0.0
          %453 = vst [vmem:[#allocation2 + $0x3b8] sm:$0xff] 0.0
          %454 = vst [vmem:[#allocation2 + $0x3c0] sm:$0xff] 0.0
          %455 = vst [vmem:[#allocation2 + $0x3c8] sm:$0xff] 0.0
          %456 = vst [vmem:[#allocation2 + $0x3d0] sm:$0xff] 0.0
          %457 = vst [vmem:[#allocation2 + $0x3d8] sm:$0xff] 0.0
          %458 = vst [vmem:[#allocation2 + $0x3e0] sm:$0xff] 0.0
          %459 = vst [vmem:[#allocation2 + $0x3e8] sm:$0xff] 0.0
          %460 = vst [vmem:[#allocation2 + $0x3f0] sm:$0xff] 0.0
          %461 = vst [vmem:[#allocation2 + $0x3f8] sm:$0xff] 0.0
        $region59: #{attention_forward.4} parent=50 // pred_fallthru
          _
        %v462 = vld [vmem:[#allocation2] sm:$0xff]
        %v463 = vld [vmem:[#allocation2 + $0x8] sm:$0xff]
        %v464 = vld [vmem:[#allocation2 + $0x10] sm:$0xff]
        %v465 = vld [vmem:[#allocation2 + $0x18] sm:$0xff]
        %v466 = vld [vmem:[#allocation2 + $0x20] sm:$0xff]
        %v467 = vld [vmem:[#allocation2 + $0x28] sm:$0xff]
        %v468 = vld [vmem:[#allocation2 + $0x30] sm:$0xff]
        %v469 = vld [vmem:[#allocation2 + $0x38] sm:$0xff]
        %v470 = vld [vmem:[#allocation2 + $0x40] sm:$0xff]
        %v471 = vld [vmem:[#allocation2 + $0x48] sm:$0xff]
        %v472 = vld [vmem:[#allocation2 + $0x50] sm:$0xff]
        %v473 = vld [vmem:[#allocation2 + $0x58] sm:$0xff]
        %v474 = vld [vmem:[#allocation2 + $0x60] sm:$0xff]
        %v475 = vld [vmem:[#allocation2 + $0x68] sm:$0xff]
        %v476 = vld [vmem:[#allocation2 + $0x70] sm:$0xff]
        %v477 = vld [vmem:[#allocation2 + $0x78] sm:$0xff]
        %v478 = vld [vmem:[#allocation2 + $0x80] sm:$0xff]
        %v479 = vld [vmem:[#allocation2 + $0x88] sm:$0xff]
        %v480 = vld [vmem:[#allocation2 + $0x90] sm:$0xff]
        %v481 = vld [vmem:[#allocation2 + $0x98] sm:$0xff]
        %v482 = vld [vmem:[#allocation2 + $0xa0] sm:$0xff]
        %v483 = vld [vmem:[#allocation2 + $0xa8] sm:$0xff]
        %v484 = vld [vmem:[#allocation2 + $0xb0] sm:$0xff]
        %v485 = vld [vmem:[#allocation2 + $0xb8] sm:$0xff]
        %v486 = vld [vmem:[#allocation2 + $0xc0] sm:$0xff]
        %v487 = vld [vmem:[#allocation2 + $0xc8] sm:$0xff]
        %v488 = vld [vmem:[#allocation2 + $0xd0] sm:$0xff]
        %v489 = vld [vmem:[#allocation2 + $0xd8] sm:$0xff]
        %v490 = vld [vmem:[#allocation2 + $0xe0] sm:$0xff]
        %v491 = vld [vmem:[#allocation2 + $0xe8] sm:$0xff]
        %v492 = vld [vmem:[#allocation2 + $0xf0] sm:$0xff]
        %v493 = vld [vmem:[#allocation2 + $0xf8] sm:$0xff]
        %v494 = vld [vmem:[#allocation2 + $0x100] sm:$0xff]
        %v495 = vld [vmem:[#allocation2 + $0x108] sm:$0xff]
        %v496 = vld [vmem:[#allocation2 + $0x110] sm:$0xff]
        %v497 = vld [vmem:[#allocation2 + $0x118] sm:$0xff]
        %v498 = vld [vmem:[#allocation2 + $0x120] sm:$0xff]
        %v499 = vld [vmem:[#allocation2 + $0x128] sm:$0xff]
        %v500 = vld [vmem:[#allocation2 + $0x130] sm:$0xff]
        %v501 = vld [vmem:[#allocation2 + $0x138] sm:$0xff]
        %v502 = vld [vmem:[#allocation2 + $0x140] sm:$0xff]
        %v503 = vld [vmem:[#allocation2 + $0x148] sm:$0xff]
        %v504 = vld [vmem:[#allocation2 + $0x150] sm:$0xff]
        %v505 = vld [vmem:[#allocation2 + $0x158] sm:$0xff]
        %v506 = vld [vmem:[#allocation2 + $0x160] sm:$0xff]
        %v507 = vld [vmem:[#allocation2 + $0x168] sm:$0xff]
        %v508 = vld [vmem:[#allocation2 + $0x170] sm:$0xff]
        %v509 = vld [vmem:[#allocation2 + $0x178] sm:$0xff]
        %v510 = vld [vmem:[#allocation2 + $0x180] sm:$0xff]
        %v511 = vld [vmem:[#allocation2 + $0x188] sm:$0xff]
        %v512 = vld [vmem:[#allocation2 + $0x190] sm:$0xff]
        %v513 = vld [vmem:[#allocation2 + $0x198] sm:$0xff]
        %v514 = vld [vmem:[#allocation2 + $0x1a0] sm:$0xff]
        %v515 = vld [vmem:[#allocation2 + $0x1a8] sm:$0xff]
        %v516 = vld [vmem:[#allocation2 + $0x1b0] sm:$0xff]
        %v517 = vld [vmem:[#allocation2 + $0x1b8] sm:$0xff]
        %v518 = vld [vmem:[#allocation2 + $0x1c0] sm:$0xff]
        %v519 = vld [vmem:[#allocation2 + $0x1c8] sm:$0xff]
        %v520 = vld [vmem:[#allocation2 + $0x1d0] sm:$0xff]
        %v521 = vld [vmem:[#allocation2 + $0x1d8] sm:$0xff]
        %v522 = vld [vmem:[#allocation2 + $0x1e0] sm:$0xff]
        %v523 = vld [vmem:[#allocation2 + $0x1e8] sm:$0xff]
        %v524 = vld [vmem:[#allocation2 + $0x1f0] sm:$0xff]
        %v525 = vld [vmem:[#allocation2 + $0x1f8] sm:$0xff]
        %v526 = vld [vmem:[#allocation2 + $0x200] sm:$0xff]
        %v527 = vld [vmem:[#allocation2 + $0x208] sm:$0xff]
        %v528 = vld [vmem:[#allocation2 + $0x210] sm:$0xff]
        %v529 = vld [vmem:[#allocation2 + $0x218] sm:$0xff]
        %v530 = vld [vmem:[#allocation2 + $0x220] sm:$0xff]
        %v531 = vld [vmem:[#allocation2 + $0x228] sm:$0xff]
        %v532 = vld [vmem:[#allocation2 + $0x230] sm:$0xff]
        %v533 = vld [vmem:[#allocation2 + $0x238] sm:$0xff]
        %v534 = vld [vmem:[#allocation2 + $0x240] sm:$0xff]
        %v535 = vld [vmem:[#allocation2 + $0x248] sm:$0xff]
        %v536 = vld [vmem:[#allocation2 + $0x250] sm:$0xff]
        %v537 = vld [vmem:[#allocation2 + $0x258] sm:$0xff]
        %v538 = vld [vmem:[#allocation2 + $0x260] sm:$0xff]
        %v539 = vld [vmem:[#allocation2 + $0x268] sm:$0xff]
        %v540 = vld [vmem:[#allocation2 + $0x270] sm:$0xff]
        %v541 = vld [vmem:[#allocation2 + $0x278] sm:$0xff]
        %v542 = vld [vmem:[#allocation2 + $0x280] sm:$0xff]
        %v543 = vld [vmem:[#allocation2 + $0x288] sm:$0xff]
        %v544 = vld [vmem:[#allocation2 + $0x290] sm:$0xff]
        %v545 = vld [vmem:[#allocation2 + $0x298] sm:$0xff]
        %v546 = vld [vmem:[#allocation2 + $0x2a0] sm:$0xff]
        %v547 = vld [vmem:[#allocation2 + $0x2a8] sm:$0xff]
        %v548 = vld [vmem:[#allocation2 + $0x2b0] sm:$0xff]
        %v549 = vld [vmem:[#allocation2 + $0x2b8] sm:$0xff]
        %v550 = vld [vmem:[#allocation2 + $0x2c0] sm:$0xff]
        %v551 = vld [vmem:[#allocation2 + $0x2c8] sm:$0xff]
        %v552 = vld [vmem:[#allocation2 + $0x2d0] sm:$0xff]
        %v553 = vld [vmem:[#allocation2 + $0x2d8] sm:$0xff]
        %v554 = vld [vmem:[#allocation2 + $0x2e0] sm:$0xff]
        %v555 = vld [vmem:[#allocation2 + $0x2e8] sm:$0xff]
        %v556 = vld [vmem:[#allocation2 + $0x2f0] sm:$0xff]
        %v557 = vld [vmem:[#allocation2 + $0x2f8] sm:$0xff]
        %v558 = vld [vmem:[#allocation2 + $0x300] sm:$0xff]
        %v559 = vld [vmem:[#allocation2 + $0x308] sm:$0xff]
        %v560 = vld [vmem:[#allocation2 + $0x310] sm:$0xff]
        %v561 = vld [vmem:[#allocation2 + $0x318] sm:$0xff]
        %v562 = vld [vmem:[#allocation2 + $0x320] sm:$0xff]
        %v563 = vld [vmem:[#allocation2 + $0x328] sm:$0xff]
        %v564 = vld [vmem:[#allocation2 + $0x330] sm:$0xff]
        %v565 = vld [vmem:[#allocation2 + $0x338] sm:$0xff]
        %v566 = vld [vmem:[#allocation2 + $0x340] sm:$0xff]
        %v567 = vld [vmem:[#allocation2 + $0x348] sm:$0xff]
        %v568 = vld [vmem:[#allocation2 + $0x350] sm:$0xff]
        %v569 = vld [vmem:[#allocation2 + $0x358] sm:$0xff]
        %v570 = vld [vmem:[#allocation2 + $0x360] sm:$0xff]
        %v571 = vld [vmem:[#allocation2 + $0x368] sm:$0xff]
        %v572 = vld [vmem:[#allocation2 + $0x370] sm:$0xff]
        %v573 = vld [vmem:[#allocation2 + $0x378] sm:$0xff]
        %v574 = vld [vmem:[#allocation2 + $0x380] sm:$0xff]
        %v575 = vld [vmem:[#allocation2 + $0x388] sm:$0xff]
        %v576 = vld [vmem:[#allocation2 + $0x390] sm:$0xff]
        %v577 = vld [vmem:[#allocation2 + $0x398] sm:$0xff]
        %v578 = vld [vmem:[#allocation2 + $0x3a0] sm:$0xff]
        %v579 = vld [vmem:[#allocation2 + $0x3a8] sm:$0xff]
        %v580 = vld [vmem:[#allocation2 + $0x3b0] sm:$0xff]
        %v581 = vld [vmem:[#allocation2 + $0x3b8] sm:$0xff]
        %v582 = vld [vmem:[#allocation2 + $0x3c0] sm:$0xff]
        %v583 = vld [vmem:[#allocation2 + $0x3c8] sm:$0xff]
        %v584 = vld [vmem:[#allocation2 + $0x3d0] sm:$0xff]
        %v585 = vld [vmem:[#allocation2 + $0x3d8] sm:$0xff]
        %v586 = vld [vmem:[#allocation2 + $0x3e0] sm:$0xff]
        %v587 = vld [vmem:[#allocation2 + $0x3e8] sm:$0xff]
        %v588 = vld [vmem:[#allocation2 + $0x3f0] sm:$0xff]
        %v589 = vld [vmem:[#allocation2 + $0x3f8] sm:$0xff]
        %v590 = vld [vmem:[%s318] sm:$0xf]
        %v591 = vld [vmem:[%s318 + $0x4] sm:$0xf]
        %v592 = vld [vmem:[%s318 + $0x8] sm:$0xf]
        %v593 = vld [vmem:[%s318 + $0xc] sm:$0xf]
        %v594 = vld [vmem:[%s318 + $0x10] sm:$0xf]
        %v595 = vld [vmem:[%s318 + $0x14] sm:$0xf]
        %v596 = vld [vmem:[%s318 + $0x18] sm:$0xf]
        %v597 = vld [vmem:[%s318 + $0x1c] sm:$0xf]
        %v598 = vld [vmem:[%s318 + $0x20] sm:$0xf]
        %v599 = vld [vmem:[%s318 + $0x24] sm:$0xf]
        %v600 = vld [vmem:[%s318 + $0x28] sm:$0xf]
        %v601 = vld [vmem:[%s318 + $0x2c] sm:$0xf]
        %v602 = vld [vmem:[%s318 + $0x30] sm:$0xf]
        %v603 = vld [vmem:[%s318 + $0x34] sm:$0xf]
        %v604 = vld [vmem:[%s318 + $0x38] sm:$0xf]
        %v605 = vld [vmem:[%s318 + $0x3c] sm:$0xf]
        %v606 = vld [vmem:[%s318 + $0x40] sm:$0xf]
        %v607 = vld [vmem:[%s318 + $0x44] sm:$0xf]
        %v608 = vld [vmem:[%s318 + $0x48] sm:$0xf]
        %v609 = vld [vmem:[%s318 + $0x4c] sm:$0xf]
        %v610 = vld [vmem:[%s318 + $0x50] sm:$0xf]
        %v611 = vld [vmem:[%s318 + $0x54] sm:$0xf]
        %v612 = vld [vmem:[%s318 + $0x58] sm:$0xf]
        %v613 = vld [vmem:[%s318 + $0x5c] sm:$0xf]
        %v614 = vld [vmem:[%s318 + $0x60] sm:$0xf]
        %v615 = vld [vmem:[%s318 + $0x64] sm:$0xf]
        %v616 = vld [vmem:[%s318 + $0x68] sm:$0xf]
        %v617 = vld [vmem:[%s318 + $0x6c] sm:$0xf]
        %v618 = vld [vmem:[%s318 + $0x70] sm:$0xf]
        %v619 = vld [vmem:[%s318 + $0x74] sm:$0xf]
        %v620 = vld [vmem:[%s318 + $0x78] sm:$0xf]
        %v621 = vld [vmem:[%s318 + $0x7c] sm:$0xf]
        %v622 = vld [vmem:[%s279] sm:$0xff]
        %v623 = vld [vmem:[%s279 + $0x8] sm:$0xff]
        %v624 = vld [vmem:[%s279 + $0x10] sm:$0xff]
        %v625 = vld [vmem:[%s279 + $0x18] sm:$0xff]
        %v626 = vld [vmem:[%s279 + $0x20] sm:$0xff]
        %v627 = vld [vmem:[%s279 + $0x28] sm:$0xff]
        %v628 = vld [vmem:[%s279 + $0x30] sm:$0xff]
        %v629 = vld [vmem:[%s279 + $0x38] sm:$0xff]
        %v630 = vld [vmem:[%s279 + $0x40] sm:$0xff]
        %v631 = vld [vmem:[%s279 + $0x48] sm:$0xff]
        %v632 = vld [vmem:[%s279 + $0x50] sm:$0xff]
        %v633 = vld [vmem:[%s279 + $0x58] sm:$0xff]
        %v634 = vld [vmem:[%s279 + $0x60] sm:$0xff]
        %v635 = vld [vmem:[%s279 + $0x68] sm:$0xff]
        %v636 = vld [vmem:[%s279 + $0x70] sm:$0xff]
        %v637 = vld [vmem:[%s279 + $0x78] sm:$0xff]
        %v638 = vld [vmem:[%s279 + $0x80] sm:$0xff]
        %v639 = vld [vmem:[%s279 + $0x88] sm:$0xff]
        %v640 = vld [vmem:[%s279 + $0x90] sm:$0xff]
        %v641 = vld [vmem:[%s279 + $0x98] sm:$0xff]
        %v642 = vld [vmem:[%s279 + $0xa0] sm:$0xff]
        %v643 = vld [vmem:[%s279 + $0xa8] sm:$0xff]
        %v644 = vld [vmem:[%s279 + $0xb0] sm:$0xff]
        %v645 = vld [vmem:[%s279 + $0xb8] sm:$0xff]
        %v646 = vld [vmem:[%s279 + $0xc0] sm:$0xff]
        %v647 = vld [vmem:[%s279 + $0xc8] sm:$0xff]
        %v648 = vld [vmem:[%s279 + $0xd0] sm:$0xff]
        %v649 = vld [vmem:[%s279 + $0xd8] sm:$0xff]
        %v650 = vld [vmem:[%s279 + $0xe0] sm:$0xff]
        %v651 = vld [vmem:[%s279 + $0xe8] sm:$0xff]
        %v652 = vld [vmem:[%s279 + $0xf0] sm:$0xff]
        %v653 = vld [vmem:[%s279 + $0xf8] sm:$0xff]
        %v686 = vunpack.c.l.b16 %v590
        %v687 = vunpack.c.l.b16 %v591
        %v688 = vunpack.c.l.b16 %v592
        %v689 = vunpack.c.l.b16 %v593
        %v690 = vunpack.c.l.b16 %v594
        %v691 = vunpack.c.l.b16 %v595
        %v692 = vunpack.c.l.b16 %v596
        %v693 = vunpack.c.l.b16 %v597
        %v694 = vunpack.c.l.b16 %v598
        %v695 = vunpack.c.l.b16 %v599
        %v696 = vunpack.c.l.b16 %v600
        %v697 = vunpack.c.l.b16 %v601
        %v698 = vunpack.c.l.b16 %v602
        %v699 = vunpack.c.l.b16 %v603
        %v700 = vunpack.c.l.b16 %v604
        %v701 = vunpack.c.l.b16 %v605
        %v702 = vunpack.c.l.b16 %v606
        %v703 = vunpack.c.l.b16 %v607
        %v704 = vunpack.c.l.b16 %v608
        %v705 = vunpack.c.l.b16 %v609
        %v706 = vunpack.c.l.b16 %v610
        %v707 = vunpack.c.l.b16 %v611
        %v708 = vunpack.c.l.b16 %v612
        %v709 = vunpack.c.l.b16 %v613
        %v710 = vunpack.c.l.b16 %v614
        %v711 = vunpack.c.l.b16 %v615
        %v712 = vunpack.c.l.b16 %v616
        %v713 = vunpack.c.l.b16 %v617
        %v714 = vunpack.c.l.b16 %v618
        %v715 = vunpack.c.l.b16 %v619
        %v716 = vunpack.c.l.b16 %v620
        %v717 = vunpack.c.l.b16 %v621
        %v718 = vpack.c.b16 %v687, %v686
        %v719 = vpack.c.b16 %v689, %v688
        %v720 = vpack.c.b16 %v691, %v690
        %v721 = vpack.c.b16 %v693, %v692
        %v722 = vpack.c.b16 %v695, %v694
        %v723 = vpack.c.b16 %v697, %v696
        %v724 = vpack.c.b16 %v699, %v698
        %v725 = vpack.c.b16 %v701, %v700
        %v726 = vpack.c.b16 %v703, %v702
        %v727 = vpack.c.b16 %v705, %v704
        %v728 = vpack.c.b16 %v707, %v706
        %v729 = vpack.c.b16 %v709, %v708
        %v730 = vpack.c.b16 %v711, %v710
        %v731 = vpack.c.b16 %v713, %v712
        %v732 = vpack.c.b16 %v715, %v714
        %v733 = vpack.c.b16 %v717, %v716
        %v782 = vunpack.c.l.b16 %v622
        %v783 = vunpack.c.h.b16 %v622
        %v784 = vunpack.c.l.b16 %v623
        %v785 = vunpack.c.h.b16 %v623
        %v786 = vunpack.c.l.b16 %v624
        %v787 = vunpack.c.h.b16 %v624
        %v788 = vunpack.c.l.b16 %v625
        %v789 = vunpack.c.h.b16 %v625
        %v790 = vunpack.c.l.b16 %v626
        %v791 = vunpack.c.h.b16 %v626
        %v792 = vunpack.c.l.b16 %v627
        %v793 = vunpack.c.h.b16 %v627
        %v794 = vunpack.c.l.b16 %v628
        %v795 = vunpack.c.h.b16 %v628
        %v796 = vunpack.c.l.b16 %v629
        %v797 = vunpack.c.h.b16 %v629
        %v798 = vunpack.c.l.b16 %v630
        %v799 = vunpack.c.h.b16 %v630
        %v800 = vunpack.c.l.b16 %v631
        %v801 = vunpack.c.h.b16 %v631
        %v802 = vunpack.c.l.b16 %v632
        %v803 = vunpack.c.h.b16 %v632
        %v804 = vunpack.c.l.b16 %v633
        %v805 = vunpack.c.h.b16 %v633
        %v806 = vunpack.c.l.b16 %v634
        %v807 = vunpack.c.h.b16 %v634
        %v808 = vunpack.c.l.b16 %v635
        %v809 = vunpack.c.h.b16 %v635
        %v810 = vunpack.c.l.b16 %v636
        %v811 = vunpack.c.h.b16 %v636
        %v812 = vunpack.c.l.b16 %v637
        %v813 = vunpack.c.h.b16 %v637
        %v814 = vunpack.c.l.b16 %v638
        %v815 = vunpack.c.h.b16 %v638
        %v816 = vunpack.c.l.b16 %v639
        %v817 = vunpack.c.h.b16 %v639
        %v818 = vunpack.c.l.b16 %v640
        %v819 = vunpack.c.h.b16 %v640
        %v820 = vunpack.c.l.b16 %v641
        %v821 = vunpack.c.h.b16 %v641
        %v822 = vunpack.c.l.b16 %v642
        %v823 = vunpack.c.h.b16 %v642
        %v824 = vunpack.c.l.b16 %v643
        %v825 = vunpack.c.h.b16 %v643
        %v826 = vunpack.c.l.b16 %v644
        %v827 = vunpack.c.h.b16 %v644
        %v828 = vunpack.c.l.b16 %v645
        %v829 = vunpack.c.h.b16 %v645
        %v830 = vunpack.c.l.b16 %v646
        %v831 = vunpack.c.h.b16 %v646
        %v832 = vunpack.c.l.b16 %v647
        %v833 = vunpack.c.h.b16 %v647
        %v834 = vunpack.c.l.b16 %v648
        %v835 = vunpack.c.h.b16 %v648
        %v836 = vunpack.c.l.b16 %v649
        %v837 = vunpack.c.h.b16 %v649
        %v838 = vunpack.c.l.b16 %v650
        %v839 = vunpack.c.h.b16 %v650
        %v840 = vunpack.c.l.b16 %v651
        %v841 = vunpack.c.h.b16 %v651
        %v842 = vunpack.c.l.b16 %v652
        %v843 = vunpack.c.h.b16 %v652
        %v844 = vunpack.c.l.b16 %v653
        %v845 = vunpack.c.h.b16 %v653
        %v846 = vpack.c.b16 %v786, %v782
        %v847 = vpack.c.b16 %v787, %v783
        %v848 = vpack.c.b16 %v788, %v784
        %v849 = vpack.c.b16 %v789, %v785
        %v850 = vpack.c.b16 %v794, %v790
        %v851 = vpack.c.b16 %v795, %v791
        %v852 = vpack.c.b16 %v796, %v792
        %v853 = vpack.c.b16 %v797, %v793
        %v854 = vpack.c.b16 %v802, %v798
        %v855 = vpack.c.b16 %v803, %v799
        %v856 = vpack.c.b16 %v804, %v800
        %v857 = vpack.c.b16 %v805, %v801
        %v858 = vpack.c.b16 %v810, %v806
        %v859 = vpack.c.b16 %v811, %v807
        %v860 = vpack.c.b16 %v812, %v808
        %v861 = vpack.c.b16 %v813, %v809
        %v862 = vpack.c.b16 %v818, %v814
        %v863 = vpack.c.b16 %v819, %v815
        %v864 = vpack.c.b16 %v820, %v816
        %v865 = vpack.c.b16 %v821, %v817
        %v866 = vpack.c.b16 %v826, %v822
        %v867 = vpack.c.b16 %v827, %v823
        %v868 = vpack.c.b16 %v828, %v824
        %v869 = vpack.c.b16 %v829, %v825
        %v870 = vpack.c.b16 %v834, %v830
        %v871 = vpack.c.b16 %v835, %v831
        %v872 = vpack.c.b16 %v836, %v832
        %v873 = vpack.c.b16 %v837, %v833
        %v874 = vpack.c.b16 %v842, %v838
        %v875 = vpack.c.b16 %v843, %v839
        %v876 = vpack.c.b16 %v844, %v840
        %v877 = vpack.c.b16 %v845, %v841
        %910 = vmatprep.subr.bf16.mxu0 %v875
        %911 = vmatpush1.bf16.msra.mxu0 %v874
        %912 = vmatprep.subr.bf16.mxu0 %v871
        %913 = vmatpush1.bf16.msra.mxu0 %v870
        %914 = vmatprep.subr.bf16.mxu0 %v867
        %915 = vmatpush1.bf16.msra.mxu0 %v866
        %916 = vmatprep.subr.bf16.mxu0 %v863
        %917 = vmatpush1.bf16.msra.mxu0 %v862
        %918 = vmatprep.subr.bf16.mxu0 %v859
        %919 = vmatpush1.bf16.msra.mxu0 %v858
        %920 = vmatprep.subr.bf16.mxu0 %v855
        %921 = vmatpush1.bf16.msra.mxu0 %v854
        %922 = vmatprep.subr.bf16.mxu0 %v851
        %923 = vmatpush1.bf16.msra.mxu0 %v850
        %924 = vmatprep.subr.bf16.mxu0 %v847
        %925 = vmatpush1.bf16.msra.mxu0 %v846
        %926 = vmatprep.subr.bf16.mxu0 0
        %927 = vmatpush2.bf16.msra.mxu0 0
        %928 = vmatprep.subr.bf16.mxu0 0
        %929 = vmatpush2.bf16.msra.mxu0 0
        %930 = vmatprep.subr.bf16.mxu0 0
        %931 = vmatpush2.bf16.msra.mxu0 0
        %932 = vmatprep.subr.bf16.mxu0 0
        %933 = vmatpush2.bf16.msra.mxu0 0
        %934 = vmatprep.subr.bf16.mxu0 0
        %935 = vmatpush2.bf16.msra.mxu0 0
        %936 = vmatprep.subr.bf16.mxu0 0
        %937 = vmatpush2.bf16.msra.mxu0 0
        %938 = vmatprep.subr.bf16.mxu0 0
        %939 = vmatpush2.bf16.msra.mxu0 0
        %940 = vmatprep.subr.bf16.mxu0 0
        %941 = vmatpush2.bf16.msra.mxu0 0
        %942 = vmatprep.mubr.bf16.mxu0 0
        %943 = vmatmul.mubr.bf16.gmra.mxu0 %v718
        %v944 = vpop.f32.mrf.mxu0
        %v945 = vadd.f32 0.0, %v944
        %v946 = vpop.f32.mrf.mxu0
        %v947 = vadd.f32 0.0, %v946
        %v948 = vpop.f32.mrf.mxu0
        %v949 = vadd.f32 0.0, %v948
        %v950 = vpop.f32.mrf.mxu0
        %v951 = vadd.f32 0.0, %v950
        %952 = vmatprep.mubr.bf16.mxu0 0
        %953 = vmatmul.mubr.bf16.gmra.mxu0 %v719
        %v954 = vpop.f32.mrf.mxu0
        %v955 = vadd.f32 0.0, %v954
        %v956 = vpop.f32.mrf.mxu0
        %v957 = vadd.f32 0.0, %v956
        %v958 = vpop.f32.mrf.mxu0
        %v959 = vadd.f32 0.0, %v958
        %v960 = vpop.f32.mrf.mxu0
        %v961 = vadd.f32 0.0, %v960
        %962 = vmatprep.mubr.bf16.mxu0 0
        %963 = vmatmul.mubr.bf16.gmra.mxu0 %v720
        %v964 = vpop.f32.mrf.mxu0
        %v965 = vadd.f32 0.0, %v964
        %v966 = vpop.f32.mrf.mxu0
        %v967 = vadd.f32 0.0, %v966
        %v968 = vpop.f32.mrf.mxu0
        %v969 = vadd.f32 0.0, %v968
        %v970 = vpop.f32.mrf.mxu0
        %v971 = vadd.f32 0.0, %v970
        %972 = vmatprep.mubr.bf16.mxu0 0
        %973 = vmatmul.mubr.bf16.gmra.mxu0 %v721
        %v974 = vpop.f32.mrf.mxu0
        %v975 = vadd.f32 0.0, %v974
        %v976 = vpop.f32.mrf.mxu0
        %v977 = vadd.f32 0.0, %v976
        %v978 = vpop.f32.mrf.mxu0
        %v979 = vadd.f32 0.0, %v978
        %v980 = vpop.f32.mrf.mxu0
        %v981 = vadd.f32 0.0, %v980
        %982 = vmatprep.mubr.bf16.mxu0 0
        %983 = vmatmul.mubr.bf16.gmra.mxu0 %v722
        %v984 = vpop.f32.mrf.mxu0
        %v985 = vadd.f32 0.0, %v984
        %v986 = vpop.f32.mrf.mxu0
        %v987 = vadd.f32 0.0, %v986
        %v988 = vpop.f32.mrf.mxu0
        %v989 = vadd.f32 0.0, %v988
        %v990 = vpop.f32.mrf.mxu0
        %v991 = vadd.f32 0.0, %v990
        %992 = vmatprep.mubr.bf16.mxu0 0
        %993 = vmatmul.mubr.bf16.gmra.mxu0 %v723
        %v994 = vpop.f32.mrf.mxu0
        %v995 = vadd.f32 0.0, %v994
        %v996 = vpop.f32.mrf.mxu0
        %v997 = vadd.f32 0.0, %v996
        %v998 = vpop.f32.mrf.mxu0
        %v999 = vadd.f32 0.0, %v998
        %v1000 = vpop.f32.mrf.mxu0
        %v1001 = vadd.f32 0.0, %v1000
        %1002 = vmatprep.mubr.bf16.mxu0 0
        %1003 = vmatmul.mubr.bf16.gmra.mxu0 %v724
        %v1004 = vpop.f32.mrf.mxu0
        %v1005 = vadd.f32 0.0, %v1004
        %v1006 = vpop.f32.mrf.mxu0
        %v1007 = vadd.f32 0.0, %v1006
        %v1008 = vpop.f32.mrf.mxu0
        %v1009 = vadd.f32 0.0, %v1008
        %v1010 = vpop.f32.mrf.mxu0
        %v1011 = vadd.f32 0.0, %v1010
        %1012 = vmatprep.mubr.bf16.mxu0 0
        %1013 = vmatmul.mubr.bf16.gmra.mxu0 %v725
        %v1014 = vpop.f32.mrf.mxu0
        %v1015 = vadd.f32 0.0, %v1014
        %v1016 = vpop.f32.mrf.mxu0
        %v1017 = vadd.f32 0.0, %v1016
        %v1018 = vpop.f32.mrf.mxu0
        %v1019 = vadd.f32 0.0, %v1018
        %v1020 = vpop.f32.mrf.mxu0
        %v1021 = vadd.f32 0.0, %v1020
        %1022 = vmatprep.mubr.bf16.mxu0 0
        %1023 = vmatmul.mubr.bf16.gmra.mxu0 %v726
        %v1024 = vpop.f32.mrf.mxu0
        %v1025 = vadd.f32 0.0, %v1024
        %v1026 = vpop.f32.mrf.mxu0
        %v1027 = vadd.f32 0.0, %v1026
        %v1028 = vpop.f32.mrf.mxu0
        %v1029 = vadd.f32 0.0, %v1028
        %v1030 = vpop.f32.mrf.mxu0
        %v1031 = vadd.f32 0.0, %v1030
        %1032 = vmatprep.mubr.bf16.mxu0 0
        %1033 = vmatmul.mubr.bf16.gmra.mxu0 %v727
        %v1034 = vpop.f32.mrf.mxu0
        %v1035 = vadd.f32 0.0, %v1034
        %v1036 = vpop.f32.mrf.mxu0
        %v1037 = vadd.f32 0.0, %v1036
        %v1038 = vpop.f32.mrf.mxu0
        %v1039 = vadd.f32 0.0, %v1038
        %v1040 = vpop.f32.mrf.mxu0
        %v1041 = vadd.f32 0.0, %v1040
        %1042 = vmatprep.mubr.bf16.mxu0 0
        %1043 = vmatmul.mubr.bf16.gmra.mxu0 %v728
        %v1044 = vpop.f32.mrf.mxu0
        %v1045 = vadd.f32 0.0, %v1044
        %v1046 = vpop.f32.mrf.mxu0
        %v1047 = vadd.f32 0.0, %v1046
        %v1048 = vpop.f32.mrf.mxu0
        %v1049 = vadd.f32 0.0, %v1048
        %v1050 = vpop.f32.mrf.mxu0
        %v1051 = vadd.f32 0.0, %v1050
        %1052 = vmatprep.mubr.bf16.mxu0 0
        %1053 = vmatmul.mubr.bf16.gmra.mxu0 %v729
        %v1054 = vpop.f32.mrf.mxu0
        %v1055 = vadd.f32 0.0, %v1054
        %v1056 = vpop.f32.mrf.mxu0
        %v1057 = vadd.f32 0.0, %v1056
        %v1058 = vpop.f32.mrf.mxu0
        %v1059 = vadd.f32 0.0, %v1058
        %v1060 = vpop.f32.mrf.mxu0
        %v1061 = vadd.f32 0.0, %v1060
        %1062 = vmatprep.mubr.bf16.mxu0 0
        %1063 = vmatmul.mubr.bf16.gmra.mxu0 %v730
        %v1064 = vpop.f32.mrf.mxu0
        %v1065 = vadd.f32 0.0, %v1064
        %v1066 = vpop.f32.mrf.mxu0
        %v1067 = vadd.f32 0.0, %v1066
        %v1068 = vpop.f32.mrf.mxu0
        %v1069 = vadd.f32 0.0, %v1068
        %v1070 = vpop.f32.mrf.mxu0
        %v1071 = vadd.f32 0.0, %v1070
        %1072 = vmatprep.mubr.bf16.mxu0 0
        %1073 = vmatmul.mubr.bf16.gmra.mxu0 %v731
        %v1074 = vpop.f32.mrf.mxu0
        %v1075 = vadd.f32 0.0, %v1074
        %v1076 = vpop.f32.mrf.mxu0
        %v1077 = vadd.f32 0.0, %v1076
        %v1078 = vpop.f32.mrf.mxu0
        %v1079 = vadd.f32 0.0, %v1078
        %v1080 = vpop.f32.mrf.mxu0
        %v1081 = vadd.f32 0.0, %v1080
        %1082 = vmatprep.mubr.bf16.mxu0 0
        %1083 = vmatmul.mubr.bf16.gmra.mxu0 %v732
        %v1084 = vpop.f32.mrf.mxu0
        %v1085 = vadd.f32 0.0, %v1084
        %v1086 = vpop.f32.mrf.mxu0
        %v1087 = vadd.f32 0.0, %v1086
        %v1088 = vpop.f32.mrf.mxu0
        %v1089 = vadd.f32 0.0, %v1088
        %v1090 = vpop.f32.mrf.mxu0
        %v1091 = vadd.f32 0.0, %v1090
        %1092 = vmatprep.mubr.bf16.mxu0 0
        %1093 = vmatmul.mubr.bf16.gmra.mxu0 %v733
        %v1094 = vpop.f32.mrf.mxu0
        %v1095 = vadd.f32 0.0, %v1094
        %v1096 = vpop.f32.mrf.mxu0
        %v1097 = vadd.f32 0.0, %v1096
        %v1098 = vpop.f32.mrf.mxu0
        %v1099 = vadd.f32 0.0, %v1098
        %v1100 = vpop.f32.mrf.mxu0
        %v1101 = vadd.f32 0.0, %v1100
        %1102 = vdwg.mxu0
        %1103 = vmatprep.subr.bf16.mxu0 %v877
        %1104 = vmatpush1.bf16.msra.mxu0 %v876
        %1105 = vmatprep.subr.bf16.mxu0 %v873
        %1106 = vmatpush1.bf16.msra.mxu0 %v872
        %1107 = vmatprep.subr.bf16.mxu0 %v869
        %1108 = vmatpush1.bf16.msra.mxu0 %v868
        %1109 = vmatprep.subr.bf16.mxu0 %v865
        %1110 = vmatpush1.bf16.msra.mxu0 %v864
        %1111 = vmatprep.subr.bf16.mxu0 %v861
        %1112 = vmatpush1.bf16.msra.mxu0 %v860
        %1113 = vmatprep.subr.bf16.mxu0 %v857
        %1114 = vmatpush1.bf16.msra.mxu0 %v856
        %1115 = vmatprep.subr.bf16.mxu0 %v853
        %1116 = vmatpush1.bf16.msra.mxu0 %v852
        %1117 = vmatprep.subr.bf16.mxu0 %v849
        %1118 = vmatpush1.bf16.msra.mxu0 %v848
        %1119 = vmatprep.subr.bf16.mxu0 0
        %1120 = vmatpush2.bf16.msra.mxu0 0
        %1121 = vmatprep.subr.bf16.mxu0 0
        %1122 = vmatpush2.bf16.msra.mxu0 0
        %1123 = vmatprep.subr.bf16.mxu0 0
        %1124 = vmatpush2.bf16.msra.mxu0 0
        %1125 = vmatprep.subr.bf16.mxu0 0
        %1126 = vmatpush2.bf16.msra.mxu0 0
        %1127 = vmatprep.subr.bf16.mxu0 0
        %1128 = vmatpush2.bf16.msra.mxu0 0
        %1129 = vmatprep.subr.bf16.mxu0 0
        %1130 = vmatpush2.bf16.msra.mxu0 0
        %1131 = vmatprep.subr.bf16.mxu0 0
        %1132 = vmatpush2.bf16.msra.mxu0 0
        %1133 = vmatprep.subr.bf16.mxu0 0
        %1134 = vmatpush2.bf16.msra.mxu0 0
        %1135 = vmatprep.mubr.bf16.mxu0 0
        %1136 = vmatmul.mubr.bf16.gmra.mxu0 %v718
        %v1137 = vpop.f32.mrf.mxu0
        %v1138 = vadd.f32 0.0, %v1137
        %v1139 = vpop.f32.mrf.mxu0
        %v1140 = vadd.f32 0.0, %v1139
        %v1141 = vpop.f32.mrf.mxu0
        %v1142 = vadd.f32 0.0, %v1141
        %v1143 = vpop.f32.mrf.mxu0
        %v1144 = vadd.f32 0.0, %v1143
        %1145 = vmatprep.mubr.bf16.mxu0 0
        %1146 = vmatmul.mubr.bf16.gmra.mxu0 %v719
        %v1147 = vpop.f32.mrf.mxu0
        %v1148 = vadd.f32 0.0, %v1147
        %v1149 = vpop.f32.mrf.mxu0
        %v1150 = vadd.f32 0.0, %v1149
        %v1151 = vpop.f32.mrf.mxu0
        %v1152 = vadd.f32 0.0, %v1151
        %v1153 = vpop.f32.mrf.mxu0
        %v1154 = vadd.f32 0.0, %v1153
        %1155 = vmatprep.mubr.bf16.mxu0 0
        %1156 = vmatmul.mubr.bf16.gmra.mxu0 %v720
        %v1157 = vpop.f32.mrf.mxu0
        %v1158 = vadd.f32 0.0, %v1157
        %v1159 = vpop.f32.mrf.mxu0
        %v1160 = vadd.f32 0.0, %v1159
        %v1161 = vpop.f32.mrf.mxu0
        %v1162 = vadd.f32 0.0, %v1161
        %v1163 = vpop.f32.mrf.mxu0
        %v1164 = vadd.f32 0.0, %v1163
        %1165 = vmatprep.mubr.bf16.mxu0 0
        %1166 = vmatmul.mubr.bf16.gmra.mxu0 %v721
        %v1167 = vpop.f32.mrf.mxu0
        %v1168 = vadd.f32 0.0, %v1167
        %v1169 = vpop.f32.mrf.mxu0
        %v1170 = vadd.f32 0.0, %v1169
        %v1171 = vpop.f32.mrf.mxu0
        %v1172 = vadd.f32 0.0, %v1171
        %v1173 = vpop.f32.mrf.mxu0
        %v1174 = vadd.f32 0.0, %v1173
        %1175 = vmatprep.mubr.bf16.mxu0 0
        %1176 = vmatmul.mubr.bf16.gmra.mxu0 %v722
        %v1177 = vpop.f32.mrf.mxu0
        %v1178 = vadd.f32 0.0, %v1177
        %v1179 = vpop.f32.mrf.mxu0
        %v1180 = vadd.f32 0.0, %v1179
        %v1181 = vpop.f32.mrf.mxu0
        %v1182 = vadd.f32 0.0, %v1181
        %v1183 = vpop.f32.mrf.mxu0
        %v1184 = vadd.f32 0.0, %v1183
        %1185 = vmatprep.mubr.bf16.mxu0 0
        %1186 = vmatmul.mubr.bf16.gmra.mxu0 %v723
        %v1187 = vpop.f32.mrf.mxu0
        %v1188 = vadd.f32 0.0, %v1187
        %v1189 = vpop.f32.mrf.mxu0
        %v1190 = vadd.f32 0.0, %v1189
        %v1191 = vpop.f32.mrf.mxu0
        %v1192 = vadd.f32 0.0, %v1191
        %v1193 = vpop.f32.mrf.mxu0
        %v1194 = vadd.f32 0.0, %v1193
        %1195 = vmatprep.mubr.bf16.mxu0 0
        %1196 = vmatmul.mubr.bf16.gmra.mxu0 %v724
        %v1197 = vpop.f32.mrf.mxu0
        %v1198 = vadd.f32 0.0, %v1197
        %v1199 = vpop.f32.mrf.mxu0
        %v1200 = vadd.f32 0.0, %v1199
        %v1201 = vpop.f32.mrf.mxu0
        %v1202 = vadd.f32 0.0, %v1201
        %v1203 = vpop.f32.mrf.mxu0
        %v1204 = vadd.f32 0.0, %v1203
        %1205 = vmatprep.mubr.bf16.mxu0 0
        %1206 = vmatmul.mubr.bf16.gmra.mxu0 %v725
        %v1207 = vpop.f32.mrf.mxu0
        %v1208 = vadd.f32 0.0, %v1207
        %v1209 = vpop.f32.mrf.mxu0
        %v1210 = vadd.f32 0.0, %v1209
        %v1211 = vpop.f32.mrf.mxu0
        %v1212 = vadd.f32 0.0, %v1211
        %v1213 = vpop.f32.mrf.mxu0
        %v1214 = vadd.f32 0.0, %v1213
        %1215 = vmatprep.mubr.bf16.mxu0 0
        %1216 = vmatmul.mubr.bf16.gmra.mxu0 %v726
        %v1217 = vpop.f32.mrf.mxu0
        %v1218 = vadd.f32 0.0, %v1217
        %v1219 = vpop.f32.mrf.mxu0
        %v1220 = vadd.f32 0.0, %v1219
        %v1221 = vpop.f32.mrf.mxu0
        %v1222 = vadd.f32 0.0, %v1221
        %v1223 = vpop.f32.mrf.mxu0
        %v1224 = vadd.f32 0.0, %v1223
        %1225 = vmatprep.mubr.bf16.mxu0 0
        %1226 = vmatmul.mubr.bf16.gmra.mxu0 %v727
        %v1227 = vpop.f32.mrf.mxu0
        %v1228 = vadd.f32 0.0, %v1227
        %v1229 = vpop.f32.mrf.mxu0
        %v1230 = vadd.f32 0.0, %v1229
        %v1231 = vpop.f32.mrf.mxu0
        %v1232 = vadd.f32 0.0, %v1231
        %v1233 = vpop.f32.mrf.mxu0
        %v1234 = vadd.f32 0.0, %v1233
        %1235 = vmatprep.mubr.bf16.mxu0 0
        %1236 = vmatmul.mubr.bf16.gmra.mxu0 %v728
        %v1237 = vpop.f32.mrf.mxu0
        %v1238 = vadd.f32 0.0, %v1237
        %v1239 = vpop.f32.mrf.mxu0
        %v1240 = vadd.f32 0.0, %v1239
        %v1241 = vpop.f32.mrf.mxu0
        %v1242 = vadd.f32 0.0, %v1241
        %v1243 = vpop.f32.mrf.mxu0
        %v1244 = vadd.f32 0.0, %v1243
        %1245 = vmatprep.mubr.bf16.mxu0 0
        %1246 = vmatmul.mubr.bf16.gmra.mxu0 %v729
        %v1247 = vpop.f32.mrf.mxu0
        %v1248 = vadd.f32 0.0, %v1247
        %v1249 = vpop.f32.mrf.mxu0
        %v1250 = vadd.f32 0.0, %v1249
        %v1251 = vpop.f32.mrf.mxu0
        %v1252 = vadd.f32 0.0, %v1251
        %v1253 = vpop.f32.mrf.mxu0
        %v1254 = vadd.f32 0.0, %v1253
        %1255 = vmatprep.mubr.bf16.mxu0 0
        %1256 = vmatmul.mubr.bf16.gmra.mxu0 %v730
        %v1257 = vpop.f32.mrf.mxu0
        %v1258 = vadd.f32 0.0, %v1257
        %v1259 = vpop.f32.mrf.mxu0
        %v1260 = vadd.f32 0.0, %v1259
        %v1261 = vpop.f32.mrf.mxu0
        %v1262 = vadd.f32 0.0, %v1261
        %v1263 = vpop.f32.mrf.mxu0
        %v1264 = vadd.f32 0.0, %v1263
        %1265 = vmatprep.mubr.bf16.mxu0 0
        %1266 = vmatmul.mubr.bf16.gmra.mxu0 %v731
        %v1267 = vpop.f32.mrf.mxu0
        %v1268 = vadd.f32 0.0, %v1267
        %v1269 = vpop.f32.mrf.mxu0
        %v1270 = vadd.f32 0.0, %v1269
        %v1271 = vpop.f32.mrf.mxu0
        %v1272 = vadd.f32 0.0, %v1271
        %v1273 = vpop.f32.mrf.mxu0
        %v1274 = vadd.f32 0.0, %v1273
        %1275 = vmatprep.mubr.bf16.mxu0 0
        %1276 = vmatmul.mubr.bf16.gmra.mxu0 %v732
        %v1277 = vpop.f32.mrf.mxu0
        %v1278 = vadd.f32 0.0, %v1277
        %v1279 = vpop.f32.mrf.mxu0
        %v1280 = vadd.f32 0.0, %v1279
        %v1281 = vpop.f32.mrf.mxu0
        %v1282 = vadd.f32 0.0, %v1281
        %v1283 = vpop.f32.mrf.mxu0
        %v1284 = vadd.f32 0.0, %v1283
        %1285 = vmatprep.mubr.bf16.mxu0 0
        %1286 = vmatmul.mubr.bf16.gmra.mxu0 %v733
        %v1287 = vpop.f32.mrf.mxu0
        %v1288 = vadd.f32 0.0, %v1287
        %v1289 = vpop.f32.mrf.mxu0
        %v1290 = vadd.f32 0.0, %v1289
        %v1291 = vpop.f32.mrf.mxu0
        %v1292 = vadd.f32 0.0, %v1291
        %v1293 = vpop.f32.mrf.mxu0
        %v1294 = vadd.f32 0.0, %v1293
        %1295 = vdwg.mxu0
        %v1296 = vadd.f32 %v462, %v945
        %v1297 = vadd.f32 %v463, %v947
        %v1298 = vadd.f32 %v464, %v1138
        %v1299 = vadd.f32 %v465, %v1140
        %v1300 = vadd.f32 %v466, %v949
        %v1301 = vadd.f32 %v467, %v951
        %v1302 = vadd.f32 %v468, %v1142
        %v1303 = vadd.f32 %v469, %v1144
        %v1304 = vadd.f32 %v470, %v955
        %v1305 = vadd.f32 %v471, %v957
        %v1306 = vadd.f32 %v472, %v1148
        %v1307 = vadd.f32 %v473, %v1150
        %v1308 = vadd.f32 %v474, %v959
        %v1309 = vadd.f32 %v475, %v961
        %v1310 = vadd.f32 %v476, %v1152
        %v1311 = vadd.f32 %v477, %v1154
        %v1312 = vadd.f32 %v478, %v965
        %v1313 = vadd.f32 %v479, %v967
        %v1314 = vadd.f32 %v480, %v1158
        %v1315 = vadd.f32 %v481, %v1160
        %v1316 = vadd.f32 %v482, %v969
        %v1317 = vadd.f32 %v483, %v971
        %v1318 = vadd.f32 %v484, %v1162
        %v1319 = vadd.f32 %v485, %v1164
        %v1320 = vadd.f32 %v486, %v975
        %v1321 = vadd.f32 %v487, %v977
        %v1322 = vadd.f32 %v488, %v1168
        %v1323 = vadd.f32 %v489, %v1170
        %v1324 = vadd.f32 %v490, %v979
        %v1325 = vadd.f32 %v491, %v981
        %v1326 = vadd.f32 %v492, %v1172
        %v1327 = vadd.f32 %v493, %v1174
        %v1328 = vadd.f32 %v494, %v985
        %v1329 = vadd.f32 %v495, %v987
        %v1330 = vadd.f32 %v496, %v1178
        %v1331 = vadd.f32 %v497, %v1180
        %v1332 = vadd.f32 %v498, %v989
        %v1333 = vadd.f32 %v499, %v991
        %v1334 = vadd.f32 %v500, %v1182
        %v1335 = vadd.f32 %v501, %v1184
        %v1336 = vadd.f32 %v502, %v995
        %v1337 = vadd.f32 %v503, %v997
        %v1338 = vadd.f32 %v504, %v1188
        %v1339 = vadd.f32 %v505, %v1190
        %v1340 = vadd.f32 %v506, %v999
        %v1341 = vadd.f32 %v507, %v1001
        %v1342 = vadd.f32 %v508, %v1192
        %v1343 = vadd.f32 %v509, %v1194
        %v1344 = vadd.f32 %v510, %v1005
        %v1345 = vadd.f32 %v511, %v1007
        %v1346 = vadd.f32 %v512, %v1198
        %v1347 = vadd.f32 %v513, %v1200
        %v1348 = vadd.f32 %v514, %v1009
        %v1349 = vadd.f32 %v515, %v1011
        %v1350 = vadd.f32 %v516, %v1202
        %v1351 = vadd.f32 %v517, %v1204
        %v1352 = vadd.f32 %v518, %v1015
        %v1353 = vadd.f32 %v519, %v1017
        %v1354 = vadd.f32 %v520, %v1208
        %v1355 = vadd.f32 %v521, %v1210
        %v1356 = vadd.f32 %v522, %v1019
        %v1357 = vadd.f32 %v523, %v1021
        %v1358 = vadd.f32 %v524, %v1212
        %v1359 = vadd.f32 %v525, %v1214
        %v1360 = vadd.f32 %v526, %v1025
        %v1361 = vadd.f32 %v527, %v1027
        %v1362 = vadd.f32 %v528, %v1218
        %v1363 = vadd.f32 %v529, %v1220
        %v1364 = vadd.f32 %v530, %v1029
        %v1365 = vadd.f32 %v531, %v1031
        %v1366 = vadd.f32 %v532, %v1222
        %v1367 = vadd.f32 %v533, %v1224
        %v1368 = vadd.f32 %v534, %v1035
        %v1369 = vadd.f32 %v535, %v1037
        %v1370 = vadd.f32 %v536, %v1228
        %v1371 = vadd.f32 %v537, %v1230
        %v1372 = vadd.f32 %v538, %v1039
        %v1373 = vadd.f32 %v539, %v1041
        %v1374 = vadd.f32 %v540, %v1232
        %v1375 = vadd.f32 %v541, %v1234
        %v1376 = vadd.f32 %v542, %v1045
        %v1377 = vadd.f32 %v543, %v1047
        %v1378 = vadd.f32 %v544, %v1238
        %v1379 = vadd.f32 %v545, %v1240
        %v1380 = vadd.f32 %v546, %v1049
        %v1381 = vadd.f32 %v547, %v1051
        %v1382 = vadd.f32 %v548, %v1242
        %v1383 = vadd.f32 %v549, %v1244
        %v1384 = vadd.f32 %v550, %v1055
        %v1385 = vadd.f32 %v551, %v1057
        %v1386 = vadd.f32 %v552, %v1248
        %v1387 = vadd.f32 %v553, %v1250
        %v1388 = vadd.f32 %v554, %v1059
        %v1389 = vadd.f32 %v555, %v1061
        %v1390 = vadd.f32 %v556, %v1252
        %v1391 = vadd.f32 %v557, %v1254
        %v1392 = vadd.f32 %v558, %v1065
        %v1393 = vadd.f32 %v559, %v1067
        %v1394 = vadd.f32 %v560, %v1258
        %v1395 = vadd.f32 %v561, %v1260
        %v1396 = vadd.f32 %v562, %v1069
        %v1397 = vadd.f32 %v563, %v1071
        %v1398 = vadd.f32 %v564, %v1262
        %v1399 = vadd.f32 %v565, %v1264
        %v1400 = vadd.f32 %v566, %v1075
        %v1401 = vadd.f32 %v567, %v1077
        %v1402 = vadd.f32 %v568, %v1268
        %v1403 = vadd.f32 %v569, %v1270
        %v1404 = vadd.f32 %v570, %v1079
        %v1405 = vadd.f32 %v571, %v1081
        %v1406 = vadd.f32 %v572, %v1272
        %v1407 = vadd.f32 %v573, %v1274
        %v1408 = vadd.f32 %v574, %v1085
        %v1409 = vadd.f32 %v575, %v1087
        %v1410 = vadd.f32 %v576, %v1278
        %v1411 = vadd.f32 %v577, %v1280
        %v1412 = vadd.f32 %v578, %v1089
        %v1413 = vadd.f32 %v579, %v1091
        %v1414 = vadd.f32 %v580, %v1282
        %v1415 = vadd.f32 %v581, %v1284
        %v1416 = vadd.f32 %v582, %v1095
        %v1417 = vadd.f32 %v583, %v1097
        %v1418 = vadd.f32 %v584, %v1288
        %v1419 = vadd.f32 %v585, %v1290
        %v1420 = vadd.f32 %v586, %v1099
        %v1421 = vadd.f32 %v587, %v1101
        %v1422 = vadd.f32 %v588, %v1292
        %v1423 = vadd.f32 %v589, %v1294
        %1424 = vst [vmem:[#allocation2] sm:$0xff] %v1296
        %1425 = vst [vmem:[#allocation2 + $0x8] sm:$0xff] %v1297
        %1426 = vst [vmem:[#allocation2 + $0x10] sm:$0xff] %v1298
        %1427 = vst [vmem:[#allocation2 + $0x18] sm:$0xff] %v1299
        %1428 = vst [vmem:[#allocation2 + $0x20] sm:$0xff] %v1300
        %1429 = vst [vmem:[#allocation2 + $0x28] sm:$0xff] %v1301
        %1430 = vst [vmem:[#allocation2 + $0x30] sm:$0xff] %v1302
        %1431 = vst [vmem:[#allocation2 + $0x38] sm:$0xff] %v1303
        %1432 = vst [vmem:[#allocation2 + $0x40] sm:$0xff] %v1304
        %1433 = vst [vmem:[#allocation2 + $0x48] sm:$0xff] %v1305
        %1434 = vst [vmem:[#allocation2 + $0x50] sm:$0xff] %v1306
        %1435 = vst [vmem:[#allocation2 + $0x58] sm:$0xff] %v1307
        %1436 = vst [vmem:[#allocation2 + $0x60] sm:$0xff] %v1308
        %1437 = vst [vmem:[#allocation2 + $0x68] sm:$0xff] %v1309
        %1438 = vst [vmem:[#allocation2 + $0x70] sm:$0xff] %v1310
        %1439 = vst [vmem:[#allocation2 + $0x78] sm:$0xff] %v1311
        %1440 = vst [vmem:[#allocation2 + $0x80] sm:$0xff] %v1312
        %1441 = vst [vmem:[#allocation2 + $0x88] sm:$0xff] %v1313
        %1442 = vst [vmem:[#allocation2 + $0x90] sm:$0xff] %v1314
        %1443 = vst [vmem:[#allocation2 + $0x98] sm:$0xff] %v1315
        %1444 = vst [vmem:[#allocation2 + $0xa0] sm:$0xff] %v1316
        %1445 = vst [vmem:[#allocation2 + $0xa8] sm:$0xff] %v1317
        %1446 = vst [vmem:[#allocation2 + $0xb0] sm:$0xff] %v1318
        %1447 = vst [vmem:[#allocation2 + $0xb8] sm:$0xff] %v1319
        %1448 = vst [vmem:[#allocation2 + $0xc0] sm:$0xff] %v1320
        %1449 = vst [vmem:[#allocation2 + $0xc8] sm:$0xff] %v1321
        %1450 = vst [vmem:[#allocation2 + $0xd0] sm:$0xff] %v1322
        %1451 = vst [vmem:[#allocation2 + $0xd8] sm:$0xff] %v1323
        %1452 = vst [vmem:[#allocation2 + $0xe0] sm:$0xff] %v1324
        %1453 = vst [vmem:[#allocation2 + $0xe8] sm:$0xff] %v1325
        %1454 = vst [vmem:[#allocation2 + $0xf0] sm:$0xff] %v1326
        %1455 = vst [vmem:[#allocation2 + $0xf8] sm:$0xff] %v1327
        %1456 = vst [vmem:[#allocation2 + $0x100] sm:$0xff] %v1328
        %1457 = vst [vmem:[#allocation2 + $0x108] sm:$0xff] %v1329
        %1458 = vst [vmem:[#allocation2 + $0x110] sm:$0xff] %v1330
        %1459 = vst [vmem:[#allocation2 + $0x118] sm:$0xff] %v1331
        %1460 = vst [vmem:[#allocation2 + $0x120] sm:$0xff] %v1332
        %1461 = vst [vmem:[#allocation2 + $0x128] sm:$0xff] %v1333
        %1462 = vst [vmem:[#allocation2 + $0x130] sm:$0xff] %v1334
        %1463 = vst [vmem:[#allocation2 + $0x138] sm:$0xff] %v1335
        %1464 = vst [vmem:[#allocation2 + $0x140] sm:$0xff] %v1336
        %1465 = vst [vmem:[#allocation2 + $0x148] sm:$0xff] %v1337
        %1466 = vst [vmem:[#allocation2 + $0x150] sm:$0xff] %v1338
        %1467 = vst [vmem:[#allocation2 + $0x158] sm:$0xff] %v1339
        %1468 = vst [vmem:[#allocation2 + $0x160] sm:$0xff] %v1340
        %1469 = vst [vmem:[#allocation2 + $0x168] sm:$0xff] %v1341
        %1470 = vst [vmem:[#allocation2 + $0x170] sm:$0xff] %v1342
        %1471 = vst [vmem:[#allocation2 + $0x178] sm:$0xff] %v1343
        %1472 = vst [vmem:[#allocation2 + $0x180] sm:$0xff] %v1344
        %1473 = vst [vmem:[#allocation2 + $0x188] sm:$0xff] %v1345
        %1474 = vst [vmem:[#allocation2 + $0x190] sm:$0xff] %v1346
        %1475 = vst [vmem:[#allocation2 + $0x198] sm:$0xff] %v1347
        %1476 = vst [vmem:[#allocation2 + $0x1a0] sm:$0xff] %v1348
        %1477 = vst [vmem:[#allocation2 + $0x1a8] sm:$0xff] %v1349
        %1478 = vst [vmem:[#allocation2 + $0x1b0] sm:$0xff] %v1350
        %1479 = vst [vmem:[#allocation2 + $0x1b8] sm:$0xff] %v1351
        %1480 = vst [vmem:[#allocation2 + $0x1c0] sm:$0xff] %v1352
        %1481 = vst [vmem:[#allocation2 + $0x1c8] sm:$0xff] %v1353
        %1482 = vst [vmem:[#allocation2 + $0x1d0] sm:$0xff] %v1354
        %1483 = vst [vmem:[#allocation2 + $0x1d8] sm:$0xff] %v1355
        %1484 = vst [vmem:[#allocation2 + $0x1e0] sm:$0xff] %v1356
        %1485 = vst [vmem:[#allocation2 + $0x1e8] sm:$0xff] %v1357
        %1486 = vst [vmem:[#allocation2 + $0x1f0] sm:$0xff] %v1358
        %1487 = vst [vmem:[#allocation2 + $0x1f8] sm:$0xff] %v1359
        %1488 = vst [vmem:[#allocation2 + $0x200] sm:$0xff] %v1360
        %1489 = vst [vmem:[#allocation2 + $0x208] sm:$0xff] %v1361
        %1490 = vst [vmem:[#allocation2 + $0x210] sm:$0xff] %v1362
        %1491 = vst [vmem:[#allocation2 + $0x218] sm:$0xff] %v1363
        %1492 = vst [vmem:[#allocation2 + $0x220] sm:$0xff] %v1364
        %1493 = vst [vmem:[#allocation2 + $0x228] sm:$0xff] %v1365
        %1494 = vst [vmem:[#allocation2 + $0x230] sm:$0xff] %v1366
        %1495 = vst [vmem:[#allocation2 + $0x238] sm:$0xff] %v1367
        %1496 = vst [vmem:[#allocation2 + $0x240] sm:$0xff] %v1368
        %1497 = vst [vmem:[#allocation2 + $0x248] sm:$0xff] %v1369
        %1498 = vst [vmem:[#allocation2 + $0x250] sm:$0xff] %v1370
        %1499 = vst [vmem:[#allocation2 + $0x258] sm:$0xff] %v1371
        %1500 = vst [vmem:[#allocation2 + $0x260] sm:$0xff] %v1372
        %1501 = vst [vmem:[#allocation2 + $0x268] sm:$0xff] %v1373
        %1502 = vst [vmem:[#allocation2 + $0x270] sm:$0xff] %v1374
        %1503 = vst [vmem:[#allocation2 + $0x278] sm:$0xff] %v1375
        %1504 = vst [vmem:[#allocation2 + $0x280] sm:$0xff] %v1376
        %1505 = vst [vmem:[#allocation2 + $0x288] sm:$0xff] %v1377
        %1506 = vst [vmem:[#allocation2 + $0x290] sm:$0xff] %v1378
        %1507 = vst [vmem:[#allocation2 + $0x298] sm:$0xff] %v1379
        %1508 = vst [vmem:[#allocation2 + $0x2a0] sm:$0xff] %v1380
        %1509 = vst [vmem:[#allocation2 + $0x2a8] sm:$0xff] %v1381
        %1510 = vst [vmem:[#allocation2 + $0x2b0] sm:$0xff] %v1382
        %1511 = vst [vmem:[#allocation2 + $0x2b8] sm:$0xff] %v1383
        %1512 = vst [vmem:[#allocation2 + $0x2c0] sm:$0xff] %v1384
        %1513 = vst [vmem:[#allocation2 + $0x2c8] sm:$0xff] %v1385
        %1514 = vst [vmem:[#allocation2 + $0x2d0] sm:$0xff] %v1386
        %1515 = vst [vmem:[#allocation2 + $0x2d8] sm:$0xff] %v1387
        %1516 = vst [vmem:[#allocation2 + $0x2e0] sm:$0xff] %v1388
        %1517 = vst [vmem:[#allocation2 + $0x2e8] sm:$0xff] %v1389
        %1518 = vst [vmem:[#allocation2 + $0x2f0] sm:$0xff] %v1390
        %1519 = vst [vmem:[#allocation2 + $0x2f8] sm:$0xff] %v1391
        %1520 = vst [vmem:[#allocation2 + $0x300] sm:$0xff] %v1392
        %1521 = vst [vmem:[#allocation2 + $0x308] sm:$0xff] %v1393
        %1522 = vst [vmem:[#allocation2 + $0x310] sm:$0xff] %v1394
        %1523 = vst [vmem:[#allocation2 + $0x318] sm:$0xff] %v1395
        %1524 = vst [vmem:[#allocation2 + $0x320] sm:$0xff] %v1396
        %1525 = vst [vmem:[#allocation2 + $0x328] sm:$0xff] %v1397
        %1526 = vst [vmem:[#allocation2 + $0x330] sm:$0xff] %v1398
        %1527 = vst [vmem:[#allocation2 + $0x338] sm:$0xff] %v1399
        %1528 = vst [vmem:[#allocation2 + $0x340] sm:$0xff] %v1400
        %1529 = vst [vmem:[#allocation2 + $0x348] sm:$0xff] %v1401
        %1530 = vst [vmem:[#allocation2 + $0x350] sm:$0xff] %v1402
        %1531 = vst [vmem:[#allocation2 + $0x358] sm:$0xff] %v1403
        %1532 = vst [vmem:[#allocation2 + $0x360] sm:$0xff] %v1404
        %1533 = vst [vmem:[#allocation2 + $0x368] sm:$0xff] %v1405
        %1534 = vst [vmem:[#allocation2 + $0x370] sm:$0xff] %v1406
        %1535 = vst [vmem:[#allocation2 + $0x378] sm:$0xff] %v1407
        %1536 = vst [vmem:[#allocation2 + $0x380] sm:$0xff] %v1408
        %1537 = vst [vmem:[#allocation2 + $0x388] sm:$0xff] %v1409
        %1538 = vst [vmem:[#allocation2 + $0x390] sm:$0xff] %v1410
        %1539 = vst [vmem:[#allocation2 + $0x398] sm:$0xff] %v1411
        %1540 = vst [vmem:[#allocation2 + $0x3a0] sm:$0xff] %v1412
        %1541 = vst [vmem:[#allocation2 + $0x3a8] sm:$0xff] %v1413
        %1542 = vst [vmem:[#allocation2 + $0x3b0] sm:$0xff] %v1414
        %1543 = vst [vmem:[#allocation2 + $0x3b8] sm:$0xff] %v1415
        %1544 = vst [vmem:[#allocation2 + $0x3c0] sm:$0xff] %v1416
        %1545 = vst [vmem:[#allocation2 + $0x3c8] sm:$0xff] %v1417
        %1546 = vst [vmem:[#allocation2 + $0x3d0] sm:$0xff] %v1418
        %1547 = vst [vmem:[#allocation2 + $0x3d8] sm:$0xff] %v1419
        %1548 = vst [vmem:[#allocation2 + $0x3e0] sm:$0xff] %v1420
        %1549 = vst [vmem:[#allocation2 + $0x3e8] sm:$0xff] %v1421
        %1550 = vst [vmem:[#allocation2 + $0x3f0] sm:$0xff] %v1422
        %1551 = vst [vmem:[#allocation2 + $0x3f8] sm:$0xff] %v1423
        // Predicated region
        $region60: #{attention_forward.4} parent=50 // pred_check
          %p1552 = pneg %p330
        $region61: #{attention_forward.4} parent=50 // pred_check_branch
          %1554 = sbr.rel (%p1552) target = $region63
        $region62: #{attention_forward.4} parent=50 // pred_region
          %v1555 = vld [vmem:[#allocation2] sm:$0xff]
          %v1556 = vld [vmem:[#allocation2 + $0x8] sm:$0xff]
          %v1557 = vld [vmem:[#allocation2 + $0x10] sm:$0xff]
          %v1558 = vld [vmem:[#allocation2 + $0x18] sm:$0xff]
          %v1559 = vld [vmem:[#allocation2 + $0x20] sm:$0xff]
          %v1560 = vld [vmem:[#allocation2 + $0x28] sm:$0xff]
          %v1561 = vld [vmem:[#allocation2 + $0x30] sm:$0xff]
          %v1562 = vld [vmem:[#allocation2 + $0x38] sm:$0xff]
          %v1563 = vld [vmem:[#allocation2 + $0x40] sm:$0xff]
          %v1564 = vld [vmem:[#allocation2 + $0x48] sm:$0xff]
          %v1565 = vld [vmem:[#allocation2 + $0x50] sm:$0xff]
          %v1566 = vld [vmem:[#allocation2 + $0x58] sm:$0xff]
          %v1567 = vld [vmem:[#allocation2 + $0x60] sm:$0xff]
          %v1568 = vld [vmem:[#allocation2 + $0x68] sm:$0xff]
          %v1569 = vld [vmem:[#allocation2 + $0x70] sm:$0xff]
          %v1570 = vld [vmem:[#allocation2 + $0x78] sm:$0xff]
          %v1571 = vld [vmem:[#allocation2 + $0x80] sm:$0xff]
          %v1572 = vld [vmem:[#allocation2 + $0x88] sm:$0xff]
          %v1573 = vld [vmem:[#allocation2 + $0x90] sm:$0xff]
          %v1574 = vld [vmem:[#allocation2 + $0x98] sm:$0xff]
          %v1575 = vld [vmem:[#allocation2 + $0xa0] sm:$0xff]
          %v1576 = vld [vmem:[#allocation2 + $0xa8] sm:$0xff]
          %v1577 = vld [vmem:[#allocation2 + $0xb0] sm:$0xff]
          %v1578 = vld [vmem:[#allocation2 + $0xb8] sm:$0xff]
          %v1579 = vld [vmem:[#allocation2 + $0xc0] sm:$0xff]
          %v1580 = vld [vmem:[#allocation2 + $0xc8] sm:$0xff]
          %v1581 = vld [vmem:[#allocation2 + $0xd0] sm:$0xff]
          %v1582 = vld [vmem:[#allocation2 + $0xd8] sm:$0xff]
          %v1583 = vld [vmem:[#allocation2 + $0xe0] sm:$0xff]
          %v1584 = vld [vmem:[#allocation2 + $0xe8] sm:$0xff]
          %v1585 = vld [vmem:[#allocation2 + $0xf0] sm:$0xff]
          %v1586 = vld [vmem:[#allocation2 + $0xf8] sm:$0xff]
          %v1587 = vld [vmem:[#allocation2 + $0x100] sm:$0xff]
          %v1588 = vld [vmem:[#allocation2 + $0x108] sm:$0xff]
          %v1589 = vld [vmem:[#allocation2 + $0x110] sm:$0xff]
          %v1590 = vld [vmem:[#allocation2 + $0x118] sm:$0xff]
          %v1591 = vld [vmem:[#allocation2 + $0x120] sm:$0xff]
          %v1592 = vld [vmem:[#allocation2 + $0x128] sm:$0xff]
          %v1593 = vld [vmem:[#allocation2 + $0x130] sm:$0xff]
          %v1594 = vld [vmem:[#allocation2 + $0x138] sm:$0xff]
          %v1595 = vld [vmem:[#allocation2 + $0x140] sm:$0xff]
          %v1596 = vld [vmem:[#allocation2 + $0x148] sm:$0xff]
          %v1597 = vld [vmem:[#allocation2 + $0x150] sm:$0xff]
          %v1598 = vld [vmem:[#allocation2 + $0x158] sm:$0xff]
          %v1599 = vld [vmem:[#allocation2 + $0x160] sm:$0xff]
          %v1600 = vld [vmem:[#allocation2 + $0x168] sm:$0xff]
          %v1601 = vld [vmem:[#allocation2 + $0x170] sm:$0xff]
          %v1602 = vld [vmem:[#allocation2 + $0x178] sm:$0xff]
          %v1603 = vld [vmem:[#allocation2 + $0x180] sm:$0xff]
          %v1604 = vld [vmem:[#allocation2 + $0x188] sm:$0xff]
          %v1605 = vld [vmem:[#allocation2 + $0x190] sm:$0xff]
          %v1606 = vld [vmem:[#allocation2 + $0x198] sm:$0xff]
          %v1607 = vld [vmem:[#allocation2 + $0x1a0] sm:$0xff]
          %v1608 = vld [vmem:[#allocation2 + $0x1a8] sm:$0xff]
          %v1609 = vld [vmem:[#allocation2 + $0x1b0] sm:$0xff]
          %v1610 = vld [vmem:[#allocation2 + $0x1b8] sm:$0xff]
          %v1611 = vld [vmem:[#allocation2 + $0x1c0] sm:$0xff]
          %v1612 = vld [vmem:[#allocation2 + $0x1c8] sm:$0xff]
          %v1613 = vld [vmem:[#allocation2 + $0x1d0] sm:$0xff]
          %v1614 = vld [vmem:[#allocation2 + $0x1d8] sm:$0xff]
          %v1615 = vld [vmem:[#allocation2 + $0x1e0] sm:$0xff]
          %v1616 = vld [vmem:[#allocation2 + $0x1e8] sm:$0xff]
          %v1617 = vld [vmem:[#allocation2 + $0x1f0] sm:$0xff]
          %v1618 = vld [vmem:[#allocation2 + $0x1f8] sm:$0xff]
          %v1619 = vld [vmem:[#allocation2 + $0x200] sm:$0xff]
          %v1620 = vld [vmem:[#allocation2 + $0x208] sm:$0xff]
          %v1621 = vld [vmem:[#allocation2 + $0x210] sm:$0xff]
          %v1622 = vld [vmem:[#allocation2 + $0x218] sm:$0xff]
          %v1623 = vld [vmem:[#allocation2 + $0x220] sm:$0xff]
          %v1624 = vld [vmem:[#allocation2 + $0x228] sm:$0xff]
          %v1625 = vld [vmem:[#allocation2 + $0x230] sm:$0xff]
          %v1626 = vld [vmem:[#allocation2 + $0x238] sm:$0xff]
          %v1627 = vld [vmem:[#allocation2 + $0x240] sm:$0xff]
          %v1628 = vld [vmem:[#allocation2 + $0x248] sm:$0xff]
          %v1629 = vld [vmem:[#allocation2 + $0x250] sm:$0xff]
          %v1630 = vld [vmem:[#allocation2 + $0x258] sm:$0xff]
          %v1631 = vld [vmem:[#allocation2 + $0x260] sm:$0xff]
          %v1632 = vld [vmem:[#allocation2 + $0x268] sm:$0xff]
          %v1633 = vld [vmem:[#allocation2 + $0x270] sm:$0xff]
          %v1634 = vld [vmem:[#allocation2 + $0x278] sm:$0xff]
          %v1635 = vld [vmem:[#allocation2 + $0x280] sm:$0xff]
          %v1636 = vld [vmem:[#allocation2 + $0x288] sm:$0xff]
          %v1637 = vld [vmem:[#allocation2 + $0x290] sm:$0xff]
          %v1638 = vld [vmem:[#allocation2 + $0x298] sm:$0xff]
          %v1639 = vld [vmem:[#allocation2 + $0x2a0] sm:$0xff]
          %v1640 = vld [vmem:[#allocation2 + $0x2a8] sm:$0xff]
          %v1641 = vld [vmem:[#allocation2 + $0x2b0] sm:$0xff]
          %v1642 = vld [vmem:[#allocation2 + $0x2b8] sm:$0xff]
          %v1643 = vld [vmem:[#allocation2 + $0x2c0] sm:$0xff]
          %v1644 = vld [vmem:[#allocation2 + $0x2c8] sm:$0xff]
          %v1645 = vld [vmem:[#allocation2 + $0x2d0] sm:$0xff]
          %v1646 = vld [vmem:[#allocation2 + $0x2d8] sm:$0xff]
          %v1647 = vld [vmem:[#allocation2 + $0x2e0] sm:$0xff]
          %v1648 = vld [vmem:[#allocation2 + $0x2e8] sm:$0xff]
          %v1649 = vld [vmem:[#allocation2 + $0x2f0] sm:$0xff]
          %v1650 = vld [vmem:[#allocation2 + $0x2f8] sm:$0xff]
          %v1651 = vld [vmem:[#allocation2 + $0x300] sm:$0xff]
          %v1652 = vld [vmem:[#allocation2 + $0x308] sm:$0xff]
          %v1653 = vld [vmem:[#allocation2 + $0x310] sm:$0xff]
          %v1654 = vld [vmem:[#allocation2 + $0x318] sm:$0xff]
          %v1655 = vld [vmem:[#allocation2 + $0x320] sm:$0xff]
          %v1656 = vld [vmem:[#allocation2 + $0x328] sm:$0xff]
          %v1657 = vld [vmem:[#allocation2 + $0x330] sm:$0xff]
          %v1658 = vld [vmem:[#allocation2 + $0x338] sm:$0xff]
          %v1659 = vld [vmem:[#allocation2 + $0x340] sm:$0xff]
          %v1660 = vld [vmem:[#allocation2 + $0x348] sm:$0xff]
          %v1661 = vld [vmem:[#allocation2 + $0x350] sm:$0xff]
          %v1662 = vld [vmem:[#allocation2 + $0x358] sm:$0xff]
          %v1663 = vld [vmem:[#allocation2 + $0x360] sm:$0xff]
          %v1664 = vld [vmem:[#allocation2 + $0x368] sm:$0xff]
          %v1665 = vld [vmem:[#allocation2 + $0x370] sm:$0xff]
          %v1666 = vld [vmem:[#allocation2 + $0x378] sm:$0xff]
          %v1667 = vld [vmem:[#allocation2 + $0x380] sm:$0xff]
          %v1668 = vld [vmem:[#allocation2 + $0x388] sm:$0xff]
          %v1669 = vld [vmem:[#allocation2 + $0x390] sm:$0xff]
          %v1670 = vld [vmem:[#allocation2 + $0x398] sm:$0xff]
          %v1671 = vld [vmem:[#allocation2 + $0x3a0] sm:$0xff]
          %v1672 = vld [vmem:[#allocation2 + $0x3a8] sm:$0xff]
          %v1673 = vld [vmem:[#allocation2 + $0x3b0] sm:$0xff]
          %v1674 = vld [vmem:[#allocation2 + $0x3b8] sm:$0xff]
          %v1675 = vld [vmem:[#allocation2 + $0x3c0] sm:$0xff]
          %v1676 = vld [vmem:[#allocation2 + $0x3c8] sm:$0xff]
          %v1677 = vld [vmem:[#allocation2 + $0x3d0] sm:$0xff]
          %v1678 = vld [vmem:[#allocation2 + $0x3d8] sm:$0xff]
          %v1679 = vld [vmem:[#allocation2 + $0x3e0] sm:$0xff]
          %v1680 = vld [vmem:[#allocation2 + $0x3e8] sm:$0xff]
          %v1681 = vld [vmem:[#allocation2 + $0x3f0] sm:$0xff]
          %v1682 = vld [vmem:[#allocation2 + $0x3f8] sm:$0xff]
          %v1683 = vld [vmem:[%s325] sm:$0xf]
          %v1685 = vlaneseq
          %v1686 = vshrl.u32 %v1685, 7
          %v1687 = vsub.s32 0, %v1686
          %v1688 = vrot.slane %v1683, %v1687
          %v1689 = vlaneseq
          %v1690 = vshrl.u32 %v1689, 7
          %v1691 = vsub.s32 1, %v1690
          %v1692 = vrot.slane %v1683, %v1691
          %v1693 = vlaneseq
          %v1694 = vshrl.u32 %v1693, 7
          %v1695 = vsub.s32 2, %v1694
          %v1696 = vrot.slane %v1683, %v1695
          %v1697 = vlaneseq
          %v1698 = vshrl.u32 %v1697, 7
          %v1699 = vsub.s32 3, %v1698
          %v1700 = vrot.slane %v1683, %v1699
          %v1705 = vadd.f32 %v1555, %v1688
          %v1706 = vadd.f32 %v1556, %v1692
          %v1707 = vadd.f32 %v1557, %v1696
          %v1708 = vadd.f32 %v1558, %v1700
          %v1709 = vadd.f32 %v1559, %v1688
          %v1710 = vadd.f32 %v1560, %v1692
          %v1711 = vadd.f32 %v1561, %v1696
          %v1712 = vadd.f32 %v1562, %v1700
          %v1713 = vadd.f32 %v1563, %v1688
          %v1714 = vadd.f32 %v1564, %v1692
          %v1715 = vadd.f32 %v1565, %v1696
          %v1716 = vadd.f32 %v1566, %v1700
          %v1717 = vadd.f32 %v1567, %v1688
          %v1718 = vadd.f32 %v1568, %v1692
          %v1719 = vadd.f32 %v1569, %v1696
          %v1720 = vadd.f32 %v1570, %v1700
          %v1721 = vadd.f32 %v1571, %v1688
          %v1722 = vadd.f32 %v1572, %v1692
          %v1723 = vadd.f32 %v1573, %v1696
          %v1724 = vadd.f32 %v1574, %v1700
          %v1725 = vadd.f32 %v1575, %v1688
          %v1726 = vadd.f32 %v1576, %v1692
          %v1727 = vadd.f32 %v1577, %v1696
          %v1728 = vadd.f32 %v1578, %v1700
          %v1729 = vadd.f32 %v1579, %v1688
          %v1730 = vadd.f32 %v1580, %v1692
          %v1731 = vadd.f32 %v1581, %v1696
          %v1732 = vadd.f32 %v1582, %v1700
          %v1733 = vadd.f32 %v1583, %v1688
          %v1734 = vadd.f32 %v1584, %v1692
          %v1735 = vadd.f32 %v1585, %v1696
          %v1736 = vadd.f32 %v1586, %v1700
          %v1737 = vadd.f32 %v1587, %v1688
          %v1738 = vadd.f32 %v1588, %v1692
          %v1739 = vadd.f32 %v1589, %v1696
          %v1740 = vadd.f32 %v1590, %v1700
          %v1741 = vadd.f32 %v1591, %v1688
          %v1742 = vadd.f32 %v1592, %v1692
          %v1743 = vadd.f32 %v1593, %v1696
          %v1744 = vadd.f32 %v1594, %v1700
          %v1745 = vadd.f32 %v1595, %v1688
          %v1746 = vadd.f32 %v1596, %v1692
          %v1747 = vadd.f32 %v1597, %v1696
          %v1748 = vadd.f32 %v1598, %v1700
          %v1749 = vadd.f32 %v1599, %v1688
          %v1750 = vadd.f32 %v1600, %v1692
          %v1751 = vadd.f32 %v1601, %v1696
          %v1752 = vadd.f32 %v1602, %v1700
          %v1753 = vadd.f32 %v1603, %v1688
          %v1754 = vadd.f32 %v1604, %v1692
          %v1755 = vadd.f32 %v1605, %v1696
          %v1756 = vadd.f32 %v1606, %v1700
          %v1757 = vadd.f32 %v1607, %v1688
          %v1758 = vadd.f32 %v1608, %v1692
          %v1759 = vadd.f32 %v1609, %v1696
          %v1760 = vadd.f32 %v1610, %v1700
          %v1761 = vadd.f32 %v1611, %v1688
          %v1762 = vadd.f32 %v1612, %v1692
          %v1763 = vadd.f32 %v1613, %v1696
          %v1764 = vadd.f32 %v1614, %v1700
          %v1765 = vadd.f32 %v1615, %v1688
          %v1766 = vadd.f32 %v1616, %v1692
          %v1767 = vadd.f32 %v1617, %v1696
          %v1768 = vadd.f32 %v1618, %v1700
          %v1769 = vadd.f32 %v1619, %v1688
          %v1770 = vadd.f32 %v1620, %v1692
          %v1771 = vadd.f32 %v1621, %v1696
          %v1772 = vadd.f32 %v1622, %v1700
          %v1773 = vadd.f32 %v1623, %v1688
          %v1774 = vadd.f32 %v1624, %v1692
          %v1775 = vadd.f32 %v1625, %v1696
          %v1776 = vadd.f32 %v1626, %v1700
          %v1777 = vadd.f32 %v1627, %v1688
          %v1778 = vadd.f32 %v1628, %v1692
          %v1779 = vadd.f32 %v1629, %v1696
          %v1780 = vadd.f32 %v1630, %v1700
          %v1781 = vadd.f32 %v1631, %v1688
          %v1782 = vadd.f32 %v1632, %v1692
          %v1783 = vadd.f32 %v1633, %v1696
          %v1784 = vadd.f32 %v1634, %v1700
          %v1785 = vadd.f32 %v1635, %v1688
          %v1786 = vadd.f32 %v1636, %v1692
          %v1787 = vadd.f32 %v1637, %v1696
          %v1788 = vadd.f32 %v1638, %v1700
          %v1789 = vadd.f32 %v1639, %v1688
          %v1790 = vadd.f32 %v1640, %v1692
          %v1791 = vadd.f32 %v1641, %v1696
          %v1792 = vadd.f32 %v1642, %v1700
          %v1793 = vadd.f32 %v1643, %v1688
          %v1794 = vadd.f32 %v1644, %v1692
          %v1795 = vadd.f32 %v1645, %v1696
          %v1796 = vadd.f32 %v1646, %v1700
          %v1797 = vadd.f32 %v1647, %v1688
          %v1798 = vadd.f32 %v1648, %v1692
          %v1799 = vadd.f32 %v1649, %v1696
          %v1800 = vadd.f32 %v1650, %v1700
          %v1801 = vadd.f32 %v1651, %v1688
          %v1802 = vadd.f32 %v1652, %v1692
          %v1803 = vadd.f32 %v1653, %v1696
          %v1804 = vadd.f32 %v1654, %v1700
          %v1805 = vadd.f32 %v1655, %v1688
          %v1806 = vadd.f32 %v1656, %v1692
          %v1807 = vadd.f32 %v1657, %v1696
          %v1808 = vadd.f32 %v1658, %v1700
          %v1809 = vadd.f32 %v1659, %v1688
          %v1810 = vadd.f32 %v1660, %v1692
          %v1811 = vadd.f32 %v1661, %v1696
          %v1812 = vadd.f32 %v1662, %v1700
          %v1813 = vadd.f32 %v1663, %v1688
          %v1814 = vadd.f32 %v1664, %v1692
          %v1815 = vadd.f32 %v1665, %v1696
          %v1816 = vadd.f32 %v1666, %v1700
          %v1817 = vadd.f32 %v1667, %v1688
          %v1818 = vadd.f32 %v1668, %v1692
          %v1819 = vadd.f32 %v1669, %v1696
          %v1820 = vadd.f32 %v1670, %v1700
          %v1821 = vadd.f32 %v1671, %v1688
          %v1822 = vadd.f32 %v1672, %v1692
          %v1823 = vadd.f32 %v1673, %v1696
          %v1824 = vadd.f32 %v1674, %v1700
          %v1825 = vadd.f32 %v1675, %v1688
          %v1826 = vadd.f32 %v1676, %v1692
          %v1827 = vadd.f32 %v1677, %v1696
          %v1828 = vadd.f32 %v1678, %v1700
          %v1829 = vadd.f32 %v1679, %v1688
          %v1830 = vadd.f32 %v1680, %v1692
          %v1831 = vadd.f32 %v1681, %v1696
          %v1832 = vadd.f32 %v1682, %v1700
          %1833 = vst [vmem:[%s310] sm:$0xff] %v1705
          %1834 = vst [vmem:[%s310 + $0x8] sm:$0xff] %v1706
          %1835 = vst [vmem:[%s310 + $0x10] sm:$0xff] %v1707
          %1836 = vst [vmem:[%s310 + $0x18] sm:$0xff] %v1708
          %1837 = vst [vmem:[%s310 + $0x20] sm:$0xff] %v1709
          %1838 = vst [vmem:[%s310 + $0x28] sm:$0xff] %v1710
          %1839 = vst [vmem:[%s310 + $0x30] sm:$0xff] %v1711
          %1840 = vst [vmem:[%s310 + $0x38] sm:$0xff] %v1712
          %1841 = vst [vmem:[%s310 + $0x40] sm:$0xff] %v1713
          %1842 = vst [vmem:[%s310 + $0x48] sm:$0xff] %v1714
          %1843 = vst [vmem:[%s310 + $0x50] sm:$0xff] %v1715
          %1844 = vst [vmem:[%s310 + $0x58] sm:$0xff] %v1716
          %1845 = vst [vmem:[%s310 + $0x60] sm:$0xff] %v1717
          %1846 = vst [vmem:[%s310 + $0x68] sm:$0xff] %v1718
          %1847 = vst [vmem:[%s310 + $0x70] sm:$0xff] %v1719
          %1848 = vst [vmem:[%s310 + $0x78] sm:$0xff] %v1720
          %1849 = vst [vmem:[%s310 + $0x80] sm:$0xff] %v1721
          %1850 = vst [vmem:[%s310 + $0x88] sm:$0xff] %v1722
          %1851 = vst [vmem:[%s310 + $0x90] sm:$0xff] %v1723
          %1852 = vst [vmem:[%s310 + $0x98] sm:$0xff] %v1724
          %1853 = vst [vmem:[%s310 + $0xa0] sm:$0xff] %v1725
          %1854 = vst [vmem:[%s310 + $0xa8] sm:$0xff] %v1726
          %1855 = vst [vmem:[%s310 + $0xb0] sm:$0xff] %v1727
          %1856 = vst [vmem:[%s310 + $0xb8] sm:$0xff] %v1728
          %1857 = vst [vmem:[%s310 + $0xc0] sm:$0xff] %v1729
          %1858 = vst [vmem:[%s310 + $0xc8] sm:$0xff] %v1730
          %1859 = vst [vmem:[%s310 + $0xd0] sm:$0xff] %v1731
          %1860 = vst [vmem:[%s310 + $0xd8] sm:$0xff] %v1732
          %1861 = vst [vmem:[%s310 + $0xe0] sm:$0xff] %v1733
          %1862 = vst [vmem:[%s310 + $0xe8] sm:$0xff] %v1734
          %1863 = vst [vmem:[%s310 + $0xf0] sm:$0xff] %v1735
          %1864 = vst [vmem:[%s310 + $0xf8] sm:$0xff] %v1736
          %1865 = vst [vmem:[%s310 + $0x100] sm:$0xff] %v1737
          %1866 = vst [vmem:[%s310 + $0x108] sm:$0xff] %v1738
          %1867 = vst [vmem:[%s310 + $0x110] sm:$0xff] %v1739
          %1868 = vst [vmem:[%s310 + $0x118] sm:$0xff] %v1740
          %1869 = vst [vmem:[%s310 + $0x120] sm:$0xff] %v1741
          %1870 = vst [vmem:[%s310 + $0x128] sm:$0xff] %v1742
          %1871 = vst [vmem:[%s310 + $0x130] sm:$0xff] %v1743
          %1872 = vst [vmem:[%s310 + $0x138] sm:$0xff] %v1744
          %1873 = vst [vmem:[%s310 + $0x140] sm:$0xff] %v1745
          %1874 = vst [vmem:[%s310 + $0x148] sm:$0xff] %v1746
          %1875 = vst [vmem:[%s310 + $0x150] sm:$0xff] %v1747
          %1876 = vst [vmem:[%s310 + $0x158] sm:$0xff] %v1748
          %1877 = vst [vmem:[%s310 + $0x160] sm:$0xff] %v1749
          %1878 = vst [vmem:[%s310 + $0x168] sm:$0xff] %v1750
          %1879 = vst [vmem:[%s310 + $0x170] sm:$0xff] %v1751
          %1880 = vst [vmem:[%s310 + $0x178] sm:$0xff] %v1752
          %1881 = vst [vmem:[%s310 + $0x180] sm:$0xff] %v1753
          %1882 = vst [vmem:[%s310 + $0x188] sm:$0xff] %v1754
          %1883 = vst [vmem:[%s310 + $0x190] sm:$0xff] %v1755
          %1884 = vst [vmem:[%s310 + $0x198] sm:$0xff] %v1756
          %1885 = vst [vmem:[%s310 + $0x1a0] sm:$0xff] %v1757
          %1886 = vst [vmem:[%s310 + $0x1a8] sm:$0xff] %v1758
          %1887 = vst [vmem:[%s310 + $0x1b0] sm:$0xff] %v1759
          %1888 = vst [vmem:[%s310 + $0x1b8] sm:$0xff] %v1760
          %1889 = vst [vmem:[%s310 + $0x1c0] sm:$0xff] %v1761
          %1890 = vst [vmem:[%s310 + $0x1c8] sm:$0xff] %v1762
          %1891 = vst [vmem:[%s310 + $0x1d0] sm:$0xff] %v1763
          %1892 = vst [vmem:[%s310 + $0x1d8] sm:$0xff] %v1764
          %1893 = vst [vmem:[%s310 + $0x1e0] sm:$0xff] %v1765
          %1894 = vst [vmem:[%s310 + $0x1e8] sm:$0xff] %v1766
          %1895 = vst [vmem:[%s310 + $0x1f0] sm:$0xff] %v1767
          %1896 = vst [vmem:[%s310 + $0x1f8] sm:$0xff] %v1768
          %1897 = vst [vmem:[%s310 + $0x200] sm:$0xff] %v1769
          %1898 = vst [vmem:[%s310 + $0x208] sm:$0xff] %v1770
          %1899 = vst [vmem:[%s310 + $0x210] sm:$0xff] %v1771
          %1900 = vst [vmem:[%s310 + $0x218] sm:$0xff] %v1772
          %1901 = vst [vmem:[%s310 + $0x220] sm:$0xff] %v1773
          %1902 = vst [vmem:[%s310 + $0x228] sm:$0xff] %v1774
          %1903 = vst [vmem:[%s310 + $0x230] sm:$0xff] %v1775
          %1904 = vst [vmem:[%s310 + $0x238] sm:$0xff] %v1776
          %1905 = vst [vmem:[%s310 + $0x240] sm:$0xff] %v1777
          %1906 = vst [vmem:[%s310 + $0x248] sm:$0xff] %v1778
          %1907 = vst [vmem:[%s310 + $0x250] sm:$0xff] %v1779
          %1908 = vst [vmem:[%s310 + $0x258] sm:$0xff] %v1780
          %1909 = vst [vmem:[%s310 + $0x260] sm:$0xff] %v1781
          %1910 = vst [vmem:[%s310 + $0x268] sm:$0xff] %v1782
          %1911 = vst [vmem:[%s310 + $0x270] sm:$0xff] %v1783
          %1912 = vst [vmem:[%s310 + $0x278] sm:$0xff] %v1784
          %1913 = vst [vmem:[%s310 + $0x280] sm:$0xff] %v1785
          %1914 = vst [vmem:[%s310 + $0x288] sm:$0xff] %v1786
          %1915 = vst [vmem:[%s310 + $0x290] sm:$0xff] %v1787
          %1916 = vst [vmem:[%s310 + $0x298] sm:$0xff] %v1788
          %1917 = vst [vmem:[%s310 + $0x2a0] sm:$0xff] %v1789
          %1918 = vst [vmem:[%s310 + $0x2a8] sm:$0xff] %v1790
          %1919 = vst [vmem:[%s310 + $0x2b0] sm:$0xff] %v1791
          %1920 = vst [vmem:[%s310 + $0x2b8] sm:$0xff] %v1792
          %1921 = vst [vmem:[%s310 + $0x2c0] sm:$0xff] %v1793
          %1922 = vst [vmem:[%s310 + $0x2c8] sm:$0xff] %v1794
          %1923 = vst [vmem:[%s310 + $0x2d0] sm:$0xff] %v1795
          %1924 = vst [vmem:[%s310 + $0x2d8] sm:$0xff] %v1796
          %1925 = vst [vmem:[%s310 + $0x2e0] sm:$0xff] %v1797
          %1926 = vst [vmem:[%s310 + $0x2e8] sm:$0xff] %v1798
          %1927 = vst [vmem:[%s310 + $0x2f0] sm:$0xff] %v1799
          %1928 = vst [vmem:[%s310 + $0x2f8] sm:$0xff] %v1800
          %1929 = vst [vmem:[%s310 + $0x300] sm:$0xff] %v1801
          %1930 = vst [vmem:[%s310 + $0x308] sm:$0xff] %v1802
          %1931 = vst [vmem:[%s310 + $0x310] sm:$0xff] %v1803
          %1932 = vst [vmem:[%s310 + $0x318] sm:$0xff] %v1804
          %1933 = vst [vmem:[%s310 + $0x320] sm:$0xff] %v1805
          %1934 = vst [vmem:[%s310 + $0x328] sm:$0xff] %v1806
          %1935 = vst [vmem:[%s310 + $0x330] sm:$0xff] %v1807
          %1936 = vst [vmem:[%s310 + $0x338] sm:$0xff] %v1808
          %1937 = vst [vmem:[%s310 + $0x340] sm:$0xff] %v1809
          %1938 = vst [vmem:[%s310 + $0x348] sm:$0xff] %v1810
          %1939 = vst [vmem:[%s310 + $0x350] sm:$0xff] %v1811
          %1940 = vst [vmem:[%s310 + $0x358] sm:$0xff] %v1812
          %1941 = vst [vmem:[%s310 + $0x360] sm:$0xff] %v1813
          %1942 = vst [vmem:[%s310 + $0x368] sm:$0xff] %v1814
          %1943 = vst [vmem:[%s310 + $0x370] sm:$0xff] %v1815
          %1944 = vst [vmem:[%s310 + $0x378] sm:$0xff] %v1816
          %1945 = vst [vmem:[%s310 + $0x380] sm:$0xff] %v1817
          %1946 = vst [vmem:[%s310 + $0x388] sm:$0xff] %v1818
          %1947 = vst [vmem:[%s310 + $0x390] sm:$0xff] %v1819
          %1948 = vst [vmem:[%s310 + $0x398] sm:$0xff] %v1820
          %1949 = vst [vmem:[%s310 + $0x3a0] sm:$0xff] %v1821
          %1950 = vst [vmem:[%s310 + $0x3a8] sm:$0xff] %v1822
          %1951 = vst [vmem:[%s310 + $0x3b0] sm:$0xff] %v1823
          %1952 = vst [vmem:[%s310 + $0x3b8] sm:$0xff] %v1824
          %1953 = vst [vmem:[%s310 + $0x3c0] sm:$0xff] %v1825
          %1954 = vst [vmem:[%s310 + $0x3c8] sm:$0xff] %v1826
          %1955 = vst [vmem:[%s310 + $0x3d0] sm:$0xff] %v1827
          %1956 = vst [vmem:[%s310 + $0x3d8] sm:$0xff] %v1828
          %1957 = vst [vmem:[%s310 + $0x3e0] sm:$0xff] %v1829
          %1958 = vst [vmem:[%s310 + $0x3e8] sm:$0xff] %v1830
          %1959 = vst [vmem:[%s310 + $0x3f0] sm:$0xff] %v1831
          %1960 = vst [vmem:[%s310 + $0x3f8] sm:$0xff] %v1832
        $region63: #{attention_forward.4} parent=50 // pred_fallthru
          _
        %s1961 = sand.u32 %s125, 1
        %s1962 = sand.u32 %s125, 1
        %s1963 = smul.addr %s1962, 1024
        %s1964 = scalar_lea.vmem [#allocation4], %s1963
        // Predicated region
        $region64: #{attention_forward.4} parent=50 // pred_check
          %p1965 = pneg %p135
        $region65: #{attention_forward.4} parent=50 // pred_check_branch
          %1967 = sbr.rel (%p1965) target = $region67
        $region66: #{attention_forward.4} parent=50 // pred_region
          %s1968 = smul.u32 32, %s19
          %s1969 = smul.u32 4, %s20
          %s1970 = smul.addr %s1968, 8
          %s1971 = sadd.s32 %s1969, %s1970
          %s1972 = smul.addr %s1971, 8
          %s1973 = scalar_lea.vmem %s3, %s1972
          // Predicated region
          $region68: #{attention_forward.4} parent=66 // pred_check
            _
          $region69: #{attention_forward.4} parent=66 // pred_check_branch
            %1975 = sbr.rel (0) target = $region71
          $region70: #{attention_forward.4} parent=66 // pred_region
            // Predicated region
            $region72: #{attention_forward.4} parent=70 // pred_check
              _
            $region73: #{attention_forward.4} parent=70 // pred_check_branch
              %1977 = sbr.rel (0) target = $region75
            $region74: #{attention_forward.4} parent=70 // pred_region
              loop: start=0, step=1, limit=1
              $region76: #{attention_forward.4} parent=74 // loop_pre_header
                _
              $region77: #{attention_forward.4} parent=74 // loop_header
                %s1979 = sphi 0, %s1983
                %p1980 = scmp.ge.s32.totalorder %s1979, 1
                %s1984 = sphi %s1964, %s1964
                %s1985 = sphi %s1973, %s1973
              $region78: #{attention_forward.4} parent=74 // loop_header_branch
                %1982 = sbr.rel (%p1980) target = $region82
              $region79: #{attention_forward.4} parent=74 // loop_body
                %v1986 = vld [vmem:[%s1984] sm:$0xff]
                %1987 = vst [vmem:[%s1985] sm:$0xff] %v1986
                %v1988 = vld [vmem:[%s1984 + $0x8] sm:$0xff]
                %1989 = vst [vmem:[%s1985 + $0x8] sm:$0xff] %v1988
                %v1990 = vld [vmem:[%s1984 + $0x10] sm:$0xff]
                %1991 = vst [vmem:[%s1985 + $0x10] sm:$0xff] %v1990
                %v1992 = vld [vmem:[%s1984 + $0x18] sm:$0xff]
                %1993 = vst [vmem:[%s1985 + $0x18] sm:$0xff] %v1992
                %v1994 = vld [vmem:[%s1984 + $0x20] sm:$0xff]
                %1995 = vst [vmem:[%s1985 + $0x40] sm:$0xff] %v1994
                %v1996 = vld [vmem:[%s1984 + $0x28] sm:$0xff]
                %1997 = vst [vmem:[%s1985 + $0x48] sm:$0xff] %v1996
                %v1998 = vld [vmem:[%s1984 + $0x30] sm:$0xff]
                %1999 = vst [vmem:[%s1985 + $0x50] sm:$0xff] %v1998
                %v2000 = vld [vmem:[%s1984 + $0x38] sm:$0xff]
                %2001 = vst [vmem:[%s1985 + $0x58] sm:$0xff] %v2000
                %v2002 = vld [vmem:[%s1984 + $0x40] sm:$0xff]
                %2003 = vst [vmem:[%s1985 + $0x80] sm:$0xff] %v2002
                %v2004 = vld [vmem:[%s1984 + $0x48] sm:$0xff]
                %2005 = vst [vmem:[%s1985 + $0x88] sm:$0xff] %v2004
                %v2006 = vld [vmem:[%s1984 + $0x50] sm:$0xff]
                %2007 = vst [vmem:[%s1985 + $0x90] sm:$0xff] %v2006
                %v2008 = vld [vmem:[%s1984 + $0x58] sm:$0xff]
                %2009 = vst [vmem:[%s1985 + $0x98] sm:$0xff] %v2008
                %v2010 = vld [vmem:[%s1984 + $0x60] sm:$0xff]
                %2011 = vst [vmem:[%s1985 + $0xc0] sm:$0xff] %v2010
                %v2012 = vld [vmem:[%s1984 + $0x68] sm:$0xff]
                %2013 = vst [vmem:[%s1985 + $0xc8] sm:$0xff] %v2012
                %v2014 = vld [vmem:[%s1984 + $0x70] sm:$0xff]
                %2015 = vst [vmem:[%s1985 + $0xd0] sm:$0xff] %v2014
                %v2016 = vld [vmem:[%s1984 + $0x78] sm:$0xff]
                %2017 = vst [vmem:[%s1985 + $0xd8] sm:$0xff] %v2016
                %v2018 = vld [vmem:[%s1984 + $0x80] sm:$0xff]
                %2019 = vst [vmem:[%s1985 + $0x100] sm:$0xff] %v2018
                %v2020 = vld [vmem:[%s1984 + $0x88] sm:$0xff]
                %2021 = vst [vmem:[%s1985 + $0x108] sm:$0xff] %v2020
                %v2022 = vld [vmem:[%s1984 + $0x90] sm:$0xff]
                %2023 = vst [vmem:[%s1985 + $0x110] sm:$0xff] %v2022
                %v2024 = vld [vmem:[%s1984 + $0x98] sm:$0xff]
                %2025 = vst [vmem:[%s1985 + $0x118] sm:$0xff] %v2024
                %v2026 = vld [vmem:[%s1984 + $0xa0] sm:$0xff]
                %2027 = vst [vmem:[%s1985 + $0x140] sm:$0xff] %v2026
                %v2028 = vld [vmem:[%s1984 + $0xa8] sm:$0xff]
                %2029 = vst [vmem:[%s1985 + $0x148] sm:$0xff] %v2028
                %v2030 = vld [vmem:[%s1984 + $0xb0] sm:$0xff]
                %2031 = vst [vmem:[%s1985 + $0x150] sm:$0xff] %v2030
                %v2032 = vld [vmem:[%s1984 + $0xb8] sm:$0xff]
                %2033 = vst [vmem:[%s1985 + $0x158] sm:$0xff] %v2032
                %v2034 = vld [vmem:[%s1984 + $0xc0] sm:$0xff]
                %2035 = vst [vmem:[%s1985 + $0x180] sm:$0xff] %v2034
                %v2036 = vld [vmem:[%s1984 + $0xc8] sm:$0xff]
                %2037 = vst [vmem:[%s1985 + $0x188] sm:$0xff] %v2036
                %v2038 = vld [vmem:[%s1984 + $0xd0] sm:$0xff]
                %2039 = vst [vmem:[%s1985 + $0x190] sm:$0xff] %v2038
                %v2040 = vld [vmem:[%s1984 + $0xd8] sm:$0xff]
                %2041 = vst [vmem:[%s1985 + $0x198] sm:$0xff] %v2040
                %v2042 = vld [vmem:[%s1984 + $0xe0] sm:$0xff]
                %2043 = vst [vmem:[%s1985 + $0x1c0] sm:$0xff] %v2042
                %v2044 = vld [vmem:[%s1984 + $0xe8] sm:$0xff]
                %2045 = vst [vmem:[%s1985 + $0x1c8] sm:$0xff] %v2044
                %v2046 = vld [vmem:[%s1984 + $0xf0] sm:$0xff]
                %2047 = vst [vmem:[%s1985 + $0x1d0] sm:$0xff] %v2046
                %v2048 = vld [vmem:[%s1984 + $0xf8] sm:$0xff]
                %2049 = vst [vmem:[%s1985 + $0x1d8] sm:$0xff] %v2048
                %v2050 = vld [vmem:[%s1984 + $0x100] sm:$0xff]
                %2051 = vst [vmem:[%s1985 + $0x200] sm:$0xff] %v2050
                %v2052 = vld [vmem:[%s1984 + $0x108] sm:$0xff]
                %2053 = vst [vmem:[%s1985 + $0x208] sm:$0xff] %v2052
                %v2054 = vld [vmem:[%s1984 + $0x110] sm:$0xff]
                %2055 = vst [vmem:[%s1985 + $0x210] sm:$0xff] %v2054
                %v2056 = vld [vmem:[%s1984 + $0x118] sm:$0xff]
                %2057 = vst [vmem:[%s1985 + $0x218] sm:$0xff] %v2056
                %v2058 = vld [vmem:[%s1984 + $0x120] sm:$0xff]
                %2059 = vst [vmem:[%s1985 + $0x240] sm:$0xff] %v2058
                %v2060 = vld [vmem:[%s1984 + $0x128] sm:$0xff]
                %2061 = vst [vmem:[%s1985 + $0x248] sm:$0xff] %v2060
                %v2062 = vld [vmem:[%s1984 + $0x130] sm:$0xff]
                %2063 = vst [vmem:[%s1985 + $0x250] sm:$0xff] %v2062
                %v2064 = vld [vmem:[%s1984 + $0x138] sm:$0xff]
                %2065 = vst [vmem:[%s1985 + $0x258] sm:$0xff] %v2064
                %v2066 = vld [vmem:[%s1984 + $0x140] sm:$0xff]
                %2067 = vst [vmem:[%s1985 + $0x280] sm:$0xff] %v2066
                %v2068 = vld [vmem:[%s1984 + $0x148] sm:$0xff]
                %2069 = vst [vmem:[%s1985 + $0x288] sm:$0xff] %v2068
                %v2070 = vld [vmem:[%s1984 + $0x150] sm:$0xff]
                %2071 = vst [vmem:[%s1985 + $0x290] sm:$0xff] %v2070
                %v2072 = vld [vmem:[%s1984 + $0x158] sm:$0xff]
                %2073 = vst [vmem:[%s1985 + $0x298] sm:$0xff] %v2072
                %v2074 = vld [vmem:[%s1984 + $0x160] sm:$0xff]
                %2075 = vst [vmem:[%s1985 + $0x2c0] sm:$0xff] %v2074
                %v2076 = vld [vmem:[%s1984 + $0x168] sm:$0xff]
                %2077 = vst [vmem:[%s1985 + $0x2c8] sm:$0xff] %v2076
                %v2078 = vld [vmem:[%s1984 + $0x170] sm:$0xff]
                %2079 = vst [vmem:[%s1985 + $0x2d0] sm:$0xff] %v2078
                %v2080 = vld [vmem:[%s1984 + $0x178] sm:$0xff]
                %2081 = vst [vmem:[%s1985 + $0x2d8] sm:$0xff] %v2080
                %v2082 = vld [vmem:[%s1984 + $0x180] sm:$0xff]
                %2083 = vst [vmem:[%s1985 + $0x300] sm:$0xff] %v2082
                %v2084 = vld [vmem:[%s1984 + $0x188] sm:$0xff]
                %2085 = vst [vmem:[%s1985 + $0x308] sm:$0xff] %v2084
                %v2086 = vld [vmem:[%s1984 + $0x190] sm:$0xff]
                %2087 = vst [vmem:[%s1985 + $0x310] sm:$0xff] %v2086
                %v2088 = vld [vmem:[%s1984 + $0x198] sm:$0xff]
                %2089 = vst [vmem:[%s1985 + $0x318] sm:$0xff] %v2088
                %v2090 = vld [vmem:[%s1984 + $0x1a0] sm:$0xff]
                %2091 = vst [vmem:[%s1985 + $0x340] sm:$0xff] %v2090
                %v2092 = vld [vmem:[%s1984 + $0x1a8] sm:$0xff]
                %2093 = vst [vmem:[%s1985 + $0x348] sm:$0xff] %v2092
                %v2094 = vld [vmem:[%s1984 + $0x1b0] sm:$0xff]
                %2095 = vst [vmem:[%s1985 + $0x350] sm:$0xff] %v2094
                %v2096 = vld [vmem:[%s1984 + $0x1b8] sm:$0xff]
                %2097 = vst [vmem:[%s1985 + $0x358] sm:$0xff] %v2096
                %v2098 = vld [vmem:[%s1984 + $0x1c0] sm:$0xff]
                %2099 = vst [vmem:[%s1985 + $0x380] sm:$0xff] %v2098
                %v2100 = vld [vmem:[%s1984 + $0x1c8] sm:$0xff]
                %2101 = vst [vmem:[%s1985 + $0x388] sm:$0xff] %v2100
                %v2102 = vld [vmem:[%s1984 + $0x1d0] sm:$0xff]
                %2103 = vst [vmem:[%s1985 + $0x390] sm:$0xff] %v2102
                %v2104 = vld [vmem:[%s1984 + $0x1d8] sm:$0xff]
                %2105 = vst [vmem:[%s1985 + $0x398] sm:$0xff] %v2104
                %v2106 = vld [vmem:[%s1984 + $0x1e0] sm:$0xff]
                %2107 = vst [vmem:[%s1985 + $0x3c0] sm:$0xff] %v2106
                %v2108 = vld [vmem:[%s1984 + $0x1e8] sm:$0xff]
                %2109 = vst [vmem:[%s1985 + $0x3c8] sm:$0xff] %v2108
                %v2110 = vld [vmem:[%s1984 + $0x1f0] sm:$0xff]
                %2111 = vst [vmem:[%s1985 + $0x3d0] sm:$0xff] %v2110
                %v2112 = vld [vmem:[%s1984 + $0x1f8] sm:$0xff]
                %2113 = vst [vmem:[%s1985 + $0x3d8] sm:$0xff] %v2112
                %v2114 = vld [vmem:[%s1984 + $0x200] sm:$0xff]
                %2115 = vst [vmem:[%s1985 + $0x400] sm:$0xff] %v2114
                %v2116 = vld [vmem:[%s1984 + $0x208] sm:$0xff]
                %2117 = vst [vmem:[%s1985 + $0x408] sm:$0xff] %v2116
                %v2118 = vld [vmem:[%s1984 + $0x210] sm:$0xff]
                %2119 = vst [vmem:[%s1985 + $0x410] sm:$0xff] %v2118
                %v2120 = vld [vmem:[%s1984 + $0x218] sm:$0xff]
                %2121 = vst [vmem:[%s1985 + $0x418] sm:$0xff] %v2120
                %v2122 = vld [vmem:[%s1984 + $0x220] sm:$0xff]
                %2123 = vst [vmem:[%s1985 + $0x440] sm:$0xff] %v2122
                %v2124 = vld [vmem:[%s1984 + $0x228] sm:$0xff]
                %2125 = vst [vmem:[%s1985 + $0x448] sm:$0xff] %v2124
                %v2126 = vld [vmem:[%s1984 + $0x230] sm:$0xff]
                %2127 = vst [vmem:[%s1985 + $0x450] sm:$0xff] %v2126
                %v2128 = vld [vmem:[%s1984 + $0x238] sm:$0xff]
                %2129 = vst [vmem:[%s1985 + $0x458] sm:$0xff] %v2128
                %v2130 = vld [vmem:[%s1984 + $0x240] sm:$0xff]
                %2131 = vst [vmem:[%s1985 + $0x480] sm:$0xff] %v2130
                %v2132 = vld [vmem:[%s1984 + $0x248] sm:$0xff]
                %2133 = vst [vmem:[%s1985 + $0x488] sm:$0xff] %v2132
                %v2134 = vld [vmem:[%s1984 + $0x250] sm:$0xff]
                %2135 = vst [vmem:[%s1985 + $0x490] sm:$0xff] %v2134
                %v2136 = vld [vmem:[%s1984 + $0x258] sm:$0xff]
                %2137 = vst [vmem:[%s1985 + $0x498] sm:$0xff] %v2136
                %v2138 = vld [vmem:[%s1984 + $0x260] sm:$0xff]
                %2139 = vst [vmem:[%s1985 + $0x4c0] sm:$0xff] %v2138
                %v2140 = vld [vmem:[%s1984 + $0x268] sm:$0xff]
                %2141 = vst [vmem:[%s1985 + $0x4c8] sm:$0xff] %v2140
                %v2142 = vld [vmem:[%s1984 + $0x270] sm:$0xff]
                %2143 = vst [vmem:[%s1985 + $0x4d0] sm:$0xff] %v2142
                %v2144 = vld [vmem:[%s1984 + $0x278] sm:$0xff]
                %2145 = vst [vmem:[%s1985 + $0x4d8] sm:$0xff] %v2144
                %v2146 = vld [vmem:[%s1984 + $0x280] sm:$0xff]
                %2147 = vst [vmem:[%s1985 + $0x500] sm:$0xff] %v2146
                %v2148 = vld [vmem:[%s1984 + $0x288] sm:$0xff]
                %2149 = vst [vmem:[%s1985 + $0x508] sm:$0xff] %v2148
                %v2150 = vld [vmem:[%s1984 + $0x290] sm:$0xff]
                %2151 = vst [vmem:[%s1985 + $0x510] sm:$0xff] %v2150
                %v2152 = vld [vmem:[%s1984 + $0x298] sm:$0xff]
                %2153 = vst [vmem:[%s1985 + $0x518] sm:$0xff] %v2152
                %v2154 = vld [vmem:[%s1984 + $0x2a0] sm:$0xff]
                %2155 = vst [vmem:[%s1985 + $0x540] sm:$0xff] %v2154
                %v2156 = vld [vmem:[%s1984 + $0x2a8] sm:$0xff]
                %2157 = vst [vmem:[%s1985 + $0x548] sm:$0xff] %v2156
                %v2158 = vld [vmem:[%s1984 + $0x2b0] sm:$0xff]
                %2159 = vst [vmem:[%s1985 + $0x550] sm:$0xff] %v2158
                %v2160 = vld [vmem:[%s1984 + $0x2b8] sm:$0xff]
                %2161 = vst [vmem:[%s1985 + $0x558] sm:$0xff] %v2160
                %v2162 = vld [vmem:[%s1984 + $0x2c0] sm:$0xff]
                %2163 = vst [vmem:[%s1985 + $0x580] sm:$0xff] %v2162
                %v2164 = vld [vmem:[%s1984 + $0x2c8] sm:$0xff]
                %2165 = vst [vmem:[%s1985 + $0x588] sm:$0xff] %v2164
                %v2166 = vld [vmem:[%s1984 + $0x2d0] sm:$0xff]
                %2167 = vst [vmem:[%s1985 + $0x590] sm:$0xff] %v2166
                %v2168 = vld [vmem:[%s1984 + $0x2d8] sm:$0xff]
                %2169 = vst [vmem:[%s1985 + $0x598] sm:$0xff] %v2168
                %v2170 = vld [vmem:[%s1984 + $0x2e0] sm:$0xff]
                %2171 = vst [vmem:[%s1985 + $0x5c0] sm:$0xff] %v2170
                %v2172 = vld [vmem:[%s1984 + $0x2e8] sm:$0xff]
                %2173 = vst [vmem:[%s1985 + $0x5c8] sm:$0xff] %v2172
                %v2174 = vld [vmem:[%s1984 + $0x2f0] sm:$0xff]
                %2175 = vst [vmem:[%s1985 + $0x5d0] sm:$0xff] %v2174
                %v2176 = vld [vmem:[%s1984 + $0x2f8] sm:$0xff]
                %2177 = vst [vmem:[%s1985 + $0x5d8] sm:$0xff] %v2176
                %v2178 = vld [vmem:[%s1984 + $0x300] sm:$0xff]
                %2179 = vst [vmem:[%s1985 + $0x600] sm:$0xff] %v2178
                %v2180 = vld [vmem:[%s1984 + $0x308] sm:$0xff]
                %2181 = vst [vmem:[%s1985 + $0x608] sm:$0xff] %v2180
                %v2182 = vld [vmem:[%s1984 + $0x310] sm:$0xff]
                %2183 = vst [vmem:[%s1985 + $0x610] sm:$0xff] %v2182
                %v2184 = vld [vmem:[%s1984 + $0x318] sm:$0xff]
                %2185 = vst [vmem:[%s1985 + $0x618] sm:$0xff] %v2184
                %v2186 = vld [vmem:[%s1984 + $0x320] sm:$0xff]
                %2187 = vst [vmem:[%s1985 + $0x640] sm:$0xff] %v2186
                %v2188 = vld [vmem:[%s1984 + $0x328] sm:$0xff]
                %2189 = vst [vmem:[%s1985 + $0x648] sm:$0xff] %v2188
                %v2190 = vld [vmem:[%s1984 + $0x330] sm:$0xff]
                %2191 = vst [vmem:[%s1985 + $0x650] sm:$0xff] %v2190
                %v2192 = vld [vmem:[%s1984 + $0x338] sm:$0xff]
                %2193 = vst [vmem:[%s1985 + $0x658] sm:$0xff] %v2192
                %v2194 = vld [vmem:[%s1984 + $0x340] sm:$0xff]
                %2195 = vst [vmem:[%s1985 + $0x680] sm:$0xff] %v2194
                %v2196 = vld [vmem:[%s1984 + $0x348] sm:$0xff]
                %2197 = vst [vmem:[%s1985 + $0x688] sm:$0xff] %v2196
                %v2198 = vld [vmem:[%s1984 + $0x350] sm:$0xff]
                %2199 = vst [vmem:[%s1985 + $0x690] sm:$0xff] %v2198
                %v2200 = vld [vmem:[%s1984 + $0x358] sm:$0xff]
                %2201 = vst [vmem:[%s1985 + $0x698] sm:$0xff] %v2200
                %v2202 = vld [vmem:[%s1984 + $0x360] sm:$0xff]
                %2203 = vst [vmem:[%s1985 + $0x6c0] sm:$0xff] %v2202
                %v2204 = vld [vmem:[%s1984 + $0x368] sm:$0xff]
                %2205 = vst [vmem:[%s1985 + $0x6c8] sm:$0xff] %v2204
                %v2206 = vld [vmem:[%s1984 + $0x370] sm:$0xff]
                %2207 = vst [vmem:[%s1985 + $0x6d0] sm:$0xff] %v2206
                %v2208 = vld [vmem:[%s1984 + $0x378] sm:$0xff]
                %2209 = vst [vmem:[%s1985 + $0x6d8] sm:$0xff] %v2208
                %v2210 = vld [vmem:[%s1984 + $0x380] sm:$0xff]
                %2211 = vst [vmem:[%s1985 + $0x700] sm:$0xff] %v2210
                %v2212 = vld [vmem:[%s1984 + $0x388] sm:$0xff]
                %2213 = vst [vmem:[%s1985 + $0x708] sm:$0xff] %v2212
                %v2214 = vld [vmem:[%s1984 + $0x390] sm:$0xff]
                %2215 = vst [vmem:[%s1985 + $0x710] sm:$0xff] %v2214
                %v2216 = vld [vmem:[%s1984 + $0x398] sm:$0xff]
                %2217 = vst [vmem:[%s1985 + $0x718] sm:$0xff] %v2216
                %v2218 = vld [vmem:[%s1984 + $0x3a0] sm:$0xff]
                %2219 = vst [vmem:[%s1985 + $0x740] sm:$0xff] %v2218
                %v2220 = vld [vmem:[%s1984 + $0x3a8] sm:$0xff]
                %2221 = vst [vmem:[%s1985 + $0x748] sm:$0xff] %v2220
                %v2222 = vld [vmem:[%s1984 + $0x3b0] sm:$0xff]
                %2223 = vst [vmem:[%s1985 + $0x750] sm:$0xff] %v2222
                %v2224 = vld [vmem:[%s1984 + $0x3b8] sm:$0xff]
                %2225 = vst [vmem:[%s1985 + $0x758] sm:$0xff] %v2224
                %v2226 = vld [vmem:[%s1984 + $0x3c0] sm:$0xff]
                %2227 = vst [vmem:[%s1985 + $0x780] sm:$0xff] %v2226
                %v2228 = vld [vmem:[%s1984 + $0x3c8] sm:$0xff]
                %2229 = vst [vmem:[%s1985 + $0x788] sm:$0xff] %v2228
                %v2230 = vld [vmem:[%s1984 + $0x3d0] sm:$0xff]
                %2231 = vst [vmem:[%s1985 + $0x790] sm:$0xff] %v2230
                %v2232 = vld [vmem:[%s1984 + $0x3d8] sm:$0xff]
                %2233 = vst [vmem:[%s1985 + $0x798] sm:$0xff] %v2232
                %v2234 = vld [vmem:[%s1984 + $0x3e0] sm:$0xff]
                %2235 = vst [vmem:[%s1985 + $0x7c0] sm:$0xff] %v2234
                %v2236 = vld [vmem:[%s1984 + $0x3e8] sm:$0xff]
                %2237 = vst [vmem:[%s1985 + $0x7c8] sm:$0xff] %v2236
                %v2238 = vld [vmem:[%s1984 + $0x3f0] sm:$0xff]
                %2239 = vst [vmem:[%s1985 + $0x7d0] sm:$0xff] %v2238
                %v2240 = vld [vmem:[%s1984 + $0x3f8] sm:$0xff]
                %2241 = vst [vmem:[%s1985 + $0x7d8] sm:$0xff] %v2240
              $region80: #{attention_forward.4} parent=74 // loop_footer
                %s1983 = sadd.s32 1, %s1979
              $region81: #{attention_forward.4} parent=74 // loop_footer_branch
                %1978 = sbr.rel target = $region77
              $region82: #{attention_forward.4} parent=74 // loop_exit
                _
            $region75: #{attention_forward.4} parent=70 // pred_fallthru
              _
            // Predicated region
            $region83: #{attention_forward.4} parent=70 // pred_check
              _
            $region84: #{attention_forward.4} parent=70 // pred_check_branch
              %2243 = sbr.rel target = $region86
            $region85: #{attention_forward.4} parent=70 // pred_region
              _
            $region86: #{attention_forward.4} parent=70 // pred_fallthru
              _
          $region71: #{attention_forward.4} parent=66 // pred_fallthru
            _
          %2244 = vnop
        $region67: #{attention_forward.4} parent=50 // pred_fallthru
          _
      $region51: #{attention_forward.4} parent=5 // pred_fallthru
        _
      %p2245 = scmp.le.s32.totalorder 2, %s9
      // Predicated region
      $region87: #{attention_forward.4} parent=5 // pred_check
        %p2246 = pneg %p2245
      $region88: #{attention_forward.4} parent=5 // pred_check_branch
        %2248 = sbr.rel (%p2246) target = $region90
      $region89: #{attention_forward.4} parent=5 // pred_region
        %s2249 = ssub.s32 %s9, 2
        // Predicated region
        $region91: #{attention_forward.4} parent=89 // pred_check
          %p2250 = pneg %p141
        $region92: #{attention_forward.4} parent=89 // pred_check_branch
          %2252 = sbr.rel (%p2250) target = $region94
        $region93: #{attention_forward.4} parent=89 // pred_region
          %s2253 = sand.u32 %s126, 1
          %s2254 = sand.u32 %s126, 1
          %s2255 = smul.addr %s2254, 1024
          %s2256 = scalar_lea.vmem [#allocation4], %s2255
        $region94: #{attention_forward.4} parent=89 // pred_fallthru
          _
      $region90: #{attention_forward.4} parent=5 // pred_fallthru
        _
    $region6: #{attention_forward.4} parent=1 // loop_footer
      %s13 = sadd.s32 1, %s9
    $region7: #{attention_forward.4} parent=1 // loop_footer_branch
      %8 = sbr.rel target = $region3
    $region8: #{attention_forward.4} parent=1 // loop_exit
      _

// kernel: attention_forward.6
$region0: #{attention_forward.6}
  #allocation0 [shape = 'u32[]', space=smem, size = 0x4, offset = 0x4, fixed_abs, tag = 'smem constant byte address 0x4 - core index']
  #allocation1 [shape = 'u32[144,128]{1,0:T(1,128)}', space=vmem, size = 0x12000, scoped, tag = 'internal scratch']
  #allocation2 [shape = 'f32[128,256]{1,0:T(8,128)}', space=vmem, size = 0x20000, scoped, tag = 'scratch operand']
  %s0 = inlined_call_operand.vmem [shape: bf16[128,5120], index: 0, kind: input, shape index: {}]
  %s1 = inlined_call_operand.vmem [shape: bf16[5120,256], index: 1, kind: input, shape index: {}]
  %s2 = inlined_call_operand.vmem [shape: f32[1,256], index: 2, kind: input, shape index: {}]
  %s3 = inlined_call_operand.vmem [shape: f32[128,256], index: 3, kind: output, shape index: {}]
  %s4 = sld [smem:[#allocation0]]
  $region76: #{attention_forward.6} parent=0
    _
  %s6 = ssub.s32 1, %s4
  %s7 = scalar_select 0, %s6, %s4
  $region1: #{attention_forward.6} parent=0
    #allocation3 [shape = 'u8[524288]{0}', space=vmem, size = 0x80000, scoped, tag = 'input window, operand 0']
    loop: start=0, step=1, limit=7
    $region2: #{attention_forward.6} parent=1 // loop_pre_header
      _
    $region3: #{attention_forward.6} parent=1 // loop_header
      %s9 = sphi 0, %s13
      %p10 = scmp.ge.s32.totalorder %s9, 7
      %s16 = sphi 0, %s35
      %s17 = sphi 0, %s31
      %s18 = sphi 0, %s27
      %s19 = sphi 0, %s16
      %s20 = sphi 0, %s17
      %s21 = sphi 0, %s18
      %s22 = sphi 0, %s19
      %s23 = sphi 0, %s20
      %s24 = sphi 0, %s21
      %s40 = sphi 0, %s42
      %s43 = sphi 0, %s40
      %s44 = sphi 0, %s43
      %s60 = sphi 0, %s44
      %s68 = sphi 0, %s70
      %s71 = sphi 0, %s68
      %s72 = sphi 0, %s71
      %s88 = sphi 0, %s72
      %s94 = sphi 0, %s96
      %s97 = sphi 0, %s94
      %s98 = sphi 0, %s97
      %s114 = sphi 0, %s98
      %s122 = sphi 0, %s124
      %s125 = sphi 0, %s122
      %s126 = sphi 0, %s125
      %s142 = sphi 0, %s126
    $region4: #{attention_forward.6} parent=1 // loop_header_branch
      %12 = sbr.rel (%p10) target = $region8
    $region5: #{attention_forward.6} parent=1 // loop_body
      %s14 = ssub.s32 %s9, 1
      %s15 = ssub.s32 %s9, 2
      %s25 = sadd.s32 1, %s18
      %p26 = scmp.ge.s32.totalorder %s25, 5
      %s27 = scalar_select %p26, 0, %s25
      %s28 = sadd.s32 1, %s17
      %s29 = scalar_select %p26, %s28, %s17
      %p30 = scmp.ge.s32.totalorder %s29, 1
      %s31 = scalar_select %p30, 0, %s29
      %s32 = sadd.s32 1, %s16
      %s33 = scalar_select %p30, %s32, %s16
      %p34 = scmp.ge.s32.totalorder %s33, 1
      %s35 = scalar_select %p34, 0, %s33
      %s36 = ssub.s32 %s16, %s35
      %s37 = ssub.s32 %s18, %s27
      %s38 = sor.u32 %s36, %s37
      %p39 = scmp.eq.s32.totalorder %s38, 0
      %s41 = sadd.s32 %s40, 1
      %s42 = scalar_select %p39, %s40, %s41
      %p45 = pneg %p39
      %p46 = scmp.eq.s32.totalorder %s9, 4
      %p47 = por %p45, %p46
      %p48 = scmp.ne.s32.totalorder %s40, %s43
      %p49 = scmp.eq.s32.totalorder %s9, 0
      %p50 = por %p48, %p49
      %p51 = scmp.ne.s32.totalorder %s40, %s43
      %p52 = scmp.eq.s32.totalorder %s14, 4
      %p53 = por %p51, %p52
      %p54 = scmp.ne.s32.totalorder %s43, %s44
      %p55 = scmp.eq.s32.totalorder %s14, 0
      %p56 = por %p54, %p55
      %p57 = scmp.ne.s32.totalorder %s43, %s44
      %p58 = scmp.eq.s32.totalorder %s15, 4
      %p59 = por %p57, %p58
      %p61 = scmp.ne.s32.totalorder %s44, %s60
      %p62 = scmp.eq.s32.totalorder %s15, 0
      %p63 = por %p61, %p62
      %s64 = ssub.s32 %s18, %s27
      %s65 = ssub.s32 %s17, %s31
      %s66 = sor.u32 %s64, %s65
      %p67 = scmp.eq.s32.totalorder %s66, 0
      %s69 = sadd.s32 %s68, 1
      %s70 = scalar_select %p67, %s68, %s69
      %p73 = pneg %p67
      %p74 = scmp.eq.s32.totalorder %s9, 4
      %p75 = por %p73, %p74
      %p76 = scmp.ne.s32.totalorder %s68, %s71
      %p77 = scmp.eq.s32.totalorder %s9, 0
      %p78 = por %p76, %p77
      %p79 = scmp.ne.s32.totalorder %s68, %s71
      %p80 = scmp.eq.s32.totalorder %s14, 4
      %p81 = por %p79, %p80
      %p82 = scmp.ne.s32.totalorder %s71, %s72
      %p83 = scmp.eq.s32.totalorder %s14, 0
      %p84 = por %p82, %p83
      %p85 = scmp.ne.s32.totalorder %s71, %s72
      %p86 = scmp.eq.s32.totalorder %s15, 4
      %p87 = por %p85, %p86
      %p89 = scmp.ne.s32.totalorder %s72, %s88
      %p90 = scmp.eq.s32.totalorder %s15, 0
      %p91 = por %p89, %p90
      %s92 = ssub.s32 %s17, %s31
      %p93 = scmp.eq.s32.totalorder %s92, 0
      %s95 = sadd.s32 %s94, 1
      %s96 = scalar_select %p93, %s94, %s95
      %p99 = pneg %p93
      %p100 = scmp.eq.s32.totalorder %s9, 4
      %p101 = por %p99, %p100
      %p102 = scmp.ne.s32.totalorder %s94, %s97
      %p103 = scmp.eq.s32.totalorder %s9, 0
      %p104 = por %p102, %p103
      %p105 = scmp.ne.s32.totalorder %s94, %s97
      %p106 = scmp.eq.s32.totalorder %s14, 4
      %p107 = por %p105, %p106
      %p108 = scmp.ne.s32.totalorder %s97, %s98
      %p109 = scmp.eq.s32.totalorder %s14, 0
      %p110 = por %p108, %p109
      %p111 = scmp.ne.s32.totalorder %s97, %s98
      %p112 = scmp.eq.s32.totalorder %s15, 4
      %p113 = por %p111, %p112
      %p115 = scmp.ne.s32.totalorder %s98, %s114
      %p116 = scmp.eq.s32.totalorder %s15, 0
      %p117 = por %p115, %p116
      %s118 = ssub.s32 %s16, %s35
      %s119 = ssub.s32 %s17, %s31
      %s120 = sor.u32 %s118, %s119
      %p121 = scmp.eq.s32.totalorder %s120, 0
      %s123 = sadd.s32 %s122, 1
      %s124 = scalar_select %p121, %s122, %s123
      %p127 = pneg %p121
      %p128 = scmp.eq.s32.totalorder %s9, 4
      %p129 = por %p127, %p128
      %p130 = scmp.ne.s32.totalorder %s122, %s125
      %p131 = scmp.eq.s32.totalorder %s9, 0
      %p132 = por %p130, %p131
      %p133 = scmp.ne.s32.totalorder %s122, %s125
      %p134 = scmp.eq.s32.totalorder %s14, 4
      %p135 = por %p133, %p134
      %p136 = scmp.ne.s32.totalorder %s125, %s126
      %p137 = scmp.eq.s32.totalorder %s14, 0
      %p138 = por %p136, %p137
      %p139 = scmp.ne.s32.totalorder %s125, %s126
      %p140 = scmp.eq.s32.totalorder %s15, 4
      %p141 = por %p139, %p140
      %p143 = scmp.ne.s32.totalorder %s126, %s142
      %p144 = scmp.eq.s32.totalorder %s15, 0
      %p145 = por %p143, %p144
      %p146 = scmp.le.s32.totalorder 1, %s9
      %p147 = scmp.lt.s32.totalorder %s9, 6
      %p148 = pnand %p146, %p147
      %p149 = pneg %p148
      // Predicated region
      $region9: #{attention_forward.6} parent=5 // pred_check
        _
      $region10: #{attention_forward.6} parent=5 // pred_check_branch
        %151 = sbr.rel (%p148) target = $region12
      $region11: #{attention_forward.6} parent=5 // pred_region
        %s152 = ssub.s32 %s9, 1
        // Predicated region
        $region13: #{attention_forward.6} parent=11 // pred_check
          %p153 = pneg %p110
        $region14: #{attention_forward.6} parent=11 // pred_check_branch
          %155 = sbr.rel (%p153) target = $region16
        $region15: #{attention_forward.6} parent=11 // pred_region
          %s156 = smul.u32 2, %s20
          %p157 = scmp.lt.s32.totalorder %s156, 1
          %s158 = scalar_select %p157, %s156, 1
          %s159 = scalar_lea.vmem %s2, %s158
          %s160 = smul.u32 2, %s20
        $region16: #{attention_forward.6} parent=11 // pred_fallthru
          _
      $region12: #{attention_forward.6} parent=5 // pred_fallthru
        _
      %p161 = scmp.lt.s32.totalorder %s9, 5
      // Predicated region
      $region17: #{attention_forward.6} parent=5 // pred_check
        %p162 = pneg %p161
      $region18: #{attention_forward.6} parent=5 // pred_check_branch
        %164 = sbr.rel (%p162) target = $region20
      $region19: #{attention_forward.6} parent=5 // pred_region
        // Predicated region
        $region21: #{attention_forward.6} parent=19 // pred_check
          %p165 = pneg %p50
        $region22: #{attention_forward.6} parent=19 // pred_check_branch
          %167 = sbr.rel (%p165) target = $region24
        $region23: #{attention_forward.6} parent=19 // pred_region
          %s168 = sand.u32 %s40, 1
          %s169 = sand.u32 %s40, 1
          %s170 = smul.addr %s169, 512
          %s171 = scalar_lea.vmem [#allocation3], %s170
          %s172 = smul.u32 16, %s16
          %s173 = smul.u32 8, %s18
          %s174 = smul.addr %s172, 40
          %s175 = sadd.s32 %s173, %s174
          %s176 = smul.addr %s175, 4
          %s177 = scalar_lea.vmem %s0, %s176
          // Predicated region
          $region25: #{attention_forward.6} parent=23 // pred_check
            _
          $region26: #{attention_forward.6} parent=23 // pred_check_branch
            %179 = sbr.rel (0) target = $region28
          $region27: #{attention_forward.6} parent=23 // pred_region
            // Predicated region
            $region29: #{attention_forward.6} parent=27 // pred_check
              _
            $region30: #{attention_forward.6} parent=27 // pred_check_branch
              %181 = sbr.rel (0) target = $region32
            $region31: #{attention_forward.6} parent=27 // pred_region
              loop: start=0, step=1, limit=1
              $region33: #{attention_forward.6} parent=31 // loop_pre_header
                _
              $region34: #{attention_forward.6} parent=31 // loop_header
                %s183 = sphi 0, %s187
                %p184 = scmp.ge.s32.totalorder %s183, 1
                %s188 = sphi %s177, %s177
                %s189 = sphi %s171, %s171
              $region35: #{attention_forward.6} parent=31 // loop_header_branch
                %186 = sbr.rel (%p184) target = $region39
              $region36: #{attention_forward.6} parent=31 // loop_body
                %v190 = vld [vmem:[%s188] sm:$0xff]
                %191 = vst [vmem:[%s189] sm:$0xff] %v190
                %v192 = vld [vmem:[%s188 + $0x8] sm:$0xff]
                %193 = vst [vmem:[%s189 + $0x8] sm:$0xff] %v192
                %v194 = vld [vmem:[%s188 + $0x10] sm:$0xff]
                %195 = vst [vmem:[%s189 + $0x10] sm:$0xff] %v194
                %v196 = vld [vmem:[%s188 + $0x18] sm:$0xff]
                %197 = vst [vmem:[%s189 + $0x18] sm:$0xff] %v196
                %v198 = vld [vmem:[%s188 + $0xa0] sm:$0xff]
                %199 = vst [vmem:[%s189 + $0x20] sm:$0xff] %v198
                %v200 = vld [vmem:[%s188 + $0xa8] sm:$0xff]
                %201 = vst [vmem:[%s189 + $0x28] sm:$0xff] %v200
                %v202 = vld [vmem:[%s188 + $0xb0] sm:$0xff]
                %203 = vst [vmem:[%s189 + $0x30] sm:$0xff] %v202
                %v204 = vld [vmem:[%s188 + $0xb8] sm:$0xff]
                %205 = vst [vmem:[%s189 + $0x38] sm:$0xff] %v204
                %v206 = vld [vmem:[%s188 + $0x140] sm:$0xff]
                %207 = vst [vmem:[%s189 + $0x40] sm:$0xff] %v206
                %v208 = vld [vmem:[%s188 + $0x148] sm:$0xff]
                %209 = vst [vmem:[%s189 + $0x48] sm:$0xff] %v208
                %v210 = vld [vmem:[%s188 + $0x150] sm:$0xff]
                %211 = vst [vmem:[%s189 + $0x50] sm:$0xff] %v210
                %v212 = vld [vmem:[%s188 + $0x158] sm:$0xff]
                %213 = vst [vmem:[%s189 + $0x58] sm:$0xff] %v212
                %v214 = vld [vmem:[%s188 + $0x1e0] sm:$0xff]
                %215 = vst [vmem:[%s189 + $0x60] sm:$0xff] %v214
                %v216 = vld [vmem:[%s188 + $0x1e8] sm:$0xff]
                %217 = vst [vmem:[%s189 + $0x68] sm:$0xff] %v216
                %v218 = vld [vmem:[%s188 + $0x1f0] sm:$0xff]
                %219 = vst [vmem:[%s189 + $0x70] sm:$0xff] %v218
                %v220 = vld [vmem:[%s188 + $0x1f8] sm:$0xff]
                %221 = vst [vmem:[%s189 + $0x78] sm:$0xff] %v220
                %v222 = vld [vmem:[%s188 + $0x280] sm:$0xff]
                %223 = vst [vmem:[%s189 + $0x80] sm:$0xff] %v222
                %v224 = vld [vmem:[%s188 + $0x288] sm:$0xff]
                %225 = vst [vmem:[%s189 + $0x88] sm:$0xff] %v224
                %v226 = vld [vmem:[%s188 + $0x290] sm:$0xff]
                %227 = vst [vmem:[%s189 + $0x90] sm:$0xff] %v226
                %v228 = vld [vmem:[%s188 + $0x298] sm:$0xff]
                %229 = vst [vmem:[%s189 + $0x98] sm:$0xff] %v228
                %v230 = vld [vmem:[%s188 + $0x320] sm:$0xff]
                %231 = vst [vmem:[%s189 + $0xa0] sm:$0xff] %v230
                %v232 = vld [vmem:[%s188 + $0x328] sm:$0xff]
                %233 = vst [vmem:[%s189 + $0xa8] sm:$0xff] %v232
                %v234 = vld [vmem:[%s188 + $0x330] sm:$0xff]
                %235 = vst [vmem:[%s189 + $0xb0] sm:$0xff] %v234
                %v236 = vld [vmem:[%s188 + $0x338] sm:$0xff]
                %237 = vst [vmem:[%s189 + $0xb8] sm:$0xff] %v236
                %v238 = vld [vmem:[%s188 + $0x3c0] sm:$0xff]
                %239 = vst [vmem:[%s189 + $0xc0] sm:$0xff] %v238
                %v240 = vld [vmem:[%s188 + $0x3c8] sm:$0xff]
                %241 = vst [vmem:[%s189 + $0xc8] sm:$0xff] %v240
                %v242 = vld [vmem:[%s188 + $0x3d0] sm:$0xff]
                %243 = vst [vmem:[%s189 + $0xd0] sm:$0xff] %v242
                %v244 = vld [vmem:[%s188 + $0x3d8] sm:$0xff]
                %245 = vst [vmem:[%s189 + $0xd8] sm:$0xff] %v244
                %v246 = vld [vmem:[%s188 + $0x460] sm:$0xff]
                %247 = vst [vmem:[%s189 + $0xe0] sm:$0xff] %v246
                %v248 = vld [vmem:[%s188 + $0x468] sm:$0xff]
                %249 = vst [vmem:[%s189 + $0xe8] sm:$0xff] %v248
                %v250 = vld [vmem:[%s188 + $0x470] sm:$0xff]
                %251 = vst [vmem:[%s189 + $0xf0] sm:$0xff] %v250
                %v252 = vld [vmem:[%s188 + $0x478] sm:$0xff]
                %253 = vst [vmem:[%s189 + $0xf8] sm:$0xff] %v252
                %v254 = vld [vmem:[%s188 + $0x500] sm:$0xff]
                %255 = vst [vmem:[%s189 + $0x100] sm:$0xff] %v254
                %v256 = vld [vmem:[%s188 + $0x508] sm:$0xff]
                %257 = vst [vmem:[%s189 + $0x108] sm:$0xff] %v256
                %v258 = vld [vmem:[%s188 + $0x510] sm:$0xff]
                %259 = vst [vmem:[%s189 + $0x110] sm:$0xff] %v258
                %v260 = vld [vmem:[%s188 + $0x518] sm:$0xff]
                %261 = vst [vmem:[%s189 + $0x118] sm:$0xff] %v260
                %v262 = vld [vmem:[%s188 + $0x5a0] sm:$0xff]
                %263 = vst [vmem:[%s189 + $0x120] sm:$0xff] %v262
                %v264 = vld [vmem:[%s188 + $0x5a8] sm:$0xff]
                %265 = vst [vmem:[%s189 + $0x128] sm:$0xff] %v264
                %v266 = vld [vmem:[%s188 + $0x5b0] sm:$0xff]
                %267 = vst [vmem:[%s189 + $0x130] sm:$0xff] %v266
                %v268 = vld [vmem:[%s188 + $0x5b8] sm:$0xff]
                %269 = vst [vmem:[%s189 + $0x138] sm:$0xff] %v268
                %v270 = vld [vmem:[%s188 + $0x640] sm:$0xff]
                %271 = vst [vmem:[%s189 + $0x140] sm:$0xff] %v270
                %v272 = vld [vmem:[%s188 + $0x648] sm:$0xff]
                %273 = vst [vmem:[%s189 + $0x148] sm:$0xff] %v272
                %v274 = vld [vmem:[%s188 + $0x650] sm:$0xff]
                %275 = vst [vmem:[%s189 + $0x150] sm:$0xff] %v274
                %v276 = vld [vmem:[%s188 + $0x658] sm:$0xff]
                %277 = vst [vmem:[%s189 + $0x158] sm:$0xff] %v276
                %v278 = vld [vmem:[%s188 + $0x6e0] sm:$0xff]
                %279 = vst [vmem:[%s189 + $0x160] sm:$0xff] %v278
                %v280 = vld [vmem:[%s188 + $0x6e8] sm:$0xff]
                %281 = vst [vmem:[%s189 + $0x168] sm:$0xff] %v280
                %v282 = vld [vmem:[%s188 + $0x6f0] sm:$0xff]
                %283 = vst [vmem:[%s189 + $0x170] sm:$0xff] %v282
                %v284 = vld [vmem:[%s188 + $0x6f8] sm:$0xff]
                %285 = vst [vmem:[%s189 + $0x178] sm:$0xff] %v284
                %v286 = vld [vmem:[%s188 + $0x780] sm:$0xff]
                %287 = vst [vmem:[%s189 + $0x180] sm:$0xff] %v286
                %v288 = vld [vmem:[%s188 + $0x788] sm:$0xff]
                %289 = vst [vmem:[%s189 + $0x188] sm:$0xff] %v288
                %v290 = vld [vmem:[%s188 + $0x790] sm:$0xff]
                %291 = vst [vmem:[%s189 + $0x190] sm:$0xff] %v290
                %v292 = vld [vmem:[%s188 + $0x798] sm:$0xff]
                %293 = vst [vmem:[%s189 + $0x198] sm:$0xff] %v292
                %v294 = vld [vmem:[%s188 + $0x820] sm:$0xff]
                %295 = vst [vmem:[%s189 + $0x1a0] sm:$0xff] %v294
                %v296 = vld [vmem:[%s188 + $0x828] sm:$0xff]
                %297 = vst [vmem:[%s189 + $0x1a8] sm:$0xff] %v296
                %v298 = vld [vmem:[%s188 + $0x830] sm:$0xff]
                %299 = vst [vmem:[%s189 + $0x1b0] sm:$0xff] %v298
                %v300 = vld [vmem:[%s188 + $0x838] sm:$0xff]
                %301 = vst [vmem:[%s189 + $0x1b8] sm:$0xff] %v300
                %v302 = vld [vmem:[%s188 + $0x8c0] sm:$0xff]
                %303 = vst [vmem:[%s189 + $0x1c0] sm:$0xff] %v302
                %v304 = vld [vmem:[%s188 + $0x8c8] sm:$0xff]
                %305 = vst [vmem:[%s189 + $0x1c8] sm:$0xff] %v304
                %v306 = vld [vmem:[%s188 + $0x8d0] sm:$0xff]
                %307 = vst [vmem:[%s189 + $0x1d0] sm:$0xff] %v306
                %v308 = vld [vmem:[%s188 + $0x8d8] sm:$0xff]
                %309 = vst [vmem:[%s189 + $0x1d8] sm:$0xff] %v308
                %v310 = vld [vmem:[%s188 + $0x960] sm:$0xff]
                %311 = vst [vmem:[%s189 + $0x1e0] sm:$0xff] %v310
                %v312 = vld [vmem:[%s188 + $0x968] sm:$0xff]
                %313 = vst [vmem:[%s189 + $0x1e8] sm:$0xff] %v312
                %v314 = vld [vmem:[%s188 + $0x970] sm:$0xff]
                %315 = vst [vmem:[%s189 + $0x1f0] sm:$0xff] %v314
                %v316 = vld [vmem:[%s188 + $0x978] sm:$0xff]
                %317 = vst [vmem:[%s189 + $0x1f8] sm:$0xff] %v316
              $region37: #{attention_forward.6} parent=31 // loop_footer
                %s187 = sadd.s32 1, %s183
              $region38: #{attention_forward.6} parent=31 // loop_footer_branch
                %182 = sbr.rel target = $region34
              $region39: #{attention_forward.6} parent=31 // loop_exit
                _
            $region32: #{attention_forward.6} parent=27 // pred_fallthru
              _
            // Predicated region
            $region40: #{attention_forward.6} parent=27 // pred_check
              _
            $region41: #{attention_forward.6} parent=27 // pred_check_branch
              %319 = sbr.rel target = $region43
            $region42: #{attention_forward.6} parent=27 // pred_region
              _
            $region43: #{attention_forward.6} parent=27 // pred_fallthru
              _
          $region28: #{attention_forward.6} parent=23 // pred_fallthru
            _
          %320 = vnop
        $region24: #{attention_forward.6} parent=19 // pred_fallthru
          _
        // Predicated region
        $region44: #{attention_forward.6} parent=19 // pred_check
          %p321 = pneg %p78
        $region45: #{attention_forward.6} parent=19 // pred_check_branch
          %323 = sbr.rel (%p321) target = $region47
        $region46: #{attention_forward.6} parent=19 // pred_region
          %s324 = smul.u32 128, %s18
          %s325 = smul.u32 2, %s17
          %p326 = scmp.lt.s32.totalorder %s324, 639
          %s327 = scalar_select %p326, %s324, 639
          %p328 = scmp.lt.s32.totalorder %s325, 1
          %s329 = scalar_select %p328, %s325, 1
          %s330 = smul.addr %s327, 2
          %s331 = sadd.s32 %s329, %s330
          %s332 = smul.addr %s331, 4
          %s333 = scalar_lea.vmem %s1, %s332
          %s334 = smul.u32 128, %s18
          %s335 = smul.u32 2, %s17
        $region47: #{attention_forward.6} parent=19 // pred_fallthru
          _
      $region20: #{attention_forward.6} parent=5 // pred_fallthru
        _
      %p336 = scmp.le.s32.totalorder 1, %s9
      %p337 = scmp.lt.s32.totalorder %s9, 6
      %p338 = pnand %p336, %p337
      %p339 = pneg %p338
      // Predicated region
      $region48: #{attention_forward.6} parent=5 // pred_check
        _
      $region49: #{attention_forward.6} parent=5 // pred_check_branch
        %341 = sbr.rel (%p338) target = $region51
      $region50: #{attention_forward.6} parent=5 // pred_region
        %s342 = ssub.s32 %s9, 1
        %s343 = sand.u32 %s43, 1
        %s344 = sand.u32 %s43, 1
        %s345 = smul.addr %s344, 512
        %s346 = scalar_lea.vmem [#allocation3], %s345
        // Predicated region
        $region52: #{attention_forward.6} parent=50 // pred_check
          %p347 = pneg %p56
        $region53: #{attention_forward.6} parent=50 // pred_check_branch
          %349 = sbr.rel (%p347) target = $region55
        $region54: #{attention_forward.6} parent=50 // pred_region
          _
        $region55: #{attention_forward.6} parent=50 // pred_fallthru
          _
        %s350 = sand.u32 %s43, 1
        %s351 = sand.u32 %s43, 1
        %s352 = smul.addr %s351, 512
        %s353 = scalar_lea.vmem [#allocation3], %s352
        %p354 = pneg %p56
        %p355 = pneg %p53
        %s356 = smul.u32 128, %s21
        %s357 = smul.u32 2, %s20
        %p358 = scmp.lt.s32.totalorder %s356, 639
        %s359 = scalar_select %p358, %s356, 639
        %p360 = scmp.lt.s32.totalorder %s357, 1
        %s361 = scalar_select %p360, %s357, 1
        %s362 = smul.addr %s359, 2
        %s363 = sadd.s32 %s361, %s362
        %s364 = smul.addr %s363, 4
        %s365 = scalar_lea.vmem %s1, %s364
        %p366 = pneg %p84
        %p367 = pneg %p81
        %s368 = smul.u32 2, %s20
        %p369 = scmp.lt.s32.totalorder %s368, 1
        %s370 = scalar_select %p369, %s368, 1
        %s371 = scalar_lea.vmem %s2, %s370
        %p372 = pneg %p110
        %p373 = pneg %p107
        %p374 = pneg %p138
        %p375 = pneg %p135
        %s376 = smul.u32 16, %s19
        %s377 = smul.u32 2, %s20
        %p378 = scmp.lt.s32.totalorder %s376, 15
        %s379 = scalar_select %p378, %s376, 15
        %p380 = scmp.lt.s32.totalorder %s377, 1
        %s381 = scalar_select %p380, %s377, 1
        %s382 = smul.addr %s379, 2
        %s383 = sadd.s32 %s381, %s382
        %s384 = smul.addr %s383, 8
        %s385 = scalar_lea.vmem %s3, %s384
        %s386 = smul.u32 16, %s19
        %s387 = smul.u32 8, %s21
        %s388 = smul.u32 128, %s21
        %s389 = smul.u32 2, %s20
        %p390 = scmp.lt.s32.totalorder %s388, 639
        %s391 = scalar_select %p390, %s388, 639
        %p392 = scmp.lt.s32.totalorder %s389, 1
        %s393 = scalar_select %p392, %s389, 1
        %s394 = smul.addr %s391, 2
        %s395 = sadd.s32 %s393, %s394
        %s396 = smul.addr %s395, 4
        %s397 = scalar_lea.vmem %s1, %s396
        %s398 = smul.u32 128, %s21
        %s399 = smul.u32 2, %s20
        %s400 = smul.u32 2, %s20
        %p401 = scmp.lt.s32.totalorder %s400, 1
        %s402 = scalar_select %p401, %s400, 1
        %s403 = scalar_lea.vmem %s2, %s402
        %s404 = smul.u32 2, %s20
        %s405 = smul.u32 16, %s19
        %s406 = smul.u32 2, %s20
        %p407 = scmp.lt.s32.totalorder %s405, 15
        %s408 = scalar_select %p407, %s405, 15
        %p409 = scmp.lt.s32.totalorder %s406, 1
        %s410 = scalar_select %p409, %s406, 1
        %s411 = smul.addr %s408, 2
        %s412 = sadd.s32 %s410, %s411
        %s413 = smul.addr %s412, 8
        %s414 = scalar_lea.vmem %s3, %s413
        %s415 = smul.u32 16, %s19
        %s416 = smul.u32 2, %s20
        %p417 = scmp.eq.s32.totalorder %s21, 0
        // Predicated region
        $region56: #{attention_forward.6} parent=50 // pred_check
          %p418 = pneg %p417
        $region57: #{attention_forward.6} parent=50 // pred_check_branch
          %420 = sbr.rel (%p418) target = $region59
        $region58: #{attention_forward.6} parent=50 // pred_region
          %421 = vst [vmem:[#allocation2] sm:$0xff] 0.0
          %422 = vst [vmem:[#allocation2 + $0x8] sm:$0xff] 0.0
          %423 = vst [vmem:[#allocation2 + $0x10] sm:$0xff] 0.0
          %424 = vst [vmem:[#allocation2 + $0x18] sm:$0xff] 0.0
          %425 = vst [vmem:[#allocation2 + $0x20] sm:$0xff] 0.0
          %426 = vst [vmem:[#allocation2 + $0x28] sm:$0xff] 0.0
          %427 = vst [vmem:[#allocation2 + $0x30] sm:$0xff] 0.0
          %428 = vst [vmem:[#allocation2 + $0x38] sm:$0xff] 0.0
          %429 = vst [vmem:[#allocation2 + $0x40] sm:$0xff] 0.0
          %430 = vst [vmem:[#allocation2 + $0x48] sm:$0xff] 0.0
          %431 = vst [vmem:[#allocation2 + $0x50] sm:$0xff] 0.0
          %432 = vst [vmem:[#allocation2 + $0x58] sm:$0xff] 0.0
          %433 = vst [vmem:[#allocation2 + $0x60] sm:$0xff] 0.0
          %434 = vst [vmem:[#allocation2 + $0x68] sm:$0xff] 0.0
          %435 = vst [vmem:[#allocation2 + $0x70] sm:$0xff] 0.0
          %436 = vst [vmem:[#allocation2 + $0x78] sm:$0xff] 0.0
          %437 = vst [vmem:[#allocation2 + $0x80] sm:$0xff] 0.0
          %438 = vst [vmem:[#allocation2 + $0x88] sm:$0xff] 0.0
          %439 = vst [vmem:[#allocation2 + $0x90] sm:$0xff] 0.0
          %440 = vst [vmem:[#allocation2 + $0x98] sm:$0xff] 0.0
          %441 = vst [vmem:[#allocation2 + $0xa0] sm:$0xff] 0.0
          %442 = vst [vmem:[#allocation2 + $0xa8] sm:$0xff] 0.0
          %443 = vst [vmem:[#allocation2 + $0xb0] sm:$0xff] 0.0
          %444 = vst [vmem:[#allocation2 + $0xb8] sm:$0xff] 0.0
          %445 = vst [vmem:[#allocation2 + $0xc0] sm:$0xff] 0.0
          %446 = vst [vmem:[#allocation2 + $0xc8] sm:$0xff] 0.0
          %447 = vst [vmem:[#allocation2 + $0xd0] sm:$0xff] 0.0
          %448 = vst [vmem:[#allocation2 + $0xd8] sm:$0xff] 0.0
          %449 = vst [vmem:[#allocation2 + $0xe0] sm:$0xff] 0.0
          %450 = vst [vmem:[#allocation2 + $0xe8] sm:$0xff] 0.0
          %451 = vst [vmem:[#allocation2 + $0xf0] sm:$0xff] 0.0
          %452 = vst [vmem:[#allocation2 + $0xf8] sm:$0xff] 0.0
        $region59: #{attention_forward.6} parent=50 // pred_fallthru
          _
        %v453 = vld [vmem:[#allocation2] sm:$0xff]
        %v454 = vld [vmem:[#allocation2 + $0x8] sm:$0xff]
        %v455 = vld [vmem:[#allocation2 + $0x10] sm:$0xff]
        %v456 = vld [vmem:[#allocation2 + $0x18] sm:$0xff]
        %v457 = vld [vmem:[#allocation2 + $0x20] sm:$0xff]
        %v458 = vld [vmem:[#allocation2 + $0x28] sm:$0xff]
        %v459 = vld [vmem:[#allocation2 + $0x30] sm:$0xff]
        %v460 = vld [vmem:[#allocation2 + $0x38] sm:$0xff]
        %v461 = vld [vmem:[#allocation2 + $0x40] sm:$0xff]
        %v462 = vld [vmem:[#allocation2 + $0x48] sm:$0xff]
        %v463 = vld [vmem:[#allocation2 + $0x50] sm:$0xff]
        %v464 = vld [vmem:[#allocation2 + $0x58] sm:$0xff]
        %v465 = vld [vmem:[#allocation2 + $0x60] sm:$0xff]
        %v466 = vld [vmem:[#allocation2 + $0x68] sm:$0xff]
        %v467 = vld [vmem:[#allocation2 + $0x70] sm:$0xff]
        %v468 = vld [vmem:[#allocation2 + $0x78] sm:$0xff]
        %v469 = vld [vmem:[#allocation2 + $0x80] sm:$0xff]
        %v470 = vld [vmem:[#allocation2 + $0x88] sm:$0xff]
        %v471 = vld [vmem:[#allocation2 + $0x90] sm:$0xff]
        %v472 = vld [vmem:[#allocation2 + $0x98] sm:$0xff]
        %v473 = vld [vmem:[#allocation2 + $0xa0] sm:$0xff]
        %v474 = vld [vmem:[#allocation2 + $0xa8] sm:$0xff]
        %v475 = vld [vmem:[#allocation2 + $0xb0] sm:$0xff]
        %v476 = vld [vmem:[#allocation2 + $0xb8] sm:$0xff]
        %v477 = vld [vmem:[#allocation2 + $0xc0] sm:$0xff]
        %v478 = vld [vmem:[#allocation2 + $0xc8] sm:$0xff]
        %v479 = vld [vmem:[#allocation2 + $0xd0] sm:$0xff]
        %v480 = vld [vmem:[#allocation2 + $0xd8] sm:$0xff]
        %v481 = vld [vmem:[#allocation2 + $0xe0] sm:$0xff]
        %v482 = vld [vmem:[#allocation2 + $0xe8] sm:$0xff]
        %v483 = vld [vmem:[#allocation2 + $0xf0] sm:$0xff]
        %v484 = vld [vmem:[#allocation2 + $0xf8] sm:$0xff]
        %v485 = vld [vmem:[%s346] sm:$0xff]
        %v486 = vld [vmem:[%s346 + $0x8] sm:$0xff]
        %v487 = vld [vmem:[%s346 + $0x10] sm:$0xff]
        %v488 = vld [vmem:[%s346 + $0x18] sm:$0xff]
        %v489 = vld [vmem:[%s346 + $0x20] sm:$0xff]
        %v490 = vld [vmem:[%s346 + $0x28] sm:$0xff]
        %v491 = vld [vmem:[%s346 + $0x30] sm:$0xff]
        %v492 = vld [vmem:[%s346 + $0x38] sm:$0xff]
        %v493 = vld [vmem:[%s346 + $0x40] sm:$0xff]
        %v494 = vld [vmem:[%s346 + $0x48] sm:$0xff]
        %v495 = vld [vmem:[%s346 + $0x50] sm:$0xff]
        %v496 = vld [vmem:[%s346 + $0x58] sm:$0xff]
        %v497 = vld [vmem:[%s346 + $0x60] sm:$0xff]
        %v498 = vld [vmem:[%s346 + $0x68] sm:$0xff]
        %v499 = vld [vmem:[%s346 + $0x70] sm:$0xff]
        %v500 = vld [vmem:[%s346 + $0x78] sm:$0xff]
        %v501 = vld [vmem:[%s346 + $0x80] sm:$0xff]
        %v502 = vld [vmem:[%s346 + $0x88] sm:$0xff]
        %v503 = vld [vmem:[%s346 + $0x90] sm:$0xff]
        %v504 = vld [vmem:[%s346 + $0x98] sm:$0xff]
        %v505 = vld [vmem:[%s346 + $0xa0] sm:$0xff]
        %v506 = vld [vmem:[%s346 + $0xa8] sm:$0xff]
        %v507 = vld [vmem:[%s346 + $0xb0] sm:$0xff]
        %v508 = vld [vmem:[%s346 + $0xb8] sm:$0xff]
        %v509 = vld [vmem:[%s346 + $0xc0] sm:$0xff]
        %v510 = vld [vmem:[%s346 + $0xc8] sm:$0xff]
        %v511 = vld [vmem:[%s346 + $0xd0] sm:$0xff]
        %v512 = vld [vmem:[%s346 + $0xd8] sm:$0xff]
        %v513 = vld [vmem:[%s346 + $0xe0] sm:$0xff]
        %v514 = vld [vmem:[%s346 + $0xe8] sm:$0xff]
        %v515 = vld [vmem:[%s346 + $0xf0] sm:$0xff]
        %v516 = vld [vmem:[%s346 + $0xf8] sm:$0xff]
        %v517 = vld [vmem:[%s346 + $0x100] sm:$0xff]
        %v518 = vld [vmem:[%s346 + $0x108] sm:$0xff]
        %v519 = vld [vmem:[%s346 + $0x110] sm:$0xff]
        %v520 = vld [vmem:[%s346 + $0x118] sm:$0xff]
        %v521 = vld [vmem:[%s346 + $0x120] sm:$0xff]
        %v522 = vld [vmem:[%s346 + $0x128] sm:$0xff]
        %v523 = vld [vmem:[%s346 + $0x130] sm:$0xff]
        %v524 = vld [vmem:[%s346 + $0x138] sm:$0xff]
        %v525 = vld [vmem:[%s346 + $0x140] sm:$0xff]
        %v526 = vld [vmem:[%s346 + $0x148] sm:$0xff]
        %v527 = vld [vmem:[%s346 + $0x150] sm:$0xff]
        %v528 = vld [vmem:[%s346 + $0x158] sm:$0xff]
        %v529 = vld [vmem:[%s346 + $0x160] sm:$0xff]
        %v530 = vld [vmem:[%s346 + $0x168] sm:$0xff]
        %v531 = vld [vmem:[%s346 + $0x170] sm:$0xff]
        %v532 = vld [vmem:[%s346 + $0x178] sm:$0xff]
        %v533 = vld [vmem:[%s346 + $0x180] sm:$0xff]
        %v534 = vld [vmem:[%s346 + $0x188] sm:$0xff]
        %v535 = vld [vmem:[%s346 + $0x190] sm:$0xff]
        %v536 = vld [vmem:[%s346 + $0x198] sm:$0xff]
        %v537 = vld [vmem:[%s346 + $0x1a0] sm:$0xff]
        %v538 = vld [vmem:[%s346 + $0x1a8] sm:$0xff]
        %v539 = vld [vmem:[%s346 + $0x1b0] sm:$0xff]
        %v540 = vld [vmem:[%s346 + $0x1b8] sm:$0xff]
        %v541 = vld [vmem:[%s346 + $0x1c0] sm:$0xff]
        %v542 = vld [vmem:[%s346 + $0x1c8] sm:$0xff]
        %v543 = vld [vmem:[%s346 + $0x1d0] sm:$0xff]
        %v544 = vld [vmem:[%s346 + $0x1d8] sm:$0xff]
        %v545 = vld [vmem:[%s346 + $0x1e0] sm:$0xff]
        %v546 = vld [vmem:[%s346 + $0x1e8] sm:$0xff]
        %v547 = vld [vmem:[%s346 + $0x1f0] sm:$0xff]
        %v548 = vld [vmem:[%s346 + $0x1f8] sm:$0xff]
        %v549 = vld [vmem:[%s397] sm:$0xff]
        %v550 = vld [vmem:[%s397 + $0x8] sm:$0xff]
        %v551 = vld [vmem:[%s397 + $0x10] sm:$0xff]
        %v552 = vld [vmem:[%s397 + $0x18] sm:$0xff]
        %v553 = vld [vmem:[%s397 + $0x20] sm:$0xff]
        %v554 = vld [vmem:[%s397 + $0x28] sm:$0xff]
        %v555 = vld [vmem:[%s397 + $0x30] sm:$0xff]
        %v556 = vld [vmem:[%s397 + $0x38] sm:$0xff]
        %v557 = vld [vmem:[%s397 + $0x40] sm:$0xff]
        %v558 = vld [vmem:[%s397 + $0x48] sm:$0xff]
        %v559 = vld [vmem:[%s397 + $0x50] sm:$0xff]
        %v560 = vld [vmem:[%s397 + $0x58] sm:$0xff]
        %v561 = vld [vmem:[%s397 + $0x60] sm:$0xff]
        %v562 = vld [vmem:[%s397 + $0x68] sm:$0xff]
        %v563 = vld [vmem:[%s397 + $0x70] sm:$0xff]
        %v564 = vld [vmem:[%s397 + $0x78] sm:$0xff]
        %v565 = vld [vmem:[%s397 + $0x80] sm:$0xff]
        %v566 = vld [vmem:[%s397 + $0x88] sm:$0xff]
        %v567 = vld [vmem:[%s397 + $0x90] sm:$0xff]
        %v568 = vld [vmem:[%s397 + $0x98] sm:$0xff]
        %v569 = vld [vmem:[%s397 + $0xa0] sm:$0xff]
        %v570 = vld [vmem:[%s397 + $0xa8] sm:$0xff]
        %v571 = vld [vmem:[%s397 + $0xb0] sm:$0xff]
        %v572 = vld [vmem:[%s397 + $0xb8] sm:$0xff]
        %v573 = vld [vmem:[%s397 + $0xc0] sm:$0xff]
        %v574 = vld [vmem:[%s397 + $0xc8] sm:$0xff]
        %v575 = vld [vmem:[%s397 + $0xd0] sm:$0xff]
        %v576 = vld [vmem:[%s397 + $0xd8] sm:$0xff]
        %v577 = vld [vmem:[%s397 + $0xe0] sm:$0xff]
        %v578 = vld [vmem:[%s397 + $0xe8] sm:$0xff]
        %v579 = vld [vmem:[%s397 + $0xf0] sm:$0xff]
        %v580 = vld [vmem:[%s397 + $0xf8] sm:$0xff]
        %v581 = vld [vmem:[%s397 + $0x100] sm:$0xff]
        %v582 = vld [vmem:[%s397 + $0x108] sm:$0xff]
        %v583 = vld [vmem:[%s397 + $0x110] sm:$0xff]
        %v584 = vld [vmem:[%s397 + $0x118] sm:$0xff]
        %v585 = vld [vmem:[%s397 + $0x120] sm:$0xff]
        %v586 = vld [vmem:[%s397 + $0x128] sm:$0xff]
        %v587 = vld [vmem:[%s397 + $0x130] sm:$0xff]
        %v588 = vld [vmem:[%s397 + $0x138] sm:$0xff]
        %v589 = vld [vmem:[%s397 + $0x140] sm:$0xff]
        %v590 = vld [vmem:[%s397 + $0x148] sm:$0xff]
        %v591 = vld [vmem:[%s397 + $0x150] sm:$0xff]
        %v592 = vld [vmem:[%s397 + $0x158] sm:$0xff]
        %v593 = vld [vmem:[%s397 + $0x160] sm:$0xff]
        %v594 = vld [vmem:[%s397 + $0x168] sm:$0xff]
        %v595 = vld [vmem:[%s397 + $0x170] sm:$0xff]
        %v596 = vld [vmem:[%s397 + $0x178] sm:$0xff]
        %v597 = vld [vmem:[%s397 + $0x180] sm:$0xff]
        %v598 = vld [vmem:[%s397 + $0x188] sm:$0xff]
        %v599 = vld [vmem:[%s397 + $0x190] sm:$0xff]
        %v600 = vld [vmem:[%s397 + $0x198] sm:$0xff]
        %v601 = vld [vmem:[%s397 + $0x1a0] sm:$0xff]
        %v602 = vld [vmem:[%s397 + $0x1a8] sm:$0xff]
        %v603 = vld [vmem:[%s397 + $0x1b0] sm:$0xff]
        %v604 = vld [vmem:[%s397 + $0x1b8] sm:$0xff]
        %v605 = vld [vmem:[%s397 + $0x1c0] sm:$0xff]
        %v606 = vld [vmem:[%s397 + $0x1c8] sm:$0xff]
        %v607 = vld [vmem:[%s397 + $0x1d0] sm:$0xff]
        %v608 = vld [vmem:[%s397 + $0x1d8] sm:$0xff]
        %v609 = vld [vmem:[%s397 + $0x1e0] sm:$0xff]
        %v610 = vld [vmem:[%s397 + $0x1e8] sm:$0xff]
        %v611 = vld [vmem:[%s397 + $0x1f0] sm:$0xff]
        %v612 = vld [vmem:[%s397 + $0x1f8] sm:$0xff]
        %v613 = vld [vmem:[%s397 + $0x200] sm:$0xff]
        %v614 = vld [vmem:[%s397 + $0x208] sm:$0xff]
        %v615 = vld [vmem:[%s397 + $0x210] sm:$0xff]
        %v616 = vld [vmem:[%s397 + $0x218] sm:$0xff]
        %v617 = vld [vmem:[%s397 + $0x220] sm:$0xff]
        %v618 = vld [vmem:[%s397 + $0x228] sm:$0xff]
        %v619 = vld [vmem:[%s397 + $0x230] sm:$0xff]
        %v620 = vld [vmem:[%s397 + $0x238] sm:$0xff]
        %v621 = vld [vmem:[%s397 + $0x240] sm:$0xff]
        %v622 = vld [vmem:[%s397 + $0x248] sm:$0xff]
        %v623 = vld [vmem:[%s397 + $0x250] sm:$0xff]
        %v624 = vld [vmem:[%s397 + $0x258] sm:$0xff]
        %v625 = vld [vmem:[%s397 + $0x260] sm:$0xff]
        %v626 = vld [vmem:[%s397 + $0x268] sm:$0xff]
        %v627 = vld [vmem:[%s397 + $0x270] sm:$0xff]
        %v628 = vld [vmem:[%s397 + $0x278] sm:$0xff]
        %v629 = vld [vmem:[%s397 + $0x280] sm:$0xff]
        %v630 = vld [vmem:[%s397 + $0x288] sm:$0xff]
        %v631 = vld [vmem:[%s397 + $0x290] sm:$0xff]
        %v632 = vld [vmem:[%s397 + $0x298] sm:$0xff]
        %v633 = vld [vmem:[%s397 + $0x2a0] sm:$0xff]
        %v634 = vld [vmem:[%s397 + $0x2a8] sm:$0xff]
        %v635 = vld [vmem:[%s397 + $0x2b0] sm:$0xff]
        %v636 = vld [vmem:[%s397 + $0x2b8] sm:$0xff]
        %v637 = vld [vmem:[%s397 + $0x2c0] sm:$0xff]
        %v638 = vld [vmem:[%s397 + $0x2c8] sm:$0xff]
        %v639 = vld [vmem:[%s397 + $0x2d0] sm:$0xff]
        %v640 = vld [vmem:[%s397 + $0x2d8] sm:$0xff]
        %v641 = vld [vmem:[%s397 + $0x2e0] sm:$0xff]
        %v642 = vld [vmem:[%s397 + $0x2e8] sm:$0xff]
        %v643 = vld [vmem:[%s397 + $0x2f0] sm:$0xff]
        %v644 = vld [vmem:[%s397 + $0x2f8] sm:$0xff]
        %v645 = vld [vmem:[%s397 + $0x300] sm:$0xff]
        %v646 = vld [vmem:[%s397 + $0x308] sm:$0xff]
        %v647 = vld [vmem:[%s397 + $0x310] sm:$0xff]
        %v648 = vld [vmem:[%s397 + $0x318] sm:$0xff]
        %v649 = vld [vmem:[%s397 + $0x320] sm:$0xff]
        %v650 = vld [vmem:[%s397 + $0x328] sm:$0xff]
        %v651 = vld [vmem:[%s397 + $0x330] sm:$0xff]
        %v652 = vld [vmem:[%s397 + $0x338] sm:$0xff]
        %v653 = vld [vmem:[%s397 + $0x340] sm:$0xff]
        %v654 = vld [vmem:[%s397 + $0x348] sm:$0xff]
        %v655 = vld [vmem:[%s397 + $0x350] sm:$0xff]
        %v656 = vld [vmem:[%s397 + $0x358] sm:$0xff]
        %v657 = vld [vmem:[%s397 + $0x360] sm:$0xff]
        %v658 = vld [vmem:[%s397 + $0x368] sm:$0xff]
        %v659 = vld [vmem:[%s397 + $0x370] sm:$0xff]
        %v660 = vld [vmem:[%s397 + $0x378] sm:$0xff]
        %v661 = vld [vmem:[%s397 + $0x380] sm:$0xff]
        %v662 = vld [vmem:[%s397 + $0x388] sm:$0xff]
        %v663 = vld [vmem:[%s397 + $0x390] sm:$0xff]
        %v664 = vld [vmem:[%s397 + $0x398] sm:$0xff]
        %v665 = vld [vmem:[%s397 + $0x3a0] sm:$0xff]
        %v666 = vld [vmem:[%s397 + $0x3a8] sm:$0xff]
        %v667 = vld [vmem:[%s397 + $0x3b0] sm:$0xff]
        %v668 = vld [vmem:[%s397 + $0x3b8] sm:$0xff]
        %v669 = vld [vmem:[%s397 + $0x3c0] sm:$0xff]
        %v670 = vld [vmem:[%s397 + $0x3c8] sm:$0xff]
        %v671 = vld [vmem:[%s397 + $0x3d0] sm:$0xff]
        %v672 = vld [vmem:[%s397 + $0x3d8] sm:$0xff]
        %v673 = vld [vmem:[%s397 + $0x3e0] sm:$0xff]
        %v674 = vld [vmem:[%s397 + $0x3e8] sm:$0xff]
        %v675 = vld [vmem:[%s397 + $0x3f0] sm:$0xff]
        %v676 = vld [vmem:[%s397 + $0x3f8] sm:$0xff]
        %v741 = vunpack.c.l.b16 %v485
        %v742 = vunpack.c.h.b16 %v485
        %v743 = vunpack.c.l.b16 %v486
        %v744 = vunpack.c.h.b16 %v486
        %v745 = vunpack.c.l.b16 %v487
        %v746 = vunpack.c.h.b16 %v487
        %v747 = vunpack.c.l.b16 %v488
        %v748 = vunpack.c.h.b16 %v488
        %v749 = vunpack.c.l.b16 %v489
        %v750 = vunpack.c.h.b16 %v489
        %v751 = vunpack.c.l.b16 %v490
        %v752 = vunpack.c.h.b16 %v490
        %v753 = vunpack.c.l.b16 %v491
        %v754 = vunpack.c.h.b16 %v491
        %v755 = vunpack.c.l.b16 %v492
        %v756 = vunpack.c.h.b16 %v492
        %v757 = vunpack.c.l.b16 %v493
        %v758 = vunpack.c.h.b16 %v493
        %v759 = vunpack.c.l.b16 %v494
        %v760 = vunpack.c.h.b16 %v494
        %v761 = vunpack.c.l.b16 %v495
        %v762 = vunpack.c.h.b16 %v495
        %v763 = vunpack.c.l.b16 %v496
        %v764 = vunpack.c.h.b16 %v496
        %v765 = vunpack.c.l.b16 %v497
        %v766 = vunpack.c.h.b16 %v497
        %v767 = vunpack.c.l.b16 %v498
        %v768 = vunpack.c.h.b16 %v498
        %v769 = vunpack.c.l.b16 %v499
        %v770 = vunpack.c.h.b16 %v499
        %v771 = vunpack.c.l.b16 %v500
        %v772 = vunpack.c.h.b16 %v500
        %v773 = vunpack.c.l.b16 %v501
        %v774 = vunpack.c.h.b16 %v501
        %v775 = vunpack.c.l.b16 %v502
        %v776 = vunpack.c.h.b16 %v502
        %v777 = vunpack.c.l.b16 %v503
        %v778 = vunpack.c.h.b16 %v503
        %v779 = vunpack.c.l.b16 %v504
        %v780 = vunpack.c.h.b16 %v504
        %v781 = vunpack.c.l.b16 %v505
        %v782 = vunpack.c.h.b16 %v505
        %v783 = vunpack.c.l.b16 %v506
        %v784 = vunpack.c.h.b16 %v506
        %v785 = vunpack.c.l.b16 %v507
        %v786 = vunpack.c.h.b16 %v507
        %v787 = vunpack.c.l.b16 %v508
        %v788 = vunpack.c.h.b16 %v508
        %v789 = vunpack.c.l.b16 %v509
        %v790 = vunpack.c.h.b16 %v509
        %v791 = vunpack.c.l.b16 %v510
        %v792 = vunpack.c.h.b16 %v510
        %v793 = vunpack.c.l.b16 %v511
        %v794 = vunpack.c.h.b16 %v511
        %v795 = vunpack.c.l.b16 %v512
        %v796 = vunpack.c.h.b16 %v512
        %v797 = vunpack.c.l.b16 %v513
        %v798 = vunpack.c.h.b16 %v513
        %v799 = vunpack.c.l.b16 %v514
        %v800 = vunpack.c.h.b16 %v514
        %v801 = vunpack.c.l.b16 %v515
        %v802 = vunpack.c.h.b16 %v515
        %v803 = vunpack.c.l.b16 %v516
        %v804 = vunpack.c.h.b16 %v516
        %v805 = vunpack.c.l.b16 %v517
        %v806 = vunpack.c.h.b16 %v517
        %v807 = vunpack.c.l.b16 %v518
        %v808 = vunpack.c.h.b16 %v518
        %v809 = vunpack.c.l.b16 %v519
        %v810 = vunpack.c.h.b16 %v519
        %v811 = vunpack.c.l.b16 %v520
        %v812 = vunpack.c.h.b16 %v520
        %v813 = vunpack.c.l.b16 %v521
        %v814 = vunpack.c.h.b16 %v521
        %v815 = vunpack.c.l.b16 %v522
        %v816 = vunpack.c.h.b16 %v522
        %v817 = vunpack.c.l.b16 %v523
        %v818 = vunpack.c.h.b16 %v523
        %v819 = vunpack.c.l.b16 %v524
        %v820 = vunpack.c.h.b16 %v524
        %v821 = vunpack.c.l.b16 %v525
        %v822 = vunpack.c.h.b16 %v525
        %v823 = vunpack.c.l.b16 %v526
        %v824 = vunpack.c.h.b16 %v526
        %v825 = vunpack.c.l.b16 %v527
        %v826 = vunpack.c.h.b16 %v527
        %v827 = vunpack.c.l.b16 %v528
        %v828 = vunpack.c.h.b16 %v528
        %v829 = vunpack.c.l.b16 %v529
        %v830 = vunpack.c.h.b16 %v529
        %v831 = vunpack.c.l.b16 %v530
        %v832 = vunpack.c.h.b16 %v530
        %v833 = vunpack.c.l.b16 %v531
        %v834 = vunpack.c.h.b16 %v531
        %v835 = vunpack.c.l.b16 %v532
        %v836 = vunpack.c.h.b16 %v532
        %v837 = vunpack.c.l.b16 %v533
        %v838 = vunpack.c.h.b16 %v533
        %v839 = vunpack.c.l.b16 %v534
        %v840 = vunpack.c.h.b16 %v534
        %v841 = vunpack.c.l.b16 %v535
        %v842 = vunpack.c.h.b16 %v535
        %v843 = vunpack.c.l.b16 %v536
        %v844 = vunpack.c.h.b16 %v536
        %v845 = vunpack.c.l.b16 %v537
        %v846 = vunpack.c.h.b16 %v537
        %v847 = vunpack.c.l.b16 %v538
        %v848 = vunpack.c.h.b16 %v538
        %v849 = vunpack.c.l.b16 %v539
        %v850 = vunpack.c.h.b16 %v539
        %v851 = vunpack.c.l.b16 %v540
        %v852 = vunpack.c.h.b16 %v540
        %v853 = vunpack.c.l.b16 %v541
        %v854 = vunpack.c.h.b16 %v541
        %v855 = vunpack.c.l.b16 %v542
        %v856 = vunpack.c.h.b16 %v542
        %v857 = vunpack.c.l.b16 %v543
        %v858 = vunpack.c.h.b16 %v543
        %v859 = vunpack.c.l.b16 %v544
        %v860 = vunpack.c.h.b16 %v544
        %v861 = vunpack.c.l.b16 %v545
        %v862 = vunpack.c.h.b16 %v545
        %v863 = vunpack.c.l.b16 %v546
        %v864 = vunpack.c.h.b16 %v546
        %v865 = vunpack.c.l.b16 %v547
        %v866 = vunpack.c.h.b16 %v547
        %v867 = vunpack.c.l.b16 %v548
        %v868 = vunpack.c.h.b16 %v548
        %v869 = vpack.c.b16 %v749, %v741
        %v870 = vpack.c.b16 %v750, %v742
        %v871 = vpack.c.b16 %v751, %v743
        %v872 = vpack.c.b16 %v752, %v744
        %v873 = vpack.c.b16 %v753, %v745
        %v874 = vpack.c.b16 %v754, %v746
        %v875 = vpack.c.b16 %v755, %v747
        %v876 = vpack.c.b16 %v756, %v748
        %v877 = vpack.c.b16 %v765, %v757
        %v878 = vpack.c.b16 %v766, %v758
        %v879 = vpack.c.b16 %v767, %v759
        %v880 = vpack.c.b16 %v768, %v760
        %v881 = vpack.c.b16 %v769, %v761
        %v882 = vpack.c.b16 %v770, %v762
        %v883 = vpack.c.b16 %v771, %v763
        %v884 = vpack.c.b16 %v772, %v764
        %v885 = vpack.c.b16 %v781, %v773
        %v886 = vpack.c.b16 %v782, %v774
        %v887 = vpack.c.b16 %v783, %v775
        %v888 = vpack.c.b16 %v784, %v776
        %v889 = vpack.c.b16 %v785, %v777
        %v890 = vpack.c.b16 %v786, %v778
        %v891 = vpack.c.b16 %v787, %v779
        %v892 = vpack.c.b16 %v788, %v780
        %v893 = vpack.c.b16 %v797, %v789
        %v894 = vpack.c.b16 %v798, %v790
        %v895 = vpack.c.b16 %v799, %v791
        %v896 = vpack.c.b16 %v800, %v792
        %v897 = vpack.c.b16 %v801, %v793
        %v898 = vpack.c.b16 %v802, %v794
        %v899 = vpack.c.b16 %v803, %v795
        %v900 = vpack.c.b16 %v804, %v796
        %v901 = vpack.c.b16 %v813, %v805
        %v902 = vpack.c.b16 %v814, %v806
        %v903 = vpack.c.b16 %v815, %v807
        %v904 = vpack.c.b16 %v816, %v808
        %v905 = vpack.c.b16 %v817, %v809
        %v906 = vpack.c.b16 %v818, %v810
        %v907 = vpack.c.b16 %v819, %v811
        %v908 = vpack.c.b16 %v820, %v812
        %v909 = vpack.c.b16 %v829, %v821
        %v910 = vpack.c.b16 %v830, %v822
        %v911 = vpack.c.b16 %v831, %v823
        %v912 = vpack.c.b16 %v832, %v824
        %v913 = vpack.c.b16 %v833, %v825
        %v914 = vpack.c.b16 %v834, %v826
        %v915 = vpack.c.b16 %v835, %v827
        %v916 = vpack.c.b16 %v836, %v828
        %v917 = vpack.c.b16 %v845, %v837
        %v918 = vpack.c.b16 %v846, %v838
        %v919 = vpack.c.b16 %v847, %v839
        %v920 = vpack.c.b16 %v848, %v840
        %v921 = vpack.c.b16 %v849, %v841
        %v922 = vpack.c.b16 %v850, %v842
        %v923 = vpack.c.b16 %v851, %v843
        %v924 = vpack.c.b16 %v852, %v844
        %v925 = vpack.c.b16 %v861, %v853
        %v926 = vpack.c.b16 %v862, %v854
        %v927 = vpack.c.b16 %v863, %v855
        %v928 = vpack.c.b16 %v864, %v856
        %v929 = vpack.c.b16 %v865, %v857
        %v930 = vpack.c.b16 %v866, %v858
        %v931 = vpack.c.b16 %v867, %v859
        %v932 = vpack.c.b16 %v868, %v860
        %v1125 = vunpack.c.l.b16 %v549
        %v1126 = vunpack.c.h.b16 %v549
        %v1127 = vunpack.c.l.b16 %v550
        %v1128 = vunpack.c.h.b16 %v550
        %v1129 = vunpack.c.l.b16 %v551
        %v1130 = vunpack.c.h.b16 %v551
        %v1131 = vunpack.c.l.b16 %v552
        %v1132 = vunpack.c.h.b16 %v552
        %v1133 = vunpack.c.l.b16 %v553
        %v1134 = vunpack.c.h.b16 %v553
        %v1135 = vunpack.c.l.b16 %v554
        %v1136 = vunpack.c.h.b16 %v554
        %v1137 = vunpack.c.l.b16 %v555
        %v1138 = vunpack.c.h.b16 %v555
        %v1139 = vunpack.c.l.b16 %v556
        %v1140 = vunpack.c.h.b16 %v556
        %v1141 = vunpack.c.l.b16 %v557
        %v1142 = vunpack.c.h.b16 %v557
        %v1143 = vunpack.c.l.b16 %v558
        %v1144 = vunpack.c.h.b16 %v558
        %v1145 = vunpack.c.l.b16 %v559
        %v1146 = vunpack.c.h.b16 %v559
        %v1147 = vunpack.c.l.b16 %v560
        %v1148 = vunpack.c.h.b16 %v560
        %v1149 = vunpack.c.l.b16 %v561
        %v1150 = vunpack.c.h.b16 %v561
        %v1151 = vunpack.c.l.b16 %v562
        %v1152 = vunpack.c.h.b16 %v562
        %v1153 = vunpack.c.l.b16 %v563
        %v1154 = vunpack.c.h.b16 %v563
        %v1155 = vunpack.c.l.b16 %v564
        %v1156 = vunpack.c.h.b16 %v564
        %v1157 = vunpack.c.l.b16 %v565
        %v1158 = vunpack.c.h.b16 %v565
        %v1159 = vunpack.c.l.b16 %v566
        %v1160 = vunpack.c.h.b16 %v566
        %v1161 = vunpack.c.l.b16 %v567
        %v1162 = vunpack.c.h.b16 %v567
        %v1163 = vunpack.c.l.b16 %v568
        %v1164 = vunpack.c.h.b16 %v568
        %v1165 = vunpack.c.l.b16 %v569
        %v1166 = vunpack.c.h.b16 %v569
        %v1167 = vunpack.c.l.b16 %v570
        %v1168 = vunpack.c.h.b16 %v570
        %v1169 = vunpack.c.l.b16 %v571
        %v1170 = vunpack.c.h.b16 %v571
        %v1171 = vunpack.c.l.b16 %v572
        %v1172 = vunpack.c.h.b16 %v572
        %v1173 = vunpack.c.l.b16 %v573
        %v1174 = vunpack.c.h.b16 %v573
        %v1175 = vunpack.c.l.b16 %v574
        %v1176 = vunpack.c.h.b16 %v574
        %v1177 = vunpack.c.l.b16 %v575
        %v1178 = vunpack.c.h.b16 %v575
        %v1179 = vunpack.c.l.b16 %v576
        %v1180 = vunpack.c.h.b16 %v576
        %v1181 = vunpack.c.l.b16 %v577
        %v1182 = vunpack.c.h.b16 %v577
        %v1183 = vunpack.c.l.b16 %v578
        %v1184 = vunpack.c.h.b16 %v578
        %v1185 = vunpack.c.l.b16 %v579
        %v1186 = vunpack.c.h.b16 %v579
        %v1187 = vunpack.c.l.b16 %v580
        %v1188 = vunpack.c.h.b16 %v580
        %v1189 = vunpack.c.l.b16 %v581
        %v1190 = vunpack.c.h.b16 %v581
        %v1191 = vunpack.c.l.b16 %v582
        %v1192 = vunpack.c.h.b16 %v582
        %v1193 = vunpack.c.l.b16 %v583
        %v1194 = vunpack.c.h.b16 %v583
        %v1195 = vunpack.c.l.b16 %v584
        %v1196 = vunpack.c.h.b16 %v584
        %v1197 = vunpack.c.l.b16 %v585
        %v1198 = vunpack.c.h.b16 %v585
        %v1199 = vunpack.c.l.b16 %v586
        %v1200 = vunpack.c.h.b16 %v586
        %v1201 = vunpack.c.l.b16 %v587
        %v1202 = vunpack.c.h.b16 %v587
        %v1203 = vunpack.c.l.b16 %v588
        %v1204 = vunpack.c.h.b16 %v588
        %v1205 = vunpack.c.l.b16 %v589
        %v1206 = vunpack.c.h.b16 %v589
        %v1207 = vunpack.c.l.b16 %v590
        %v1208 = vunpack.c.h.b16 %v590
        %v1209 = vunpack.c.l.b16 %v591
        %v1210 = vunpack.c.h.b16 %v591
        %v1211 = vunpack.c.l.b16 %v592
        %v1212 = vunpack.c.h.b16 %v592
        %v1213 = vunpack.c.l.b16 %v593
        %v1214 = vunpack.c.h.b16 %v593
        %v1215 = vunpack.c.l.b16 %v594
        %v1216 = vunpack.c.h.b16 %v594
        %v1217 = vunpack.c.l.b16 %v595
        %v1218 = vunpack.c.h.b16 %v595
        %v1219 = vunpack.c.l.b16 %v596
        %v1220 = vunpack.c.h.b16 %v596
        %v1221 = vunpack.c.l.b16 %v597
        %v1222 = vunpack.c.h.b16 %v597
        %v1223 = vunpack.c.l.b16 %v598
        %v1224 = vunpack.c.h.b16 %v598
        %v1225 = vunpack.c.l.b16 %v599
        %v1226 = vunpack.c.h.b16 %v599
        %v1227 = vunpack.c.l.b16 %v600
        %v1228 = vunpack.c.h.b16 %v600
        %v1229 = vunpack.c.l.b16 %v601
        %v1230 = vunpack.c.h.b16 %v601
        %v1231 = vunpack.c.l.b16 %v602
        %v1232 = vunpack.c.h.b16 %v602
        %v1233 = vunpack.c.l.b16 %v603
        %v1234 = vunpack.c.h.b16 %v603
        %v1235 = vunpack.c.l.b16 %v604
        %v1236 = vunpack.c.h.b16 %v604
        %v1237 = vunpack.c.l.b16 %v605
        %v1238 = vunpack.c.h.b16 %v605
        %v1239 = vunpack.c.l.b16 %v606
        %v1240 = vunpack.c.h.b16 %v606
        %v1241 = vunpack.c.l.b16 %v607
        %v1242 = vunpack.c.h.b16 %v607
        %v1243 = vunpack.c.l.b16 %v608
        %v1244 = vunpack.c.h.b16 %v608
        %v1245 = vunpack.c.l.b16 %v609
        %v1246 = vunpack.c.h.b16 %v609
        %v1247 = vunpack.c.l.b16 %v610
        %v1248 = vunpack.c.h.b16 %v610
        %v1249 = vunpack.c.l.b16 %v611
        %v1250 = vunpack.c.h.b16 %v611
        %v1251 = vunpack.c.l.b16 %v612
        %v1252 = vunpack.c.h.b16 %v612
        %v1253 = vunpack.c.l.b16 %v613
        %v1254 = vunpack.c.h.b16 %v613
        %v1255 = vunpack.c.l.b16 %v614
        %v1256 = vunpack.c.h.b16 %v614
        %v1257 = vunpack.c.l.b16 %v615
        %v1258 = vunpack.c.h.b16 %v615
        %v1259 = vunpack.c.l.b16 %v616
        %v1260 = vunpack.c.h.b16 %v616
        %v1261 = vunpack.c.l.b16 %v617
        %v1262 = vunpack.c.h.b16 %v617
        %v1263 = vunpack.c.l.b16 %v618
        %v1264 = vunpack.c.h.b16 %v618
        %v1265 = vunpack.c.l.b16 %v619
        %v1266 = vunpack.c.h.b16 %v619
        %v1267 = vunpack.c.l.b16 %v620
        %v1268 = vunpack.c.h.b16 %v620
        %v1269 = vunpack.c.l.b16 %v621
        %v1270 = vunpack.c.h.b16 %v621
        %v1271 = vunpack.c.l.b16 %v622
        %v1272 = vunpack.c.h.b16 %v622
        %v1273 = vunpack.c.l.b16 %v623
        %v1274 = vunpack.c.h.b16 %v623
        %v1275 = vunpack.c.l.b16 %v624
        %v1276 = vunpack.c.h.b16 %v624
        %v1277 = vunpack.c.l.b16 %v625
        %v1278 = vunpack.c.h.b16 %v625
        %v1279 = vunpack.c.l.b16 %v626
        %v1280 = vunpack.c.h.b16 %v626
        %v1281 = vunpack.c.l.b16 %v627
        %v1282 = vunpack.c.h.b16 %v627
        %v1283 = vunpack.c.l.b16 %v628
        %v1284 = vunpack.c.h.b16 %v628
        %v1285 = vunpack.c.l.b16 %v629
        %v1286 = vunpack.c.h.b16 %v629
        %v1287 = vunpack.c.l.b16 %v630
        %v1288 = vunpack.c.h.b16 %v630
        %v1289 = vunpack.c.l.b16 %v631
        %v1290 = vunpack.c.h.b16 %v631
        %v1291 = vunpack.c.l.b16 %v632
        %v1292 = vunpack.c.h.b16 %v632
        %v1293 = vunpack.c.l.b16 %v633
        %v1294 = vunpack.c.h.b16 %v633
        %v1295 = vunpack.c.l.b16 %v634
        %v1296 = vunpack.c.h.b16 %v634
        %v1297 = vunpack.c.l.b16 %v635
        %v1298 = vunpack.c.h.b16 %v635
        %v1299 = vunpack.c.l.b16 %v636
        %v1300 = vunpack.c.h.b16 %v636
        %v1301 = vunpack.c.l.b16 %v637
        %v1302 = vunpack.c.h.b16 %v637
        %v1303 = vunpack.c.l.b16 %v638
        %v1304 = vunpack.c.h.b16 %v638
        %v1305 = vunpack.c.l.b16 %v639
        %v1306 = vunpack.c.h.b16 %v639
        %v1307 = vunpack.c.l.b16 %v640
        %v1308 = vunpack.c.h.b16 %v640
        %v1309 = vunpack.c.l.b16 %v641
        %v1310 = vunpack.c.h.b16 %v641
        %v1311 = vunpack.c.l.b16 %v642
        %v1312 = vunpack.c.h.b16 %v642
        %v1313 = vunpack.c.l.b16 %v643
        %v1314 = vunpack.c.h.b16 %v643
        %v1315 = vunpack.c.l.b16 %v644
        %v1316 = vunpack.c.h.b16 %v644
        %v1317 = vunpack.c.l.b16 %v645
        %v1318 = vunpack.c.h.b16 %v645
        %v1319 = vunpack.c.l.b16 %v646
        %v1320 = vunpack.c.h.b16 %v646
        %v1321 = vunpack.c.l.b16 %v647
        %v1322 = vunpack.c.h.b16 %v647
        %v1323 = vunpack.c.l.b16 %v648
        %v1324 = vunpack.c.h.b16 %v648
        %v1325 = vunpack.c.l.b16 %v649
        %v1326 = vunpack.c.h.b16 %v649
        %v1327 = vunpack.c.l.b16 %v650
        %v1328 = vunpack.c.h.b16 %v650
        %v1329 = vunpack.c.l.b16 %v651
        %v1330 = vunpack.c.h.b16 %v651
        %v1331 = vunpack.c.l.b16 %v652
        %v1332 = vunpack.c.h.b16 %v652
        %v1333 = vunpack.c.l.b16 %v653
        %v1334 = vunpack.c.h.b16 %v653
        %v1335 = vunpack.c.l.b16 %v654
        %v1336 = vunpack.c.h.b16 %v654
        %v1337 = vunpack.c.l.b16 %v655
        %v1338 = vunpack.c.h.b16 %v655
        %v1339 = vunpack.c.l.b16 %v656
        %v1340 = vunpack.c.h.b16 %v656
        %v1341 = vunpack.c.l.b16 %v657
        %v1342 = vunpack.c.h.b16 %v657
        %v1343 = vunpack.c.l.b16 %v658
        %v1344 = vunpack.c.h.b16 %v658
        %v1345 = vunpack.c.l.b16 %v659
        %v1346 = vunpack.c.h.b16 %v659
        %v1347 = vunpack.c.l.b16 %v660
        %v1348 = vunpack.c.h.b16 %v660
        %v1349 = vunpack.c.l.b16 %v661
        %v1350 = vunpack.c.h.b16 %v661
        %v1351 = vunpack.c.l.b16 %v662
        %v1352 = vunpack.c.h.b16 %v662
        %v1353 = vunpack.c.l.b16 %v663
        %v1354 = vunpack.c.h.b16 %v663
        %v1355 = vunpack.c.l.b16 %v664
        %v1356 = vunpack.c.h.b16 %v664
        %v1357 = vunpack.c.l.b16 %v665
        %v1358 = vunpack.c.h.b16 %v665
        %v1359 = vunpack.c.l.b16 %v666
        %v1360 = vunpack.c.h.b16 %v666
        %v1361 = vunpack.c.l.b16 %v667
        %v1362 = vunpack.c.h.b16 %v667
        %v1363 = vunpack.c.l.b16 %v668
        %v1364 = vunpack.c.h.b16 %v668
        %v1365 = vunpack.c.l.b16 %v669
        %v1366 = vunpack.c.h.b16 %v669
        %v1367 = vunpack.c.l.b16 %v670
        %v1368 = vunpack.c.h.b16 %v670
        %v1369 = vunpack.c.l.b16 %v671
        %v1370 = vunpack.c.h.b16 %v671
        %v1371 = vunpack.c.l.b16 %v672
        %v1372 = vunpack.c.h.b16 %v672
        %v1373 = vunpack.c.l.b16 %v673
        %v1374 = vunpack.c.h.b16 %v673
        %v1375 = vunpack.c.l.b16 %v674
        %v1376 = vunpack.c.h.b16 %v674
        %v1377 = vunpack.c.l.b16 %v675
        %v1378 = vunpack.c.h.b16 %v675
        %v1379 = vunpack.c.l.b16 %v676
        %v1380 = vunpack.c.h.b16 %v676
        %v1381 = vpack.c.b16 %v1127, %v1125
        %v1382 = vpack.c.b16 %v1128, %v1126
        %v1383 = vpack.c.b16 %v1131, %v1129
        %v1384 = vpack.c.b16 %v1132, %v1130
        %v1385 = vpack.c.b16 %v1135, %v1133
        %v1386 = vpack.c.b16 %v1136, %v1134
        %v1387 = vpack.c.b16 %v1139, %v1137
        %v1388 = vpack.c.b16 %v1140, %v1138
        %v1389 = vpack.c.b16 %v1143, %v1141
        %v1390 = vpack.c.b16 %v1144, %v1142
        %v1391 = vpack.c.b16 %v1147, %v1145
        %v1392 = vpack.c.b16 %v1148, %v1146
        %v1393 = vpack.c.b16 %v1151, %v1149
        %v1394 = vpack.c.b16 %v1152, %v1150
        %v1395 = vpack.c.b16 %v1155, %v1153
        %v1396 = vpack.c.b16 %v1156, %v1154
        %v1397 = vpack.c.b16 %v1159, %v1157
        %v1398 = vpack.c.b16 %v1160, %v1158
        %v1399 = vpack.c.b16 %v1163, %v1161
        %v1400 = vpack.c.b16 %v1164, %v1162
        %v1401 = vpack.c.b16 %v1167, %v1165
        %v1402 = vpack.c.b16 %v1168, %v1166
        %v1403 = vpack.c.b16 %v1171, %v1169
        %v1404 = vpack.c.b16 %v1172, %v1170
        %v1405 = vpack.c.b16 %v1175, %v1173
        %v1406 = vpack.c.b16 %v1176, %v1174
        %v1407 = vpack.c.b16 %v1179, %v1177
        %v1408 = vpack.c.b16 %v1180, %v1178
        %v1409 = vpack.c.b16 %v1183, %v1181
        %v1410 = vpack.c.b16 %v1184, %v1182
        %v1411 = vpack.c.b16 %v1187, %v1185
        %v1412 = vpack.c.b16 %v1188, %v1186
        %v1413 = vpack.c.b16 %v1191, %v1189
        %v1414 = vpack.c.b16 %v1192, %v1190
        %v1415 = vpack.c.b16 %v1195, %v1193
        %v1416 = vpack.c.b16 %v1196, %v1194
        %v1417 = vpack.c.b16 %v1199, %v1197
        %v1418 = vpack.c.b16 %v1200, %v1198
        %v1419 = vpack.c.b16 %v1203, %v1201
        %v1420 = vpack.c.b16 %v1204, %v1202
        %v1421 = vpack.c.b16 %v1207, %v1205
        %v1422 = vpack.c.b16 %v1208, %v1206
        %v1423 = vpack.c.b16 %v1211, %v1209
        %v1424 = vpack.c.b16 %v1212, %v1210
        %v1425 = vpack.c.b16 %v1215, %v1213
        %v1426 = vpack.c.b16 %v1216, %v1214
        %v1427 = vpack.c.b16 %v1219, %v1217
        %v1428 = vpack.c.b16 %v1220, %v1218
        %v1429 = vpack.c.b16 %v1223, %v1221
        %v1430 = vpack.c.b16 %v1224, %v1222
        %v1431 = vpack.c.b16 %v1227, %v1225
        %v1432 = vpack.c.b16 %v1228, %v1226
        %v1433 = vpack.c.b16 %v1231, %v1229
        %v1434 = vpack.c.b16 %v1232, %v1230
        %v1435 = vpack.c.b16 %v1235, %v1233
        %v1436 = vpack.c.b16 %v1236, %v1234
        %v1437 = vpack.c.b16 %v1239, %v1237
        %v1438 = vpack.c.b16 %v1240, %v1238
        %v1439 = vpack.c.b16 %v1243, %v1241
        %v1440 = vpack.c.b16 %v1244, %v1242
        %v1441 = vpack.c.b16 %v1247, %v1245
        %v1442 = vpack.c.b16 %v1248, %v1246
        %v1443 = vpack.c.b16 %v1251, %v1249
        %v1444 = vpack.c.b16 %v1252, %v1250
        %v1445 = vpack.c.b16 %v1255, %v1253
        %v1446 = vpack.c.b16 %v1256, %v1254
        %v1447 = vpack.c.b16 %v1259, %v1257
        %v1448 = vpack.c.b16 %v1260, %v1258
        %v1449 = vpack.c.b16 %v1263, %v1261
        %v1450 = vpack.c.b16 %v1264, %v1262
        %v1451 = vpack.c.b16 %v1267, %v1265
        %v1452 = vpack.c.b16 %v1268, %v1266
        %v1453 = vpack.c.b16 %v1271, %v1269
        %v1454 = vpack.c.b16 %v1272, %v1270
        %v1455 = vpack.c.b16 %v1275, %v1273
        %v1456 = vpack.c.b16 %v1276, %v1274
        %v1457 = vpack.c.b16 %v1279, %v1277
        %v1458 = vpack.c.b16 %v1280, %v1278
        %v1459 = vpack.c.b16 %v1283, %v1281
        %v1460 = vpack.c.b16 %v1284, %v1282
        %v1461 = vpack.c.b16 %v1287, %v1285
        %v1462 = vpack.c.b16 %v1288, %v1286
        %v1463 = vpack.c.b16 %v1291, %v1289
        %v1464 = vpack.c.b16 %v1292, %v1290
        %v1465 = vpack.c.b16 %v1295, %v1293
        %v1466 = vpack.c.b16 %v1296, %v1294
        %v1467 = vpack.c.b16 %v1299, %v1297
        %v1468 = vpack.c.b16 %v1300, %v1298
        %v1469 = vpack.c.b16 %v1303, %v1301
        %v1470 = vpack.c.b16 %v1304, %v1302
        %v1471 = vpack.c.b16 %v1307, %v1305
        %v1472 = vpack.c.b16 %v1308, %v1306
        %v1473 = vpack.c.b16 %v1311, %v1309
        %v1474 = vpack.c.b16 %v1312, %v1310
        %v1475 = vpack.c.b16 %v1315, %v1313
        %v1476 = vpack.c.b16 %v1316, %v1314
        %v1477 = vpack.c.b16 %v1319, %v1317
        %v1478 = vpack.c.b16 %v1320, %v1318
        %v1479 = vpack.c.b16 %v1323, %v1321
        %v1480 = vpack.c.b16 %v1324, %v1322
        %v1481 = vpack.c.b16 %v1327, %v1325
        %v1482 = vpack.c.b16 %v1328, %v1326
        %v1483 = vpack.c.b16 %v1331, %v1329
        %v1484 = vpack.c.b16 %v1332, %v1330
        %v1485 = vpack.c.b16 %v1335, %v1333
        %v1486 = vpack.c.b16 %v1336, %v1334
        %v1487 = vpack.c.b16 %v1339, %v1337
        %v1488 = vpack.c.b16 %v1340, %v1338
        %v1489 = vpack.c.b16 %v1343, %v1341
        %v1490 = vpack.c.b16 %v1344, %v1342
        %v1491 = vpack.c.b16 %v1347, %v1345
        %v1492 = vpack.c.b16 %v1348, %v1346
        %v1493 = vpack.c.b16 %v1351, %v1349
        %v1494 = vpack.c.b16 %v1352, %v1350
        %v1495 = vpack.c.b16 %v1355, %v1353
        %v1496 = vpack.c.b16 %v1356, %v1354
        %v1497 = vpack.c.b16 %v1359, %v1357
        %v1498 = vpack.c.b16 %v1360, %v1358
        %v1499 = vpack.c.b16 %v1363, %v1361
        %v1500 = vpack.c.b16 %v1364, %v1362
        %v1501 = vpack.c.b16 %v1367, %v1365
        %v1502 = vpack.c.b16 %v1368, %v1366
        %v1503 = vpack.c.b16 %v1371, %v1369
        %v1504 = vpack.c.b16 %v1372, %v1370
        %v1505 = vpack.c.b16 %v1375, %v1373
        %v1506 = vpack.c.b16 %v1376, %v1374
        %v1507 = vpack.c.b16 %v1379, %v1377
        %v1508 = vpack.c.b16 %v1380, %v1378
        %1637 = vmatprep.subr.bf16.mxu0 %v1396
        %1638 = vmatpush1.bf16.msra.mxu0 %v1395
        %1639 = vmatprep.subr.bf16.mxu0 %v1394
        %1640 = vmatpush1.bf16.msra.mxu0 %v1393
        %1641 = vmatprep.subr.bf16.mxu0 %v1392
        %1642 = vmatpush1.bf16.msra.mxu0 %v1391
        %1643 = vmatprep.subr.bf16.mxu0 %v1390
        %1644 = vmatpush1.bf16.msra.mxu0 %v1389
        %1645 = vmatprep.subr.bf16.mxu0 %v1388
        %1646 = vmatpush1.bf16.msra.mxu0 %v1387
        %1647 = vmatprep.subr.bf16.mxu0 %v1386
        %1648 = vmatpush1.bf16.msra.mxu0 %v1385
        %1649 = vmatprep.subr.bf16.mxu0 %v1384
        %1650 = vmatpush1.bf16.msra.mxu0 %v1383
        %1651 = vmatprep.subr.bf16.mxu0 %v1382
        %1652 = vmatpush1.bf16.msra.mxu0 %v1381
        %1653 = vmatprep.subr.bf16.mxu0 %v1412
        %1654 = vmatpush2.bf16.msra.mxu0 %v1411
        %1655 = vmatprep.subr.bf16.mxu0 %v1410
        %1656 = vmatpush2.bf16.msra.mxu0 %v1409
        %1657 = vmatprep.subr.bf16.mxu0 %v1408
        %1658 = vmatpush2.bf16.msra.mxu0 %v1407
        %1659 = vmatprep.subr.bf16.mxu0 %v1406
        %1660 = vmatpush2.bf16.msra.mxu0 %v1405
        %1661 = vmatprep.subr.bf16.mxu0 %v1404
        %1662 = vmatpush2.bf16.msra.mxu0 %v1403
        %1663 = vmatprep.subr.bf16.mxu0 %v1402
        %1664 = vmatpush2.bf16.msra.mxu0 %v1401
        %1665 = vmatprep.subr.bf16.mxu0 %v1400
        %1666 = vmatpush2.bf16.msra.mxu0 %v1399
        %1667 = vmatprep.subr.bf16.mxu0 %v1398
        %1668 = vmatpush2.bf16.msra.mxu0 %v1397
        %1669 = vmatprep.mubr.bf16.mxu0 %v870
        %1670 = vmatmul.mubr.bf16.gmra.mxu0 %v869
        %v1671 = vpop.f32.mrf.mxu0
        %v1672 = vadd.f32 0.0, %v1671
        %v1673 = vpop.f32.mrf.mxu0
        %v1674 = vadd.f32 0.0, %v1673
        %v1675 = vpop.f32.mrf.mxu0
        %v1676 = vadd.f32 0.0, %v1675
        %v1677 = vpop.f32.mrf.mxu0
        %v1678 = vadd.f32 0.0, %v1677
        %1679 = vmatprep.mubr.bf16.mxu0 %v878
        %1680 = vmatmul.mubr.bf16.gmra.mxu0 %v877
        %v1681 = vpop.f32.mrf.mxu0
        %v1682 = vadd.f32 0.0, %v1681
        %v1683 = vpop.f32.mrf.mxu0
        %v1684 = vadd.f32 0.0, %v1683
        %v1685 = vpop.f32.mrf.mxu0
        %v1686 = vadd.f32 0.0, %v1685
        %v1687 = vpop.f32.mrf.mxu0
        %v1688 = vadd.f32 0.0, %v1687
        %1689 = vmatprep.mubr.bf16.mxu0 %v886
        %1690 = vmatmul.mubr.bf16.gmra.mxu0 %v885
        %v1691 = vpop.f32.mrf.mxu0
        %v1692 = vadd.f32 0.0, %v1691
        %v1693 = vpop.f32.mrf.mxu0
        %v1694 = vadd.f32 0.0, %v1693
        %v1695 = vpop.f32.mrf.mxu0
        %v1696 = vadd.f32 0.0, %v1695
        %v1697 = vpop.f32.mrf.mxu0
        %v1698 = vadd.f32 0.0, %v1697
        %1699 = vmatprep.mubr.bf16.mxu0 %v894
        %1700 = vmatmul.mubr.bf16.gmra.mxu0 %v893
        %v1701 = vpop.f32.mrf.mxu0
        %v1702 = vadd.f32 0.0, %v1701
        %v1703 = vpop.f32.mrf.mxu0
        %v1704 = vadd.f32 0.0, %v1703
        %v1705 = vpop.f32.mrf.mxu0
        %v1706 = vadd.f32 0.0, %v1705
        %v1707 = vpop.f32.mrf.mxu0
        %v1708 = vadd.f32 0.0, %v1707
        %1709 = vmatprep.mubr.bf16.mxu0 %v902
        %1710 = vmatmul.mubr.bf16.gmra.mxu0 %v901
        %v1711 = vpop.f32.mrf.mxu0
        %v1712 = vadd.f32 0.0, %v1711
        %v1713 = vpop.f32.mrf.mxu0
        %v1714 = vadd.f32 0.0, %v1713
        %v1715 = vpop.f32.mrf.mxu0
        %v1716 = vadd.f32 0.0, %v1715
        %v1717 = vpop.f32.mrf.mxu0
        %v1718 = vadd.f32 0.0, %v1717
        %1719 = vmatprep.mubr.bf16.mxu0 %v910
        %1720 = vmatmul.mubr.bf16.gmra.mxu0 %v909
        %v1721 = vpop.f32.mrf.mxu0
        %v1722 = vadd.f32 0.0, %v1721
        %v1723 = vpop.f32.mrf.mxu0
        %v1724 = vadd.f32 0.0, %v1723
        %v1725 = vpop.f32.mrf.mxu0
        %v1726 = vadd.f32 0.0, %v1725
        %v1727 = vpop.f32.mrf.mxu0
        %v1728 = vadd.f32 0.0, %v1727
        %1729 = vmatprep.mubr.bf16.mxu0 %v918
        %1730 = vmatmul.mubr.bf16.gmra.mxu0 %v917
        %v1731 = vpop.f32.mrf.mxu0
        %v1732 = vadd.f32 0.0, %v1731
        %v1733 = vpop.f32.mrf.mxu0
        %v1734 = vadd.f32 0.0, %v1733
        %v1735 = vpop.f32.mrf.mxu0
        %v1736 = vadd.f32 0.0, %v1735
        %v1737 = vpop.f32.mrf.mxu0
        %v1738 = vadd.f32 0.0, %v1737
        %1739 = vmatprep.mubr.bf16.mxu0 %v926
        %1740 = vmatmul.mubr.bf16.gmra.mxu0 %v925
        %v1741 = vpop.f32.mrf.mxu0
        %v1742 = vadd.f32 0.0, %v1741
        %v1743 = vpop.f32.mrf.mxu0
        %v1744 = vadd.f32 0.0, %v1743
        %v1745 = vpop.f32.mrf.mxu0
        %v1746 = vadd.f32 0.0, %v1745
        %v1747 = vpop.f32.mrf.mxu0
        %v1748 = vadd.f32 0.0, %v1747
        %1749 = vdwg.mxu0
        %1750 = vmatprep.subr.bf16.mxu0 %v1428
        %1751 = vmatpush1.bf16.msra.mxu0 %v1427
        %1752 = vmatprep.subr.bf16.mxu0 %v1426
        %1753 = vmatpush1.bf16.msra.mxu0 %v1425
        %1754 = vmatprep.subr.bf16.mxu0 %v1424
        %1755 = vmatpush1.bf16.msra.mxu0 %v1423
        %1756 = vmatprep.subr.bf16.mxu0 %v1422
        %1757 = vmatpush1.bf16.msra.mxu0 %v1421
        %1758 = vmatprep.subr.bf16.mxu0 %v1420
        %1759 = vmatpush1.bf16.msra.mxu0 %v1419
        %1760 = vmatprep.subr.bf16.mxu0 %v1418
        %1761 = vmatpush1.bf16.msra.mxu0 %v1417
        %1762 = vmatprep.subr.bf16.mxu0 %v1416
        %1763 = vmatpush1.bf16.msra.mxu0 %v1415
        %1764 = vmatprep.subr.bf16.mxu0 %v1414
        %1765 = vmatpush1.bf16.msra.mxu0 %v1413
        %1766 = vmatprep.subr.bf16.mxu0 %v1444
        %1767 = vmatpush2.bf16.msra.mxu0 %v1443
        %1768 = vmatprep.subr.bf16.mxu0 %v1442
        %1769 = vmatpush2.bf16.msra.mxu0 %v1441
        %1770 = vmatprep.subr.bf16.mxu0 %v1440
        %1771 = vmatpush2.bf16.msra.mxu0 %v1439
        %1772 = vmatprep.subr.bf16.mxu0 %v1438
        %1773 = vmatpush2.bf16.msra.mxu0 %v1437
        %1774 = vmatprep.subr.bf16.mxu0 %v1436
        %1775 = vmatpush2.bf16.msra.mxu0 %v1435
        %1776 = vmatprep.subr.bf16.mxu0 %v1434
        %1777 = vmatpush2.bf16.msra.mxu0 %v1433
        %1778 = vmatprep.subr.bf16.mxu0 %v1432
        %1779 = vmatpush2.bf16.msra.mxu0 %v1431
        %1780 = vmatprep.subr.bf16.mxu0 %v1430
        %1781 = vmatpush2.bf16.msra.mxu0 %v1429
        %1782 = vmatprep.mubr.bf16.mxu0 %v872
        %1783 = vmatmul.mubr.bf16.gmra.mxu0 %v871
        %v1784 = vpop.f32.mrf.mxu0
        %v1785 = vadd.f32 %v1672, %v1784
        %v1786 = vpop.f32.mrf.mxu0
        %v1787 = vadd.f32 %v1674, %v1786
        %v1788 = vpop.f32.mrf.mxu0
        %v1789 = vadd.f32 %v1676, %v1788
        %v1790 = vpop.f32.mrf.mxu0
        %v1791 = vadd.f32 %v1678, %v1790
        %1792 = vmatprep.mubr.bf16.mxu0 %v880
        %1793 = vmatmul.mubr.bf16.gmra.mxu0 %v879
        %v1794 = vpop.f32.mrf.mxu0
        %v1795 = vadd.f32 %v1682, %v1794
        %v1796 = vpop.f32.mrf.mxu0
        %v1797 = vadd.f32 %v1684, %v1796
        %v1798 = vpop.f32.mrf.mxu0
        %v1799 = vadd.f32 %v1686, %v1798
        %v1800 = vpop.f32.mrf.mxu0
        %v1801 = vadd.f32 %v1688, %v1800
        %1802 = vmatprep.mubr.bf16.mxu0 %v888
        %1803 = vmatmul.mubr.bf16.gmra.mxu0 %v887
        %v1804 = vpop.f32.mrf.mxu0
        %v1805 = vadd.f32 %v1692, %v1804
        %v1806 = vpop.f32.mrf.mxu0
        %v1807 = vadd.f32 %v1694, %v1806
        %v1808 = vpop.f32.mrf.mxu0
        %v1809 = vadd.f32 %v1696, %v1808
        %v1810 = vpop.f32.mrf.mxu0
        %v1811 = vadd.f32 %v1698, %v1810
        %1812 = vmatprep.mubr.bf16.mxu0 %v896
        %1813 = vmatmul.mubr.bf16.gmra.mxu0 %v895
        %v1814 = vpop.f32.mrf.mxu0
        %v1815 = vadd.f32 %v1702, %v1814
        %v1816 = vpop.f32.mrf.mxu0
        %v1817 = vadd.f32 %v1704, %v1816
        %v1818 = vpop.f32.mrf.mxu0
        %v1819 = vadd.f32 %v1706, %v1818
        %v1820 = vpop.f32.mrf.mxu0
        %v1821 = vadd.f32 %v1708, %v1820
        %1822 = vmatprep.mubr.bf16.mxu0 %v904
        %1823 = vmatmul.mubr.bf16.gmra.mxu0 %v903
        %v1824 = vpop.f32.mrf.mxu0
        %v1825 = vadd.f32 %v1712, %v1824
        %v1826 = vpop.f32.mrf.mxu0
        %v1827 = vadd.f32 %v1714, %v1826
        %v1828 = vpop.f32.mrf.mxu0
        %v1829 = vadd.f32 %v1716, %v1828
        %v1830 = vpop.f32.mrf.mxu0
        %v1831 = vadd.f32 %v1718, %v1830
        %1832 = vmatprep.mubr.bf16.mxu0 %v912
        %1833 = vmatmul.mubr.bf16.gmra.mxu0 %v911
        %v1834 = vpop.f32.mrf.mxu0
        %v1835 = vadd.f32 %v1722, %v1834
        %v1836 = vpop.f32.mrf.mxu0
        %v1837 = vadd.f32 %v1724, %v1836
        %v1838 = vpop.f32.mrf.mxu0
        %v1839 = vadd.f32 %v1726, %v1838
        %v1840 = vpop.f32.mrf.mxu0
        %v1841 = vadd.f32 %v1728, %v1840
        %1842 = vmatprep.mubr.bf16.mxu0 %v920
        %1843 = vmatmul.mubr.bf16.gmra.mxu0 %v919
        %v1844 = vpop.f32.mrf.mxu0
        %v1845 = vadd.f32 %v1732, %v1844
        %v1846 = vpop.f32.mrf.mxu0
        %v1847 = vadd.f32 %v1734, %v1846
        %v1848 = vpop.f32.mrf.mxu0
        %v1849 = vadd.f32 %v1736, %v1848
        %v1850 = vpop.f32.mrf.mxu0
        %v1851 = vadd.f32 %v1738, %v1850
        %1852 = vmatprep.mubr.bf16.mxu0 %v928
        %1853 = vmatmul.mubr.bf16.gmra.mxu0 %v927
        %v1854 = vpop.f32.mrf.mxu0
        %v1855 = vadd.f32 %v1742, %v1854
        %v1856 = vpop.f32.mrf.mxu0
        %v1857 = vadd.f32 %v1744, %v1856
        %v1858 = vpop.f32.mrf.mxu0
        %v1859 = vadd.f32 %v1746, %v1858
        %v1860 = vpop.f32.mrf.mxu0
        %v1861 = vadd.f32 %v1748, %v1860
        %1862 = vdwg.mxu0
        %1863 = vmatprep.subr.bf16.mxu0 %v1460
        %1864 = vmatpush1.bf16.msra.mxu0 %v1459
        %1865 = vmatprep.subr.bf16.mxu0 %v1458
        %1866 = vmatpush1.bf16.msra.mxu0 %v1457
        %1867 = vmatprep.subr.bf16.mxu0 %v1456
        %1868 = vmatpush1.bf16.msra.mxu0 %v1455
        %1869 = vmatprep.subr.bf16.mxu0 %v1454
        %1870 = vmatpush1.bf16.msra.mxu0 %v1453
        %1871 = vmatprep.subr.bf16.mxu0 %v1452
        %1872 = vmatpush1.bf16.msra.mxu0 %v1451
        %1873 = vmatprep.subr.bf16.mxu0 %v1450
        %1874 = vmatpush1.bf16.msra.mxu0 %v1449
        %1875 = vmatprep.subr.bf16.mxu0 %v1448
        %1876 = vmatpush1.bf16.msra.mxu0 %v1447
        %1877 = vmatprep.subr.bf16.mxu0 %v1446
        %1878 = vmatpush1.bf16.msra.mxu0 %v1445
        %1879 = vmatprep.subr.bf16.mxu0 %v1476
        %1880 = vmatpush2.bf16.msra.mxu0 %v1475
        %1881 = vmatprep.subr.bf16.mxu0 %v1474
        %1882 = vmatpush2.bf16.msra.mxu0 %v1473
        %1883 = vmatprep.subr.bf16.mxu0 %v1472
        %1884 = vmatpush2.bf16.msra.mxu0 %v1471
        %1885 = vmatprep.subr.bf16.mxu0 %v1470
        %1886 = vmatpush2.bf16.msra.mxu0 %v1469
        %1887 = vmatprep.subr.bf16.mxu0 %v1468
        %1888 = vmatpush2.bf16.msra.mxu0 %v1467
        %1889 = vmatprep.subr.bf16.mxu0 %v1466
        %1890 = vmatpush2.bf16.msra.mxu0 %v1465
        %1891 = vmatprep.subr.bf16.mxu0 %v1464
        %1892 = vmatpush2.bf16.msra.mxu0 %v1463
        %1893 = vmatprep.subr.bf16.mxu0 %v1462
        %1894 = vmatpush2.bf16.msra.mxu0 %v1461
        %1895 = vmatprep.mubr.bf16.mxu0 %v874
        %1896 = vmatmul.mubr.bf16.gmra.mxu0 %v873
        %v1897 = vpop.f32.mrf.mxu0
        %v1898 = vadd.f32 %v1785, %v1897
        %v1899 = vpop.f32.mrf.mxu0
        %v1900 = vadd.f32 %v1787, %v1899
        %v1901 = vpop.f32.mrf.mxu0
        %v1902 = vadd.f32 %v1789, %v1901
        %v1903 = vpop.f32.mrf.mxu0
        %v1904 = vadd.f32 %v1791, %v1903
        %1905 = vmatprep.mubr.bf16.mxu0 %v882
        %1906 = vmatmul.mubr.bf16.gmra.mxu0 %v881
        %v1907 = vpop.f32.mrf.mxu0
        %v1908 = vadd.f32 %v1795, %v1907
        %v1909 = vpop.f32.mrf.mxu0
        %v1910 = vadd.f32 %v1797, %v1909
        %v1911 = vpop.f32.mrf.mxu0
        %v1912 = vadd.f32 %v1799, %v1911
        %v1913 = vpop.f32.mrf.mxu0
        %v1914 = vadd.f32 %v1801, %v1913
        %1915 = vmatprep.mubr.bf16.mxu0 %v890
        %1916 = vmatmul.mubr.bf16.gmra.mxu0 %v889
        %v1917 = vpop.f32.mrf.mxu0
        %v1918 = vadd.f32 %v1805, %v1917
        %v1919 = vpop.f32.mrf.mxu0
        %v1920 = vadd.f32 %v1807, %v1919
        %v1921 = vpop.f32.mrf.mxu0
        %v1922 = vadd.f32 %v1809, %v1921
        %v1923 = vpop.f32.mrf.mxu0
        %v1924 = vadd.f32 %v1811, %v1923
        %1925 = vmatprep.mubr.bf16.mxu0 %v898
        %1926 = vmatmul.mubr.bf16.gmra.mxu0 %v897
        %v1927 = vpop.f32.mrf.mxu0
        %v1928 = vadd.f32 %v1815, %v1927
        %v1929 = vpop.f32.mrf.mxu0
        %v1930 = vadd.f32 %v1817, %v1929
        %v1931 = vpop.f32.mrf.mxu0
        %v1932 = vadd.f32 %v1819, %v1931
        %v1933 = vpop.f32.mrf.mxu0
        %v1934 = vadd.f32 %v1821, %v1933
        %1935 = vmatprep.mubr.bf16.mxu0 %v906
        %1936 = vmatmul.mubr.bf16.gmra.mxu0 %v905
        %v1937 = vpop.f32.mrf.mxu0
        %v1938 = vadd.f32 %v1825, %v1937
        %v1939 = vpop.f32.mrf.mxu0
        %v1940 = vadd.f32 %v1827, %v1939
        %v1941 = vpop.f32.mrf.mxu0
        %v1942 = vadd.f32 %v1829, %v1941
        %v1943 = vpop.f32.mrf.mxu0
        %v1944 = vadd.f32 %v1831, %v1943
        %1945 = vmatprep.mubr.bf16.mxu0 %v914
        %1946 = vmatmul.mubr.bf16.gmra.mxu0 %v913
        %v1947 = vpop.f32.mrf.mxu0
        %v1948 = vadd.f32 %v1835, %v1947
        %v1949 = vpop.f32.mrf.mxu0
        %v1950 = vadd.f32 %v1837, %v1949
        %v1951 = vpop.f32.mrf.mxu0
        %v1952 = vadd.f32 %v1839, %v1951
        %v1953 = vpop.f32.mrf.mxu0
        %v1954 = vadd.f32 %v1841, %v1953
        %1955 = vmatprep.mubr.bf16.mxu0 %v922
        %1956 = vmatmul.mubr.bf16.gmra.mxu0 %v921
        %v1957 = vpop.f32.mrf.mxu0
        %v1958 = vadd.f32 %v1845, %v1957
        %v1959 = vpop.f32.mrf.mxu0
        %v1960 = vadd.f32 %v1847, %v1959
        %v1961 = vpop.f32.mrf.mxu0
        %v1962 = vadd.f32 %v1849, %v1961
        %v1963 = vpop.f32.mrf.mxu0
        %v1964 = vadd.f32 %v1851, %v1963
        %1965 = vmatprep.mubr.bf16.mxu0 %v930
        %1966 = vmatmul.mubr.bf16.gmra.mxu0 %v929
        %v1967 = vpop.f32.mrf.mxu0
        %v1968 = vadd.f32 %v1855, %v1967
        %v1969 = vpop.f32.mrf.mxu0
        %v1970 = vadd.f32 %v1857, %v1969
        %v1971 = vpop.f32.mrf.mxu0
        %v1972 = vadd.f32 %v1859, %v1971
        %v1973 = vpop.f32.mrf.mxu0
        %v1974 = vadd.f32 %v1861, %v1973
        %1975 = vdwg.mxu0
        %1976 = vmatprep.subr.bf16.mxu0 %v1492
        %1977 = vmatpush1.bf16.msra.mxu0 %v1491
        %1978 = vmatprep.subr.bf16.mxu0 %v1490
        %1979 = vmatpush1.bf16.msra.mxu0 %v1489
        %1980 = vmatprep.subr.bf16.mxu0 %v1488
        %1981 = vmatpush1.bf16.msra.mxu0 %v1487
        %1982 = vmatprep.subr.bf16.mxu0 %v1486
        %1983 = vmatpush1.bf16.msra.mxu0 %v1485
        %1984 = vmatprep.subr.bf16.mxu0 %v1484
        %1985 = vmatpush1.bf16.msra.mxu0 %v1483
        %1986 = vmatprep.subr.bf16.mxu0 %v1482
        %1987 = vmatpush1.bf16.msra.mxu0 %v1481
        %1988 = vmatprep.subr.bf16.mxu0 %v1480
        %1989 = vmatpush1.bf16.msra.mxu0 %v1479
        %1990 = vmatprep.subr.bf16.mxu0 %v1478
        %1991 = vmatpush1.bf16.msra.mxu0 %v1477
        %1992 = vmatprep.subr.bf16.mxu0 %v1508
        %1993 = vmatpush2.bf16.msra.mxu0 %v1507
        %1994 = vmatprep.subr.bf16.mxu0 %v1506
        %1995 = vmatpush2.bf16.msra.mxu0 %v1505
        %1996 = vmatprep.subr.bf16.mxu0 %v1504
        %1997 = vmatpush2.bf16.msra.mxu0 %v1503
        %1998 = vmatprep.subr.bf16.mxu0 %v1502
        %1999 = vmatpush2.bf16.msra.mxu0 %v1501
        %2000 = vmatprep.subr.bf16.mxu0 %v1500
        %2001 = vmatpush2.bf16.msra.mxu0 %v1499
        %2002 = vmatprep.subr.bf16.mxu0 %v1498
        %2003 = vmatpush2.bf16.msra.mxu0 %v1497
        %2004 = vmatprep.subr.bf16.mxu0 %v1496
        %2005 = vmatpush2.bf16.msra.mxu0 %v1495
        %2006 = vmatprep.subr.bf16.mxu0 %v1494
        %2007 = vmatpush2.bf16.msra.mxu0 %v1493
        %2008 = vmatprep.mubr.bf16.mxu0 %v876
        %2009 = vmatmul.mubr.bf16.gmra.mxu0 %v875
        %v2010 = vpop.f32.mrf.mxu0
        %v2011 = vadd.f32 %v1898, %v2010
        %v2012 = vpop.f32.mrf.mxu0
        %v2013 = vadd.f32 %v1900, %v2012
        %v2014 = vpop.f32.mrf.mxu0
        %v2015 = vadd.f32 %v1902, %v2014
        %v2016 = vpop.f32.mrf.mxu0
        %v2017 = vadd.f32 %v1904, %v2016
        %2018 = vmatprep.mubr.bf16.mxu0 %v884
        %2019 = vmatmul.mubr.bf16.gmra.mxu0 %v883
        %v2020 = vpop.f32.mrf.mxu0
        %v2021 = vadd.f32 %v1908, %v2020
        %v2022 = vpop.f32.mrf.mxu0
        %v2023 = vadd.f32 %v1910, %v2022
        %v2024 = vpop.f32.mrf.mxu0
        %v2025 = vadd.f32 %v1912, %v2024
        %v2026 = vpop.f32.mrf.mxu0
        %v2027 = vadd.f32 %v1914, %v2026
        %2028 = vmatprep.mubr.bf16.mxu0 %v892
        %2029 = vmatmul.mubr.bf16.gmra.mxu0 %v891
        %v2030 = vpop.f32.mrf.mxu0
        %v2031 = vadd.f32 %v1918, %v2030
        %v2032 = vpop.f32.mrf.mxu0
        %v2033 = vadd.f32 %v1920, %v2032
        %v2034 = vpop.f32.mrf.mxu0
        %v2035 = vadd.f32 %v1922, %v2034
        %v2036 = vpop.f32.mrf.mxu0
        %v2037 = vadd.f32 %v1924, %v2036
        %2038 = vmatprep.mubr.bf16.mxu0 %v900
        %2039 = vmatmul.mubr.bf16.gmra.mxu0 %v899
        %v2040 = vpop.f32.mrf.mxu0
        %v2041 = vadd.f32 %v1928, %v2040
        %v2042 = vpop.f32.mrf.mxu0
        %v2043 = vadd.f32 %v1930, %v2042
        %v2044 = vpop.f32.mrf.mxu0
        %v2045 = vadd.f32 %v1932, %v2044
        %v2046 = vpop.f32.mrf.mxu0
        %v2047 = vadd.f32 %v1934, %v2046
        %2048 = vmatprep.mubr.bf16.mxu0 %v908
        %2049 = vmatmul.mubr.bf16.gmra.mxu0 %v907
        %v2050 = vpop.f32.mrf.mxu0
        %v2051 = vadd.f32 %v1938, %v2050
        %v2052 = vpop.f32.mrf.mxu0
        %v2053 = vadd.f32 %v1940, %v2052
        %v2054 = vpop.f32.mrf.mxu0
        %v2055 = vadd.f32 %v1942, %v2054
        %v2056 = vpop.f32.mrf.mxu0
        %v2057 = vadd.f32 %v1944, %v2056
        %2058 = vmatprep.mubr.bf16.mxu0 %v916
        %2059 = vmatmul.mubr.bf16.gmra.mxu0 %v915
        %v2060 = vpop.f32.mrf.mxu0
        %v2061 = vadd.f32 %v1948, %v2060
        %v2062 = vpop.f32.mrf.mxu0
        %v2063 = vadd.f32 %v1950, %v2062
        %v2064 = vpop.f32.mrf.mxu0
        %v2065 = vadd.f32 %v1952, %v2064
        %v2066 = vpop.f32.mrf.mxu0
        %v2067 = vadd.f32 %v1954, %v2066
        %2068 = vmatprep.mubr.bf16.mxu0 %v924
        %2069 = vmatmul.mubr.bf16.gmra.mxu0 %v923
        %v2070 = vpop.f32.mrf.mxu0
        %v2071 = vadd.f32 %v1958, %v2070
        %v2072 = vpop.f32.mrf.mxu0
        %v2073 = vadd.f32 %v1960, %v2072
        %v2074 = vpop.f32.mrf.mxu0
        %v2075 = vadd.f32 %v1962, %v2074
        %v2076 = vpop.f32.mrf.mxu0
        %v2077 = vadd.f32 %v1964, %v2076
        %2078 = vmatprep.mubr.bf16.mxu0 %v932
        %2079 = vmatmul.mubr.bf16.gmra.mxu0 %v931
        %v2080 = vpop.f32.mrf.mxu0
        %v2081 = vadd.f32 %v1968, %v2080
        %v2082 = vpop.f32.mrf.mxu0
        %v2083 = vadd.f32 %v1970, %v2082
        %v2084 = vpop.f32.mrf.mxu0
        %v2085 = vadd.f32 %v1972, %v2084
        %v2086 = vpop.f32.mrf.mxu0
        %v2087 = vadd.f32 %v1974, %v2086
        %2088 = vdwg.mxu0
        %v2089 = vadd.f32 %v453, %v2011
        %v2090 = vadd.f32 %v454, %v2013
        %v2091 = vadd.f32 %v455, %v2015
        %v2092 = vadd.f32 %v456, %v2017
        %v2093 = vadd.f32 %v457, %v2021
        %v2094 = vadd.f32 %v458, %v2023
        %v2095 = vadd.f32 %v459, %v2025
        %v2096 = vadd.f32 %v460, %v2027
        %v2097 = vadd.f32 %v461, %v2031
        %v2098 = vadd.f32 %v462, %v2033
        %v2099 = vadd.f32 %v463, %v2035
        %v2100 = vadd.f32 %v464, %v2037
        %v2101 = vadd.f32 %v465, %v2041
        %v2102 = vadd.f32 %v466, %v2043
        %v2103 = vadd.f32 %v467, %v2045
        %v2104 = vadd.f32 %v468, %v2047
        %v2105 = vadd.f32 %v469, %v2051
        %v2106 = vadd.f32 %v470, %v2053
        %v2107 = vadd.f32 %v471, %v2055
        %v2108 = vadd.f32 %v472, %v2057
        %v2109 = vadd.f32 %v473, %v2061
        %v2110 = vadd.f32 %v474, %v2063
        %v2111 = vadd.f32 %v475, %v2065
        %v2112 = vadd.f32 %v476, %v2067
        %v2113 = vadd.f32 %v477, %v2071
        %v2114 = vadd.f32 %v478, %v2073
        %v2115 = vadd.f32 %v479, %v2075
        %v2116 = vadd.f32 %v480, %v2077
        %v2117 = vadd.f32 %v481, %v2081
        %v2118 = vadd.f32 %v482, %v2083
        %v2119 = vadd.f32 %v483, %v2085
        %v2120 = vadd.f32 %v484, %v2087
        %2121 = vst [vmem:[#allocation2] sm:$0xff] %v2089
        %2122 = vst [vmem:[#allocation2 + $0x8] sm:$0xff] %v2090
        %2123 = vst [vmem:[#allocation2 + $0x10] sm:$0xff] %v2091
        %2124 = vst [vmem:[#allocation2 + $0x18] sm:$0xff] %v2092
        %2125 = vst [vmem:[#allocation2 + $0x20] sm:$0xff] %v2093
        %2126 = vst [vmem:[#allocation2 + $0x28] sm:$0xff] %v2094
        %2127 = vst [vmem:[#allocation2 + $0x30] sm:$0xff] %v2095
        %2128 = vst [vmem:[#allocation2 + $0x38] sm:$0xff] %v2096
        %2129 = vst [vmem:[#allocation2 + $0x40] sm:$0xff] %v2097
        %2130 = vst [vmem:[#allocation2 + $0x48] sm:$0xff] %v2098
        %2131 = vst [vmem:[#allocation2 + $0x50] sm:$0xff] %v2099
        %2132 = vst [vmem:[#allocation2 + $0x58] sm:$0xff] %v2100
        %2133 = vst [vmem:[#allocation2 + $0x60] sm:$0xff] %v2101
        %2134 = vst [vmem:[#allocation2 + $0x68] sm:$0xff] %v2102
        %2135 = vst [vmem:[#allocation2 + $0x70] sm:$0xff] %v2103
        %2136 = vst [vmem:[#allocation2 + $0x78] sm:$0xff] %v2104
        %2137 = vst [vmem:[#allocation2 + $0x80] sm:$0xff] %v2105
        %2138 = vst [vmem:[#allocation2 + $0x88] sm:$0xff] %v2106
        %2139 = vst [vmem:[#allocation2 + $0x90] sm:$0xff] %v2107
        %2140 = vst [vmem:[#allocation2 + $0x98] sm:$0xff] %v2108
        %2141 = vst [vmem:[#allocation2 + $0xa0] sm:$0xff] %v2109
        %2142 = vst [vmem:[#allocation2 + $0xa8] sm:$0xff] %v2110
        %2143 = vst [vmem:[#allocation2 + $0xb0] sm:$0xff] %v2111
        %2144 = vst [vmem:[#allocation2 + $0xb8] sm:$0xff] %v2112
        %2145 = vst [vmem:[#allocation2 + $0xc0] sm:$0xff] %v2113
        %2146 = vst [vmem:[#allocation2 + $0xc8] sm:$0xff] %v2114
        %2147 = vst [vmem:[#allocation2 + $0xd0] sm:$0xff] %v2115
        %2148 = vst [vmem:[#allocation2 + $0xd8] sm:$0xff] %v2116
        %2149 = vst [vmem:[#allocation2 + $0xe0] sm:$0xff] %v2117
        %2150 = vst [vmem:[#allocation2 + $0xe8] sm:$0xff] %v2118
        %2151 = vst [vmem:[#allocation2 + $0xf0] sm:$0xff] %v2119
        %2152 = vst [vmem:[#allocation2 + $0xf8] sm:$0xff] %v2120
        %p2153 = scmp.eq.s32.totalorder %s21, 4
        // Predicated region
        $region60: #{attention_forward.6} parent=50 // pred_check
          %p2154 = pneg %p2153
        $region61: #{attention_forward.6} parent=50 // pred_check_branch
          %2156 = sbr.rel (%p2154) target = $region63
        $region62: #{attention_forward.6} parent=50 // pred_region
          %v2157 = vld [vmem:[#allocation2] sm:$0xff]
          %v2158 = vld [vmem:[#allocation2 + $0x8] sm:$0xff]
          %v2159 = vld [vmem:[#allocation2 + $0x10] sm:$0xff]
          %v2160 = vld [vmem:[#allocation2 + $0x18] sm:$0xff]
          %v2161 = vld [vmem:[#allocation2 + $0x20] sm:$0xff]
          %v2162 = vld [vmem:[#allocation2 + $0x28] sm:$0xff]
          %v2163 = vld [vmem:[#allocation2 + $0x30] sm:$0xff]
          %v2164 = vld [vmem:[#allocation2 + $0x38] sm:$0xff]
          %v2165 = vld [vmem:[#allocation2 + $0x40] sm:$0xff]
          %v2166 = vld [vmem:[#allocation2 + $0x48] sm:$0xff]
          %v2167 = vld [vmem:[#allocation2 + $0x50] sm:$0xff]
          %v2168 = vld [vmem:[#allocation2 + $0x58] sm:$0xff]
          %v2169 = vld [vmem:[#allocation2 + $0x60] sm:$0xff]
          %v2170 = vld [vmem:[#allocation2 + $0x68] sm:$0xff]
          %v2171 = vld [vmem:[#allocation2 + $0x70] sm:$0xff]
          %v2172 = vld [vmem:[#allocation2 + $0x78] sm:$0xff]
          %v2173 = vld [vmem:[#allocation2 + $0x80] sm:$0xff]
          %v2174 = vld [vmem:[#allocation2 + $0x88] sm:$0xff]
          %v2175 = vld [vmem:[#allocation2 + $0x90] sm:$0xff]
          %v2176 = vld [vmem:[#allocation2 + $0x98] sm:$0xff]
          %v2177 = vld [vmem:[#allocation2 + $0xa0] sm:$0xff]
          %v2178 = vld [vmem:[#allocation2 + $0xa8] sm:$0xff]
          %v2179 = vld [vmem:[#allocation2 + $0xb0] sm:$0xff]
          %v2180 = vld [vmem:[#allocation2 + $0xb8] sm:$0xff]
          %v2181 = vld [vmem:[#allocation2 + $0xc0] sm:$0xff]
          %v2182 = vld [vmem:[#allocation2 + $0xc8] sm:$0xff]
          %v2183 = vld [vmem:[#allocation2 + $0xd0] sm:$0xff]
          %v2184 = vld [vmem:[#allocation2 + $0xd8] sm:$0xff]
          %v2185 = vld [vmem:[#allocation2 + $0xe0] sm:$0xff]
          %v2186 = vld [vmem:[#allocation2 + $0xe8] sm:$0xff]
          %v2187 = vld [vmem:[#allocation2 + $0xf0] sm:$0xff]
          %v2188 = vld [vmem:[#allocation2 + $0xf8] sm:$0xff]
          %v2189 = vld [vmem:[%s403] sm:$0x3]
          %v2191 = vlaneseq
          %v2192 = vshrl.u32 %v2191, 7
          %v2193 = vsub.s32 0, %v2192
          %v2194 = vrot.slane %v2189, %v2193
          %v2195 = vlaneseq
          %v2196 = vshrl.u32 %v2195, 7
          %v2197 = vsub.s32 1, %v2196
          %v2198 = vrot.slane %v2189, %v2197
          %v2201 = vadd.f32 %v2157, %v2194
          %v2202 = vadd.f32 %v2158, %v2198
          %v2203 = vadd.f32 %v2159, %v2194
          %v2204 = vadd.f32 %v2160, %v2198
          %v2205 = vadd.f32 %v2161, %v2194
          %v2206 = vadd.f32 %v2162, %v2198
          %v2207 = vadd.f32 %v2163, %v2194
          %v2208 = vadd.f32 %v2164, %v2198
          %v2209 = vadd.f32 %v2165, %v2194
          %v2210 = vadd.f32 %v2166, %v2198
          %v2211 = vadd.f32 %v2167, %v2194
          %v2212 = vadd.f32 %v2168, %v2198
          %v2213 = vadd.f32 %v2169, %v2194
          %v2214 = vadd.f32 %v2170, %v2198
          %v2215 = vadd.f32 %v2171, %v2194
          %v2216 = vadd.f32 %v2172, %v2198
          %v2217 = vadd.f32 %v2173, %v2194
          %v2218 = vadd.f32 %v2174, %v2198
          %v2219 = vadd.f32 %v2175, %v2194
          %v2220 = vadd.f32 %v2176, %v2198
          %v2221 = vadd.f32 %v2177, %v2194
          %v2222 = vadd.f32 %v2178, %v2198
          %v2223 = vadd.f32 %v2179, %v2194
          %v2224 = vadd.f32 %v2180, %v2198
          %v2225 = vadd.f32 %v2181, %v2194
          %v2226 = vadd.f32 %v2182, %v2198
          %v2227 = vadd.f32 %v2183, %v2194
          %v2228 = vadd.f32 %v2184, %v2198
          %v2229 = vadd.f32 %v2185, %v2194
          %v2230 = vadd.f32 %v2186, %v2198
          %v2231 = vadd.f32 %v2187, %v2194
          %v2232 = vadd.f32 %v2188, %v2198
          %2233 = vst [vmem:[%s414] sm:$0xff] %v2201
          %2234 = vst [vmem:[%s414 + $0x8] sm:$0xff] %v2202
          %2235 = vst [vmem:[%s414 + $0x10] sm:$0xff] %v2203
          %2236 = vst [vmem:[%s414 + $0x18] sm:$0xff] %v2204
          %2237 = vst [vmem:[%s414 + $0x20] sm:$0xff] %v2205
          %2238 = vst [vmem:[%s414 + $0x28] sm:$0xff] %v2206
          %2239 = vst [vmem:[%s414 + $0x30] sm:$0xff] %v2207
          %2240 = vst [vmem:[%s414 + $0x38] sm:$0xff] %v2208
          %2241 = vst [vmem:[%s414 + $0x40] sm:$0xff] %v2209
          %2242 = vst [vmem:[%s414 + $0x48] sm:$0xff] %v2210
          %2243 = vst [vmem:[%s414 + $0x50] sm:$0xff] %v2211
          %2244 = vst [vmem:[%s414 + $0x58] sm:$0xff] %v2212
          %2245 = vst [vmem:[%s414 + $0x60] sm:$0xff] %v2213
          %2246 = vst [vmem:[%s414 + $0x68] sm:$0xff] %v2214
          %2247 = vst [vmem:[%s414 + $0x70] sm:$0xff] %v2215
          %2248 = vst [vmem:[%s414 + $0x78] sm:$0xff] %v2216
          %2249 = vst [vmem:[%s414 + $0x80] sm:$0xff] %v2217
          %2250 = vst [vmem:[%s414 + $0x88] sm:$0xff] %v2218
          %2251 = vst [vmem:[%s414 + $0x90] sm:$0xff] %v2219
          %2252 = vst [vmem:[%s414 + $0x98] sm:$0xff] %v2220
          %2253 = vst [vmem:[%s414 + $0xa0] sm:$0xff] %v2221
          %2254 = vst [vmem:[%s414 + $0xa8] sm:$0xff] %v2222
          %2255 = vst [vmem:[%s414 + $0xb0] sm:$0xff] %v2223
          %2256 = vst [vmem:[%s414 + $0xb8] sm:$0xff] %v2224
          %2257 = vst [vmem:[%s414 + $0xc0] sm:$0xff] %v2225
          %2258 = vst [vmem:[%s414 + $0xc8] sm:$0xff] %v2226
          %2259 = vst [vmem:[%s414 + $0xd0] sm:$0xff] %v2227
          %2260 = vst [vmem:[%s414 + $0xd8] sm:$0xff] %v2228
          %2261 = vst [vmem:[%s414 + $0xe0] sm:$0xff] %v2229
          %2262 = vst [vmem:[%s414 + $0xe8] sm:$0xff] %v2230
          %2263 = vst [vmem:[%s414 + $0xf0] sm:$0xff] %v2231
          %2264 = vst [vmem:[%s414 + $0xf8] sm:$0xff] %v2232
        $region63: #{attention_forward.6} parent=50 // pred_fallthru
          _
        %s2265 = smul.u32 16, %s19
        %s2266 = smul.u32 2, %s20
        %p2267 = scmp.lt.s32.totalorder %s2265, 15
        %s2268 = scalar_select %p2267, %s2265, 15
        %p2269 = scmp.lt.s32.totalorder %s2266, 1
        %s2270 = scalar_select %p2269, %s2266, 1
        %s2271 = smul.addr %s2268, 2
        %s2272 = sadd.s32 %s2270, %s2271
        %s2273 = smul.addr %s2272, 8
        %s2274 = scalar_lea.vmem %s3, %s2273
        // Predicated region
        $region64: #{attention_forward.6} parent=50 // pred_check
          %p2275 = pneg %p135
        $region65: #{attention_forward.6} parent=50 // pred_check_branch
          %2277 = sbr.rel (%p2275) target = $region67
        $region66: #{attention_forward.6} parent=50 // pred_region
          %s2278 = smul.u32 16, %s19
          %s2279 = smul.u32 2, %s20
        $region67: #{attention_forward.6} parent=50 // pred_fallthru
          _
        // Predicated region
        $region68: #{attention_forward.6} parent=50 // pred_check
          %p2280 = pneg %p135
        $region69: #{attention_forward.6} parent=50 // pred_check_branch
          %2282 = sbr.rel (%p2280) target = $region71
        $region70: #{attention_forward.6} parent=50 // pred_region
          %s2283 = smul.u32 16, %s19
          %s2284 = smul.u32 2, %s20
          %p2285 = scmp.lt.s32.totalorder %s2283, 15
          %s2286 = scalar_select %p2285, %s2283, 15
          %p2287 = scmp.lt.s32.totalorder %s2284, 1
          %s2288 = scalar_select %p2287, %s2284, 1
          %s2289 = smul.addr %s2286, 2
          %s2290 = sadd.s32 %s2288, %s2289
          %s2291 = smul.addr %s2290, 8
          %s2292 = scalar_lea.vmem %s3, %s2291
        $region71: #{attention_forward.6} parent=50 // pred_fallthru
          _
      $region51: #{attention_forward.6} parent=5 // pred_fallthru
        _
      %p2293 = scmp.le.s32.totalorder 2, %s9
      // Predicated region
      $region72: #{attention_forward.6} parent=5 // pred_check
        %p2294 = pneg %p2293
      $region73: #{attention_forward.6} parent=5 // pred_check_branch
        %2296 = sbr.rel (%p2294) target = $region75
      $region74: #{attention_forward.6} parent=5 // pred_region
        %s2297 = ssub.s32 %s9, 2
      $region75: #{attention_forward.6} parent=5 // pred_fallthru
        _
    $region6: #{attention_forward.6} parent=1 // loop_footer
      %s13 = sadd.s32 1, %s9
    $region7: #{attention_forward.6} parent=1 // loop_footer_branch
      %8 = sbr.rel target = $region3
    $region8: #{attention_forward.6} parent=1 // loop_exit
      _

// kernel: attention_forward.5
$region0: #{attention_forward.5}
  #allocation0 [shape = 'u32[]', space=smem, size = 0x4, offset = 0x4, fixed_abs, tag = 'smem constant byte address 0x4 - core index']
  #allocation1 [shape = 'u32[144,128]{1,0:T(1,128)}', space=vmem, size = 0x12000, scoped, tag = 'internal scratch']
  #allocation2 [shape = 'f32[128,512]{1,0:T(8,128)}', space=vmem, size = 0x40000, scoped, tag = 'scratch operand']
  %s0 = inlined_call_operand.vmem [shape: bf16[128,9216], index: 0, kind: input, shape index: {}]
  %s1 = inlined_call_operand.vmem [shape: bf16[9216,512], index: 1, kind: input, shape index: {}]
  %s2 = inlined_call_operand.vmem [shape: f32[1,512], index: 2, kind: input, shape index: {}]
  %s3 = inlined_call_operand.vmem [shape: f32[128,512], index: 3, kind: output, shape index: {}]
  %s4 = sld [smem:[#allocation0]]
  $region76: #{attention_forward.5} parent=0
    _
  %s6 = ssub.s32 1, %s4
  %s7 = scalar_select 0, %s6, %s4
  $region1: #{attention_forward.5} parent=0
    #allocation3 [shape = 'u8[524288]{0}', space=vmem, size = 0x80000, scoped, tag = 'input window, operand 0']
    loop: start=0, step=1, limit=11
    $region2: #{attention_forward.5} parent=1 // loop_pre_header
      _
    $region3: #{attention_forward.5} parent=1 // loop_header
      %s9 = sphi 0, %s13
      %p10 = scmp.ge.s32.totalorder %s9, 11
      %s16 = sphi 0, %s35
      %s17 = sphi 0, %s31
      %s18 = sphi 0, %s27
      %s19 = sphi 0, %s16
      %s20 = sphi 0, %s17
      %s21 = sphi 0, %s18
      %s22 = sphi 0, %s19
      %s23 = sphi 0, %s20
      %s24 = sphi 0, %s21
      %s40 = sphi 0, %s42
      %s43 = sphi 0, %s40
      %s44 = sphi 0, %s43
      %s60 = sphi 0, %s44
      %s68 = sphi 0, %s70
      %s71 = sphi 0, %s68
      %s72 = sphi 0, %s71
      %s88 = sphi 0, %s72
      %s94 = sphi 0, %s96
      %s97 = sphi 0, %s94
      %s98 = sphi 0, %s97
      %s114 = sphi 0, %s98
      %s122 = sphi 0, %s124
      %s125 = sphi 0, %s122
      %s126 = sphi 0, %s125
      %s142 = sphi 0, %s126
    $region4: #{attention_forward.5} parent=1 // loop_header_branch
      %12 = sbr.rel (%p10) target = $region8
    $region5: #{attention_forward.5} parent=1 // loop_body
      %s14 = ssub.s32 %s9, 1
      %s15 = ssub.s32 %s9, 2
      %s25 = sadd.s32 1, %s18
      %p26 = scmp.ge.s32.totalorder %s25, 9
      %s27 = scalar_select %p26, 0, %s25
      %s28 = sadd.s32 1, %s17
      %s29 = scalar_select %p26, %s28, %s17
      %p30 = scmp.ge.s32.totalorder %s29, 1
      %s31 = scalar_select %p30, 0, %s29
      %s32 = sadd.s32 1, %s16
      %s33 = scalar_select %p30, %s32, %s16
      %p34 = scmp.ge.s32.totalorder %s33, 1
      %s35 = scalar_select %p34, 0, %s33
      %s36 = ssub.s32 %s16, %s35
      %s37 = ssub.s32 %s18, %s27
      %s38 = sor.u32 %s36, %s37
      %p39 = scmp.eq.s32.totalorder %s38, 0
      %s41 = sadd.s32 %s40, 1
      %s42 = scalar_select %p39, %s40, %s41
      %p45 = pneg %p39
      %p46 = scmp.eq.s32.totalorder %s9, 8
      %p47 = por %p45, %p46
      %p48 = scmp.ne.s32.totalorder %s40, %s43
      %p49 = scmp.eq.s32.totalorder %s9, 0
      %p50 = por %p48, %p49
      %p51 = scmp.ne.s32.totalorder %s40, %s43
      %p52 = scmp.eq.s32.totalorder %s14, 8
      %p53 = por %p51, %p52
      %p54 = scmp.ne.s32.totalorder %s43, %s44
      %p55 = scmp.eq.s32.totalorder %s14, 0
      %p56 = por %p54, %p55
      %p57 = scmp.ne.s32.totalorder %s43, %s44
      %p58 = scmp.eq.s32.totalorder %s15, 8
      %p59 = por %p57, %p58
      %p61 = scmp.ne.s32.totalorder %s44, %s60
      %p62 = scmp.eq.s32.totalorder %s15, 0
      %p63 = por %p61, %p62
      %s64 = ssub.s32 %s18, %s27
      %s65 = ssub.s32 %s17, %s31
      %s66 = sor.u32 %s64, %s65
      %p67 = scmp.eq.s32.totalorder %s66, 0
      %s69 = sadd.s32 %s68, 1
      %s70 = scalar_select %p67, %s68, %s69
      %p73 = pneg %p67
      %p74 = scmp.eq.s32.totalorder %s9, 8
      %p75 = por %p73, %p74
      %p76 = scmp.ne.s32.totalorder %s68, %s71
      %p77 = scmp.eq.s32.totalorder %s9, 0
      %p78 = por %p76, %p77
      %p79 = scmp.ne.s32.totalorder %s68, %s71
      %p80 = scmp.eq.s32.totalorder %s14, 8
      %p81 = por %p79, %p80
      %p82 = scmp.ne.s32.totalorder %s71, %s72
      %p83 = scmp.eq.s32.totalorder %s14, 0
      %p84 = por %p82, %p83
      %p85 = scmp.ne.s32.totalorder %s71, %s72
      %p86 = scmp.eq.s32.totalorder %s15, 8
      %p87 = por %p85, %p86
      %p89 = scmp.ne.s32.totalorder %s72, %s88
      %p90 = scmp.eq.s32.totalorder %s15, 0
      %p91 = por %p89, %p90
      %s92 = ssub.s32 %s17, %s31
      %p93 = scmp.eq.s32.totalorder %s92, 0
      %s95 = sadd.s32 %s94, 1
      %s96 = scalar_select %p93, %s94, %s95
      %p99 = pneg %p93
      %p100 = scmp.eq.s32.totalorder %s9, 8
      %p101 = por %p99, %p100
      %p102 = scmp.ne.s32.totalorder %s94, %s97
      %p103 = scmp.eq.s32.totalorder %s9, 0
      %p104 = por %p102, %p103
      %p105 = scmp.ne.s32.totalorder %s94, %s97
      %p106 = scmp.eq.s32.totalorder %s14, 8
      %p107 = por %p105, %p106
      %p108 = scmp.ne.s32.totalorder %s97, %s98
      %p109 = scmp.eq.s32.totalorder %s14, 0
      %p110 = por %p108, %p109
      %p111 = scmp.ne.s32.totalorder %s97, %s98
      %p112 = scmp.eq.s32.totalorder %s15, 8
      %p113 = por %p111, %p112
      %p115 = scmp.ne.s32.totalorder %s98, %s114
      %p116 = scmp.eq.s32.totalorder %s15, 0
      %p117 = por %p115, %p116
      %s118 = ssub.s32 %s16, %s35
      %s119 = ssub.s32 %s17, %s31
      %s120 = sor.u32 %s118, %s119
      %p121 = scmp.eq.s32.totalorder %s120, 0
      %s123 = sadd.s32 %s122, 1
      %s124 = scalar_select %p121, %s122, %s123
      %p127 = pneg %p121
      %p128 = scmp.eq.s32.totalorder %s9, 8
      %p129 = por %p127, %p128
      %p130 = scmp.ne.s32.totalorder %s122, %s125
      %p131 = scmp.eq.s32.totalorder %s9, 0
      %p132 = por %p130, %p131
      %p133 = scmp.ne.s32.totalorder %s122, %s125
      %p134 = scmp.eq.s32.totalorder %s14, 8
      %p135 = por %p133, %p134
      %p136 = scmp.ne.s32.totalorder %s125, %s126
      %p137 = scmp.eq.s32.totalorder %s14, 0
      %p138 = por %p136, %p137
      %p139 = scmp.ne.s32.totalorder %s125, %s126
      %p140 = scmp.eq.s32.totalorder %s15, 8
      %p141 = por %p139, %p140
      %p143 = scmp.ne.s32.totalorder %s126, %s142
      %p144 = scmp.eq.s32.totalorder %s15, 0
      %p145 = por %p143, %p144
      %p146 = scmp.le.s32.totalorder 1, %s9
      %p147 = scmp.lt.s32.totalorder %s9, 10
      %p148 = pnand %p146, %p147
      %p149 = pneg %p148
      // Predicated region
      $region9: #{attention_forward.5} parent=5 // pred_check
        _
      $region10: #{attention_forward.5} parent=5 // pred_check_branch
        %151 = sbr.rel (%p148) target = $region12
      $region11: #{attention_forward.5} parent=5 // pred_region
        %s152 = ssub.s32 %s9, 1
        // Predicated region
        $region13: #{attention_forward.5} parent=11 // pred_check
          %p153 = pneg %p110
        $region14: #{attention_forward.5} parent=11 // pred_check_branch
          %155 = sbr.rel (%p153) target = $region16
        $region15: #{attention_forward.5} parent=11 // pred_region
          %s156 = smul.u32 4, %s20
          %p157 = scmp.lt.s32.totalorder %s156, 3
          %s158 = scalar_select %p157, %s156, 3
          %s159 = scalar_lea.vmem %s2, %s158
          %s160 = smul.u32 4, %s20
        $region16: #{attention_forward.5} parent=11 // pred_fallthru
          _
      $region12: #{attention_forward.5} parent=5 // pred_fallthru
        _
      %p161 = scmp.lt.s32.totalorder %s9, 9
      // Predicated region
      $region17: #{attention_forward.5} parent=5 // pred_check
        %p162 = pneg %p161
      $region18: #{attention_forward.5} parent=5 // pred_check_branch
        %164 = sbr.rel (%p162) target = $region20
      $region19: #{attention_forward.5} parent=5 // pred_region
        // Predicated region
        $region21: #{attention_forward.5} parent=19 // pred_check
          %p165 = pneg %p50
        $region22: #{attention_forward.5} parent=19 // pred_check_branch
          %167 = sbr.rel (%p165) target = $region24
        $region23: #{attention_forward.5} parent=19 // pred_region
          %s168 = sand.u32 %s40, 1
          %s169 = sand.u32 %s40, 1
          %s170 = smul.addr %s169, 512
          %s171 = scalar_lea.vmem [#allocation3], %s170
          %s172 = smul.u32 16, %s16
          %s173 = smul.u32 8, %s18
          %s174 = smul.addr %s172, 72
          %s175 = sadd.s32 %s173, %s174
          %s176 = smul.addr %s175, 4
          %s177 = scalar_lea.vmem %s0, %s176
          // Predicated region
          $region25: #{attention_forward.5} parent=23 // pred_check
            _
          $region26: #{attention_forward.5} parent=23 // pred_check_branch
            %179 = sbr.rel (0) target = $region28
          $region27: #{attention_forward.5} parent=23 // pred_region
            // Predicated region
            $region29: #{attention_forward.5} parent=27 // pred_check
              _
            $region30: #{attention_forward.5} parent=27 // pred_check_branch
              %181 = sbr.rel (0) target = $region32
            $region31: #{attention_forward.5} parent=27 // pred_region
              loop: start=0, step=1, limit=1
              $region33: #{attention_forward.5} parent=31 // loop_pre_header
                _
              $region34: #{attention_forward.5} parent=31 // loop_header
                %s183 = sphi 0, %s187
                %p184 = scmp.ge.s32.totalorder %s183, 1
                %s188 = sphi %s177, %s177
                %s189 = sphi %s171, %s171
              $region35: #{attention_forward.5} parent=31 // loop_header_branch
                %186 = sbr.rel (%p184) target = $region39
              $region36: #{attention_forward.5} parent=31 // loop_body
                %v190 = vld [vmem:[%s188] sm:$0xff]
                %191 = vst [vmem:[%s189] sm:$0xff] %v190
                %v192 = vld [vmem:[%s188 + $0x8] sm:$0xff]
                %193 = vst [vmem:[%s189 + $0x8] sm:$0xff] %v192
                %v194 = vld [vmem:[%s188 + $0x10] sm:$0xff]
                %195 = vst [vmem:[%s189 + $0x10] sm:$0xff] %v194
                %v196 = vld [vmem:[%s188 + $0x18] sm:$0xff]
                %197 = vst [vmem:[%s189 + $0x18] sm:$0xff] %v196
                %v198 = vld [vmem:[%s188 + $0x120] sm:$0xff]
                %199 = vst [vmem:[%s189 + $0x20] sm:$0xff] %v198
                %v200 = vld [vmem:[%s188 + $0x128] sm:$0xff]
                %201 = vst [vmem:[%s189 + $0x28] sm:$0xff] %v200
                %v202 = vld [vmem:[%s188 + $0x130] sm:$0xff]
                %203 = vst [vmem:[%s189 + $0x30] sm:$0xff] %v202
                %v204 = vld [vmem:[%s188 + $0x138] sm:$0xff]
                %205 = vst [vmem:[%s189 + $0x38] sm:$0xff] %v204
                %v206 = vld [vmem:[%s188 + $0x240] sm:$0xff]
                %207 = vst [vmem:[%s189 + $0x40] sm:$0xff] %v206
                %v208 = vld [vmem:[%s188 + $0x248] sm:$0xff]
                %209 = vst [vmem:[%s189 + $0x48] sm:$0xff] %v208
                %v210 = vld [vmem:[%s188 + $0x250] sm:$0xff]
                %211 = vst [vmem:[%s189 + $0x50] sm:$0xff] %v210
                %v212 = vld [vmem:[%s188 + $0x258] sm:$0xff]
                %213 = vst [vmem:[%s189 + $0x58] sm:$0xff] %v212
                %v214 = vld [vmem:[%s188 + $0x360] sm:$0xff]
                %215 = vst [vmem:[%s189 + $0x60] sm:$0xff] %v214
                %v216 = vld [vmem:[%s188 + $0x368] sm:$0xff]
                %217 = vst [vmem:[%s189 + $0x68] sm:$0xff] %v216
                %v218 = vld [vmem:[%s188 + $0x370] sm:$0xff]
                %219 = vst [vmem:[%s189 + $0x70] sm:$0xff] %v218
                %v220 = vld [vmem:[%s188 + $0x378] sm:$0xff]
                %221 = vst [vmem:[%s189 + $0x78] sm:$0xff] %v220
                %v222 = vld [vmem:[%s188 + $0x480] sm:$0xff]
                %223 = vst [vmem:[%s189 + $0x80] sm:$0xff] %v222
                %v224 = vld [vmem:[%s188 + $0x488] sm:$0xff]
                %225 = vst [vmem:[%s189 + $0x88] sm:$0xff] %v224
                %v226 = vld [vmem:[%s188 + $0x490] sm:$0xff]
                %227 = vst [vmem:[%s189 + $0x90] sm:$0xff] %v226
                %v228 = vld [vmem:[%s188 + $0x498] sm:$0xff]
                %229 = vst [vmem:[%s189 + $0x98] sm:$0xff] %v228
                %v230 = vld [vmem:[%s188 + $0x5a0] sm:$0xff]
                %231 = vst [vmem:[%s189 + $0xa0] sm:$0xff] %v230
                %v232 = vld [vmem:[%s188 + $0x5a8] sm:$0xff]
                %233 = vst [vmem:[%s189 + $0xa8] sm:$0xff] %v232
                %v234 = vld [vmem:[%s188 + $0x5b0] sm:$0xff]
                %235 = vst [vmem:[%s189 + $0xb0] sm:$0xff] %v234
                %v236 = vld [vmem:[%s188 + $0x5b8] sm:$0xff]
                %237 = vst [vmem:[%s189 + $0xb8] sm:$0xff] %v236
                %v238 = vld [vmem:[%s188 + $0x6c0] sm:$0xff]
                %239 = vst [vmem:[%s189 + $0xc0] sm:$0xff] %v238
                %v240 = vld [vmem:[%s188 + $0x6c8] sm:$0xff]
                %241 = vst [vmem:[%s189 + $0xc8] sm:$0xff] %v240
                %v242 = vld [vmem:[%s188 + $0x6d0] sm:$0xff]
                %243 = vst [vmem:[%s189 + $0xd0] sm:$0xff] %v242
                %v244 = vld [vmem:[%s188 + $0x6d8] sm:$0xff]
                %245 = vst [vmem:[%s189 + $0xd8] sm:$0xff] %v244
                %v246 = vld [vmem:[%s188 + $0x7e0] sm:$0xff]
                %247 = vst [vmem:[%s189 + $0xe0] sm:$0xff] %v246
                %v248 = vld [vmem:[%s188 + $0x7e8] sm:$0xff]
                %249 = vst [vmem:[%s189 + $0xe8] sm:$0xff] %v248
                %v250 = vld [vmem:[%s188 + $0x7f0] sm:$0xff]
                %251 = vst [vmem:[%s189 + $0xf0] sm:$0xff] %v250
                %v252 = vld [vmem:[%s188 + $0x7f8] sm:$0xff]
                %253 = vst [vmem:[%s189 + $0xf8] sm:$0xff] %v252
                %v254 = vld [vmem:[%s188 + $0x900] sm:$0xff]
                %255 = vst [vmem:[%s189 + $0x100] sm:$0xff] %v254
                %v256 = vld [vmem:[%s188 + $0x908] sm:$0xff]
                %257 = vst [vmem:[%s189 + $0x108] sm:$0xff] %v256
                %v258 = vld [vmem:[%s188 + $0x910] sm:$0xff]
                %259 = vst [vmem:[%s189 + $0x110] sm:$0xff] %v258
                %v260 = vld [vmem:[%s188 + $0x918] sm:$0xff]
                %261 = vst [vmem:[%s189 + $0x118] sm:$0xff] %v260
                %v262 = vld [vmem:[%s188 + $0xa20] sm:$0xff]
                %263 = vst [vmem:[%s189 + $0x120] sm:$0xff] %v262
                %v264 = vld [vmem:[%s188 + $0xa28] sm:$0xff]
                %265 = vst [vmem:[%s189 + $0x128] sm:$0xff] %v264
                %v266 = vld [vmem:[%s188 + $0xa30] sm:$0xff]
                %267 = vst [vmem:[%s189 + $0x130] sm:$0xff] %v266
                %v268 = vld [vmem:[%s188 + $0xa38] sm:$0xff]
                %269 = vst [vmem:[%s189 + $0x138] sm:$0xff] %v268
                %v270 = vld [vmem:[%s188 + $0xb40] sm:$0xff]
                %271 = vst [vmem:[%s189 + $0x140] sm:$0xff] %v270
                %v272 = vld [vmem:[%s188 + $0xb48] sm:$0xff]
                %273 = vst [vmem:[%s189 + $0x148] sm:$0xff] %v272
                %v274 = vld [vmem:[%s188 + $0xb50] sm:$0xff]
                %275 = vst [vmem:[%s189 + $0x150] sm:$0xff] %v274
                %v276 = vld [vmem:[%s188 + $0xb58] sm:$0xff]
                %277 = vst [vmem:[%s189 + $0x158] sm:$0xff] %v276
                %v278 = vld [vmem:[%s188 + $0xc60] sm:$0xff]
                %279 = vst [vmem:[%s189 + $0x160] sm:$0xff] %v278
                %v280 = vld [vmem:[%s188 + $0xc68] sm:$0xff]
                %281 = vst [vmem:[%s189 + $0x168] sm:$0xff] %v280
                %v282 = vld [vmem:[%s188 + $0xc70] sm:$0xff]
                %283 = vst [vmem:[%s189 + $0x170] sm:$0xff] %v282
                %v284 = vld [vmem:[%s188 + $0xc78] sm:$0xff]
                %285 = vst [vmem:[%s189 + $0x178] sm:$0xff] %v284
                %v286 = vld [vmem:[%s188 + $0xd80] sm:$0xff]
                %287 = vst [vmem:[%s189 + $0x180] sm:$0xff] %v286
                %v288 = vld [vmem:[%s188 + $0xd88] sm:$0xff]
                %289 = vst [vmem:[%s189 + $0x188] sm:$0xff] %v288
                %v290 = vld [vmem:[%s188 + $0xd90] sm:$0xff]
                %291 = vst [vmem:[%s189 + $0x190] sm:$0xff] %v290
                %v292 = vld [vmem:[%s188 + $0xd98] sm:$0xff]
                %293 = vst [vmem:[%s189 + $0x198] sm:$0xff] %v292
                %v294 = vld [vmem:[%s188 + $0xea0] sm:$0xff]
                %295 = vst [vmem:[%s189 + $0x1a0] sm:$0xff] %v294
                %v296 = vld [vmem:[%s188 + $0xea8] sm:$0xff]
                %297 = vst [vmem:[%s189 + $0x1a8] sm:$0xff] %v296
                %v298 = vld [vmem:[%s188 + $0xeb0] sm:$0xff]
                %299 = vst [vmem:[%s189 + $0x1b0] sm:$0xff] %v298
                %v300 = vld [vmem:[%s188 + $0xeb8] sm:$0xff]
                %301 = vst [vmem:[%s189 + $0x1b8] sm:$0xff] %v300
                %v302 = vld [vmem:[%s188 + $0xfc0] sm:$0xff]
                %303 = vst [vmem:[%s189 + $0x1c0] sm:$0xff] %v302
                %v304 = vld [vmem:[%s188 + $0xfc8] sm:$0xff]
                %305 = vst [vmem:[%s189 + $0x1c8] sm:$0xff] %v304
                %v306 = vld [vmem:[%s188 + $0xfd0] sm:$0xff]
                %307 = vst [vmem:[%s189 + $0x1d0] sm:$0xff] %v306
                %v308 = vld [vmem:[%s188 + $0xfd8] sm:$0xff]
                %309 = vst [vmem:[%s189 + $0x1d8] sm:$0xff] %v308
                %v310 = vld [vmem:[%s188 + $0x10e0] sm:$0xff]
                %311 = vst [vmem:[%s189 + $0x1e0] sm:$0xff] %v310
                %v312 = vld [vmem:[%s188 + $0x10e8] sm:$0xff]
                %313 = vst [vmem:[%s189 + $0x1e8] sm:$0xff] %v312
                %v314 = vld [vmem:[%s188 + $0x10f0] sm:$0xff]
                %315 = vst [vmem:[%s189 + $0x1f0] sm:$0xff] %v314
                %v316 = vld [vmem:[%s188 + $0x10f8] sm:$0xff]
                %317 = vst [vmem:[%s189 + $0x1f8] sm:$0xff] %v316
              $region37: #{attention_forward.5} parent=31 // loop_footer
                %s187 = sadd.s32 1, %s183
              $region38: #{attention_forward.5} parent=31 // loop_footer_branch
                %182 = sbr.rel target = $region34
              $region39: #{attention_forward.5} parent=31 // loop_exit
                _
            $region32: #{attention_forward.5} parent=27 // pred_fallthru
              _
            // Predicated region
            $region40: #{attention_forward.5} parent=27 // pred_check
              _
            $region41: #{attention_forward.5} parent=27 // pred_check_branch
              %319 = sbr.rel target = $region43
            $region42: #{attention_forward.5} parent=27 // pred_region
              _
            $region43: #{attention_forward.5} parent=27 // pred_fallthru
              _
          $region28: #{attention_forward.5} parent=23 // pred_fallthru
            _
          %320 = vnop
        $region24: #{attention_forward.5} parent=19 // pred_fallthru
          _
        // Predicated region
        $region44: #{attention_forward.5} parent=19 // pred_check
          %p321 = pneg %p78
        $region45: #{attention_forward.5} parent=19 // pred_check_branch
          %323 = sbr.rel (%p321) target = $region47
        $region46: #{attention_forward.5} parent=19 // pred_region
          %s324 = smul.u32 128, %s18
          %s325 = smul.u32 4, %s17
          %p326 = scmp.lt.s32.totalorder %s324, 1151
          %s327 = scalar_select %p326, %s324, 1151
          %p328 = scmp.lt.s32.totalorder %s325, 3
          %s329 = scalar_select %p328, %s325, 3
          %s330 = smul.addr %s327, 4
          %s331 = sadd.s32 %s329, %s330
          %s332 = smul.addr %s331, 4
          %s333 = scalar_lea.vmem %s1, %s332
          %s334 = smul.u32 128, %s18
          %s335 = smul.u32 4, %s17
        $region47: #{attention_forward.5} parent=19 // pred_fallthru
          _
      $region20: #{attention_forward.5} parent=5 // pred_fallthru
        _
      %p336 = scmp.le.s32.totalorder 1, %s9
      %p337 = scmp.lt.s32.totalorder %s9, 10
      %p338 = pnand %p336, %p337
      %p339 = pneg %p338
      // Predicated region
      $region48: #{attention_forward.5} parent=5 // pred_check
        _
      $region49: #{attention_forward.5} parent=5 // pred_check_branch
        %341 = sbr.rel (%p338) target = $region51
      $region50: #{attention_forward.5} parent=5 // pred_region
        %s342 = ssub.s32 %s9, 1
        %s343 = sand.u32 %s43, 1
        %s344 = sand.u32 %s43, 1
        %s345 = smul.addr %s344, 512
        %s346 = scalar_lea.vmem [#allocation3], %s345
        // Predicated region
        $region52: #{attention_forward.5} parent=50 // pred_check
          %p347 = pneg %p56
        $region53: #{attention_forward.5} parent=50 // pred_check_branch
          %349 = sbr.rel (%p347) target = $region55
        $region54: #{attention_forward.5} parent=50 // pred_region
          _
        $region55: #{attention_forward.5} parent=50 // pred_fallthru
          _
        %s350 = sand.u32 %s43, 1
        %s351 = sand.u32 %s43, 1
        %s352 = smul.addr %s351, 512
        %s353 = scalar_lea.vmem [#allocation3], %s352
        %p354 = pneg %p56
        %p355 = pneg %p53
        %s356 = smul.u32 128, %s21
        %s357 = smul.u32 4, %s20
        %p358 = scmp.lt.s32.totalorder %s356, 1151
        %s359 = scalar_select %p358, %s356, 1151
        %p360 = scmp.lt.s32.totalorder %s357, 3
        %s361 = scalar_select %p360, %s357, 3
        %s362 = smul.addr %s359, 4
        %s363 = sadd.s32 %s361, %s362
        %s364 = smul.addr %s363, 4
        %s365 = scalar_lea.vmem %s1, %s364
        %p366 = pneg %p84
        %p367 = pneg %p81
        %s368 = smul.u32 4, %s20
        %p369 = scmp.lt.s32.totalorder %s368, 3
        %s370 = scalar_select %p369, %s368, 3
        %s371 = scalar_lea.vmem %s2, %s370
        %p372 = pneg %p110
        %p373 = pneg %p107
        %p374 = pneg %p138
        %p375 = pneg %p135
        %s376 = smul.u32 16, %s19
        %s377 = smul.u32 4, %s20
        %p378 = scmp.lt.s32.totalorder %s376, 15
        %s379 = scalar_select %p378, %s376, 15
        %p380 = scmp.lt.s32.totalorder %s377, 3
        %s381 = scalar_select %p380, %s377, 3
        %s382 = smul.addr %s379, 4
        %s383 = sadd.s32 %s381, %s382
        %s384 = smul.addr %s383, 8
        %s385 = scalar_lea.vmem %s3, %s384
        %s386 = smul.u32 16, %s19
        %s387 = smul.u32 8, %s21
        %s388 = smul.u32 128, %s21
        %s389 = smul.u32 4, %s20
        %p390 = scmp.lt.s32.totalorder %s388, 1151
        %s391 = scalar_select %p390, %s388, 1151
        %p392 = scmp.lt.s32.totalorder %s389, 3
        %s393 = scalar_select %p392, %s389, 3
        %s394 = smul.addr %s391, 4
        %s395 = sadd.s32 %s393, %s394
        %s396 = smul.addr %s395, 4
        %s397 = scalar_lea.vmem %s1, %s396
        %s398 = smul.u32 128, %s21
        %s399 = smul.u32 4, %s20
        %s400 = smul.u32 4, %s20
        %p401 = scmp.lt.s32.totalorder %s400, 3
        %s402 = scalar_select %p401, %s400, 3
        %s403 = scalar_lea.vmem %s2, %s402
        %s404 = smul.u32 4, %s20
        %s405 = smul.u32 16, %s19
        %s406 = smul.u32 4, %s20
        %p407 = scmp.lt.s32.totalorder %s405, 15
        %s408 = scalar_select %p407, %s405, 15
        %p409 = scmp.lt.s32.totalorder %s406, 3
        %s410 = scalar_select %p409, %s406, 3
        %s411 = smul.addr %s408, 4
        %s412 = sadd.s32 %s410, %s411
        %s413 = smul.addr %s412, 8
        %s414 = scalar_lea.vmem %s3, %s413
        %s415 = smul.u32 16, %s19
        %s416 = smul.u32 4, %s20
        %p417 = scmp.eq.s32.totalorder %s21, 0
        // Predicated region
        $region56: #{attention_forward.5} parent=50 // pred_check
          %p418 = pneg %p417
        $region57: #{attention_forward.5} parent=50 // pred_check_branch
          %420 = sbr.rel (%p418) target = $region59
        $region58: #{attention_forward.5} parent=50 // pred_region
          %421 = vst [vmem:[#allocation2] sm:$0xff] 0.0
          %422 = vst [vmem:[#allocation2 + $0x8] sm:$0xff] 0.0
          %423 = vst [vmem:[#allocation2 + $0x10] sm:$0xff] 0.0
          %424 = vst [vmem:[#allocation2 + $0x18] sm:$0xff] 0.0
          %425 = vst [vmem:[#allocation2 + $0x20] sm:$0xff] 0.0
          %426 = vst [vmem:[#allocation2 + $0x28] sm:$0xff] 0.0
          %427 = vst [vmem:[#allocation2 + $0x30] sm:$0xff] 0.0
          %428 = vst [vmem:[#allocation2 + $0x38] sm:$0xff] 0.0
          %429 = vst [vmem:[#allocation2 + $0x40] sm:$0xff] 0.0
          %430 = vst [vmem:[#allocation2 + $0x48] sm:$0xff] 0.0
          %431 = vst [vmem:[#allocation2 + $0x50] sm:$0xff] 0.0
          %432 = vst [vmem:[#allocation2 + $0x58] sm:$0xff] 0.0
          %433 = vst [vmem:[#allocation2 + $0x60] sm:$0xff] 0.0
          %434 = vst [vmem:[#allocation2 + $0x68] sm:$0xff] 0.0
          %435 = vst [vmem:[#allocation2 + $0x70] sm:$0xff] 0.0
          %436 = vst [vmem:[#allocation2 + $0x78] sm:$0xff] 0.0
          %437 = vst [vmem:[#allocation2 + $0x80] sm:$0xff] 0.0
          %438 = vst [vmem:[#allocation2 + $0x88] sm:$0xff] 0.0
          %439 = vst [vmem:[#allocation2 + $0x90] sm:$0xff] 0.0
          %440 = vst [vmem:[#allocation2 + $0x98] sm:$0xff] 0.0
          %441 = vst [vmem:[#allocation2 + $0xa0] sm:$0xff] 0.0
          %442 = vst [vmem:[#allocation2 + $0xa8] sm:$0xff] 0.0
          %443 = vst [vmem:[#allocation2 + $0xb0] sm:$0xff] 0.0
          %444 = vst [vmem:[#allocation2 + $0xb8] sm:$0xff] 0.0
          %445 = vst [vmem:[#allocation2 + $0xc0] sm:$0xff] 0.0
          %446 = vst [vmem:[#allocation2 + $0xc8] sm:$0xff] 0.0
          %447 = vst [vmem:[#allocation2 + $0xd0] sm:$0xff] 0.0
          %448 = vst [vmem:[#allocation2 + $0xd8] sm:$0xff] 0.0
          %449 = vst [vmem:[#allocation2 + $0xe0] sm:$0xff] 0.0
          %450 = vst [vmem:[#allocation2 + $0xe8] sm:$0xff] 0.0
          %451 = vst [vmem:[#allocation2 + $0xf0] sm:$0xff] 0.0
          %452 = vst [vmem:[#allocation2 + $0xf8] sm:$0xff] 0.0
          %453 = vst [vmem:[#allocation2 + $0x100] sm:$0xff] 0.0
          %454 = vst [vmem:[#allocation2 + $0x108] sm:$0xff] 0.0
          %455 = vst [vmem:[#allocation2 + $0x110] sm:$0xff] 0.0
          %456 = vst [vmem:[#allocation2 + $0x118] sm:$0xff] 0.0
          %457 = vst [vmem:[#allocation2 + $0x120] sm:$0xff] 0.0
          %458 = vst [vmem:[#allocation2 + $0x128] sm:$0xff] 0.0
          %459 = vst [vmem:[#allocation2 + $0x130] sm:$0xff] 0.0
          %460 = vst [vmem:[#allocation2 + $0x138] sm:$0xff] 0.0
          %461 = vst [vmem:[#allocation2 + $0x140] sm:$0xff] 0.0
          %462 = vst [vmem:[#allocation2 + $0x148] sm:$0xff] 0.0
          %463 = vst [vmem:[#allocation2 + $0x150] sm:$0xff] 0.0
          %464 = vst [vmem:[#allocation2 + $0x158] sm:$0xff] 0.0
          %465 = vst [vmem:[#allocation2 + $0x160] sm:$0xff] 0.0
          %466 = vst [vmem:[#allocation2 + $0x168] sm:$0xff] 0.0
          %467 = vst [vmem:[#allocation2 + $0x170] sm:$0xff] 0.0
          %468 = vst [vmem:[#allocation2 + $0x178] sm:$0xff] 0.0
          %469 = vst [vmem:[#allocation2 + $0x180] sm:$0xff] 0.0
          %470 = vst [vmem:[#allocation2 + $0x188] sm:$0xff] 0.0
          %471 = vst [vmem:[#allocation2 + $0x190] sm:$0xff] 0.0
          %472 = vst [vmem:[#allocation2 + $0x198] sm:$0xff] 0.0
          %473 = vst [vmem:[#allocation2 + $0x1a0] sm:$0xff] 0.0
          %474 = vst [vmem:[#allocation2 + $0x1a8] sm:$0xff] 0.0
          %475 = vst [vmem:[#allocation2 + $0x1b0] sm:$0xff] 0.0
          %476 = vst [vmem:[#allocation2 + $0x1b8] sm:$0xff] 0.0
          %477 = vst [vmem:[#allocation2 + $0x1c0] sm:$0xff] 0.0
          %478 = vst [vmem:[#allocation2 + $0x1c8] sm:$0xff] 0.0
          %479 = vst [vmem:[#allocation2 + $0x1d0] sm:$0xff] 0.0
          %480 = vst [vmem:[#allocation2 + $0x1d8] sm:$0xff] 0.0
          %481 = vst [vmem:[#allocation2 + $0x1e0] sm:$0xff] 0.0
          %482 = vst [vmem:[#allocation2 + $0x1e8] sm:$0xff] 0.0
          %483 = vst [vmem:[#allocation2 + $0x1f0] sm:$0xff] 0.0
          %484 = vst [vmem:[#allocation2 + $0x1f8] sm:$0xff] 0.0
        $region59: #{attention_forward.5} parent=50 // pred_fallthru
          _
        %v485 = vld [vmem:[#allocation2] sm:$0xff]
        %v486 = vld [vmem:[#allocation2 + $0x8] sm:$0xff]
        %v487 = vld [vmem:[#allocation2 + $0x10] sm:$0xff]
        %v488 = vld [vmem:[#allocation2 + $0x18] sm:$0xff]
        %v489 = vld [vmem:[#allocation2 + $0x20] sm:$0xff]
        %v490 = vld [vmem:[#allocation2 + $0x28] sm:$0xff]
        %v491 = vld [vmem:[#allocation2 + $0x30] sm:$0xff]
        %v492 = vld [vmem:[#allocation2 + $0x38] sm:$0xff]
        %v493 = vld [vmem:[#allocation2 + $0x40] sm:$0xff]
        %v494 = vld [vmem:[#allocation2 + $0x48] sm:$0xff]
        %v495 = vld [vmem:[#allocation2 + $0x50] sm:$0xff]
        %v496 = vld [vmem:[#allocation2 + $0x58] sm:$0xff]
        %v497 = vld [vmem:[#allocation2 + $0x60] sm:$0xff]
        %v498 = vld [vmem:[#allocation2 + $0x68] sm:$0xff]
        %v499 = vld [vmem:[#allocation2 + $0x70] sm:$0xff]
        %v500 = vld [vmem:[#allocation2 + $0x78] sm:$0xff]
        %v501 = vld [vmem:[#allocation2 + $0x80] sm:$0xff]
        %v502 = vld [vmem:[#allocation2 + $0x88] sm:$0xff]
        %v503 = vld [vmem:[#allocation2 + $0x90] sm:$0xff]
        %v504 = vld [vmem:[#allocation2 + $0x98] sm:$0xff]
        %v505 = vld [vmem:[#allocation2 + $0xa0] sm:$0xff]
        %v506 = vld [vmem:[#allocation2 + $0xa8] sm:$0xff]
        %v507 = vld [vmem:[#allocation2 + $0xb0] sm:$0xff]
        %v508 = vld [vmem:[#allocation2 + $0xb8] sm:$0xff]
        %v509 = vld [vmem:[#allocation2 + $0xc0] sm:$0xff]
        %v510 = vld [vmem:[#allocation2 + $0xc8] sm:$0xff]
        %v511 = vld [vmem:[#allocation2 + $0xd0] sm:$0xff]
        %v512 = vld [vmem:[#allocation2 + $0xd8] sm:$0xff]
        %v513 = vld [vmem:[#allocation2 + $0xe0] sm:$0xff]
        %v514 = vld [vmem:[#allocation2 + $0xe8] sm:$0xff]
        %v515 = vld [vmem:[#allocation2 + $0xf0] sm:$0xff]
        %v516 = vld [vmem:[#allocation2 + $0xf8] sm:$0xff]
        %v517 = vld [vmem:[#allocation2 + $0x100] sm:$0xff]
        %v518 = vld [vmem:[#allocation2 + $0x108] sm:$0xff]
        %v519 = vld [vmem:[#allocation2 + $0x110] sm:$0xff]
        %v520 = vld [vmem:[#allocation2 + $0x118] sm:$0xff]
        %v521 = vld [vmem:[#allocation2 + $0x120] sm:$0xff]
        %v522 = vld [vmem:[#allocation2 + $0x128] sm:$0xff]
        %v523 = vld [vmem:[#allocation2 + $0x130] sm:$0xff]
        %v524 = vld [vmem:[#allocation2 + $0x138] sm:$0xff]
        %v525 = vld [vmem:[#allocation2 + $0x140] sm:$0xff]
        %v526 = vld [vmem:[#allocation2 + $0x148] sm:$0xff]
        %v527 = vld [vmem:[#allocation2 + $0x150] sm:$0xff]
        %v528 = vld [vmem:[#allocation2 + $0x158] sm:$0xff]
        %v529 = vld [vmem:[#allocation2 + $0x160] sm:$0xff]
        %v530 = vld [vmem:[#allocation2 + $0x168] sm:$0xff]
        %v531 = vld [vmem:[#allocation2 + $0x170] sm:$0xff]
        %v532 = vld [vmem:[#allocation2 + $0x178] sm:$0xff]
        %v533 = vld [vmem:[#allocation2 + $0x180] sm:$0xff]
        %v534 = vld [vmem:[#allocation2 + $0x188] sm:$0xff]
        %v535 = vld [vmem:[#allocation2 + $0x190] sm:$0xff]
        %v536 = vld [vmem:[#allocation2 + $0x198] sm:$0xff]
        %v537 = vld [vmem:[#allocation2 + $0x1a0] sm:$0xff]
        %v538 = vld [vmem:[#allocation2 + $0x1a8] sm:$0xff]
        %v539 = vld [vmem:[#allocation2 + $0x1b0] sm:$0xff]
        %v540 = vld [vmem:[#allocation2 + $0x1b8] sm:$0xff]
        %v541 = vld [vmem:[#allocation2 + $0x1c0] sm:$0xff]
        %v542 = vld [vmem:[#allocation2 + $0x1c8] sm:$0xff]
        %v543 = vld [vmem:[#allocation2 + $0x1d0] sm:$0xff]
        %v544 = vld [vmem:[#allocation2 + $0x1d8] sm:$0xff]
        %v545 = vld [vmem:[#allocation2 + $0x1e0] sm:$0xff]
        %v546 = vld [vmem:[#allocation2 + $0x1e8] sm:$0xff]
        %v547 = vld [vmem:[#allocation2 + $0x1f0] sm:$0xff]
        %v548 = vld [vmem:[#allocation2 + $0x1f8] sm:$0xff]
        %v549 = vld [vmem:[%s346] sm:$0xff]
        %v550 = vld [vmem:[%s346 + $0x8] sm:$0xff]
        %v551 = vld [vmem:[%s346 + $0x10] sm:$0xff]
        %v552 = vld [vmem:[%s346 + $0x18] sm:$0xff]
        %v553 = vld [vmem:[%s346 + $0x20] sm:$0xff]
        %v554 = vld [vmem:[%s346 + $0x28] sm:$0xff]
        %v555 = vld [vmem:[%s346 + $0x30] sm:$0xff]
        %v556 = vld [vmem:[%s346 + $0x38] sm:$0xff]
        %v557 = vld [vmem:[%s346 + $0x40] sm:$0xff]
        %v558 = vld [vmem:[%s346 + $0x48] sm:$0xff]
        %v559 = vld [vmem:[%s346 + $0x50] sm:$0xff]
        %v560 = vld [vmem:[%s346 + $0x58] sm:$0xff]
        %v561 = vld [vmem:[%s346 + $0x60] sm:$0xff]
        %v562 = vld [vmem:[%s346 + $0x68] sm:$0xff]
        %v563 = vld [vmem:[%s346 + $0x70] sm:$0xff]
        %v564 = vld [vmem:[%s346 + $0x78] sm:$0xff]
        %v565 = vld [vmem:[%s346 + $0x80] sm:$0xff]
        %v566 = vld [vmem:[%s346 + $0x88] sm:$0xff]
        %v567 = vld [vmem:[%s346 + $0x90] sm:$0xff]
        %v568 = vld [vmem:[%s346 + $0x98] sm:$0xff]
        %v569 = vld [vmem:[%s346 + $0xa0] sm:$0xff]
        %v570 = vld [vmem:[%s346 + $0xa8] sm:$0xff]
        %v571 = vld [vmem:[%s346 + $0xb0] sm:$0xff]
        %v572 = vld [vmem:[%s346 + $0xb8] sm:$0xff]
        %v573 = vld [vmem:[%s346 + $0xc0] sm:$0xff]
        %v574 = vld [vmem:[%s346 + $0xc8] sm:$0xff]
        %v575 = vld [vmem:[%s346 + $0xd0] sm:$0xff]
        %v576 = vld [vmem:[%s346 + $0xd8] sm:$0xff]
        %v577 = vld [vmem:[%s346 + $0xe0] sm:$0xff]
        %v578 = vld [vmem:[%s346 + $0xe8] sm:$0xff]
        %v579 = vld [vmem:[%s346 + $0xf0] sm:$0xff]
        %v580 = vld [vmem:[%s346 + $0xf8] sm:$0xff]
        %v581 = vld [vmem:[%s346 + $0x100] sm:$0xff]
        %v582 = vld [vmem:[%s346 + $0x108] sm:$0xff]
        %v583 = vld [vmem:[%s346 + $0x110] sm:$0xff]
        %v584 = vld [vmem:[%s346 + $0x118] sm:$0xff]
        %v585 = vld [vmem:[%s346 + $0x120] sm:$0xff]
        %v586 = vld [vmem:[%s346 + $0x128] sm:$0xff]
        %v587 = vld [vmem:[%s346 + $0x130] sm:$0xff]
        %v588 = vld [vmem:[%s346 + $0x138] sm:$0xff]
        %v589 = vld [vmem:[%s346 + $0x140] sm:$0xff]
        %v590 = vld [vmem:[%s346 + $0x148] sm:$0xff]
        %v591 = vld [vmem:[%s346 + $0x150] sm:$0xff]
        %v592 = vld [vmem:[%s346 + $0x158] sm:$0xff]
        %v593 = vld [vmem:[%s346 + $0x160] sm:$0xff]
        %v594 = vld [vmem:[%s346 + $0x168] sm:$0xff]
        %v595 = vld [vmem:[%s346 + $0x170] sm:$0xff]
        %v596 = vld [vmem:[%s346 + $0x178] sm:$0xff]
        %v597 = vld [vmem:[%s346 + $0x180] sm:$0xff]
        %v598 = vld [vmem:[%s346 + $0x188] sm:$0xff]
        %v599 = vld [vmem:[%s346 + $0x190] sm:$0xff]
        %v600 = vld [vmem:[%s346 + $0x198] sm:$0xff]
        %v601 = vld [vmem:[%s346 + $0x1a0] sm:$0xff]
        %v602 = vld [vmem:[%s346 + $0x1a8] sm:$0xff]
        %v603 = vld [vmem:[%s346 + $0x1b0] sm:$0xff]
        %v604 = vld [vmem:[%s346 + $0x1b8] sm:$0xff]
        %v605 = vld [vmem:[%s346 + $0x1c0] sm:$0xff]
        %v606 = vld [vmem:[%s346 + $0x1c8] sm:$0xff]
        %v607 = vld [vmem:[%s346 + $0x1d0] sm:$0xff]
        %v608 = vld [vmem:[%s346 + $0x1d8] sm:$0xff]
        %v609 = vld [vmem:[%s346 + $0x1e0] sm:$0xff]
        %v610 = vld [vmem:[%s346 + $0x1e8] sm:$0xff]
        %v611 = vld [vmem:[%s346 + $0x1f0] sm:$0xff]
        %v612 = vld [vmem:[%s346 + $0x1f8] sm:$0xff]
        %v613 = vld [vmem:[%s397] sm:$0xff]
        %v614 = vld [vmem:[%s397 + $0x8] sm:$0xff]
        %v615 = vld [vmem:[%s397 + $0x10] sm:$0xff]
        %v616 = vld [vmem:[%s397 + $0x18] sm:$0xff]
        %v617 = vld [vmem:[%s397 + $0x20] sm:$0xff]
        %v618 = vld [vmem:[%s397 + $0x28] sm:$0xff]
        %v619 = vld [vmem:[%s397 + $0x30] sm:$0xff]
        %v620 = vld [vmem:[%s397 + $0x38] sm:$0xff]
        %v621 = vld [vmem:[%s397 + $0x40] sm:$0xff]
        %v622 = vld [vmem:[%s397 + $0x48] sm:$0xff]
        %v623 = vld [vmem:[%s397 + $0x50] sm:$0xff]
        %v624 = vld [vmem:[%s397 + $0x58] sm:$0xff]
        %v625 = vld [vmem:[%s397 + $0x60] sm:$0xff]
        %v626 = vld [vmem:[%s397 + $0x68] sm:$0xff]
        %v627 = vld [vmem:[%s397 + $0x70] sm:$0xff]
        %v628 = vld [vmem:[%s397 + $0x78] sm:$0xff]
        %v629 = vld [vmem:[%s397 + $0x80] sm:$0xff]
        %v630 = vld [vmem:[%s397 + $0x88] sm:$0xff]
        %v631 = vld [vmem:[%s397 + $0x90] sm:$0xff]
        %v632 = vld [vmem:[%s397 + $0x98] sm:$0xff]
        %v633 = vld [vmem:[%s397 + $0xa0] sm:$0xff]
        %v634 = vld [vmem:[%s397 + $0xa8] sm:$0xff]
        %v635 = vld [vmem:[%s397 + $0xb0] sm:$0xff]
        %v636 = vld [vmem:[%s397 + $0xb8] sm:$0xff]
        %v637 = vld [vmem:[%s397 + $0xc0] sm:$0xff]
        %v638 = vld [vmem:[%s397 + $0xc8] sm:$0xff]
        %v639 = vld [vmem:[%s397 + $0xd0] sm:$0xff]
        %v640 = vld [vmem:[%s397 + $0xd8] sm:$0xff]
        %v641 = vld [vmem:[%s397 + $0xe0] sm:$0xff]
        %v642 = vld [vmem:[%s397 + $0xe8] sm:$0xff]
        %v643 = vld [vmem:[%s397 + $0xf0] sm:$0xff]
        %v644 = vld [vmem:[%s397 + $0xf8] sm:$0xff]
        %v645 = vld [vmem:[%s397 + $0x100] sm:$0xff]
        %v646 = vld [vmem:[%s397 + $0x108] sm:$0xff]
        %v647 = vld [vmem:[%s397 + $0x110] sm:$0xff]
        %v648 = vld [vmem:[%s397 + $0x118] sm:$0xff]
        %v649 = vld [vmem:[%s397 + $0x120] sm:$0xff]
        %v650 = vld [vmem:[%s397 + $0x128] sm:$0xff]
        %v651 = vld [vmem:[%s397 + $0x130] sm:$0xff]
        %v652 = vld [vmem:[%s397 + $0x138] sm:$0xff]
        %v653 = vld [vmem:[%s397 + $0x140] sm:$0xff]
        %v654 = vld [vmem:[%s397 + $0x148] sm:$0xff]
        %v655 = vld [vmem:[%s397 + $0x150] sm:$0xff]
        %v656 = vld [vmem:[%s397 + $0x158] sm:$0xff]
        %v657 = vld [vmem:[%s397 + $0x160] sm:$0xff]
        %v658 = vld [vmem:[%s397 + $0x168] sm:$0xff]
        %v659 = vld [vmem:[%s397 + $0x170] sm:$0xff]
        %v660 = vld [vmem:[%s397 + $0x178] sm:$0xff]
        %v661 = vld [vmem:[%s397 + $0x180] sm:$0xff]
        %v662 = vld [vmem:[%s397 + $0x188] sm:$0xff]
        %v663 = vld [vmem:[%s397 + $0x190] sm:$0xff]
        %v664 = vld [vmem:[%s397 + $0x198] sm:$0xff]
        %v665 = vld [vmem:[%s397 + $0x1a0] sm:$0xff]
        %v666 = vld [vmem:[%s397 + $0x1a8] sm:$0xff]
        %v667 = vld [vmem:[%s397 + $0x1b0] sm:$0xff]
        %v668 = vld [vmem:[%s397 + $0x1b8] sm:$0xff]
        %v669 = vld [vmem:[%s397 + $0x1c0] sm:$0xff]
        %v670 = vld [vmem:[%s397 + $0x1c8] sm:$0xff]
        %v671 = vld [vmem:[%s397 + $0x1d0] sm:$0xff]
        %v672 = vld [vmem:[%s397 + $0x1d8] sm:$0xff]
        %v673 = vld [vmem:[%s397 + $0x1e0] sm:$0xff]
        %v674 = vld [vmem:[%s397 + $0x1e8] sm:$0xff]
        %v675 = vld [vmem:[%s397 + $0x1f0] sm:$0xff]
        %v676 = vld [vmem:[%s397 + $0x1f8] sm:$0xff]
        %v677 = vld [vmem:[%s397 + $0x200] sm:$0xff]
        %v678 = vld [vmem:[%s397 + $0x208] sm:$0xff]
        %v679 = vld [vmem:[%s397 + $0x210] sm:$0xff]
        %v680 = vld [vmem:[%s397 + $0x218] sm:$0xff]
        %v681 = vld [vmem:[%s397 + $0x220] sm:$0xff]
        %v682 = vld [vmem:[%s397 + $0x228] sm:$0xff]
        %v683 = vld [vmem:[%s397 + $0x230] sm:$0xff]
        %v684 = vld [vmem:[%s397 + $0x238] sm:$0xff]
        %v685 = vld [vmem:[%s397 + $0x240] sm:$0xff]
        %v686 = vld [vmem:[%s397 + $0x248] sm:$0xff]
        %v687 = vld [vmem:[%s397 + $0x250] sm:$0xff]
        %v688 = vld [vmem:[%s397 + $0x258] sm:$0xff]
        %v689 = vld [vmem:[%s397 + $0x260] sm:$0xff]
        %v690 = vld [vmem:[%s397 + $0x268] sm:$0xff]
        %v691 = vld [vmem:[%s397 + $0x270] sm:$0xff]
        %v692 = vld [vmem:[%s397 + $0x278] sm:$0xff]
        %v693 = vld [vmem:[%s397 + $0x280] sm:$0xff]
        %v694 = vld [vmem:[%s397 + $0x288] sm:$0xff]
        %v695 = vld [vmem:[%s397 + $0x290] sm:$0xff]
        %v696 = vld [vmem:[%s397 + $0x298] sm:$0xff]
        %v697 = vld [vmem:[%s397 + $0x2a0] sm:$0xff]
        %v698 = vld [vmem:[%s397 + $0x2a8] sm:$0xff]
        %v699 = vld [vmem:[%s397 + $0x2b0] sm:$0xff]
        %v700 = vld [vmem:[%s397 + $0x2b8] sm:$0xff]
        %v701 = vld [vmem:[%s397 + $0x2c0] sm:$0xff]
        %v702 = vld [vmem:[%s397 + $0x2c8] sm:$0xff]
        %v703 = vld [vmem:[%s397 + $0x2d0] sm:$0xff]
        %v704 = vld [vmem:[%s397 + $0x2d8] sm:$0xff]
        %v705 = vld [vmem:[%s397 + $0x2e0] sm:$0xff]
        %v706 = vld [vmem:[%s397 + $0x2e8] sm:$0xff]
        %v707 = vld [vmem:[%s397 + $0x2f0] sm:$0xff]
        %v708 = vld [vmem:[%s397 + $0x2f8] sm:$0xff]
        %v709 = vld [vmem:[%s397 + $0x300] sm:$0xff]
        %v710 = vld [vmem:[%s397 + $0x308] sm:$0xff]
        %v711 = vld [vmem:[%s397 + $0x310] sm:$0xff]
        %v712 = vld [vmem:[%s397 + $0x318] sm:$0xff]
        %v713 = vld [vmem:[%s397 + $0x320] sm:$0xff]
        %v714 = vld [vmem:[%s397 + $0x328] sm:$0xff]
        %v715 = vld [vmem:[%s397 + $0x330] sm:$0xff]
        %v716 = vld [vmem:[%s397 + $0x338] sm:$0xff]
        %v717 = vld [vmem:[%s397 + $0x340] sm:$0xff]
        %v718 = vld [vmem:[%s397 + $0x348] sm:$0xff]
        %v719 = vld [vmem:[%s397 + $0x350] sm:$0xff]
        %v720 = vld [vmem:[%s397 + $0x358] sm:$0xff]
        %v721 = vld [vmem:[%s397 + $0x360] sm:$0xff]
        %v722 = vld [vmem:[%s397 + $0x368] sm:$0xff]
        %v723 = vld [vmem:[%s397 + $0x370] sm:$0xff]
        %v724 = vld [vmem:[%s397 + $0x378] sm:$0xff]
        %v725 = vld [vmem:[%s397 + $0x380] sm:$0xff]
        %v726 = vld [vmem:[%s397 + $0x388] sm:$0xff]
        %v727 = vld [vmem:[%s397 + $0x390] sm:$0xff]
        %v728 = vld [vmem:[%s397 + $0x398] sm:$0xff]
        %v729 = vld [vmem:[%s397 + $0x3a0] sm:$0xff]
        %v730 = vld [vmem:[%s397 + $0x3a8] sm:$0xff]
        %v731 = vld [vmem:[%s397 + $0x3b0] sm:$0xff]
        %v732 = vld [vmem:[%s397 + $0x3b8] sm:$0xff]
        %v733 = vld [vmem:[%s397 + $0x3c0] sm:$0xff]
        %v734 = vld [vmem:[%s397 + $0x3c8] sm:$0xff]
        %v735 = vld [vmem:[%s397 + $0x3d0] sm:$0xff]
        %v736 = vld [vmem:[%s397 + $0x3d8] sm:$0xff]
        %v737 = vld [vmem:[%s397 + $0x3e0] sm:$0xff]
        %v738 = vld [vmem:[%s397 + $0x3e8] sm:$0xff]
        %v739 = vld [vmem:[%s397 + $0x3f0] sm:$0xff]
        %v740 = vld [vmem:[%s397 + $0x3f8] sm:$0xff]
        %v741 = vld [vmem:[%s397 + $0x400] sm:$0xff]
        %v742 = vld [vmem:[%s397 + $0x408] sm:$0xff]
        %v743 = vld [vmem:[%s397 + $0x410] sm:$0xff]
        %v744 = vld [vmem:[%s397 + $0x418] sm:$0xff]
        %v745 = vld [vmem:[%s397 + $0x420] sm:$0xff]
        %v746 = vld [vmem:[%s397 + $0x428] sm:$0xff]
        %v747 = vld [vmem:[%s397 + $0x430] sm:$0xff]
        %v748 = vld [vmem:[%s397 + $0x438] sm:$0xff]
        %v749 = vld [vmem:[%s397 + $0x440] sm:$0xff]
        %v750 = vld [vmem:[%s397 + $0x448] sm:$0xff]
        %v751 = vld [vmem:[%s397 + $0x450] sm:$0xff]
        %v752 = vld [vmem:[%s397 + $0x458] sm:$0xff]
        %v753 = vld [vmem:[%s397 + $0x460] sm:$0xff]
        %v754 = vld [vmem:[%s397 + $0x468] sm:$0xff]
        %v755 = vld [vmem:[%s397 + $0x470] sm:$0xff]
        %v756 = vld [vmem:[%s397 + $0x478] sm:$0xff]
        %v757 = vld [vmem:[%s397 + $0x480] sm:$0xff]
        %v758 = vld [vmem:[%s397 + $0x488] sm:$0xff]
        %v759 = vld [vmem:[%s397 + $0x490] sm:$0xff]
        %v760 = vld [vmem:[%s397 + $0x498] sm:$0xff]
        %v761 = vld [vmem:[%s397 + $0x4a0] sm:$0xff]
        %v762 = vld [vmem:[%s397 + $0x4a8] sm:$0xff]
        %v763 = vld [vmem:[%s397 + $0x4b0] sm:$0xff]
        %v764 = vld [vmem:[%s397 + $0x4b8] sm:$0xff]
        %v765 = vld [vmem:[%s397 + $0x4c0] sm:$0xff]
        %v766 = vld [vmem:[%s397 + $0x4c8] sm:$0xff]
        %v767 = vld [vmem:[%s397 + $0x4d0] sm:$0xff]
        %v768 = vld [vmem:[%s397 + $0x4d8] sm:$0xff]
        %v769 = vld [vmem:[%s397 + $0x4e0] sm:$0xff]
        %v770 = vld [vmem:[%s397 + $0x4e8] sm:$0xff]
        %v771 = vld [vmem:[%s397 + $0x4f0] sm:$0xff]
        %v772 = vld [vmem:[%s397 + $0x4f8] sm:$0xff]
        %v773 = vld [vmem:[%s397 + $0x500] sm:$0xff]
        %v774 = vld [vmem:[%s397 + $0x508] sm:$0xff]
        %v775 = vld [vmem:[%s397 + $0x510] sm:$0xff]
        %v776 = vld [vmem:[%s397 + $0x518] sm:$0xff]
        %v777 = vld [vmem:[%s397 + $0x520] sm:$0xff]
        %v778 = vld [vmem:[%s397 + $0x528] sm:$0xff]
        %v779 = vld [vmem:[%s397 + $0x530] sm:$0xff]
        %v780 = vld [vmem:[%s397 + $0x538] sm:$0xff]
        %v781 = vld [vmem:[%s397 + $0x540] sm:$0xff]
        %v782 = vld [vmem:[%s397 + $0x548] sm:$0xff]
        %v783 = vld [vmem:[%s397 + $0x550] sm:$0xff]
        %v784 = vld [vmem:[%s397 + $0x558] sm:$0xff]
        %v785 = vld [vmem:[%s397 + $0x560] sm:$0xff]
        %v786 = vld [vmem:[%s397 + $0x568] sm:$0xff]
        %v787 = vld [vmem:[%s397 + $0x570] sm:$0xff]
        %v788 = vld [vmem:[%s397 + $0x578] sm:$0xff]
        %v789 = vld [vmem:[%s397 + $0x580] sm:$0xff]
        %v790 = vld [vmem:[%s397 + $0x588] sm:$0xff]
        %v791 = vld [vmem:[%s397 + $0x590] sm:$0xff]
        %v792 = vld [vmem:[%s397 + $0x598] sm:$0xff]
        %v793 = vld [vmem:[%s397 + $0x5a0] sm:$0xff]
        %v794 = vld [vmem:[%s397 + $0x5a8] sm:$0xff]
        %v795 = vld [vmem:[%s397 + $0x5b0] sm:$0xff]
        %v796 = vld [vmem:[%s397 + $0x5b8] sm:$0xff]
        %v797 = vld [vmem:[%s397 + $0x5c0] sm:$0xff]
        %v798 = vld [vmem:[%s397 + $0x5c8] sm:$0xff]
        %v799 = vld [vmem:[%s397 + $0x5d0] sm:$0xff]
        %v800 = vld [vmem:[%s397 + $0x5d8] sm:$0xff]
        %v801 = vld [vmem:[%s397 + $0x5e0] sm:$0xff]
        %v802 = vld [vmem:[%s397 + $0x5e8] sm:$0xff]
        %v803 = vld [vmem:[%s397 + $0x5f0] sm:$0xff]
        %v804 = vld [vmem:[%s397 + $0x5f8] sm:$0xff]
        %v805 = vld [vmem:[%s397 + $0x600] sm:$0xff]
        %v806 = vld [vmem:[%s397 + $0x608] sm:$0xff]
        %v807 = vld [vmem:[%s397 + $0x610] sm:$0xff]
        %v808 = vld [vmem:[%s397 + $0x618] sm:$0xff]
        %v809 = vld [vmem:[%s397 + $0x620] sm:$0xff]
        %v810 = vld [vmem:[%s397 + $0x628] sm:$0xff]
        %v811 = vld [vmem:[%s397 + $0x630] sm:$0xff]
        %v812 = vld [vmem:[%s397 + $0x638] sm:$0xff]
        %v813 = vld [vmem:[%s397 + $0x640] sm:$0xff]
        %v814 = vld [vmem:[%s397 + $0x648] sm:$0xff]
        %v815 = vld [vmem:[%s397 + $0x650] sm:$0xff]
        %v816 = vld [vmem:[%s397 + $0x658] sm:$0xff]
        %v817 = vld [vmem:[%s397 + $0x660] sm:$0xff]
        %v818 = vld [vmem:[%s397 + $0x668] sm:$0xff]
        %v819 = vld [vmem:[%s397 + $0x670] sm:$0xff]
        %v820 = vld [vmem:[%s397 + $0x678] sm:$0xff]
        %v821 = vld [vmem:[%s397 + $0x680] sm:$0xff]
        %v822 = vld [vmem:[%s397 + $0x688] sm:$0xff]
        %v823 = vld [vmem:[%s397 + $0x690] sm:$0xff]
        %v824 = vld [vmem:[%s397 + $0x698] sm:$0xff]
        %v825 = vld [vmem:[%s397 + $0x6a0] sm:$0xff]
        %v826 = vld [vmem:[%s397 + $0x6a8] sm:$0xff]
        %v827 = vld [vmem:[%s397 + $0x6b0] sm:$0xff]
        %v828 = vld [vmem:[%s397 + $0x6b8] sm:$0xff]
        %v829 = vld [vmem:[%s397 + $0x6c0] sm:$0xff]
        %v830 = vld [vmem:[%s397 + $0x6c8] sm:$0xff]
        %v831 = vld [vmem:[%s397 + $0x6d0] sm:$0xff]
        %v832 = vld [vmem:[%s397 + $0x6d8] sm:$0xff]
        %v833 = vld [vmem:[%s397 + $0x6e0] sm:$0xff]
        %v834 = vld [vmem:[%s397 + $0x6e8] sm:$0xff]
        %v835 = vld [vmem:[%s397 + $0x6f0] sm:$0xff]
        %v836 = vld [vmem:[%s397 + $0x6f8] sm:$0xff]
        %v837 = vld [vmem:[%s397 + $0x700] sm:$0xff]
        %v838 = vld [vmem:[%s397 + $0x708] sm:$0xff]
        %v839 = vld [vmem:[%s397 + $0x710] sm:$0xff]
        %v840 = vld [vmem:[%s397 + $0x718] sm:$0xff]
        %v841 = vld [vmem:[%s397 + $0x720] sm:$0xff]
        %v842 = vld [vmem:[%s397 + $0x728] sm:$0xff]
        %v843 = vld [vmem:[%s397 + $0x730] sm:$0xff]
        %v844 = vld [vmem:[%s397 + $0x738] sm:$0xff]
        %v845 = vld [vmem:[%s397 + $0x740] sm:$0xff]
        %v846 = vld [vmem:[%s397 + $0x748] sm:$0xff]
        %v847 = vld [vmem:[%s397 + $0x750] sm:$0xff]
        %v848 = vld [vmem:[%s397 + $0x758] sm:$0xff]
        %v849 = vld [vmem:[%s397 + $0x760] sm:$0xff]
        %v850 = vld [vmem:[%s397 + $0x768] sm:$0xff]
        %v851 = vld [vmem:[%s397 + $0x770] sm:$0xff]
        %v852 = vld [vmem:[%s397 + $0x778] sm:$0xff]
        %v853 = vld [vmem:[%s397 + $0x780] sm:$0xff]
        %v854 = vld [vmem:[%s397 + $0x788] sm:$0xff]
        %v855 = vld [vmem:[%s397 + $0x790] sm:$0xff]
        %v856 = vld [vmem:[%s397 + $0x798] sm:$0xff]
        %v857 = vld [vmem:[%s397 + $0x7a0] sm:$0xff]
        %v858 = vld [vmem:[%s397 + $0x7a8] sm:$0xff]
        %v859 = vld [vmem:[%s397 + $0x7b0] sm:$0xff]
        %v860 = vld [vmem:[%s397 + $0x7b8] sm:$0xff]
        %v861 = vld [vmem:[%s397 + $0x7c0] sm:$0xff]
        %v862 = vld [vmem:[%s397 + $0x7c8] sm:$0xff]
        %v863 = vld [vmem:[%s397 + $0x7d0] sm:$0xff]
        %v864 = vld [vmem:[%s397 + $0x7d8] sm:$0xff]
        %v865 = vld [vmem:[%s397 + $0x7e0] sm:$0xff]
        %v866 = vld [vmem:[%s397 + $0x7e8] sm:$0xff]
        %v867 = vld [vmem:[%s397 + $0x7f0] sm:$0xff]
        %v868 = vld [vmem:[%s397 + $0x7f8] sm:$0xff]
        %v933 = vunpack.c.l.b16 %v549
        %v934 = vunpack.c.h.b16 %v549
        %v935 = vunpack.c.l.b16 %v550
        %v936 = vunpack.c.h.b16 %v550
        %v937 = vunpack.c.l.b16 %v551
        %v938 = vunpack.c.h.b16 %v551
        %v939 = vunpack.c.l.b16 %v552
        %v940 = vunpack.c.h.b16 %v552
        %v941 = vunpack.c.l.b16 %v553
        %v942 = vunpack.c.h.b16 %v553
        %v943 = vunpack.c.l.b16 %v554
        %v944 = vunpack.c.h.b16 %v554
        %v945 = vunpack.c.l.b16 %v555
        %v946 = vunpack.c.h.b16 %v555
        %v947 = vunpack.c.l.b16 %v556
        %v948 = vunpack.c.h.b16 %v556
        %v949 = vunpack.c.l.b16 %v557
        %v950 = vunpack.c.h.b16 %v557
        %v951 = vunpack.c.l.b16 %v558
        %v952 = vunpack.c.h.b16 %v558
        %v953 = vunpack.c.l.b16 %v559
        %v954 = vunpack.c.h.b16 %v559
        %v955 = vunpack.c.l.b16 %v560
        %v956 = vunpack.c.h.b16 %v560
        %v957 = vunpack.c.l.b16 %v561
        %v958 = vunpack.c.h.b16 %v561
        %v959 = vunpack.c.l.b16 %v562
        %v960 = vunpack.c.h.b16 %v562
        %v961 = vunpack.c.l.b16 %v563
        %v962 = vunpack.c.h.b16 %v563
        %v963 = vunpack.c.l.b16 %v564
        %v964 = vunpack.c.h.b16 %v564
        %v965 = vunpack.c.l.b16 %v565
        %v966 = vunpack.c.h.b16 %v565
        %v967 = vunpack.c.l.b16 %v566
        %v968 = vunpack.c.h.b16 %v566
        %v969 = vunpack.c.l.b16 %v567
        %v970 = vunpack.c.h.b16 %v567
        %v971 = vunpack.c.l.b16 %v568
        %v972 = vunpack.c.h.b16 %v568
        %v973 = vunpack.c.l.b16 %v569
        %v974 = vunpack.c.h.b16 %v569
        %v975 = vunpack.c.l.b16 %v570
        %v976 = vunpack.c.h.b16 %v570
        %v977 = vunpack.c.l.b16 %v571
        %v978 = vunpack.c.h.b16 %v571
        %v979 = vunpack.c.l.b16 %v572
        %v980 = vunpack.c.h.b16 %v572
        %v981 = vunpack.c.l.b16 %v573
        %v982 = vunpack.c.h.b16 %v573
        %v983 = vunpack.c.l.b16 %v574
        %v984 = vunpack.c.h.b16 %v574
        %v985 = vunpack.c.l.b16 %v575
        %v986 = vunpack.c.h.b16 %v575
        %v987 = vunpack.c.l.b16 %v576
        %v988 = vunpack.c.h.b16 %v576
        %v989 = vunpack.c.l.b16 %v577
        %v990 = vunpack.c.h.b16 %v577
        %v991 = vunpack.c.l.b16 %v578
        %v992 = vunpack.c.h.b16 %v578
        %v993 = vunpack.c.l.b16 %v579
        %v994 = vunpack.c.h.b16 %v579
        %v995 = vunpack.c.l.b16 %v580
        %v996 = vunpack.c.h.b16 %v580
        %v997 = vunpack.c.l.b16 %v581
        %v998 = vunpack.c.h.b16 %v581
        %v999 = vunpack.c.l.b16 %v582
        %v1000 = vunpack.c.h.b16 %v582
        %v1001 = vunpack.c.l.b16 %v583
        %v1002 = vunpack.c.h.b16 %v583
        %v1003 = vunpack.c.l.b16 %v584
        %v1004 = vunpack.c.h.b16 %v584
        %v1005 = vunpack.c.l.b16 %v585
        %v1006 = vunpack.c.h.b16 %v585
        %v1007 = vunpack.c.l.b16 %v586
        %v1008 = vunpack.c.h.b16 %v586
        %v1009 = vunpack.c.l.b16 %v587
        %v1010 = vunpack.c.h.b16 %v587
        %v1011 = vunpack.c.l.b16 %v588
        %v1012 = vunpack.c.h.b16 %v588
        %v1013 = vunpack.c.l.b16 %v589
        %v1014 = vunpack.c.h.b16 %v589
        %v1015 = vunpack.c.l.b16 %v590
        %v1016 = vunpack.c.h.b16 %v590
        %v1017 = vunpack.c.l.b16 %v591
        %v1018 = vunpack.c.h.b16 %v591
        %v1019 = vunpack.c.l.b16 %v592
        %v1020 = vunpack.c.h.b16 %v592
        %v1021 = vunpack.c.l.b16 %v593
        %v1022 = vunpack.c.h.b16 %v593
        %v1023 = vunpack.c.l.b16 %v594
        %v1024 = vunpack.c.h.b16 %v594
        %v1025 = vunpack.c.l.b16 %v595
        %v1026 = vunpack.c.h.b16 %v595
        %v1027 = vunpack.c.l.b16 %v596
        %v1028 = vunpack.c.h.b16 %v596
        %v1029 = vunpack.c.l.b16 %v597
        %v1030 = vunpack.c.h.b16 %v597
        %v1031 = vunpack.c.l.b16 %v598
        %v1032 = vunpack.c.h.b16 %v598
        %v1033 = vunpack.c.l.b16 %v599
        %v1034 = vunpack.c.h.b16 %v599
        %v1035 = vunpack.c.l.b16 %v600
        %v1036 = vunpack.c.h.b16 %v600
        %v1037 = vunpack.c.l.b16 %v601
        %v1038 = vunpack.c.h.b16 %v601
        %v1039 = vunpack.c.l.b16 %v602
        %v1040 = vunpack.c.h.b16 %v602
        %v1041 = vunpack.c.l.b16 %v603
        %v1042 = vunpack.c.h.b16 %v603
        %v1043 = vunpack.c.l.b16 %v604
        %v1044 = vunpack.c.h.b16 %v604
        %v1045 = vunpack.c.l.b16 %v605
        %v1046 = vunpack.c.h.b16 %v605
        %v1047 = vunpack.c.l.b16 %v606
        %v1048 = vunpack.c.h.b16 %v606
        %v1049 = vunpack.c.l.b16 %v607
        %v1050 = vunpack.c.h.b16 %v607
        %v1051 = vunpack.c.l.b16 %v608
        %v1052 = vunpack.c.h.b16 %v608
        %v1053 = vunpack.c.l.b16 %v609
        %v1054 = vunpack.c.h.b16 %v609
        %v1055 = vunpack.c.l.b16 %v610
        %v1056 = vunpack.c.h.b16 %v610
        %v1057 = vunpack.c.l.b16 %v611
        %v1058 = vunpack.c.h.b16 %v611
        %v1059 = vunpack.c.l.b16 %v612
        %v1060 = vunpack.c.h.b16 %v612
        %v1061 = vpack.c.b16 %v941, %v933
        %v1062 = vpack.c.b16 %v942, %v934
        %v1063 = vpack.c.b16 %v943, %v935
        %v1064 = vpack.c.b16 %v944, %v936
        %v1065 = vpack.c.b16 %v945, %v937
        %v1066 = vpack.c.b16 %v946, %v938
        %v1067 = vpack.c.b16 %v947, %v939
        %v1068 = vpack.c.b16 %v948, %v940
        %v1069 = vpack.c.b16 %v957, %v949
        %v1070 = vpack.c.b16 %v958, %v950
        %v1071 = vpack.c.b16 %v959, %v951
        %v1072 = vpack.c.b16 %v960, %v952
        %v1073 = vpack.c.b16 %v961, %v953
        %v1074 = vpack.c.b16 %v962, %v954
        %v1075 = vpack.c.b16 %v963, %v955
        %v1076 = vpack.c.b16 %v964, %v956
        %v1077 = vpack.c.b16 %v973, %v965
        %v1078 = vpack.c.b16 %v974, %v966
        %v1079 = vpack.c.b16 %v975, %v967
        %v1080 = vpack.c.b16 %v976, %v968
        %v1081 = vpack.c.b16 %v977, %v969
        %v1082 = vpack.c.b16 %v978, %v970
        %v1083 = vpack.c.b16 %v979, %v971
        %v1084 = vpack.c.b16 %v980, %v972
        %v1085 = vpack.c.b16 %v989, %v981
        %v1086 = vpack.c.b16 %v990, %v982
        %v1087 = vpack.c.b16 %v991, %v983
        %v1088 = vpack.c.b16 %v992, %v984
        %v1089 = vpack.c.b16 %v993, %v985
        %v1090 = vpack.c.b16 %v994, %v986
        %v1091 = vpack.c.b16 %v995, %v987
        %v1092 = vpack.c.b16 %v996, %v988
        %v1093 = vpack.c.b16 %v1005, %v997
        %v1094 = vpack.c.b16 %v1006, %v998
        %v1095 = vpack.c.b16 %v1007, %v999
        %v1096 = vpack.c.b16 %v1008, %v1000
        %v1097 = vpack.c.b16 %v1009, %v1001
        %v1098 = vpack.c.b16 %v1010, %v1002
        %v1099 = vpack.c.b16 %v1011, %v1003
        %v1100 = vpack.c.b16 %v1012, %v1004
        %v1101 = vpack.c.b16 %v1021, %v1013
        %v1102 = vpack.c.b16 %v1022, %v1014
        %v1103 = vpack.c.b16 %v1023, %v1015
        %v1104 = vpack.c.b16 %v1024, %v1016
        %v1105 = vpack.c.b16 %v1025, %v1017
        %v1106 = vpack.c.b16 %v1026, %v1018
        %v1107 = vpack.c.b16 %v1027, %v1019
        %v1108 = vpack.c.b16 %v1028, %v1020
        %v1109 = vpack.c.b16 %v1037, %v1029
        %v1110 = vpack.c.b16 %v1038, %v1030
        %v1111 = vpack.c.b16 %v1039, %v1031
        %v1112 = vpack.c.b16 %v1040, %v1032
        %v1113 = vpack.c.b16 %v1041, %v1033
        %v1114 = vpack.c.b16 %v1042, %v1034
        %v1115 = vpack.c.b16 %v1043, %v1035
        %v1116 = vpack.c.b16 %v1044, %v1036
        %v1117 = vpack.c.b16 %v1053, %v1045
        %v1118 = vpack.c.b16 %v1054, %v1046
        %v1119 = vpack.c.b16 %v1055, %v1047
        %v1120 = vpack.c.b16 %v1056, %v1048
        %v1121 = vpack.c.b16 %v1057, %v1049
        %v1122 = vpack.c.b16 %v1058, %v1050
        %v1123 = vpack.c.b16 %v1059, %v1051
        %v1124 = vpack.c.b16 %v1060, %v1052
        %v1445 = vunpack.c.l.b16 %v613
        %v1446 = vunpack.c.h.b16 %v613
        %v1447 = vunpack.c.l.b16 %v614
        %v1448 = vunpack.c.h.b16 %v614
        %v1449 = vunpack.c.l.b16 %v615
        %v1450 = vunpack.c.h.b16 %v615
        %v1451 = vunpack.c.l.b16 %v616
        %v1452 = vunpack.c.h.b16 %v616
        %v1453 = vunpack.c.l.b16 %v617
        %v1454 = vunpack.c.h.b16 %v617
        %v1455 = vunpack.c.l.b16 %v618
        %v1456 = vunpack.c.h.b16 %v618
        %v1457 = vunpack.c.l.b16 %v619
        %v1458 = vunpack.c.h.b16 %v619
        %v1459 = vunpack.c.l.b16 %v620
        %v1460 = vunpack.c.h.b16 %v620
        %v1461 = vunpack.c.l.b16 %v621
        %v1462 = vunpack.c.h.b16 %v621
        %v1463 = vunpack.c.l.b16 %v622
        %v1464 = vunpack.c.h.b16 %v622
        %v1465 = vunpack.c.l.b16 %v623
        %v1466 = vunpack.c.h.b16 %v623
        %v1467 = vunpack.c.l.b16 %v624
        %v1468 = vunpack.c.h.b16 %v624
        %v1469 = vunpack.c.l.b16 %v625
        %v1470 = vunpack.c.h.b16 %v625
        %v1471 = vunpack.c.l.b16 %v626
        %v1472 = vunpack.c.h.b16 %v626
        %v1473 = vunpack.c.l.b16 %v627
        %v1474 = vunpack.c.h.b16 %v627
        %v1475 = vunpack.c.l.b16 %v628
        %v1476 = vunpack.c.h.b16 %v628
        %v1477 = vunpack.c.l.b16 %v629
        %v1478 = vunpack.c.h.b16 %v629
        %v1479 = vunpack.c.l.b16 %v630
        %v1480 = vunpack.c.h.b16 %v630
        %v1481 = vunpack.c.l.b16 %v631
        %v1482 = vunpack.c.h.b16 %v631
        %v1483 = vunpack.c.l.b16 %v632
        %v1484 = vunpack.c.h.b16 %v632
        %v1485 = vunpack.c.l.b16 %v633
        %v1486 = vunpack.c.h.b16 %v633
        %v1487 = vunpack.c.l.b16 %v634
        %v1488 = vunpack.c.h.b16 %v634
        %v1489 = vunpack.c.l.b16 %v635
        %v1490 = vunpack.c.h.b16 %v635
        %v1491 = vunpack.c.l.b16 %v636
        %v1492 = vunpack.c.h.b16 %v636
        %v1493 = vunpack.c.l.b16 %v637
        %v1494 = vunpack.c.h.b16 %v637
        %v1495 = vunpack.c.l.b16 %v638
        %v1496 = vunpack.c.h.b16 %v638
        %v1497 = vunpack.c.l.b16 %v639
        %v1498 = vunpack.c.h.b16 %v639
        %v1499 = vunpack.c.l.b16 %v640
        %v1500 = vunpack.c.h.b16 %v640
        %v1501 = vunpack.c.l.b16 %v641
        %v1502 = vunpack.c.h.b16 %v641
        %v1503 = vunpack.c.l.b16 %v642
        %v1504 = vunpack.c.h.b16 %v642
        %v1505 = vunpack.c.l.b16 %v643
        %v1506 = vunpack.c.h.b16 %v643
        %v1507 = vunpack.c.l.b16 %v644
        %v1508 = vunpack.c.h.b16 %v644
        %v1509 = vunpack.c.l.b16 %v645
        %v1510 = vunpack.c.h.b16 %v645
        %v1511 = vunpack.c.l.b16 %v646
        %v1512 = vunpack.c.h.b16 %v646
        %v1513 = vunpack.c.l.b16 %v647
        %v1514 = vunpack.c.h.b16 %v647
        %v1515 = vunpack.c.l.b16 %v648
        %v1516 = vunpack.c.h.b16 %v648
        %v1517 = vunpack.c.l.b16 %v649
        %v1518 = vunpack.c.h.b16 %v649
        %v1519 = vunpack.c.l.b16 %v650
        %v1520 = vunpack.c.h.b16 %v650
        %v1521 = vunpack.c.l.b16 %v651
        %v1522 = vunpack.c.h.b16 %v651
        %v1523 = vunpack.c.l.b16 %v652
        %v1524 = vunpack.c.h.b16 %v652
        %v1525 = vunpack.c.l.b16 %v653
        %v1526 = vunpack.c.h.b16 %v653
        %v1527 = vunpack.c.l.b16 %v654
        %v1528 = vunpack.c.h.b16 %v654
        %v1529 = vunpack.c.l.b16 %v655
        %v1530 = vunpack.c.h.b16 %v655
        %v1531 = vunpack.c.l.b16 %v656
        %v1532 = vunpack.c.h.b16 %v656
        %v1533 = vunpack.c.l.b16 %v657
        %v1534 = vunpack.c.h.b16 %v657
        %v1535 = vunpack.c.l.b16 %v658
        %v1536 = vunpack.c.h.b16 %v658
        %v1537 = vunpack.c.l.b16 %v659
        %v1538 = vunpack.c.h.b16 %v659
        %v1539 = vunpack.c.l.b16 %v660
        %v1540 = vunpack.c.h.b16 %v660
        %v1541 = vunpack.c.l.b16 %v661
        %v1542 = vunpack.c.h.b16 %v661
        %v1543 = vunpack.c.l.b16 %v662
        %v1544 = vunpack.c.h.b16 %v662
        %v1545 = vunpack.c.l.b16 %v663
        %v1546 = vunpack.c.h.b16 %v663
        %v1547 = vunpack.c.l.b16 %v664
        %v1548 = vunpack.c.h.b16 %v664
        %v1549 = vunpack.c.l.b16 %v665
        %v1550 = vunpack.c.h.b16 %v665
        %v1551 = vunpack.c.l.b16 %v666
        %v1552 = vunpack.c.h.b16 %v666
        %v1553 = vunpack.c.l.b16 %v667
        %v1554 = vunpack.c.h.b16 %v667
        %v1555 = vunpack.c.l.b16 %v668
        %v1556 = vunpack.c.h.b16 %v668
        %v1557 = vunpack.c.l.b16 %v669
        %v1558 = vunpack.c.h.b16 %v669
        %v1559 = vunpack.c.l.b16 %v670
        %v1560 = vunpack.c.h.b16 %v670
        %v1561 = vunpack.c.l.b16 %v671
        %v1562 = vunpack.c.h.b16 %v671
        %v1563 = vunpack.c.l.b16 %v672
        %v1564 = vunpack.c.h.b16 %v672
        %v1565 = vunpack.c.l.b16 %v673
        %v1566 = vunpack.c.h.b16 %v673
        %v1567 = vunpack.c.l.b16 %v674
        %v1568 = vunpack.c.h.b16 %v674
        %v1569 = vunpack.c.l.b16 %v675
        %v1570 = vunpack.c.h.b16 %v675
        %v1571 = vunpack.c.l.b16 %v676
        %v1572 = vunpack.c.h.b16 %v676
        %v1573 = vunpack.c.l.b16 %v677
        %v1574 = vunpack.c.h.b16 %v677
        %v1575 = vunpack.c.l.b16 %v678
        %v1576 = vunpack.c.h.b16 %v678
        %v1577 = vunpack.c.l.b16 %v679
        %v1578 = vunpack.c.h.b16 %v679
        %v1579 = vunpack.c.l.b16 %v680
        %v1580 = vunpack.c.h.b16 %v680
        %v1581 = vunpack.c.l.b16 %v681
        %v1582 = vunpack.c.h.b16 %v681
        %v1583 = vunpack.c.l.b16 %v682
        %v1584 = vunpack.c.h.b16 %v682
        %v1585 = vunpack.c.l.b16 %v683
        %v1586 = vunpack.c.h.b16 %v683
        %v1587 = vunpack.c.l.b16 %v684
        %v1588 = vunpack.c.h.b16 %v684
        %v1589 = vunpack.c.l.b16 %v685
        %v1590 = vunpack.c.h.b16 %v685
        %v1591 = vunpack.c.l.b16 %v686
        %v1592 = vunpack.c.h.b16 %v686
        %v1593 = vunpack.c.l.b16 %v687
        %v1594 = vunpack.c.h.b16 %v687
        %v1595 = vunpack.c.l.b16 %v688
        %v1596 = vunpack.c.h.b16 %v688
        %v1597 = vunpack.c.l.b16 %v689
        %v1598 = vunpack.c.h.b16 %v689
        %v1599 = vunpack.c.l.b16 %v690
        %v1600 = vunpack.c.h.b16 %v690
        %v1601 = vunpack.c.l.b16 %v691
        %v1602 = vunpack.c.h.b16 %v691
        %v1603 = vunpack.c.l.b16 %v692
        %v1604 = vunpack.c.h.b16 %v692
        %v1605 = vunpack.c.l.b16 %v693
        %v1606 = vunpack.c.h.b16 %v693
        %v1607 = vunpack.c.l.b16 %v694
        %v1608 = vunpack.c.h.b16 %v694
        %v1609 = vunpack.c.l.b16 %v695
        %v1610 = vunpack.c.h.b16 %v695
        %v1611 = vunpack.c.l.b16 %v696
        %v1612 = vunpack.c.h.b16 %v696
        %v1613 = vunpack.c.l.b16 %v697
        %v1614 = vunpack.c.h.b16 %v697
        %v1615 = vunpack.c.l.b16 %v698
        %v1616 = vunpack.c.h.b16 %v698
        %v1617 = vunpack.c.l.b16 %v699
        %v1618 = vunpack.c.h.b16 %v699
        %v1619 = vunpack.c.l.b16 %v700
        %v1620 = vunpack.c.h.b16 %v700
        %v1621 = vunpack.c.l.b16 %v701
        %v1622 = vunpack.c.h.b16 %v701
        %v1623 = vunpack.c.l.b16 %v702
        %v1624 = vunpack.c.h.b16 %v702
        %v1625 = vunpack.c.l.b16 %v703
        %v1626 = vunpack.c.h.b16 %v703
        %v1627 = vunpack.c.l.b16 %v704
        %v1628 = vunpack.c.h.b16 %v704
        %v1629 = vunpack.c.l.b16 %v705
        %v1630 = vunpack.c.h.b16 %v705
        %v1631 = vunpack.c.l.b16 %v706
        %v1632 = vunpack.c.h.b16 %v706
        %v1633 = vunpack.c.l.b16 %v707
        %v1634 = vunpack.c.h.b16 %v707
        %v1635 = vunpack.c.l.b16 %v708
        %v1636 = vunpack.c.h.b16 %v708
        %v1637 = vunpack.c.l.b16 %v709
        %v1638 = vunpack.c.h.b16 %v709
        %v1639 = vunpack.c.l.b16 %v710
        %v1640 = vunpack.c.h.b16 %v710
        %v1641 = vunpack.c.l.b16 %v711
        %v1642 = vunpack.c.h.b16 %v711
        %v1643 = vunpack.c.l.b16 %v712
        %v1644 = vunpack.c.h.b16 %v712
        %v1645 = vunpack.c.l.b16 %v713
        %v1646 = vunpack.c.h.b16 %v713
        %v1647 = vunpack.c.l.b16 %v714
        %v1648 = vunpack.c.h.b16 %v714
        %v1649 = vunpack.c.l.b16 %v715
        %v1650 = vunpack.c.h.b16 %v715
        %v1651 = vunpack.c.l.b16 %v716
        %v1652 = vunpack.c.h.b16 %v716
        %v1653 = vunpack.c.l.b16 %v717
        %v1654 = vunpack.c.h.b16 %v717
        %v1655 = vunpack.c.l.b16 %v718
        %v1656 = vunpack.c.h.b16 %v718
        %v1657 = vunpack.c.l.b16 %v719
        %v1658 = vunpack.c.h.b16 %v719
        %v1659 = vunpack.c.l.b16 %v720
        %v1660 = vunpack.c.h.b16 %v720
        %v1661 = vunpack.c.l.b16 %v721
        %v1662 = vunpack.c.h.b16 %v721
        %v1663 = vunpack.c.l.b16 %v722
        %v1664 = vunpack.c.h.b16 %v722
        %v1665 = vunpack.c.l.b16 %v723
        %v1666 = vunpack.c.h.b16 %v723
        %v1667 = vunpack.c.l.b16 %v724
        %v1668 = vunpack.c.h.b16 %v724
        %v1669 = vunpack.c.l.b16 %v725
        %v1670 = vunpack.c.h.b16 %v725
        %v1671 = vunpack.c.l.b16 %v726
        %v1672 = vunpack.c.h.b16 %v726
        %v1673 = vunpack.c.l.b16 %v727
        %v1674 = vunpack.c.h.b16 %v727
        %v1675 = vunpack.c.l.b16 %v728
        %v1676 = vunpack.c.h.b16 %v728
        %v1677 = vunpack.c.l.b16 %v729
        %v1678 = vunpack.c.h.b16 %v729
        %v1679 = vunpack.c.l.b16 %v730
        %v1680 = vunpack.c.h.b16 %v730
        %v1681 = vunpack.c.l.b16 %v731
        %v1682 = vunpack.c.h.b16 %v731
        %v1683 = vunpack.c.l.b16 %v732
        %v1684 = vunpack.c.h.b16 %v732
        %v1685 = vunpack.c.l.b16 %v733
        %v1686 = vunpack.c.h.b16 %v733
        %v1687 = vunpack.c.l.b16 %v734
        %v1688 = vunpack.c.h.b16 %v734
        %v1689 = vunpack.c.l.b16 %v735
        %v1690 = vunpack.c.h.b16 %v735
        %v1691 = vunpack.c.l.b16 %v736
        %v1692 = vunpack.c.h.b16 %v736
        %v1693 = vunpack.c.l.b16 %v737
        %v1694 = vunpack.c.h.b16 %v737
        %v1695 = vunpack.c.l.b16 %v738
        %v1696 = vunpack.c.h.b16 %v738
        %v1697 = vunpack.c.l.b16 %v739
        %v1698 = vunpack.c.h.b16 %v739
        %v1699 = vunpack.c.l.b16 %v740
        %v1700 = vunpack.c.h.b16 %v740
        %v1701 = vunpack.c.l.b16 %v741
        %v1702 = vunpack.c.h.b16 %v741
        %v1703 = vunpack.c.l.b16 %v742
        %v1704 = vunpack.c.h.b16 %v742
        %v1705 = vunpack.c.l.b16 %v743
        %v1706 = vunpack.c.h.b16 %v743
        %v1707 = vunpack.c.l.b16 %v744
        %v1708 = vunpack.c.h.b16 %v744
        %v1709 = vunpack.c.l.b16 %v745
        %v1710 = vunpack.c.h.b16 %v745
        %v1711 = vunpack.c.l.b16 %v746
        %v1712 = vunpack.c.h.b16 %v746
        %v1713 = vunpack.c.l.b16 %v747
        %v1714 = vunpack.c.h.b16 %v747
        %v1715 = vunpack.c.l.b16 %v748
        %v1716 = vunpack.c.h.b16 %v748
        %v1717 = vunpack.c.l.b16 %v749
        %v1718 = vunpack.c.h.b16 %v749
        %v1719 = vunpack.c.l.b16 %v750
        %v1720 = vunpack.c.h.b16 %v750
        %v1721 = vunpack.c.l.b16 %v751
        %v1722 = vunpack.c.h.b16 %v751
        %v1723 = vunpack.c.l.b16 %v752
        %v1724 = vunpack.c.h.b16 %v752
        %v1725 = vunpack.c.l.b16 %v753
        %v1726 = vunpack.c.h.b16 %v753
        %v1727 = vunpack.c.l.b16 %v754
        %v1728 = vunpack.c.h.b16 %v754
        %v1729 = vunpack.c.l.b16 %v755
        %v1730 = vunpack.c.h.b16 %v755
        %v1731 = vunpack.c.l.b16 %v756
        %v1732 = vunpack.c.h.b16 %v756
        %v1733 = vunpack.c.l.b16 %v757
        %v1734 = vunpack.c.h.b16 %v757
        %v1735 = vunpack.c.l.b16 %v758
        %v1736 = vunpack.c.h.b16 %v758
        %v1737 = vunpack.c.l.b16 %v759
        %v1738 = vunpack.c.h.b16 %v759
        %v1739 = vunpack.c.l.b16 %v760
        %v1740 = vunpack.c.h.b16 %v760
        %v1741 = vunpack.c.l.b16 %v761
        %v1742 = vunpack.c.h.b16 %v761
        %v1743 = vunpack.c.l.b16 %v762
        %v1744 = vunpack.c.h.b16 %v762
        %v1745 = vunpack.c.l.b16 %v763
        %v1746 = vunpack.c.h.b16 %v763
        %v1747 = vunpack.c.l.b16 %v764
        %v1748 = vunpack.c.h.b16 %v764
        %v1749 = vunpack.c.l.b16 %v765
        %v1750 = vunpack.c.h.b16 %v765
        %v1751 = vunpack.c.l.b16 %v766
        %v1752 = vunpack.c.h.b16 %v766
        %v1753 = vunpack.c.l.b16 %v767
        %v1754 = vunpack.c.h.b16 %v767
        %v1755 = vunpack.c.l.b16 %v768
        %v1756 = vunpack.c.h.b16 %v768
        %v1757 = vunpack.c.l.b16 %v769
        %v1758 = vunpack.c.h.b16 %v769
        %v1759 = vunpack.c.l.b16 %v770
        %v1760 = vunpack.c.h.b16 %v770
        %v1761 = vunpack.c.l.b16 %v771
        %v1762 = vunpack.c.h.b16 %v771
        %v1763 = vunpack.c.l.b16 %v772
        %v1764 = vunpack.c.h.b16 %v772
        %v1765 = vunpack.c.l.b16 %v773
        %v1766 = vunpack.c.h.b16 %v773
        %v1767 = vunpack.c.l.b16 %v774
        %v1768 = vunpack.c.h.b16 %v774
        %v1769 = vunpack.c.l.b16 %v775
        %v1770 = vunpack.c.h.b16 %v775
        %v1771 = vunpack.c.l.b16 %v776
        %v1772 = vunpack.c.h.b16 %v776
        %v1773 = vunpack.c.l.b16 %v777
        %v1774 = vunpack.c.h.b16 %v777
        %v1775 = vunpack.c.l.b16 %v778
        %v1776 = vunpack.c.h.b16 %v778
        %v1777 = vunpack.c.l.b16 %v779
        %v1778 = vunpack.c.h.b16 %v779
        %v1779 = vunpack.c.l.b16 %v780
        %v1780 = vunpack.c.h.b16 %v780
        %v1781 = vunpack.c.l.b16 %v781
        %v1782 = vunpack.c.h.b16 %v781
        %v1783 = vunpack.c.l.b16 %v782
        %v1784 = vunpack.c.h.b16 %v782
        %v1785 = vunpack.c.l.b16 %v783
        %v1786 = vunpack.c.h.b16 %v783
        %v1787 = vunpack.c.l.b16 %v784
        %v1788 = vunpack.c.h.b16 %v784
        %v1789 = vunpack.c.l.b16 %v785
        %v1790 = vunpack.c.h.b16 %v785
        %v1791 = vunpack.c.l.b16 %v786
        %v1792 = vunpack.c.h.b16 %v786
        %v1793 = vunpack.c.l.b16 %v787
        %v1794 = vunpack.c.h.b16 %v787
        %v1795 = vunpack.c.l.b16 %v788
        %v1796 = vunpack.c.h.b16 %v788
        %v1797 = vunpack.c.l.b16 %v789
        %v1798 = vunpack.c.h.b16 %v789
        %v1799 = vunpack.c.l.b16 %v790
        %v1800 = vunpack.c.h.b16 %v790
        %v1801 = vunpack.c.l.b16 %v791
        %v1802 = vunpack.c.h.b16 %v791
        %v1803 = vunpack.c.l.b16 %v792
        %v1804 = vunpack.c.h.b16 %v792
        %v1805 = vunpack.c.l.b16 %v793
        %v1806 = vunpack.c.h.b16 %v793
        %v1807 = vunpack.c.l.b16 %v794
        %v1808 = vunpack.c.h.b16 %v794
        %v1809 = vunpack.c.l.b16 %v795
        %v1810 = vunpack.c.h.b16 %v795
        %v1811 = vunpack.c.l.b16 %v796
        %v1812 = vunpack.c.h.b16 %v796
        %v1813 = vunpack.c.l.b16 %v797
        %v1814 = vunpack.c.h.b16 %v797
        %v1815 = vunpack.c.l.b16 %v798
        %v1816 = vunpack.c.h.b16 %v798
        %v1817 = vunpack.c.l.b16 %v799
        %v1818 = vunpack.c.h.b16 %v799
        %v1819 = vunpack.c.l.b16 %v800
        %v1820 = vunpack.c.h.b16 %v800
        %v1821 = vunpack.c.l.b16 %v801
        %v1822 = vunpack.c.h.b16 %v801
        %v1823 = vunpack.c.l.b16 %v802
        %v1824 = vunpack.c.h.b16 %v802
        %v1825 = vunpack.c.l.b16 %v803
        %v1826 = vunpack.c.h.b16 %v803
        %v1827 = vunpack.c.l.b16 %v804
        %v1828 = vunpack.c.h.b16 %v804
        %v1829 = vunpack.c.l.b16 %v805
        %v1830 = vunpack.c.h.b16 %v805
        %v1831 = vunpack.c.l.b16 %v806
        %v1832 = vunpack.c.h.b16 %v806
        %v1833 = vunpack.c.l.b16 %v807
        %v1834 = vunpack.c.h.b16 %v807
        %v1835 = vunpack.c.l.b16 %v808
        %v1836 = vunpack.c.h.b16 %v808
        %v1837 = vunpack.c.l.b16 %v809
        %v1838 = vunpack.c.h.b16 %v809
        %v1839 = vunpack.c.l.b16 %v810
        %v1840 = vunpack.c.h.b16 %v810
        %v1841 = vunpack.c.l.b16 %v811
        %v1842 = vunpack.c.h.b16 %v811
        %v1843 = vunpack.c.l.b16 %v812
        %v1844 = vunpack.c.h.b16 %v812
        %v1845 = vunpack.c.l.b16 %v813
        %v1846 = vunpack.c.h.b16 %v813
        %v1847 = vunpack.c.l.b16 %v814
        %v1848 = vunpack.c.h.b16 %v814
        %v1849 = vunpack.c.l.b16 %v815
        %v1850 = vunpack.c.h.b16 %v815
        %v1851 = vunpack.c.l.b16 %v816
        %v1852 = vunpack.c.h.b16 %v816
        %v1853 = vunpack.c.l.b16 %v817
        %v1854 = vunpack.c.h.b16 %v817
        %v1855 = vunpack.c.l.b16 %v818
        %v1856 = vunpack.c.h.b16 %v818
        %v1857 = vunpack.c.l.b16 %v819
        %v1858 = vunpack.c.h.b16 %v819
        %v1859 = vunpack.c.l.b16 %v820
        %v1860 = vunpack.c.h.b16 %v820
        %v1861 = vunpack.c.l.b16 %v821
        %v1862 = vunpack.c.h.b16 %v821
        %v1863 = vunpack.c.l.b16 %v822
        %v1864 = vunpack.c.h.b16 %v822
        %v1865 = vunpack.c.l.b16 %v823
        %v1866 = vunpack.c.h.b16 %v823
        %v1867 = vunpack.c.l.b16 %v824
        %v1868 = vunpack.c.h.b16 %v824
        %v1869 = vunpack.c.l.b16 %v825
        %v1870 = vunpack.c.h.b16 %v825
        %v1871 = vunpack.c.l.b16 %v826
        %v1872 = vunpack.c.h.b16 %v826
        %v1873 = vunpack.c.l.b16 %v827
        %v1874 = vunpack.c.h.b16 %v827
        %v1875 = vunpack.c.l.b16 %v828
        %v1876 = vunpack.c.h.b16 %v828
        %v1877 = vunpack.c.l.b16 %v829
        %v1878 = vunpack.c.h.b16 %v829
        %v1879 = vunpack.c.l.b16 %v830
        %v1880 = vunpack.c.h.b16 %v830
        %v1881 = vunpack.c.l.b16 %v831
        %v1882 = vunpack.c.h.b16 %v831
        %v1883 = vunpack.c.l.b16 %v832
        %v1884 = vunpack.c.h.b16 %v832
        %v1885 = vunpack.c.l.b16 %v833
        %v1886 = vunpack.c.h.b16 %v833
        %v1887 = vunpack.c.l.b16 %v834
        %v1888 = vunpack.c.h.b16 %v834
        %v1889 = vunpack.c.l.b16 %v835
        %v1890 = vunpack.c.h.b16 %v835
        %v1891 = vunpack.c.l.b16 %v836
        %v1892 = vunpack.c.h.b16 %v836
        %v1893 = vunpack.c.l.b16 %v837
        %v1894 = vunpack.c.h.b16 %v837
        %v1895 = vunpack.c.l.b16 %v838
        %v1896 = vunpack.c.h.b16 %v838
        %v1897 = vunpack.c.l.b16 %v839
        %v1898 = vunpack.c.h.b16 %v839
        %v1899 = vunpack.c.l.b16 %v840
        %v1900 = vunpack.c.h.b16 %v840
        %v1901 = vunpack.c.l.b16 %v841
        %v1902 = vunpack.c.h.b16 %v841
        %v1903 = vunpack.c.l.b16 %v842
        %v1904 = vunpack.c.h.b16 %v842
        %v1905 = vunpack.c.l.b16 %v843
        %v1906 = vunpack.c.h.b16 %v843
        %v1907 = vunpack.c.l.b16 %v844
        %v1908 = vunpack.c.h.b16 %v844
        %v1909 = vunpack.c.l.b16 %v845
        %v1910 = vunpack.c.h.b16 %v845
        %v1911 = vunpack.c.l.b16 %v846
        %v1912 = vunpack.c.h.b16 %v846
        %v1913 = vunpack.c.l.b16 %v847
        %v1914 = vunpack.c.h.b16 %v847
        %v1915 = vunpack.c.l.b16 %v848
        %v1916 = vunpack.c.h.b16 %v848
        %v1917 = vunpack.c.l.b16 %v849
        %v1918 = vunpack.c.h.b16 %v849
        %v1919 = vunpack.c.l.b16 %v850
        %v1920 = vunpack.c.h.b16 %v850
        %v1921 = vunpack.c.l.b16 %v851
        %v1922 = vunpack.c.h.b16 %v851
        %v1923 = vunpack.c.l.b16 %v852
        %v1924 = vunpack.c.h.b16 %v852
        %v1925 = vunpack.c.l.b16 %v853
        %v1926 = vunpack.c.h.b16 %v853
        %v1927 = vunpack.c.l.b16 %v854
        %v1928 = vunpack.c.h.b16 %v854
        %v1929 = vunpack.c.l.b16 %v855
        %v1930 = vunpack.c.h.b16 %v855
        %v1931 = vunpack.c.l.b16 %v856
        %v1932 = vunpack.c.h.b16 %v856
        %v1933 = vunpack.c.l.b16 %v857
        %v1934 = vunpack.c.h.b16 %v857
        %v1935 = vunpack.c.l.b16 %v858
        %v1936 = vunpack.c.h.b16 %v858
        %v1937 = vunpack.c.l.b16 %v859
        %v1938 = vunpack.c.h.b16 %v859
        %v1939 = vunpack.c.l.b16 %v860
        %v1940 = vunpack.c.h.b16 %v860
        %v1941 = vunpack.c.l.b16 %v861
        %v1942 = vunpack.c.h.b16 %v861
        %v1943 = vunpack.c.l.b16 %v862
        %v1944 = vunpack.c.h.b16 %v862
        %v1945 = vunpack.c.l.b16 %v863
        %v1946 = vunpack.c.h.b16 %v863
        %v1947 = vunpack.c.l.b16 %v864
        %v1948 = vunpack.c.h.b16 %v864
        %v1949 = vunpack.c.l.b16 %v865
        %v1950 = vunpack.c.h.b16 %v865
        %v1951 = vunpack.c.l.b16 %v866
        %v1952 = vunpack.c.h.b16 %v866
        %v1953 = vunpack.c.l.b16 %v867
        %v1954 = vunpack.c.h.b16 %v867
        %v1955 = vunpack.c.l.b16 %v868
        %v1956 = vunpack.c.h.b16 %v868
        %v1957 = vpack.c.b16 %v1449, %v1445
        %v1958 = vpack.c.b16 %v1450, %v1446
        %v1959 = vpack.c.b16 %v1451, %v1447
        %v1960 = vpack.c.b16 %v1452, %v1448
        %v1961 = vpack.c.b16 %v1457, %v1453
        %v1962 = vpack.c.b16 %v1458, %v1454
        %v1963 = vpack.c.b16 %v1459, %v1455
        %v1964 = vpack.c.b16 %v1460, %v1456
        %v1965 = vpack.c.b16 %v1465, %v1461
        %v1966 = vpack.c.b16 %v1466, %v1462
        %v1967 = vpack.c.b16 %v1467, %v1463
        %v1968 = vpack.c.b16 %v1468, %v1464
        %v1969 = vpack.c.b16 %v1473, %v1469
        %v1970 = vpack.c.b16 %v1474, %v1470
        %v1971 = vpack.c.b16 %v1475, %v1471
        %v1972 = vpack.c.b16 %v1476, %v1472
        %v1973 = vpack.c.b16 %v1481, %v1477
        %v1974 = vpack.c.b16 %v1482, %v1478
        %v1975 = vpack.c.b16 %v1483, %v1479
        %v1976 = vpack.c.b16 %v1484, %v1480
        %v1977 = vpack.c.b16 %v1489, %v1485
        %v1978 = vpack.c.b16 %v1490, %v1486
        %v1979 = vpack.c.b16 %v1491, %v1487
        %v1980 = vpack.c.b16 %v1492, %v1488
        %v1981 = vpack.c.b16 %v1497, %v1493
        %v1982 = vpack.c.b16 %v1498, %v1494
        %v1983 = vpack.c.b16 %v1499, %v1495
        %v1984 = vpack.c.b16 %v1500, %v1496
        %v1985 = vpack.c.b16 %v1505, %v1501
        %v1986 = vpack.c.b16 %v1506, %v1502
        %v1987 = vpack.c.b16 %v1507, %v1503
        %v1988 = vpack.c.b16 %v1508, %v1504
        %v1989 = vpack.c.b16 %v1513, %v1509
        %v1990 = vpack.c.b16 %v1514, %v1510
        %v1991 = vpack.c.b16 %v1515, %v1511
        %v1992 = vpack.c.b16 %v1516, %v1512
        %v1993 = vpack.c.b16 %v1521, %v1517
        %v1994 = vpack.c.b16 %v1522, %v1518
        %v1995 = vpack.c.b16 %v1523, %v1519
        %v1996 = vpack.c.b16 %v1524, %v1520
        %v1997 = vpack.c.b16 %v1529, %v1525
        %v1998 = vpack.c.b16 %v1530, %v1526
        %v1999 = vpack.c.b16 %v1531, %v1527
        %v2000 = vpack.c.b16 %v1532, %v1528
        %v2001 = vpack.c.b16 %v1537, %v1533
        %v2002 = vpack.c.b16 %v1538, %v1534
        %v2003 = vpack.c.b16 %v1539, %v1535
        %v2004 = vpack.c.b16 %v1540, %v1536
        %v2005 = vpack.c.b16 %v1545, %v1541
        %v2006 = vpack.c.b16 %v1546, %v1542
        %v2007 = vpack.c.b16 %v1547, %v1543
        %v2008 = vpack.c.b16 %v1548, %v1544
        %v2009 = vpack.c.b16 %v1553, %v1549
        %v2010 = vpack.c.b16 %v1554, %v1550
        %v2011 = vpack.c.b16 %v1555, %v1551
        %v2012 = vpack.c.b16 %v1556, %v1552
        %v2013 = vpack.c.b16 %v1561, %v1557
        %v2014 = vpack.c.b16 %v1562, %v1558
        %v2015 = vpack.c.b16 %v1563, %v1559
        %v2016 = vpack.c.b16 %v1564, %v1560
        %v2017 = vpack.c.b16 %v1569, %v1565
        %v2018 = vpack.c.b16 %v1570, %v1566
        %v2019 = vpack.c.b16 %v1571, %v1567
        %v2020 = vpack.c.b16 %v1572, %v1568
        %v2021 = vpack.c.b16 %v1577, %v1573
        %v2022 = vpack.c.b16 %v1578, %v1574
        %v2023 = vpack.c.b16 %v1579, %v1575
        %v2024 = vpack.c.b16 %v1580, %v1576
        %v2025 = vpack.c.b16 %v1585, %v1581
        %v2026 = vpack.c.b16 %v1586, %v1582
        %v2027 = vpack.c.b16 %v1587, %v1583
        %v2028 = vpack.c.b16 %v1588, %v1584
        %v2029 = vpack.c.b16 %v1593, %v1589
        %v2030 = vpack.c.b16 %v1594, %v1590
        %v2031 = vpack.c.b16 %v1595, %v1591
        %v2032 = vpack.c.b16 %v1596, %v1592
        %v2033 = vpack.c.b16 %v1601, %v1597
        %v2034 = vpack.c.b16 %v1602, %v1598
        %v2035 = vpack.c.b16 %v1603, %v1599
        %v2036 = vpack.c.b16 %v1604, %v1600
        %v2037 = vpack.c.b16 %v1609, %v1605
        %v2038 = vpack.c.b16 %v1610, %v1606
        %v2039 = vpack.c.b16 %v1611, %v1607
        %v2040 = vpack.c.b16 %v1612, %v1608
        %v2041 = vpack.c.b16 %v1617, %v1613
        %v2042 = vpack.c.b16 %v1618, %v1614
        %v2043 = vpack.c.b16 %v1619, %v1615
        %v2044 = vpack.c.b16 %v1620, %v1616
        %v2045 = vpack.c.b16 %v1625, %v1621
        %v2046 = vpack.c.b16 %v1626, %v1622
        %v2047 = vpack.c.b16 %v1627, %v1623
        %v2048 = vpack.c.b16 %v1628, %v1624
        %v2049 = vpack.c.b16 %v1633, %v1629
        %v2050 = vpack.c.b16 %v1634, %v1630
        %v2051 = vpack.c.b16 %v1635, %v1631
        %v2052 = vpack.c.b16 %v1636, %v1632
        %v2053 = vpack.c.b16 %v1641, %v1637
        %v2054 = vpack.c.b16 %v1642, %v1638
        %v2055 = vpack.c.b16 %v1643, %v1639
        %v2056 = vpack.c.b16 %v1644, %v1640
        %v2057 = vpack.c.b16 %v1649, %v1645
        %v2058 = vpack.c.b16 %v1650, %v1646
        %v2059 = vpack.c.b16 %v1651, %v1647
        %v2060 = vpack.c.b16 %v1652, %v1648
        %v2061 = vpack.c.b16 %v1657, %v1653
        %v2062 = vpack.c.b16 %v1658, %v1654
        %v2063 = vpack.c.b16 %v1659, %v1655
        %v2064 = vpack.c.b16 %v1660, %v1656
        %v2065 = vpack.c.b16 %v1665, %v1661
        %v2066 = vpack.c.b16 %v1666, %v1662
        %v2067 = vpack.c.b16 %v1667, %v1663
        %v2068 = vpack.c.b16 %v1668, %v1664
        %v2069 = vpack.c.b16 %v1673, %v1669
        %v2070 = vpack.c.b16 %v1674, %v1670
        %v2071 = vpack.c.b16 %v1675, %v1671
        %v2072 = vpack.c.b16 %v1676, %v1672
        %v2073 = vpack.c.b16 %v1681, %v1677
        %v2074 = vpack.c.b16 %v1682, %v1678
        %v2075 = vpack.c.b16 %v1683, %v1679
        %v2076 = vpack.c.b16 %v1684, %v1680
        %v2077 = vpack.c.b16 %v1689, %v1685
        %v2078 = vpack.c.b16 %v1690, %v1686
        %v2079 = vpack.c.b16 %v1691, %v1687
        %v2080 = vpack.c.b16 %v1692, %v1688
        %v2081 = vpack.c.b16 %v1697, %v1693
        %v2082 = vpack.c.b16 %v1698, %v1694
        %v2083 = vpack.c.b16 %v1699, %v1695
        %v2084 = vpack.c.b16 %v1700, %v1696
        %v2085 = vpack.c.b16 %v1705, %v1701
        %v2086 = vpack.c.b16 %v1706, %v1702
        %v2087 = vpack.c.b16 %v1707, %v1703
        %v2088 = vpack.c.b16 %v1708, %v1704
        %v2089 = vpack.c.b16 %v1713, %v1709
        %v2090 = vpack.c.b16 %v1714, %v1710
        %v2091 = vpack.c.b16 %v1715, %v1711
        %v2092 = vpack.c.b16 %v1716, %v1712
        %v2093 = vpack.c.b16 %v1721, %v1717
        %v2094 = vpack.c.b16 %v1722, %v1718
        %v2095 = vpack.c.b16 %v1723, %v1719
        %v2096 = vpack.c.b16 %v1724, %v1720
        %v2097 = vpack.c.b16 %v1729, %v1725
        %v2098 = vpack.c.b16 %v1730, %v1726
        %v2099 = vpack.c.b16 %v1731, %v1727
        %v2100 = vpack.c.b16 %v1732, %v1728
        %v2101 = vpack.c.b16 %v1737, %v1733
        %v2102 = vpack.c.b16 %v1738, %v1734
        %v2103 = vpack.c.b16 %v1739, %v1735
        %v2104 = vpack.c.b16 %v1740, %v1736
        %v2105 = vpack.c.b16 %v1745, %v1741
        %v2106 = vpack.c.b16 %v1746, %v1742
        %v2107 = vpack.c.b16 %v1747, %v1743
        %v2108 = vpack.c.b16 %v1748, %v1744
        %v2109 = vpack.c.b16 %v1753, %v1749
        %v2110 = vpack.c.b16 %v1754, %v1750
        %v2111 = vpack.c.b16 %v1755, %v1751
        %v2112 = vpack.c.b16 %v1756, %v1752
        %v2113 = vpack.c.b16 %v1761, %v1757
        %v2114 = vpack.c.b16 %v1762, %v1758
        %v2115 = vpack.c.b16 %v1763, %v1759
        %v2116 = vpack.c.b16 %v1764, %v1760
        %v2117 = vpack.c.b16 %v1769, %v1765
        %v2118 = vpack.c.b16 %v1770, %v1766
        %v2119 = vpack.c.b16 %v1771, %v1767
        %v2120 = vpack.c.b16 %v1772, %v1768
        %v2121 = vpack.c.b16 %v1777, %v1773
        %v2122 = vpack.c.b16 %v1778, %v1774
        %v2123 = vpack.c.b16 %v1779, %v1775
        %v2124 = vpack.c.b16 %v1780, %v1776
        %v2125 = vpack.c.b16 %v1785, %v1781
        %v2126 = vpack.c.b16 %v1786, %v1782
        %v2127 = vpack.c.b16 %v1787, %v1783
        %v2128 = vpack.c.b16 %v1788, %v1784
        %v2129 = vpack.c.b16 %v1793, %v1789
        %v2130 = vpack.c.b16 %v1794, %v1790
        %v2131 = vpack.c.b16 %v1795, %v1791
        %v2132 = vpack.c.b16 %v1796, %v1792
        %v2133 = vpack.c.b16 %v1801, %v1797
        %v2134 = vpack.c.b16 %v1802, %v1798
        %v2135 = vpack.c.b16 %v1803, %v1799
        %v2136 = vpack.c.b16 %v1804, %v1800
        %v2137 = vpack.c.b16 %v1809, %v1805
        %v2138 = vpack.c.b16 %v1810, %v1806
        %v2139 = vpack.c.b16 %v1811, %v1807
        %v2140 = vpack.c.b16 %v1812, %v1808
        %v2141 = vpack.c.b16 %v1817, %v1813
        %v2142 = vpack.c.b16 %v1818, %v1814
        %v2143 = vpack.c.b16 %v1819, %v1815
        %v2144 = vpack.c.b16 %v1820, %v1816
        %v2145 = vpack.c.b16 %v1825, %v1821
        %v2146 = vpack.c.b16 %v1826, %v1822
        %v2147 = vpack.c.b16 %v1827, %v1823
        %v2148 = vpack.c.b16 %v1828, %v1824
        %v2149 = vpack.c.b16 %v1833, %v1829
        %v2150 = vpack.c.b16 %v1834, %v1830
        %v2151 = vpack.c.b16 %v1835, %v1831
        %v2152 = vpack.c.b16 %v1836, %v1832
        %v2153 = vpack.c.b16 %v1841, %v1837
        %v2154 = vpack.c.b16 %v1842, %v1838
        %v2155 = vpack.c.b16 %v1843, %v1839
        %v2156 = vpack.c.b16 %v1844, %v1840
        %v2157 = vpack.c.b16 %v1849, %v1845
        %v2158 = vpack.c.b16 %v1850, %v1846
        %v2159 = vpack.c.b16 %v1851, %v1847
        %v2160 = vpack.c.b16 %v1852, %v1848
        %v2161 = vpack.c.b16 %v1857, %v1853
        %v2162 = vpack.c.b16 %v1858, %v1854
        %v2163 = vpack.c.b16 %v1859, %v1855
        %v2164 = vpack.c.b16 %v1860, %v1856
        %v2165 = vpack.c.b16 %v1865, %v1861
        %v2166 = vpack.c.b16 %v1866, %v1862
        %v2167 = vpack.c.b16 %v1867, %v1863
        %v2168 = vpack.c.b16 %v1868, %v1864
        %v2169 = vpack.c.b16 %v1873, %v1869
        %v2170 = vpack.c.b16 %v1874, %v1870
        %v2171 = vpack.c.b16 %v1875, %v1871
        %v2172 = vpack.c.b16 %v1876, %v1872
        %v2173 = vpack.c.b16 %v1881, %v1877
        %v2174 = vpack.c.b16 %v1882, %v1878
        %v2175 = vpack.c.b16 %v1883, %v1879
        %v2176 = vpack.c.b16 %v1884, %v1880
        %v2177 = vpack.c.b16 %v1889, %v1885
        %v2178 = vpack.c.b16 %v1890, %v1886
        %v2179 = vpack.c.b16 %v1891, %v1887
        %v2180 = vpack.c.b16 %v1892, %v1888
        %v2181 = vpack.c.b16 %v1897, %v1893
        %v2182 = vpack.c.b16 %v1898, %v1894
        %v2183 = vpack.c.b16 %v1899, %v1895
        %v2184 = vpack.c.b16 %v1900, %v1896
        %v2185 = vpack.c.b16 %v1905, %v1901
        %v2186 = vpack.c.b16 %v1906, %v1902
        %v2187 = vpack.c.b16 %v1907, %v1903
        %v2188 = vpack.c.b16 %v1908, %v1904
        %v2189 = vpack.c.b16 %v1913, %v1909
        %v2190 = vpack.c.b16 %v1914, %v1910
        %v2191 = vpack.c.b16 %v1915, %v1911
        %v2192 = vpack.c.b16 %v1916, %v1912
        %v2193 = vpack.c.b16 %v1921, %v1917
        %v2194 = vpack.c.b16 %v1922, %v1918
        %v2195 = vpack.c.b16 %v1923, %v1919
        %v2196 = vpack.c.b16 %v1924, %v1920
        %v2197 = vpack.c.b16 %v1929, %v1925
        %v2198 = vpack.c.b16 %v1930, %v1926
        %v2199 = vpack.c.b16 %v1931, %v1927
        %v2200 = vpack.c.b16 %v1932, %v1928
        %v2201 = vpack.c.b16 %v1937, %v1933
        %v2202 = vpack.c.b16 %v1938, %v1934
        %v2203 = vpack.c.b16 %v1939, %v1935
        %v2204 = vpack.c.b16 %v1940, %v1936
        %v2205 = vpack.c.b16 %v1945, %v1941
        %v2206 = vpack.c.b16 %v1946, %v1942
        %v2207 = vpack.c.b16 %v1947, %v1943
        %v2208 = vpack.c.b16 %v1948, %v1944
        %v2209 = vpack.c.b16 %v1953, %v1949
        %v2210 = vpack.c.b16 %v1954, %v1950
        %v2211 = vpack.c.b16 %v1955, %v1951
        %v2212 = vpack.c.b16 %v1956, %v1952
        %2469 = vmatprep.subr.bf16.mxu0 %v1986
        %2470 = vmatpush1.bf16.msra.mxu0 %v1985
        %2471 = vmatprep.subr.bf16.mxu0 %v1982
        %2472 = vmatpush1.bf16.msra.mxu0 %v1981
        %2473 = vmatprep.subr.bf16.mxu0 %v1978
        %2474 = vmatpush1.bf16.msra.mxu0 %v1977
        %2475 = vmatprep.subr.bf16.mxu0 %v1974
        %2476 = vmatpush1.bf16.msra.mxu0 %v1973
        %2477 = vmatprep.subr.bf16.mxu0 %v1970
        %2478 = vmatpush1.bf16.msra.mxu0 %v1969
        %2479 = vmatprep.subr.bf16.mxu0 %v1966
        %2480 = vmatpush1.bf16.msra.mxu0 %v1965
        %2481 = vmatprep.subr.bf16.mxu0 %v1962
        %2482 = vmatpush1.bf16.msra.mxu0 %v1961
        %2483 = vmatprep.subr.bf16.mxu0 %v1958
        %2484 = vmatpush1.bf16.msra.mxu0 %v1957
        %2485 = vmatprep.subr.bf16.mxu0 %v2018
        %2486 = vmatpush2.bf16.msra.mxu0 %v2017
        %2487 = vmatprep.subr.bf16.mxu0 %v2014
        %2488 = vmatpush2.bf16.msra.mxu0 %v2013
        %2489 = vmatprep.subr.bf16.mxu0 %v2010
        %2490 = vmatpush2.bf16.msra.mxu0 %v2009
        %2491 = vmatprep.subr.bf16.mxu0 %v2006
        %2492 = vmatpush2.bf16.msra.mxu0 %v2005
        %2493 = vmatprep.subr.bf16.mxu0 %v2002
        %2494 = vmatpush2.bf16.msra.mxu0 %v2001
        %2495 = vmatprep.subr.bf16.mxu0 %v1998
        %2496 = vmatpush2.bf16.msra.mxu0 %v1997
        %2497 = vmatprep.subr.bf16.mxu0 %v1994
        %2498 = vmatpush2.bf16.msra.mxu0 %v1993
        %2499 = vmatprep.subr.bf16.mxu0 %v1990
        %2500 = vmatpush2.bf16.msra.mxu0 %v1989
        %2501 = vmatprep.mubr.bf16.mxu0 %v1062
        %2502 = vmatmul.mubr.bf16.gmra.mxu0 %v1061
        %v2503 = vpop.f32.mrf.mxu0
        %v2504 = vadd.f32 0.0, %v2503
        %v2505 = vpop.f32.mrf.mxu0
        %v2506 = vadd.f32 0.0, %v2505
        %v2507 = vpop.f32.mrf.mxu0
        %v2508 = vadd.f32 0.0, %v2507
        %v2509 = vpop.f32.mrf.mxu0
        %v2510 = vadd.f32 0.0, %v2509
        %2511 = vmatprep.mubr.bf16.mxu0 %v1070
        %2512 = vmatmul.mubr.bf16.gmra.mxu0 %v1069
        %v2513 = vpop.f32.mrf.mxu0
        %v2514 = vadd.f32 0.0, %v2513
        %v2515 = vpop.f32.mrf.mxu0
        %v2516 = vadd.f32 0.0, %v2515
        %v2517 = vpop.f32.mrf.mxu0
        %v2518 = vadd.f32 0.0, %v2517
        %v2519 = vpop.f32.mrf.mxu0
        %v2520 = vadd.f32 0.0, %v2519
        %2521 = vmatprep.mubr.bf16.mxu0 %v1078
        %2522 = vmatmul.mubr.bf16.gmra.mxu0 %v1077
        %v2523 = vpop.f32.mrf.mxu0
        %v2524 = vadd.f32 0.0, %v2523
        %v2525 = vpop.f32.mrf.mxu0
        %v2526 = vadd.f32 0.0, %v2525
        %v2527 = vpop.f32.mrf.mxu0
        %v2528 = vadd.f32 0.0, %v2527
        %v2529 = vpop.f32.mrf.mxu0
        %v2530 = vadd.f32 0.0, %v2529
        %2531 = vmatprep.mubr.bf16.mxu0 %v1086
        %2532 = vmatmul.mubr.bf16.gmra.mxu0 %v1085
        %v2533 = vpop.f32.mrf.mxu0
        %v2534 = vadd.f32 0.0, %v2533
        %v2535 = vpop.f32.mrf.mxu0
        %v2536 = vadd.f32 0.0, %v2535
        %v2537 = vpop.f32.mrf.mxu0
        %v2538 = vadd.f32 0.0, %v2537
        %v2539 = vpop.f32.mrf.mxu0
        %v2540 = vadd.f32 0.0, %v2539
        %2541 = vmatprep.mubr.bf16.mxu0 %v1094
        %2542 = vmatmul.mubr.bf16.gmra.mxu0 %v1093
        %v2543 = vpop.f32.mrf.mxu0
        %v2544 = vadd.f32 0.0, %v2543
        %v2545 = vpop.f32.mrf.mxu0
        %v2546 = vadd.f32 0.0, %v2545
        %v2547 = vpop.f32.mrf.mxu0
        %v2548 = vadd.f32 0.0, %v2547
        %v2549 = vpop.f32.mrf.mxu0
        %v2550 = vadd.f32 0.0, %v2549
        %2551 = vmatprep.mubr.bf16.mxu0 %v1102
        %2552 = vmatmul.mubr.bf16.gmra.mxu0 %v1101
        %v2553 = vpop.f32.mrf.mxu0
        %v2554 = vadd.f32 0.0, %v2553
        %v2555 = vpop.f32.mrf.mxu0
        %v2556 = vadd.f32 0.0, %v2555
        %v2557 = vpop.f32.mrf.mxu0
        %v2558 = vadd.f32 0.0, %v2557
        %v2559 = vpop.f32.mrf.mxu0
        %v2560 = vadd.f32 0.0, %v2559
        %2561 = vmatprep.mubr.bf16.mxu0 %v1110
        %2562 = vmatmul.mubr.bf16.gmra.mxu0 %v1109
        %v2563 = vpop.f32.mrf.mxu0
        %v2564 = vadd.f32 0.0, %v2563
        %v2565 = vpop.f32.mrf.mxu0
        %v2566 = vadd.f32 0.0, %v2565
        %v2567 = vpop.f32.mrf.mxu0
        %v2568 = vadd.f32 0.0, %v2567
        %v2569 = vpop.f32.mrf.mxu0
        %v2570 = vadd.f32 0.0, %v2569
        %2571 = vmatprep.mubr.bf16.mxu0 %v1118
        %2572 = vmatmul.mubr.bf16.gmra.mxu0 %v1117
        %v2573 = vpop.f32.mrf.mxu0
        %v2574 = vadd.f32 0.0, %v2573
        %v2575 = vpop.f32.mrf.mxu0
        %v2576 = vadd.f32 0.0, %v2575
        %v2577 = vpop.f32.mrf.mxu0
        %v2578 = vadd.f32 0.0, %v2577
        %v2579 = vpop.f32.mrf.mxu0
        %v2580 = vadd.f32 0.0, %v2579
        %2581 = vdwg.mxu0
        %2582 = vmatprep.subr.bf16.mxu0 %v2050
        %2583 = vmatpush1.bf16.msra.mxu0 %v2049
        %2584 = vmatprep.subr.bf16.mxu0 %v2046
        %2585 = vmatpush1.bf16.msra.mxu0 %v2045
        %2586 = vmatprep.subr.bf16.mxu0 %v2042
        %2587 = vmatpush1.bf16.msra.mxu0 %v2041
        %2588 = vmatprep.subr.bf16.mxu0 %v2038
        %2589 = vmatpush1.bf16.msra.mxu0 %v2037
        %2590 = vmatprep.subr.bf16.mxu0 %v2034
        %2591 = vmatpush1.bf16.msra.mxu0 %v2033
        %2592 = vmatprep.subr.bf16.mxu0 %v2030
        %2593 = vmatpush1.bf16.msra.mxu0 %v2029
        %2594 = vmatprep.subr.bf16.mxu0 %v2026
        %2595 = vmatpush1.bf16.msra.mxu0 %v2025
        %2596 = vmatprep.subr.bf16.mxu0 %v2022
        %2597 = vmatpush1.bf16.msra.mxu0 %v2021
        %2598 = vmatprep.subr.bf16.mxu0 %v2082
        %2599 = vmatpush2.bf16.msra.mxu0 %v2081
        %2600 = vmatprep.subr.bf16.mxu0 %v2078
        %2601 = vmatpush2.bf16.msra.mxu0 %v2077
        %2602 = vmatprep.subr.bf16.mxu0 %v2074
        %2603 = vmatpush2.bf16.msra.mxu0 %v2073
        %2604 = vmatprep.subr.bf16.mxu0 %v2070
        %2605 = vmatpush2.bf16.msra.mxu0 %v2069
        %2606 = vmatprep.subr.bf16.mxu0 %v2066
        %2607 = vmatpush2.bf16.msra.mxu0 %v2065
        %2608 = vmatprep.subr.bf16.mxu0 %v2062
        %2609 = vmatpush2.bf16.msra.mxu0 %v2061
        %2610 = vmatprep.subr.bf16.mxu0 %v2058
        %2611 = vmatpush2.bf16.msra.mxu0 %v2057
        %2612 = vmatprep.subr.bf16.mxu0 %v2054
        %2613 = vmatpush2.bf16.msra.mxu0 %v2053
        %2614 = vmatprep.mubr.bf16.mxu0 %v1064
        %2615 = vmatmul.mubr.bf16.gmra.mxu0 %v1063
        %v2616 = vpop.f32.mrf.mxu0
        %v2617 = vadd.f32 %v2504, %v2616
        %v2618 = vpop.f32.mrf.mxu0
        %v2619 = vadd.f32 %v2506, %v2618
        %v2620 = vpop.f32.mrf.mxu0
        %v2621 = vadd.f32 %v2508, %v2620
        %v2622 = vpop.f32.mrf.mxu0
        %v2623 = vadd.f32 %v2510, %v2622
        %2624 = vmatprep.mubr.bf16.mxu0 %v1072
        %2625 = vmatmul.mubr.bf16.gmra.mxu0 %v1071
        %v2626 = vpop.f32.mrf.mxu0
        %v2627 = vadd.f32 %v2514, %v2626
        %v2628 = vpop.f32.mrf.mxu0
        %v2629 = vadd.f32 %v2516, %v2628
        %v2630 = vpop.f32.mrf.mxu0
        %v2631 = vadd.f32 %v2518, %v2630
        %v2632 = vpop.f32.mrf.mxu0
        %v2633 = vadd.f32 %v2520, %v2632
        %2634 = vmatprep.mubr.bf16.mxu0 %v1080
        %2635 = vmatmul.mubr.bf16.gmra.mxu0 %v1079
        %v2636 = vpop.f32.mrf.mxu0
        %v2637 = vadd.f32 %v2524, %v2636
        %v2638 = vpop.f32.mrf.mxu0
        %v2639 = vadd.f32 %v2526, %v2638
        %v2640 = vpop.f32.mrf.mxu0
        %v2641 = vadd.f32 %v2528, %v2640
        %v2642 = vpop.f32.mrf.mxu0
        %v2643 = vadd.f32 %v2530, %v2642
        %2644 = vmatprep.mubr.bf16.mxu0 %v1088
        %2645 = vmatmul.mubr.bf16.gmra.mxu0 %v1087
        %v2646 = vpop.f32.mrf.mxu0
        %v2647 = vadd.f32 %v2534, %v2646
        %v2648 = vpop.f32.mrf.mxu0
        %v2649 = vadd.f32 %v2536, %v2648
        %v2650 = vpop.f32.mrf.mxu0
        %v2651 = vadd.f32 %v2538, %v2650
        %v2652 = vpop.f32.mrf.mxu0
        %v2653 = vadd.f32 %v2540, %v2652
        %2654 = vmatprep.mubr.bf16.mxu0 %v1096
        %2655 = vmatmul.mubr.bf16.gmra.mxu0 %v1095
        %v2656 = vpop.f32.mrf.mxu0
        %v2657 = vadd.f32 %v2544, %v2656
        %v2658 = vpop.f32.mrf.mxu0
        %v2659 = vadd.f32 %v2546, %v2658
        %v2660 = vpop.f32.mrf.mxu0
        %v2661 = vadd.f32 %v2548, %v2660
        %v2662 = vpop.f32.mrf.mxu0
        %v2663 = vadd.f32 %v2550, %v2662
        %2664 = vmatprep.mubr.bf16.mxu0 %v1104
        %2665 = vmatmul.mubr.bf16.gmra.mxu0 %v1103
        %v2666 = vpop.f32.mrf.mxu0
        %v2667 = vadd.f32 %v2554, %v2666
        %v2668 = vpop.f32.mrf.mxu0
        %v2669 = vadd.f32 %v2556, %v2668
        %v2670 = vpop.f32.mrf.mxu0
        %v2671 = vadd.f32 %v2558, %v2670
        %v2672 = vpop.f32.mrf.mxu0
        %v2673 = vadd.f32 %v2560, %v2672
        %2674 = vmatprep.mubr.bf16.mxu0 %v1112
        %2675 = vmatmul.mubr.bf16.gmra.mxu0 %v1111
        %v2676 = vpop.f32.mrf.mxu0
        %v2677 = vadd.f32 %v2564, %v2676
        %v2678 = vpop.f32.mrf.mxu0
        %v2679 = vadd.f32 %v2566, %v2678
        %v2680 = vpop.f32.mrf.mxu0
        %v2681 = vadd.f32 %v2568, %v2680
        %v2682 = vpop.f32.mrf.mxu0
        %v2683 = vadd.f32 %v2570, %v2682
        %2684 = vmatprep.mubr.bf16.mxu0 %v1120
        %2685 = vmatmul.mubr.bf16.gmra.mxu0 %v1119
        %v2686 = vpop.f32.mrf.mxu0
        %v2687 = vadd.f32 %v2574, %v2686
        %v2688 = vpop.f32.mrf.mxu0
        %v2689 = vadd.f32 %v2576, %v2688
        %v2690 = vpop.f32.mrf.mxu0
        %v2691 = vadd.f32 %v2578, %v2690
        %v2692 = vpop.f32.mrf.mxu0
        %v2693 = vadd.f32 %v2580, %v2692
        %2694 = vdwg.mxu0
        %2695 = vmatprep.subr.bf16.mxu0 %v2114
        %2696 = vmatpush1.bf16.msra.mxu0 %v2113
        %2697 = vmatprep.subr.bf16.mxu0 %v2110
        %2698 = vmatpush1.bf16.msra.mxu0 %v2109
        %2699 = vmatprep.subr.bf16.mxu0 %v2106
        %2700 = vmatpush1.bf16.msra.mxu0 %v2105
        %2701 = vmatprep.subr.bf16.mxu0 %v2102
        %2702 = vmatpush1.bf16.msra.mxu0 %v2101
        %2703 = vmatprep.subr.bf16.mxu0 %v2098
        %2704 = vmatpush1.bf16.msra.mxu0 %v2097
        %2705 = vmatprep.subr.bf16.mxu0 %v2094
        %2706 = vmatpush1.bf16.msra.mxu0 %v2093
        %2707 = vmatprep.subr.bf16.mxu0 %v2090
        %2708 = vmatpush1.bf16.msra.mxu0 %v2089
        %2709 = vmatprep.subr.bf16.mxu0 %v2086
        %2710 = vmatpush1.bf16.msra.mxu0 %v2085
        %2711 = vmatprep.subr.bf16.mxu0 %v2146
        %2712 = vmatpush2.bf16.msra.mxu0 %v2145
        %2713 = vmatprep.subr.bf16.mxu0 %v2142
        %2714 = vmatpush2.bf16.msra.mxu0 %v2141
        %2715 = vmatprep.subr.bf16.mxu0 %v2138
        %2716 = vmatpush2.bf16.msra.mxu0 %v2137
        %2717 = vmatprep.subr.bf16.mxu0 %v2134
        %2718 = vmatpush2.bf16.msra.mxu0 %v2133
        %2719 = vmatprep.subr.bf16.mxu0 %v2130
        %2720 = vmatpush2.bf16.msra.mxu0 %v2129
        %2721 = vmatprep.subr.bf16.mxu0 %v2126
        %2722 = vmatpush2.bf16.msra.mxu0 %v2125
        %2723 = vmatprep.subr.bf16.mxu0 %v2122
        %2724 = vmatpush2.bf16.msra.mxu0 %v2121
        %2725 = vmatprep.subr.bf16.mxu0 %v2118
        %2726 = vmatpush2.bf16.msra.mxu0 %v2117
        %2727 = vmatprep.mubr.bf16.mxu0 %v1066
        %2728 = vmatmul.mubr.bf16.gmra.mxu0 %v1065
        %v2729 = vpop.f32.mrf.mxu0
        %v2730 = vadd.f32 %v2617, %v2729
        %v2731 = vpop.f32.mrf.mxu0
        %v2732 = vadd.f32 %v2619, %v2731
        %v2733 = vpop.f32.mrf.mxu0
        %v2734 = vadd.f32 %v2621, %v2733
        %v2735 = vpop.f32.mrf.mxu0
        %v2736 = vadd.f32 %v2623, %v2735
        %2737 = vmatprep.mubr.bf16.mxu0 %v1074
        %2738 = vmatmul.mubr.bf16.gmra.mxu0 %v1073
        %v2739 = vpop.f32.mrf.mxu0
        %v2740 = vadd.f32 %v2627, %v2739
        %v2741 = vpop.f32.mrf.mxu0
        %v2742 = vadd.f32 %v2629, %v2741
        %v2743 = vpop.f32.mrf.mxu0
        %v2744 = vadd.f32 %v2631, %v2743
        %v2745 = vpop.f32.mrf.mxu0
        %v2746 = vadd.f32 %v2633, %v2745
        %2747 = vmatprep.mubr.bf16.mxu0 %v1082
        %2748 = vmatmul.mubr.bf16.gmra.mxu0 %v1081
        %v2749 = vpop.f32.mrf.mxu0
        %v2750 = vadd.f32 %v2637, %v2749
        %v2751 = vpop.f32.mrf.mxu0
        %v2752 = vadd.f32 %v2639, %v2751
        %v2753 = vpop.f32.mrf.mxu0
        %v2754 = vadd.f32 %v2641, %v2753
        %v2755 = vpop.f32.mrf.mxu0
        %v2756 = vadd.f32 %v2643, %v2755
        %2757 = vmatprep.mubr.bf16.mxu0 %v1090
        %2758 = vmatmul.mubr.bf16.gmra.mxu0 %v1089
        %v2759 = vpop.f32.mrf.mxu0
        %v2760 = vadd.f32 %v2647, %v2759
        %v2761 = vpop.f32.mrf.mxu0
        %v2762 = vadd.f32 %v2649, %v2761
        %v2763 = vpop.f32.mrf.mxu0
        %v2764 = vadd.f32 %v2651, %v2763
        %v2765 = vpop.f32.mrf.mxu0
        %v2766 = vadd.f32 %v2653, %v2765
        %2767 = vmatprep.mubr.bf16.mxu0 %v1098
        %2768 = vmatmul.mubr.bf16.gmra.mxu0 %v1097
        %v2769 = vpop.f32.mrf.mxu0
        %v2770 = vadd.f32 %v2657, %v2769
        %v2771 = vpop.f32.mrf.mxu0
        %v2772 = vadd.f32 %v2659, %v2771
        %v2773 = vpop.f32.mrf.mxu0
        %v2774 = vadd.f32 %v2661, %v2773
        %v2775 = vpop.f32.mrf.mxu0
        %v2776 = vadd.f32 %v2663, %v2775
        %2777 = vmatprep.mubr.bf16.mxu0 %v1106
        %2778 = vmatmul.mubr.bf16.gmra.mxu0 %v1105
        %v2779 = vpop.f32.mrf.mxu0
        %v2780 = vadd.f32 %v2667, %v2779
        %v2781 = vpop.f32.mrf.mxu0
        %v2782 = vadd.f32 %v2669, %v2781
        %v2783 = vpop.f32.mrf.mxu0
        %v2784 = vadd.f32 %v2671, %v2783
        %v2785 = vpop.f32.mrf.mxu0
        %v2786 = vadd.f32 %v2673, %v2785
        %2787 = vmatprep.mubr.bf16.mxu0 %v1114
        %2788 = vmatmul.mubr.bf16.gmra.mxu0 %v1113
        %v2789 = vpop.f32.mrf.mxu0
        %v2790 = vadd.f32 %v2677, %v2789
        %v2791 = vpop.f32.mrf.mxu0
        %v2792 = vadd.f32 %v2679, %v2791
        %v2793 = vpop.f32.mrf.mxu0
        %v2794 = vadd.f32 %v2681, %v2793
        %v2795 = vpop.f32.mrf.mxu0
        %v2796 = vadd.f32 %v2683, %v2795
        %2797 = vmatprep.mubr.bf16.mxu0 %v1122
        %2798 = vmatmul.mubr.bf16.gmra.mxu0 %v1121
        %v2799 = vpop.f32.mrf.mxu0
        %v2800 = vadd.f32 %v2687, %v2799
        %v2801 = vpop.f32.mrf.mxu0
        %v2802 = vadd.f32 %v2689, %v2801
        %v2803 = vpop.f32.mrf.mxu0
        %v2804 = vadd.f32 %v2691, %v2803
        %v2805 = vpop.f32.mrf.mxu0
        %v2806 = vadd.f32 %v2693, %v2805
        %2807 = vdwg.mxu0
        %2808 = vmatprep.subr.bf16.mxu0 %v2178
        %2809 = vmatpush1.bf16.msra.mxu0 %v2177
        %2810 = vmatprep.subr.bf16.mxu0 %v2174
        %2811 = vmatpush1.bf16.msra.mxu0 %v2173
        %2812 = vmatprep.subr.bf16.mxu0 %v2170
        %2813 = vmatpush1.bf16.msra.mxu0 %v2169
        %2814 = vmatprep.subr.bf16.mxu0 %v2166
        %2815 = vmatpush1.bf16.msra.mxu0 %v2165
        %2816 = vmatprep.subr.bf16.mxu0 %v2162
        %2817 = vmatpush1.bf16.msra.mxu0 %v2161
        %2818 = vmatprep.subr.bf16.mxu0 %v2158
        %2819 = vmatpush1.bf16.msra.mxu0 %v2157
        %2820 = vmatprep.subr.bf16.mxu0 %v2154
        %2821 = vmatpush1.bf16.msra.mxu0 %v2153
        %2822 = vmatprep.subr.bf16.mxu0 %v2150
        %2823 = vmatpush1.bf16.msra.mxu0 %v2149
        %2824 = vmatprep.subr.bf16.mxu0 %v2210
        %2825 = vmatpush2.bf16.msra.mxu0 %v2209
        %2826 = vmatprep.subr.bf16.mxu0 %v2206
        %2827 = vmatpush2.bf16.msra.mxu0 %v2205
        %2828 = vmatprep.subr.bf16.mxu0 %v2202
        %2829 = vmatpush2.bf16.msra.mxu0 %v2201
        %2830 = vmatprep.subr.bf16.mxu0 %v2198
        %2831 = vmatpush2.bf16.msra.mxu0 %v2197
        %2832 = vmatprep.subr.bf16.mxu0 %v2194
        %2833 = vmatpush2.bf16.msra.mxu0 %v2193
        %2834 = vmatprep.subr.bf16.mxu0 %v2190
        %2835 = vmatpush2.bf16.msra.mxu0 %v2189
        %2836 = vmatprep.subr.bf16.mxu0 %v2186
        %2837 = vmatpush2.bf16.msra.mxu0 %v2185
        %2838 = vmatprep.subr.bf16.mxu0 %v2182
        %2839 = vmatpush2.bf16.msra.mxu0 %v2181
        %2840 = vmatprep.mubr.bf16.mxu0 %v1068
        %2841 = vmatmul.mubr.bf16.gmra.mxu0 %v1067
        %v2842 = vpop.f32.mrf.mxu0
        %v2843 = vadd.f32 %v2730, %v2842
        %v2844 = vpop.f32.mrf.mxu0
        %v2845 = vadd.f32 %v2732, %v2844
        %v2846 = vpop.f32.mrf.mxu0
        %v2847 = vadd.f32 %v2734, %v2846
        %v2848 = vpop.f32.mrf.mxu0
        %v2849 = vadd.f32 %v2736, %v2848
        %2850 = vmatprep.mubr.bf16.mxu0 %v1076
        %2851 = vmatmul.mubr.bf16.gmra.mxu0 %v1075
        %v2852 = vpop.f32.mrf.mxu0
        %v2853 = vadd.f32 %v2740, %v2852
        %v2854 = vpop.f32.mrf.mxu0
        %v2855 = vadd.f32 %v2742, %v2854
        %v2856 = vpop.f32.mrf.mxu0
        %v2857 = vadd.f32 %v2744, %v2856
        %v2858 = vpop.f32.mrf.mxu0
        %v2859 = vadd.f32 %v2746, %v2858
        %2860 = vmatprep.mubr.bf16.mxu0 %v1084
        %2861 = vmatmul.mubr.bf16.gmra.mxu0 %v1083
        %v2862 = vpop.f32.mrf.mxu0
        %v2863 = vadd.f32 %v2750, %v2862
        %v2864 = vpop.f32.mrf.mxu0
        %v2865 = vadd.f32 %v2752, %v2864
        %v2866 = vpop.f32.mrf.mxu0
        %v2867 = vadd.f32 %v2754, %v2866
        %v2868 = vpop.f32.mrf.mxu0
        %v2869 = vadd.f32 %v2756, %v2868
        %2870 = vmatprep.mubr.bf16.mxu0 %v1092
        %2871 = vmatmul.mubr.bf16.gmra.mxu0 %v1091
        %v2872 = vpop.f32.mrf.mxu0
        %v2873 = vadd.f32 %v2760, %v2872
        %v2874 = vpop.f32.mrf.mxu0
        %v2875 = vadd.f32 %v2762, %v2874
        %v2876 = vpop.f32.mrf.mxu0
        %v2877 = vadd.f32 %v2764, %v2876
        %v2878 = vpop.f32.mrf.mxu0
        %v2879 = vadd.f32 %v2766, %v2878
        %2880 = vmatprep.mubr.bf16.mxu0 %v1100
        %2881 = vmatmul.mubr.bf16.gmra.mxu0 %v1099
        %v2882 = vpop.f32.mrf.mxu0
        %v2883 = vadd.f32 %v2770, %v2882
        %v2884 = vpop.f32.mrf.mxu0
        %v2885 = vadd.f32 %v2772, %v2884
        %v2886 = vpop.f32.mrf.mxu0
        %v2887 = vadd.f32 %v2774, %v2886
        %v2888 = vpop.f32.mrf.mxu0
        %v2889 = vadd.f32 %v2776, %v2888
        %2890 = vmatprep.mubr.bf16.mxu0 %v1108
        %2891 = vmatmul.mubr.bf16.gmra.mxu0 %v1107
        %v2892 = vpop.f32.mrf.mxu0
        %v2893 = vadd.f32 %v2780, %v2892
        %v2894 = vpop.f32.mrf.mxu0
        %v2895 = vadd.f32 %v2782, %v2894
        %v2896 = vpop.f32.mrf.mxu0
        %v2897 = vadd.f32 %v2784, %v2896
        %v2898 = vpop.f32.mrf.mxu0
        %v2899 = vadd.f32 %v2786, %v2898
        %2900 = vmatprep.mubr.bf16.mxu0 %v1116
        %2901 = vmatmul.mubr.bf16.gmra.mxu0 %v1115
        %v2902 = vpop.f32.mrf.mxu0
        %v2903 = vadd.f32 %v2790, %v2902
        %v2904 = vpop.f32.mrf.mxu0
        %v2905 = vadd.f32 %v2792, %v2904
        %v2906 = vpop.f32.mrf.mxu0
        %v2907 = vadd.f32 %v2794, %v2906
        %v2908 = vpop.f32.mrf.mxu0
        %v2909 = vadd.f32 %v2796, %v2908
        %2910 = vmatprep.mubr.bf16.mxu0 %v1124
        %2911 = vmatmul.mubr.bf16.gmra.mxu0 %v1123
        %v2912 = vpop.f32.mrf.mxu0
        %v2913 = vadd.f32 %v2800, %v2912
        %v2914 = vpop.f32.mrf.mxu0
        %v2915 = vadd.f32 %v2802, %v2914
        %v2916 = vpop.f32.mrf.mxu0
        %v2917 = vadd.f32 %v2804, %v2916
        %v2918 = vpop.f32.mrf.mxu0
        %v2919 = vadd.f32 %v2806, %v2918
        %2920 = vdwg.mxu0
        %2921 = vmatprep.subr.bf16.mxu0 %v1988
        %2922 = vmatpush1.bf16.msra.mxu0 %v1987
        %2923 = vmatprep.subr.bf16.mxu0 %v1984
        %2924 = vmatpush1.bf16.msra.mxu0 %v1983
        %2925 = vmatprep.subr.bf16.mxu0 %v1980
        %2926 = vmatpush1.bf16.msra.mxu0 %v1979
        %2927 = vmatprep.subr.bf16.mxu0 %v1976
        %2928 = vmatpush1.bf16.msra.mxu0 %v1975
        %2929 = vmatprep.subr.bf16.mxu0 %v1972
        %2930 = vmatpush1.bf16.msra.mxu0 %v1971
        %2931 = vmatprep.subr.bf16.mxu0 %v1968
        %2932 = vmatpush1.bf16.msra.mxu0 %v1967
        %2933 = vmatprep.subr.bf16.mxu0 %v1964
        %2934 = vmatpush1.bf16.msra.mxu0 %v1963
        %2935 = vmatprep.subr.bf16.mxu0 %v1960
        %2936 = vmatpush1.bf16.msra.mxu0 %v1959
        %2937 = vmatprep.subr.bf16.mxu0 %v2020
        %2938 = vmatpush2.bf16.msra.mxu0 %v2019
        %2939 = vmatprep.subr.bf16.mxu0 %v2016
        %2940 = vmatpush2.bf16.msra.mxu0 %v2015
        %2941 = vmatprep.subr.bf16.mxu0 %v2012
        %2942 = vmatpush2.bf16.msra.mxu0 %v2011
        %2943 = vmatprep.subr.bf16.mxu0 %v2008
        %2944 = vmatpush2.bf16.msra.mxu0 %v2007
        %2945 = vmatprep.subr.bf16.mxu0 %v2004
        %2946 = vmatpush2.bf16.msra.mxu0 %v2003
        %2947 = vmatprep.subr.bf16.mxu0 %v2000
        %2948 = vmatpush2.bf16.msra.mxu0 %v1999
        %2949 = vmatprep.subr.bf16.mxu0 %v1996
        %2950 = vmatpush2.bf16.msra.mxu0 %v1995
        %2951 = vmatprep.subr.bf16.mxu0 %v1992
        %2952 = vmatpush2.bf16.msra.mxu0 %v1991
        %2953 = vmatprep.mubr.bf16.mxu0 %v1062
        %2954 = vmatmul.mubr.bf16.gmra.mxu0 %v1061
        %v2955 = vpop.f32.mrf.mxu0
        %v2956 = vadd.f32 0.0, %v2955
        %v2957 = vpop.f32.mrf.mxu0
        %v2958 = vadd.f32 0.0, %v2957
        %v2959 = vpop.f32.mrf.mxu0
        %v2960 = vadd.f32 0.0, %v2959
        %v2961 = vpop.f32.mrf.mxu0
        %v2962 = vadd.f32 0.0, %v2961
        %2963 = vmatprep.mubr.bf16.mxu0 %v1070
        %2964 = vmatmul.mubr.bf16.gmra.mxu0 %v1069
        %v2965 = vpop.f32.mrf.mxu0
        %v2966 = vadd.f32 0.0, %v2965
        %v2967 = vpop.f32.mrf.mxu0
        %v2968 = vadd.f32 0.0, %v2967
        %v2969 = vpop.f32.mrf.mxu0
        %v2970 = vadd.f32 0.0, %v2969
        %v2971 = vpop.f32.mrf.mxu0
        %v2972 = vadd.f32 0.0, %v2971
        %2973 = vmatprep.mubr.bf16.mxu0 %v1078
        %2974 = vmatmul.mubr.bf16.gmra.mxu0 %v1077
        %v2975 = vpop.f32.mrf.mxu0
        %v2976 = vadd.f32 0.0, %v2975
        %v2977 = vpop.f32.mrf.mxu0
        %v2978 = vadd.f32 0.0, %v2977
        %v2979 = vpop.f32.mrf.mxu0
        %v2980 = vadd.f32 0.0, %v2979
        %v2981 = vpop.f32.mrf.mxu0
        %v2982 = vadd.f32 0.0, %v2981
        %2983 = vmatprep.mubr.bf16.mxu0 %v1086
        %2984 = vmatmul.mubr.bf16.gmra.mxu0 %v1085
        %v2985 = vpop.f32.mrf.mxu0
        %v2986 = vadd.f32 0.0, %v2985
        %v2987 = vpop.f32.mrf.mxu0
        %v2988 = vadd.f32 0.0, %v2987
        %v2989 = vpop.f32.mrf.mxu0
        %v2990 = vadd.f32 0.0, %v2989
        %v2991 = vpop.f32.mrf.mxu0
        %v2992 = vadd.f32 0.0, %v2991
        %2993 = vmatprep.mubr.bf16.mxu0 %v1094
        %2994 = vmatmul.mubr.bf16.gmra.mxu0 %v1093
        %v2995 = vpop.f32.mrf.mxu0
        %v2996 = vadd.f32 0.0, %v2995
        %v2997 = vpop.f32.mrf.mxu0
        %v2998 = vadd.f32 0.0, %v2997
        %v2999 = vpop.f32.mrf.mxu0
        %v3000 = vadd.f32 0.0, %v2999
        %v3001 = vpop.f32.mrf.mxu0
        %v3002 = vadd.f32 0.0, %v3001
        %3003 = vmatprep.mubr.bf16.mxu0 %v1102
        %3004 = vmatmul.mubr.bf16.gmra.mxu0 %v1101
        %v3005 = vpop.f32.mrf.mxu0
        %v3006 = vadd.f32 0.0, %v3005
        %v3007 = vpop.f32.mrf.mxu0
        %v3008 = vadd.f32 0.0, %v3007
        %v3009 = vpop.f32.mrf.mxu0
        %v3010 = vadd.f32 0.0, %v3009
        %v3011 = vpop.f32.mrf.mxu0
        %v3012 = vadd.f32 0.0, %v3011
        %3013 = vmatprep.mubr.bf16.mxu0 %v1110
        %3014 = vmatmul.mubr.bf16.gmra.mxu0 %v1109
        %v3015 = vpop.f32.mrf.mxu0
        %v3016 = vadd.f32 0.0, %v3015
        %v3017 = vpop.f32.mrf.mxu0
        %v3018 = vadd.f32 0.0, %v3017
        %v3019 = vpop.f32.mrf.mxu0
        %v3020 = vadd.f32 0.0, %v3019
        %v3021 = vpop.f32.mrf.mxu0
        %v3022 = vadd.f32 0.0, %v3021
        %3023 = vmatprep.mubr.bf16.mxu0 %v1118
        %3024 = vmatmul.mubr.bf16.gmra.mxu0 %v1117
        %v3025 = vpop.f32.mrf.mxu0
        %v3026 = vadd.f32 0.0, %v3025
        %v3027 = vpop.f32.mrf.mxu0
        %v3028 = vadd.f32 0.0, %v3027
        %v3029 = vpop.f32.mrf.mxu0
        %v3030 = vadd.f32 0.0, %v3029
        %v3031 = vpop.f32.mrf.mxu0
        %v3032 = vadd.f32 0.0, %v3031
        %3033 = vdwg.mxu0
        %3034 = vmatprep.subr.bf16.mxu0 %v2052
        %3035 = vmatpush1.bf16.msra.mxu0 %v2051
        %3036 = vmatprep.subr.bf16.mxu0 %v2048
        %3037 = vmatpush1.bf16.msra.mxu0 %v2047
        %3038 = vmatprep.subr.bf16.mxu0 %v2044
        %3039 = vmatpush1.bf16.msra.mxu0 %v2043
        %3040 = vmatprep.subr.bf16.mxu0 %v2040
        %3041 = vmatpush1.bf16.msra.mxu0 %v2039
        %3042 = vmatprep.subr.bf16.mxu0 %v2036
        %3043 = vmatpush1.bf16.msra.mxu0 %v2035
        %3044 = vmatprep.subr.bf16.mxu0 %v2032
        %3045 = vmatpush1.bf16.msra.mxu0 %v2031
        %3046 = vmatprep.subr.bf16.mxu0 %v2028
        %3047 = vmatpush1.bf16.msra.mxu0 %v2027
        %3048 = vmatprep.subr.bf16.mxu0 %v2024
        %3049 = vmatpush1.bf16.msra.mxu0 %v2023
        %3050 = vmatprep.subr.bf16.mxu0 %v2084
        %3051 = vmatpush2.bf16.msra.mxu0 %v2083
        %3052 = vmatprep.subr.bf16.mxu0 %v2080
        %3053 = vmatpush2.bf16.msra.mxu0 %v2079
        %3054 = vmatprep.subr.bf16.mxu0 %v2076
        %3055 = vmatpush2.bf16.msra.mxu0 %v2075
        %3056 = vmatprep.subr.bf16.mxu0 %v2072
        %3057 = vmatpush2.bf16.msra.mxu0 %v2071
        %3058 = vmatprep.subr.bf16.mxu0 %v2068
        %3059 = vmatpush2.bf16.msra.mxu0 %v2067
        %3060 = vmatprep.subr.bf16.mxu0 %v2064
        %3061 = vmatpush2.bf16.msra.mxu0 %v2063
        %3062 = vmatprep.subr.bf16.mxu0 %v2060
        %3063 = vmatpush2.bf16.msra.mxu0 %v2059
        %3064 = vmatprep.subr.bf16.mxu0 %v2056
        %3065 = vmatpush2.bf16.msra.mxu0 %v2055
        %3066 = vmatprep.mubr.bf16.mxu0 %v1064
        %3067 = vmatmul.mubr.bf16.gmra.mxu0 %v1063
        %v3068 = vpop.f32.mrf.mxu0
        %v3069 = vadd.f32 %v2956, %v3068
        %v3070 = vpop.f32.mrf.mxu0
        %v3071 = vadd.f32 %v2958, %v3070
        %v3072 = vpop.f32.mrf.mxu0
        %v3073 = vadd.f32 %v2960, %v3072
        %v3074 = vpop.f32.mrf.mxu0
        %v3075 = vadd.f32 %v2962, %v3074
        %3076 = vmatprep.mubr.bf16.mxu0 %v1072
        %3077 = vmatmul.mubr.bf16.gmra.mxu0 %v1071
        %v3078 = vpop.f32.mrf.mxu0
        %v3079 = vadd.f32 %v2966, %v3078
        %v3080 = vpop.f32.mrf.mxu0
        %v3081 = vadd.f32 %v2968, %v3080
        %v3082 = vpop.f32.mrf.mxu0
        %v3083 = vadd.f32 %v2970, %v3082
        %v3084 = vpop.f32.mrf.mxu0
        %v3085 = vadd.f32 %v2972, %v3084
        %3086 = vmatprep.mubr.bf16.mxu0 %v1080
        %3087 = vmatmul.mubr.bf16.gmra.mxu0 %v1079
        %v3088 = vpop.f32.mrf.mxu0
        %v3089 = vadd.f32 %v2976, %v3088
        %v3090 = vpop.f32.mrf.mxu0
        %v3091 = vadd.f32 %v2978, %v3090
        %v3092 = vpop.f32.mrf.mxu0
        %v3093 = vadd.f32 %v2980, %v3092
        %v3094 = vpop.f32.mrf.mxu0
        %v3095 = vadd.f32 %v2982, %v3094
        %3096 = vmatprep.mubr.bf16.mxu0 %v1088
        %3097 = vmatmul.mubr.bf16.gmra.mxu0 %v1087
        %v3098 = vpop.f32.mrf.mxu0
        %v3099 = vadd.f32 %v2986, %v3098
        %v3100 = vpop.f32.mrf.mxu0
        %v3101 = vadd.f32 %v2988, %v3100
        %v3102 = vpop.f32.mrf.mxu0
        %v3103 = vadd.f32 %v2990, %v3102
        %v3104 = vpop.f32.mrf.mxu0
        %v3105 = vadd.f32 %v2992, %v3104
        %3106 = vmatprep.mubr.bf16.mxu0 %v1096
        %3107 = vmatmul.mubr.bf16.gmra.mxu0 %v1095
        %v3108 = vpop.f32.mrf.mxu0
        %v3109 = vadd.f32 %v2996, %v3108
        %v3110 = vpop.f32.mrf.mxu0
        %v3111 = vadd.f32 %v2998, %v3110
        %v3112 = vpop.f32.mrf.mxu0
        %v3113 = vadd.f32 %v3000, %v3112
        %v3114 = vpop.f32.mrf.mxu0
        %v3115 = vadd.f32 %v3002, %v3114
        %3116 = vmatprep.mubr.bf16.mxu0 %v1104
        %3117 = vmatmul.mubr.bf16.gmra.mxu0 %v1103
        %v3118 = vpop.f32.mrf.mxu0
        %v3119 = vadd.f32 %v3006, %v3118
        %v3120 = vpop.f32.mrf.mxu0
        %v3121 = vadd.f32 %v3008, %v3120
        %v3122 = vpop.f32.mrf.mxu0
        %v3123 = vadd.f32 %v3010, %v3122
        %v3124 = vpop.f32.mrf.mxu0
        %v3125 = vadd.f32 %v3012, %v3124
        %3126 = vmatprep.mubr.bf16.mxu0 %v1112
        %3127 = vmatmul.mubr.bf16.gmra.mxu0 %v1111
        %v3128 = vpop.f32.mrf.mxu0
        %v3129 = vadd.f32 %v3016, %v3128
        %v3130 = vpop.f32.mrf.mxu0
        %v3131 = vadd.f32 %v3018, %v3130
        %v3132 = vpop.f32.mrf.mxu0
        %v3133 = vadd.f32 %v3020, %v3132
        %v3134 = vpop.f32.mrf.mxu0
        %v3135 = vadd.f32 %v3022, %v3134
        %3136 = vmatprep.mubr.bf16.mxu0 %v1120
        %3137 = vmatmul.mubr.bf16.gmra.mxu0 %v1119
        %v3138 = vpop.f32.mrf.mxu0
        %v3139 = vadd.f32 %v3026, %v3138
        %v3140 = vpop.f32.mrf.mxu0
        %v3141 = vadd.f32 %v3028, %v3140
        %v3142 = vpop.f32.mrf.mxu0
        %v3143 = vadd.f32 %v3030, %v3142
        %v3144 = vpop.f32.mrf.mxu0
        %v3145 = vadd.f32 %v3032, %v3144
        %3146 = vdwg.mxu0
        %3147 = vmatprep.subr.bf16.mxu0 %v2116
        %3148 = vmatpush1.bf16.msra.mxu0 %v2115
        %3149 = vmatprep.subr.bf16.mxu0 %v2112
        %3150 = vmatpush1.bf16.msra.mxu0 %v2111
        %3151 = vmatprep.subr.bf16.mxu0 %v2108
        %3152 = vmatpush1.bf16.msra.mxu0 %v2107
        %3153 = vmatprep.subr.bf16.mxu0 %v2104
        %3154 = vmatpush1.bf16.msra.mxu0 %v2103
        %3155 = vmatprep.subr.bf16.mxu0 %v2100
        %3156 = vmatpush1.bf16.msra.mxu0 %v2099
        %3157 = vmatprep.subr.bf16.mxu0 %v2096
        %3158 = vmatpush1.bf16.msra.mxu0 %v2095
        %3159 = vmatprep.subr.bf16.mxu0 %v2092
        %3160 = vmatpush1.bf16.msra.mxu0 %v2091
        %3161 = vmatprep.subr.bf16.mxu0 %v2088
        %3162 = vmatpush1.bf16.msra.mxu0 %v2087
        %3163 = vmatprep.subr.bf16.mxu0 %v2148
        %3164 = vmatpush2.bf16.msra.mxu0 %v2147
        %3165 = vmatprep.subr.bf16.mxu0 %v2144
        %3166 = vmatpush2.bf16.msra.mxu0 %v2143
        %3167 = vmatprep.subr.bf16.mxu0 %v2140
        %3168 = vmatpush2.bf16.msra.mxu0 %v2139
        %3169 = vmatprep.subr.bf16.mxu0 %v2136
        %3170 = vmatpush2.bf16.msra.mxu0 %v2135
        %3171 = vmatprep.subr.bf16.mxu0 %v2132
        %3172 = vmatpush2.bf16.msra.mxu0 %v2131
        %3173 = vmatprep.subr.bf16.mxu0 %v2128
        %3174 = vmatpush2.bf16.msra.mxu0 %v2127
        %3175 = vmatprep.subr.bf16.mxu0 %v2124
        %3176 = vmatpush2.bf16.msra.mxu0 %v2123
        %3177 = vmatprep.subr.bf16.mxu0 %v2120
        %3178 = vmatpush2.bf16.msra.mxu0 %v2119
        %3179 = vmatprep.mubr.bf16.mxu0 %v1066
        %3180 = vmatmul.mubr.bf16.gmra.mxu0 %v1065
        %v3181 = vpop.f32.mrf.mxu0
        %v3182 = vadd.f32 %v3069, %v3181
        %v3183 = vpop.f32.mrf.mxu0
        %v3184 = vadd.f32 %v3071, %v3183
        %v3185 = vpop.f32.mrf.mxu0
        %v3186 = vadd.f32 %v3073, %v3185
        %v3187 = vpop.f32.mrf.mxu0
        %v3188 = vadd.f32 %v3075, %v3187
        %3189 = vmatprep.mubr.bf16.mxu0 %v1074
        %3190 = vmatmul.mubr.bf16.gmra.mxu0 %v1073
        %v3191 = vpop.f32.mrf.mxu0
        %v3192 = vadd.f32 %v3079, %v3191
        %v3193 = vpop.f32.mrf.mxu0
        %v3194 = vadd.f32 %v3081, %v3193
        %v3195 = vpop.f32.mrf.mxu0
        %v3196 = vadd.f32 %v3083, %v3195
        %v3197 = vpop.f32.mrf.mxu0
        %v3198 = vadd.f32 %v3085, %v3197
        %3199 = vmatprep.mubr.bf16.mxu0 %v1082
        %3200 = vmatmul.mubr.bf16.gmra.mxu0 %v1081
        %v3201 = vpop.f32.mrf.mxu0
        %v3202 = vadd.f32 %v3089, %v3201
        %v3203 = vpop.f32.mrf.mxu0
        %v3204 = vadd.f32 %v3091, %v3203
        %v3205 = vpop.f32.mrf.mxu0
        %v3206 = vadd.f32 %v3093, %v3205
        %v3207 = vpop.f32.mrf.mxu0
        %v3208 = vadd.f32 %v3095, %v3207
        %3209 = vmatprep.mubr.bf16.mxu0 %v1090
        %3210 = vmatmul.mubr.bf16.gmra.mxu0 %v1089
        %v3211 = vpop.f32.mrf.mxu0
        %v3212 = vadd.f32 %v3099, %v3211
        %v3213 = vpop.f32.mrf.mxu0
        %v3214 = vadd.f32 %v3101, %v3213
        %v3215 = vpop.f32.mrf.mxu0
        %v3216 = vadd.f32 %v3103, %v3215
        %v3217 = vpop.f32.mrf.mxu0
        %v3218 = vadd.f32 %v3105, %v3217
        %3219 = vmatprep.mubr.bf16.mxu0 %v1098
        %3220 = vmatmul.mubr.bf16.gmra.mxu0 %v1097
        %v3221 = vpop.f32.mrf.mxu0
        %v3222 = vadd.f32 %v3109, %v3221
        %v3223 = vpop.f32.mrf.mxu0
        %v3224 = vadd.f32 %v3111, %v3223
        %v3225 = vpop.f32.mrf.mxu0
        %v3226 = vadd.f32 %v3113, %v3225
        %v3227 = vpop.f32.mrf.mxu0
        %v3228 = vadd.f32 %v3115, %v3227
        %3229 = vmatprep.mubr.bf16.mxu0 %v1106
        %3230 = vmatmul.mubr.bf16.gmra.mxu0 %v1105
        %v3231 = vpop.f32.mrf.mxu0
        %v3232 = vadd.f32 %v3119, %v3231
        %v3233 = vpop.f32.mrf.mxu0
        %v3234 = vadd.f32 %v3121, %v3233
        %v3235 = vpop.f32.mrf.mxu0
        %v3236 = vadd.f32 %v3123, %v3235
        %v3237 = vpop.f32.mrf.mxu0
        %v3238 = vadd.f32 %v3125, %v3237
        %3239 = vmatprep.mubr.bf16.mxu0 %v1114
        %3240 = vmatmul.mubr.bf16.gmra.mxu0 %v1113
        %v3241 = vpop.f32.mrf.mxu0
        %v3242 = vadd.f32 %v3129, %v3241
        %v3243 = vpop.f32.mrf.mxu0
        %v3244 = vadd.f32 %v3131, %v3243
        %v3245 = vpop.f32.mrf.mxu0
        %v3246 = vadd.f32 %v3133, %v3245
        %v3247 = vpop.f32.mrf.mxu0
        %v3248 = vadd.f32 %v3135, %v3247
        %3249 = vmatprep.mubr.bf16.mxu0 %v1122
        %3250 = vmatmul.mubr.bf16.gmra.mxu0 %v1121
        %v3251 = vpop.f32.mrf.mxu0
        %v3252 = vadd.f32 %v3139, %v3251
        %v3253 = vpop.f32.mrf.mxu0
        %v3254 = vadd.f32 %v3141, %v3253
        %v3255 = vpop.f32.mrf.mxu0
        %v3256 = vadd.f32 %v3143, %v3255
        %v3257 = vpop.f32.mrf.mxu0
        %v3258 = vadd.f32 %v3145, %v3257
        %3259 = vdwg.mxu0
        %3260 = vmatprep.subr.bf16.mxu0 %v2180
        %3261 = vmatpush1.bf16.msra.mxu0 %v2179
        %3262 = vmatprep.subr.bf16.mxu0 %v2176
        %3263 = vmatpush1.bf16.msra.mxu0 %v2175
        %3264 = vmatprep.subr.bf16.mxu0 %v2172
        %3265 = vmatpush1.bf16.msra.mxu0 %v2171
        %3266 = vmatprep.subr.bf16.mxu0 %v2168
        %3267 = vmatpush1.bf16.msra.mxu0 %v2167
        %3268 = vmatprep.subr.bf16.mxu0 %v2164
        %3269 = vmatpush1.bf16.msra.mxu0 %v2163
        %3270 = vmatprep.subr.bf16.mxu0 %v2160
        %3271 = vmatpush1.bf16.msra.mxu0 %v2159
        %3272 = vmatprep.subr.bf16.mxu0 %v2156
        %3273 = vmatpush1.bf16.msra.mxu0 %v2155
        %3274 = vmatprep.subr.bf16.mxu0 %v2152
        %3275 = vmatpush1.bf16.msra.mxu0 %v2151
        %3276 = vmatprep.subr.bf16.mxu0 %v2212
        %3277 = vmatpush2.bf16.msra.mxu0 %v2211
        %3278 = vmatprep.subr.bf16.mxu0 %v2208
        %3279 = vmatpush2.bf16.msra.mxu0 %v2207
        %3280 = vmatprep.subr.bf16.mxu0 %v2204
        %3281 = vmatpush2.bf16.msra.mxu0 %v2203
        %3282 = vmatprep.subr.bf16.mxu0 %v2200
        %3283 = vmatpush2.bf16.msra.mxu0 %v2199
        %3284 = vmatprep.subr.bf16.mxu0 %v2196
        %3285 = vmatpush2.bf16.msra.mxu0 %v2195
        %3286 = vmatprep.subr.bf16.mxu0 %v2192
        %3287 = vmatpush2.bf16.msra.mxu0 %v2191
        %3288 = vmatprep.subr.bf16.mxu0 %v2188
        %3289 = vmatpush2.bf16.msra.mxu0 %v2187
        %3290 = vmatprep.subr.bf16.mxu0 %v2184
        %3291 = vmatpush2.bf16.msra.mxu0 %v2183
        %3292 = vmatprep.mubr.bf16.mxu0 %v1068
        %3293 = vmatmul.mubr.bf16.gmra.mxu0 %v1067
        %v3294 = vpop.f32.mrf.mxu0
        %v3295 = vadd.f32 %v3182, %v3294
        %v3296 = vpop.f32.mrf.mxu0
        %v3297 = vadd.f32 %v3184, %v3296
        %v3298 = vpop.f32.mrf.mxu0
        %v3299 = vadd.f32 %v3186, %v3298
        %v3300 = vpop.f32.mrf.mxu0
        %v3301 = vadd.f32 %v3188, %v3300
        %3302 = vmatprep.mubr.bf16.mxu0 %v1076
        %3303 = vmatmul.mubr.bf16.gmra.mxu0 %v1075
        %v3304 = vpop.f32.mrf.mxu0
        %v3305 = vadd.f32 %v3192, %v3304
        %v3306 = vpop.f32.mrf.mxu0
        %v3307 = vadd.f32 %v3194, %v3306
        %v3308 = vpop.f32.mrf.mxu0
        %v3309 = vadd.f32 %v3196, %v3308
        %v3310 = vpop.f32.mrf.mxu0
        %v3311 = vadd.f32 %v3198, %v3310
        %3312 = vmatprep.mubr.bf16.mxu0 %v1084
        %3313 = vmatmul.mubr.bf16.gmra.mxu0 %v1083
        %v3314 = vpop.f32.mrf.mxu0
        %v3315 = vadd.f32 %v3202, %v3314
        %v3316 = vpop.f32.mrf.mxu0
        %v3317 = vadd.f32 %v3204, %v3316
        %v3318 = vpop.f32.mrf.mxu0
        %v3319 = vadd.f32 %v3206, %v3318
        %v3320 = vpop.f32.mrf.mxu0
        %v3321 = vadd.f32 %v3208, %v3320
        %3322 = vmatprep.mubr.bf16.mxu0 %v1092
        %3323 = vmatmul.mubr.bf16.gmra.mxu0 %v1091
        %v3324 = vpop.f32.mrf.mxu0
        %v3325 = vadd.f32 %v3212, %v3324
        %v3326 = vpop.f32.mrf.mxu0
        %v3327 = vadd.f32 %v3214, %v3326
        %v3328 = vpop.f32.mrf.mxu0
        %v3329 = vadd.f32 %v3216, %v3328
        %v3330 = vpop.f32.mrf.mxu0
        %v3331 = vadd.f32 %v3218, %v3330
        %3332 = vmatprep.mubr.bf16.mxu0 %v1100
        %3333 = vmatmul.mubr.bf16.gmra.mxu0 %v1099
        %v3334 = vpop.f32.mrf.mxu0
        %v3335 = vadd.f32 %v3222, %v3334
        %v3336 = vpop.f32.mrf.mxu0
        %v3337 = vadd.f32 %v3224, %v3336
        %v3338 = vpop.f32.mrf.mxu0
        %v3339 = vadd.f32 %v3226, %v3338
        %v3340 = vpop.f32.mrf.mxu0
        %v3341 = vadd.f32 %v3228, %v3340
        %3342 = vmatprep.mubr.bf16.mxu0 %v1108
        %3343 = vmatmul.mubr.bf16.gmra.mxu0 %v1107
        %v3344 = vpop.f32.mrf.mxu0
        %v3345 = vadd.f32 %v3232, %v3344
        %v3346 = vpop.f32.mrf.mxu0
        %v3347 = vadd.f32 %v3234, %v3346
        %v3348 = vpop.f32.mrf.mxu0
        %v3349 = vadd.f32 %v3236, %v3348
        %v3350 = vpop.f32.mrf.mxu0
        %v3351 = vadd.f32 %v3238, %v3350
        %3352 = vmatprep.mubr.bf16.mxu0 %v1116
        %3353 = vmatmul.mubr.bf16.gmra.mxu0 %v1115
        %v3354 = vpop.f32.mrf.mxu0
        %v3355 = vadd.f32 %v3242, %v3354
        %v3356 = vpop.f32.mrf.mxu0
        %v3357 = vadd.f32 %v3244, %v3356
        %v3358 = vpop.f32.mrf.mxu0
        %v3359 = vadd.f32 %v3246, %v3358
        %v3360 = vpop.f32.mrf.mxu0
        %v3361 = vadd.f32 %v3248, %v3360
        %3362 = vmatprep.mubr.bf16.mxu0 %v1124
        %3363 = vmatmul.mubr.bf16.gmra.mxu0 %v1123
        %v3364 = vpop.f32.mrf.mxu0
        %v3365 = vadd.f32 %v3252, %v3364
        %v3366 = vpop.f32.mrf.mxu0
        %v3367 = vadd.f32 %v3254, %v3366
        %v3368 = vpop.f32.mrf.mxu0
        %v3369 = vadd.f32 %v3256, %v3368
        %v3370 = vpop.f32.mrf.mxu0
        %v3371 = vadd.f32 %v3258, %v3370
        %3372 = vdwg.mxu0
        %v3373 = vadd.f32 %v485, %v2843
        %v3374 = vadd.f32 %v486, %v2845
        %v3375 = vadd.f32 %v487, %v3295
        %v3376 = vadd.f32 %v488, %v3297
        %v3377 = vadd.f32 %v489, %v2847
        %v3378 = vadd.f32 %v490, %v2849
        %v3379 = vadd.f32 %v491, %v3299
        %v3380 = vadd.f32 %v492, %v3301
        %v3381 = vadd.f32 %v493, %v2853
        %v3382 = vadd.f32 %v494, %v2855
        %v3383 = vadd.f32 %v495, %v3305
        %v3384 = vadd.f32 %v496, %v3307
        %v3385 = vadd.f32 %v497, %v2857
        %v3386 = vadd.f32 %v498, %v2859
        %v3387 = vadd.f32 %v499, %v3309
        %v3388 = vadd.f32 %v500, %v3311
        %v3389 = vadd.f32 %v501, %v2863
        %v3390 = vadd.f32 %v502, %v2865
        %v3391 = vadd.f32 %v503, %v3315
        %v3392 = vadd.f32 %v504, %v3317
        %v3393 = vadd.f32 %v505, %v2867
        %v3394 = vadd.f32 %v506, %v2869
        %v3395 = vadd.f32 %v507, %v3319
        %v3396 = vadd.f32 %v508, %v3321
        %v3397 = vadd.f32 %v509, %v2873
        %v3398 = vadd.f32 %v510, %v2875
        %v3399 = vadd.f32 %v511, %v3325
        %v3400 = vadd.f32 %v512, %v3327
        %v3401 = vadd.f32 %v513, %v2877
        %v3402 = vadd.f32 %v514, %v2879
        %v3403 = vadd.f32 %v515, %v3329
        %v3404 = vadd.f32 %v516, %v3331
        %v3405 = vadd.f32 %v517, %v2883
        %v3406 = vadd.f32 %v518, %v2885
        %v3407 = vadd.f32 %v519, %v3335
        %v3408 = vadd.f32 %v520, %v3337
        %v3409 = vadd.f32 %v521, %v2887
        %v3410 = vadd.f32 %v522, %v2889
        %v3411 = vadd.f32 %v523, %v3339
        %v3412 = vadd.f32 %v524, %v3341
        %v3413 = vadd.f32 %v525, %v2893
        %v3414 = vadd.f32 %v526, %v2895
        %v3415 = vadd.f32 %v527, %v3345
        %v3416 = vadd.f32 %v528, %v3347
        %v3417 = vadd.f32 %v529, %v2897
        %v3418 = vadd.f32 %v530, %v2899
        %v3419 = vadd.f32 %v531, %v3349
        %v3420 = vadd.f32 %v532, %v3351
        %v3421 = vadd.f32 %v533, %v2903
        %v3422 = vadd.f32 %v534, %v2905
        %v3423 = vadd.f32 %v535, %v3355
        %v3424 = vadd.f32 %v536, %v3357
        %v3425 = vadd.f32 %v537, %v2907
        %v3426 = vadd.f32 %v538, %v2909
        %v3427 = vadd.f32 %v539, %v3359
        %v3428 = vadd.f32 %v540, %v3361
        %v3429 = vadd.f32 %v541, %v2913
        %v3430 = vadd.f32 %v542, %v2915
        %v3431 = vadd.f32 %v543, %v3365
        %v3432 = vadd.f32 %v544, %v3367
        %v3433 = vadd.f32 %v545, %v2917
        %v3434 = vadd.f32 %v546, %v2919
        %v3435 = vadd.f32 %v547, %v3369
        %v3436 = vadd.f32 %v548, %v3371
        %3437 = vst [vmem:[#allocation2] sm:$0xff] %v3373
        %3438 = vst [vmem:[#allocation2 + $0x8] sm:$0xff] %v3374
        %3439 = vst [vmem:[#allocation2 + $0x10] sm:$0xff] %v3375
        %3440 = vst [vmem:[#allocation2 + $0x18] sm:$0xff] %v3376
        %3441 = vst [vmem:[#allocation2 + $0x20] sm:$0xff] %v3377
        %3442 = vst [vmem:[#allocation2 + $0x28] sm:$0xff] %v3378
        %3443 = vst [vmem:[#allocation2 + $0x30] sm:$0xff] %v3379
        %3444 = vst [vmem:[#allocation2 + $0x38] sm:$0xff] %v3380
        %3445 = vst [vmem:[#allocation2 + $0x40] sm:$0xff] %v3381
        %3446 = vst [vmem:[#allocation2 + $0x48] sm:$0xff] %v3382
        %3447 = vst [vmem:[#allocation2 + $0x50] sm:$0xff] %v3383
        %3448 = vst [vmem:[#allocation2 + $0x58] sm:$0xff] %v3384
        %3449 = vst [vmem:[#allocation2 + $0x60] sm:$0xff] %v3385
        %3450 = vst [vmem:[#allocation2 + $0x68] sm:$0xff] %v3386
        %3451 = vst [vmem:[#allocation2 + $0x70] sm:$0xff] %v3387
        %3452 = vst [vmem:[#allocation2 + $0x78] sm:$0xff] %v3388
        %3453 = vst [vmem:[#allocation2 + $0x80] sm:$0xff] %v3389
        %3454 = vst [vmem:[#allocation2 + $0x88] sm:$0xff] %v3390
        %3455 = vst [vmem:[#allocation2 + $0x90] sm:$0xff] %v3391
        %3456 = vst [vmem:[#allocation2 + $0x98] sm:$0xff] %v3392
        %3457 = vst [vmem:[#allocation2 + $0xa0] sm:$0xff] %v3393
        %3458 = vst [vmem:[#allocation2 + $0xa8] sm:$0xff] %v3394
        %3459 = vst [vmem:[#allocation2 + $0xb0] sm:$0xff] %v3395
        %3460 = vst [vmem:[#allocation2 + $0xb8] sm:$0xff] %v3396
        %3461 = vst [vmem:[#allocation2 + $0xc0] sm:$0xff] %v3397
        %3462 = vst [vmem:[#allocation2 + $0xc8] sm:$0xff] %v3398
        %3463 = vst [vmem:[#allocation2 + $0xd0] sm:$0xff] %v3399
        %3464 = vst [vmem:[#allocation2 + $0xd8] sm:$0xff] %v3400
        %3465 = vst [vmem:[#allocation2 + $0xe0] sm:$0xff] %v3401
        %3466 = vst [vmem:[#allocation2 + $0xe8] sm:$0xff] %v3402
        %3467 = vst [vmem:[#allocation2 + $0xf0] sm:$0xff] %v3403
        %3468 = vst [vmem:[#allocation2 + $0xf8] sm:$0xff] %v3404
        %3469 = vst [vmem:[#allocation2 + $0x100] sm:$0xff] %v3405
        %3470 = vst [vmem:[#allocation2 + $0x108] sm:$0xff] %v3406
        %3471 = vst [vmem:[#allocation2 + $0x110] sm:$0xff] %v3407
        %3472 = vst [vmem:[#allocation2 + $0x118] sm:$0xff] %v3408
        %3473 = vst [vmem:[#allocation2 + $0x120] sm:$0xff] %v3409
        %3474 = vst [vmem:[#allocation2 + $0x128] sm:$0xff] %v3410
        %3475 = vst [vmem:[#allocation2 + $0x130] sm:$0xff] %v3411
        %3476 = vst [vmem:[#allocation2 + $0x138] sm:$0xff] %v3412
        %3477 = vst [vmem:[#allocation2 + $0x140] sm:$0xff] %v3413
        %3478 = vst [vmem:[#allocation2 + $0x148] sm:$0xff] %v3414
        %3479 = vst [vmem:[#allocation2 + $0x150] sm:$0xff] %v3415
        %3480 = vst [vmem:[#allocation2 + $0x158] sm:$0xff] %v3416
        %3481 = vst [vmem:[#allocation2 + $0x160] sm:$0xff] %v3417
        %3482 = vst [vmem:[#allocation2 + $0x168] sm:$0xff] %v3418
        %3483 = vst [vmem:[#allocation2 + $0x170] sm:$0xff] %v3419
        %3484 = vst [vmem:[#allocation2 + $0x178] sm:$0xff] %v3420
        %3485 = vst [vmem:[#allocation2 + $0x180] sm:$0xff] %v3421
        %3486 = vst [vmem:[#allocation2 + $0x188] sm:$0xff] %v3422
        %3487 = vst [vmem:[#allocation2 + $0x190] sm:$0xff] %v3423
        %3488 = vst [vmem:[#allocation2 + $0x198] sm:$0xff] %v3424
        %3489 = vst [vmem:[#allocation2 + $0x1a0] sm:$0xff] %v3425
        %3490 = vst [vmem:[#allocation2 + $0x1a8] sm:$0xff] %v3426
        %3491 = vst [vmem:[#allocation2 + $0x1b0] sm:$0xff] %v3427
        %3492 = vst [vmem:[#allocation2 + $0x1b8] sm:$0xff] %v3428
        %3493 = vst [vmem:[#allocation2 + $0x1c0] sm:$0xff] %v3429
        %3494 = vst [vmem:[#allocation2 + $0x1c8] sm:$0xff] %v3430
        %3495 = vst [vmem:[#allocation2 + $0x1d0] sm:$0xff] %v3431
        %3496 = vst [vmem:[#allocation2 + $0x1d8] sm:$0xff] %v3432
        %3497 = vst [vmem:[#allocation2 + $0x1e0] sm:$0xff] %v3433
        %3498 = vst [vmem:[#allocation2 + $0x1e8] sm:$0xff] %v3434
        %3499 = vst [vmem:[#allocation2 + $0x1f0] sm:$0xff] %v3435
        %3500 = vst [vmem:[#allocation2 + $0x1f8] sm:$0xff] %v3436
        %p3501 = scmp.eq.s32.totalorder %s21, 8
        // Predicated region
        $region60: #{attention_forward.5} parent=50 // pred_check
          %p3502 = pneg %p3501
        $region61: #{attention_forward.5} parent=50 // pred_check_branch
          %3504 = sbr.rel (%p3502) target = $region63
        $region62: #{attention_forward.5} parent=50 // pred_region
          %v3505 = vld [vmem:[#allocation2] sm:$0xff]
          %v3506 = vld [vmem:[#allocation2 + $0x8] sm:$0xff]
          %v3507 = vld [vmem:[#allocation2 + $0x10] sm:$0xff]
          %v3508 = vld [vmem:[#allocation2 + $0x18] sm:$0xff]
          %v3509 = vld [vmem:[#allocation2 + $0x20] sm:$0xff]
          %v3510 = vld [vmem:[#allocation2 + $0x28] sm:$0xff]
          %v3511 = vld [vmem:[#allocation2 + $0x30] sm:$0xff]
          %v3512 = vld [vmem:[#allocation2 + $0x38] sm:$0xff]
          %v3513 = vld [vmem:[#allocation2 + $0x40] sm:$0xff]
          %v3514 = vld [vmem:[#allocation2 + $0x48] sm:$0xff]
          %v3515 = vld [vmem:[#allocation2 + $0x50] sm:$0xff]
          %v3516 = vld [vmem:[#allocation2 + $0x58] sm:$0xff]
          %v3517 = vld [vmem:[#allocation2 + $0x60] sm:$0xff]
          %v3518 = vld [vmem:[#allocation2 + $0x68] sm:$0xff]
          %v3519 = vld [vmem:[#allocation2 + $0x70] sm:$0xff]
          %v3520 = vld [vmem:[#allocation2 + $0x78] sm:$0xff]
          %v3521 = vld [vmem:[#allocation2 + $0x80] sm:$0xff]
          %v3522 = vld [vmem:[#allocation2 + $0x88] sm:$0xff]
          %v3523 = vld [vmem:[#allocation2 + $0x90] sm:$0xff]
          %v3524 = vld [vmem:[#allocation2 + $0x98] sm:$0xff]
          %v3525 = vld [vmem:[#allocation2 + $0xa0] sm:$0xff]
          %v3526 = vld [vmem:[#allocation2 + $0xa8] sm:$0xff]
          %v3527 = vld [vmem:[#allocation2 + $0xb0] sm:$0xff]
          %v3528 = vld [vmem:[#allocation2 + $0xb8] sm:$0xff]
          %v3529 = vld [vmem:[#allocation2 + $0xc0] sm:$0xff]
          %v3530 = vld [vmem:[#allocation2 + $0xc8] sm:$0xff]
          %v3531 = vld [vmem:[#allocation2 + $0xd0] sm:$0xff]
          %v3532 = vld [vmem:[#allocation2 + $0xd8] sm:$0xff]
          %v3533 = vld [vmem:[#allocation2 + $0xe0] sm:$0xff]
          %v3534 = vld [vmem:[#allocation2 + $0xe8] sm:$0xff]
          %v3535 = vld [vmem:[#allocation2 + $0xf0] sm:$0xff]
          %v3536 = vld [vmem:[#allocation2 + $0xf8] sm:$0xff]
          %v3537 = vld [vmem:[#allocation2 + $0x100] sm:$0xff]
          %v3538 = vld [vmem:[#allocation2 + $0x108] sm:$0xff]
          %v3539 = vld [vmem:[#allocation2 + $0x110] sm:$0xff]
          %v3540 = vld [vmem:[#allocation2 + $0x118] sm:$0xff]
          %v3541 = vld [vmem:[#allocation2 + $0x120] sm:$0xff]
          %v3542 = vld [vmem:[#allocation2 + $0x128] sm:$0xff]
          %v3543 = vld [vmem:[#allocation2 + $0x130] sm:$0xff]
          %v3544 = vld [vmem:[#allocation2 + $0x138] sm:$0xff]
          %v3545 = vld [vmem:[#allocation2 + $0x140] sm:$0xff]
          %v3546 = vld [vmem:[#allocation2 + $0x148] sm:$0xff]
          %v3547 = vld [vmem:[#allocation2 + $0x150] sm:$0xff]
          %v3548 = vld [vmem:[#allocation2 + $0x158] sm:$0xff]
          %v3549 = vld [vmem:[#allocation2 + $0x160] sm:$0xff]
          %v3550 = vld [vmem:[#allocation2 + $0x168] sm:$0xff]
          %v3551 = vld [vmem:[#allocation2 + $0x170] sm:$0xff]
          %v3552 = vld [vmem:[#allocation2 + $0x178] sm:$0xff]
          %v3553 = vld [vmem:[#allocation2 + $0x180] sm:$0xff]
          %v3554 = vld [vmem:[#allocation2 + $0x188] sm:$0xff]
          %v3555 = vld [vmem:[#allocation2 + $0x190] sm:$0xff]
          %v3556 = vld [vmem:[#allocation2 + $0x198] sm:$0xff]
          %v3557 = vld [vmem:[#allocation2 + $0x1a0] sm:$0xff]
          %v3558 = vld [vmem:[#allocation2 + $0x1a8] sm:$0xff]
          %v3559 = vld [vmem:[#allocation2 + $0x1b0] sm:$0xff]
          %v3560 = vld [vmem:[#allocation2 + $0x1b8] sm:$0xff]
          %v3561 = vld [vmem:[#allocation2 + $0x1c0] sm:$0xff]
          %v3562 = vld [vmem:[#allocation2 + $0x1c8] sm:$0xff]
          %v3563 = vld [vmem:[#allocation2 + $0x1d0] sm:$0xff]
          %v3564 = vld [vmem:[#allocation2 + $0x1d8] sm:$0xff]
          %v3565 = vld [vmem:[#allocation2 + $0x1e0] sm:$0xff]
          %v3566 = vld [vmem:[#allocation2 + $0x1e8] sm:$0xff]
          %v3567 = vld [vmem:[#allocation2 + $0x1f0] sm:$0xff]
          %v3568 = vld [vmem:[#allocation2 + $0x1f8] sm:$0xff]
          %v3569 = vld [vmem:[%s403] sm:$0xf]
          %v3571 = vlaneseq
          %v3572 = vshrl.u32 %v3571, 7
          %v3573 = vsub.s32 0, %v3572
          %v3574 = vrot.slane %v3569, %v3573
          %v3575 = vlaneseq
          %v3576 = vshrl.u32 %v3575, 7
          %v3577 = vsub.s32 1, %v3576
          %v3578 = vrot.slane %v3569, %v3577
          %v3579 = vlaneseq
          %v3580 = vshrl.u32 %v3579, 7
          %v3581 = vsub.s32 2, %v3580
          %v3582 = vrot.slane %v3569, %v3581
          %v3583 = vlaneseq
          %v3584 = vshrl.u32 %v3583, 7
          %v3585 = vsub.s32 3, %v3584
          %v3586 = vrot.slane %v3569, %v3585
          %v3591 = vadd.f32 %v3505, %v3574
          %v3592 = vadd.f32 %v3506, %v3578
          %v3593 = vadd.f32 %v3507, %v3582
          %v3594 = vadd.f32 %v3508, %v3586
          %v3595 = vadd.f32 %v3509, %v3574
          %v3596 = vadd.f32 %v3510, %v3578
          %v3597 = vadd.f32 %v3511, %v3582
          %v3598 = vadd.f32 %v3512, %v3586
          %v3599 = vadd.f32 %v3513, %v3574
          %v3600 = vadd.f32 %v3514, %v3578
          %v3601 = vadd.f32 %v3515, %v3582
          %v3602 = vadd.f32 %v3516, %v3586
          %v3603 = vadd.f32 %v3517, %v3574
          %v3604 = vadd.f32 %v3518, %v3578
          %v3605 = vadd.f32 %v3519, %v3582
          %v3606 = vadd.f32 %v3520, %v3586
          %v3607 = vadd.f32 %v3521, %v3574
          %v3608 = vadd.f32 %v3522, %v3578
          %v3609 = vadd.f32 %v3523, %v3582
          %v3610 = vadd.f32 %v3524, %v3586
          %v3611 = vadd.f32 %v3525, %v3574
          %v3612 = vadd.f32 %v3526, %v3578
          %v3613 = vadd.f32 %v3527, %v3582
          %v3614 = vadd.f32 %v3528, %v3586
          %v3615 = vadd.f32 %v3529, %v3574
          %v3616 = vadd.f32 %v3530, %v3578
          %v3617 = vadd.f32 %v3531, %v3582
          %v3618 = vadd.f32 %v3532, %v3586
          %v3619 = vadd.f32 %v3533, %v3574
          %v3620 = vadd.f32 %v3534, %v3578
          %v3621 = vadd.f32 %v3535, %v3582
          %v3622 = vadd.f32 %v3536, %v3586
          %v3623 = vadd.f32 %v3537, %v3574
          %v3624 = vadd.f32 %v3538, %v3578
          %v3625 = vadd.f32 %v3539, %v3582
          %v3626 = vadd.f32 %v3540, %v3586
          %v3627 = vadd.f32 %v3541, %v3574
          %v3628 = vadd.f32 %v3542, %v3578
          %v3629 = vadd.f32 %v3543, %v3582
          %v3630 = vadd.f32 %v3544, %v3586
          %v3631 = vadd.f32 %v3545, %v3574
          %v3632 = vadd.f32 %v3546, %v3578
          %v3633 = vadd.f32 %v3547, %v3582
          %v3634 = vadd.f32 %v3548, %v3586
          %v3635 = vadd.f32 %v3549, %v3574
          %v3636 = vadd.f32 %v3550, %v3578
          %v3637 = vadd.f32 %v3551, %v3582
          %v3638 = vadd.f32 %v3552, %v3586
          %v3639 = vadd.f32 %v3553, %v3574
          %v3640 = vadd.f32 %v3554, %v3578
          %v3641 = vadd.f32 %v3555, %v3582
          %v3642 = vadd.f32 %v3556, %v3586
          %v3643 = vadd.f32 %v3557, %v3574
          %v3644 = vadd.f32 %v3558, %v3578
          %v3645 = vadd.f32 %v3559, %v3582
          %v3646 = vadd.f32 %v3560, %v3586
          %v3647 = vadd.f32 %v3561, %v3574
          %v3648 = vadd.f32 %v3562, %v3578
          %v3649 = vadd.f32 %v3563, %v3582
          %v3650 = vadd.f32 %v3564, %v3586
          %v3651 = vadd.f32 %v3565, %v3574
          %v3652 = vadd.f32 %v3566, %v3578
          %v3653 = vadd.f32 %v3567, %v3582
          %v3654 = vadd.f32 %v3568, %v3586
          %3655 = vst [vmem:[%s414] sm:$0xff] %v3591
          %3656 = vst [vmem:[%s414 + $0x8] sm:$0xff] %v3592
          %3657 = vst [vmem:[%s414 + $0x10] sm:$0xff] %v3593
          %3658 = vst [vmem:[%s414 + $0x18] sm:$0xff] %v3594
          %3659 = vst [vmem:[%s414 + $0x20] sm:$0xff] %v3595
          %3660 = vst [vmem:[%s414 + $0x28] sm:$0xff] %v3596
          %3661 = vst [vmem:[%s414 + $0x30] sm:$0xff] %v3597
          %3662 = vst [vmem:[%s414 + $0x38] sm:$0xff] %v3598
          %3663 = vst [vmem:[%s414 + $0x40] sm:$0xff] %v3599
          %3664 = vst [vmem:[%s414 + $0x48] sm:$0xff] %v3600
          %3665 = vst [vmem:[%s414 + $0x50] sm:$0xff] %v3601
          %3666 = vst [vmem:[%s414 + $0x58] sm:$0xff] %v3602
          %3667 = vst [vmem:[%s414 + $0x60] sm:$0xff] %v3603
          %3668 = vst [vmem:[%s414 + $0x68] sm:$0xff] %v3604
          %3669 = vst [vmem:[%s414 + $0x70] sm:$0xff] %v3605
          %3670 = vst [vmem:[%s414 + $0x78] sm:$0xff] %v3606
          %3671 = vst [vmem:[%s414 + $0x80] sm:$0xff] %v3607
          %3672 = vst [vmem:[%s414 + $0x88] sm:$0xff] %v3608
          %3673 = vst [vmem:[%s414 + $0x90] sm:$0xff] %v3609
          %3674 = vst [vmem:[%s414 + $0x98] sm:$0xff] %v3610
          %3675 = vst [vmem:[%s414 + $0xa0] sm:$0xff] %v3611
          %3676 = vst [vmem:[%s414 + $0xa8] sm:$0xff] %v3612
          %3677 = vst [vmem:[%s414 + $0xb0] sm:$0xff] %v3613
          %3678 = vst [vmem:[%s414 + $0xb8] sm:$0xff] %v3614
          %3679 = vst [vmem:[%s414 + $0xc0] sm:$0xff] %v3615
          %3680 = vst [vmem:[%s414 + $0xc8] sm:$0xff] %v3616
          %3681 = vst [vmem:[%s414 + $0xd0] sm:$0xff] %v3617
          %3682 = vst [vmem:[%s414 + $0xd8] sm:$0xff] %v3618
          %3683 = vst [vmem:[%s414 + $0xe0] sm:$0xff] %v3619
          %3684 = vst [vmem:[%s414 + $0xe8] sm:$0xff] %v3620
          %3685 = vst [vmem:[%s414 + $0xf0] sm:$0xff] %v3621
          %3686 = vst [vmem:[%s414 + $0xf8] sm:$0xff] %v3622
          %3687 = vst [vmem:[%s414 + $0x100] sm:$0xff] %v3623
          %3688 = vst [vmem:[%s414 + $0x108] sm:$0xff] %v3624
          %3689 = vst [vmem:[%s414 + $0x110] sm:$0xff] %v3625
          %3690 = vst [vmem:[%s414 + $0x118] sm:$0xff] %v3626
          %3691 = vst [vmem:[%s414 + $0x120] sm:$0xff] %v3627
          %3692 = vst [vmem:[%s414 + $0x128] sm:$0xff] %v3628
          %3693 = vst [vmem:[%s414 + $0x130] sm:$0xff] %v3629
          %3694 = vst [vmem:[%s414 + $0x138] sm:$0xff] %v3630
          %3695 = vst [vmem:[%s414 + $0x140] sm:$0xff] %v3631
          %3696 = vst [vmem:[%s414 + $0x148] sm:$0xff] %v3632
          %3697 = vst [vmem:[%s414 + $0x150] sm:$0xff] %v3633
          %3698 = vst [vmem:[%s414 + $0x158] sm:$0xff] %v3634
          %3699 = vst [vmem:[%s414 + $0x160] sm:$0xff] %v3635
          %3700 = vst [vmem:[%s414 + $0x168] sm:$0xff] %v3636
          %3701 = vst [vmem:[%s414 + $0x170] sm:$0xff] %v3637
          %3702 = vst [vmem:[%s414 + $0x178] sm:$0xff] %v3638
          %3703 = vst [vmem:[%s414 + $0x180] sm:$0xff] %v3639
          %3704 = vst [vmem:[%s414 + $0x188] sm:$0xff] %v3640
          %3705 = vst [vmem:[%s414 + $0x190] sm:$0xff] %v3641
          %3706 = vst [vmem:[%s414 + $0x198] sm:$0xff] %v3642
          %3707 = vst [vmem:[%s414 + $0x1a0] sm:$0xff] %v3643
          %3708 = vst [vmem:[%s414 + $0x1a8] sm:$0xff] %v3644
          %3709 = vst [vmem:[%s414 + $0x1b0] sm:$0xff] %v3645
          %3710 = vst [vmem:[%s414 + $0x1b8] sm:$0xff] %v3646
          %3711 = vst [vmem:[%s414 + $0x1c0] sm:$0xff] %v3647
          %3712 = vst [vmem:[%s414 + $0x1c8] sm:$0xff] %v3648
          %3713 = vst [vmem:[%s414 + $0x1d0] sm:$0xff] %v3649
          %3714 = vst [vmem:[%s414 + $0x1d8] sm:$0xff] %v3650
          %3715 = vst [vmem:[%s414 + $0x1e0] sm:$0xff] %v3651
          %3716 = vst [vmem:[%s414 + $0x1e8] sm:$0xff] %v3652
          %3717 = vst [vmem:[%s414 + $0x1f0] sm:$0xff] %v3653
          %3718 = vst [vmem:[%s414 + $0x1f8] sm:$0xff] %v3654
        $region63: #{attention_forward.5} parent=50 // pred_fallthru
          _
        %s3719 = smul.u32 16, %s19
        %s3720 = smul.u32 4, %s20
        %p3721 = scmp.lt.s32.totalorder %s3719, 15
        %s3722 = scalar_select %p3721, %s3719, 15
        %p3723 = scmp.lt.s32.totalorder %s3720, 3
        %s3724 = scalar_select %p3723, %s3720, 3
        %s3725 = smul.addr %s3722, 4
        %s3726 = sadd.s32 %s3724, %s3725
        %s3727 = smul.addr %s3726, 8
        %s3728 = scalar_lea.vmem %s3, %s3727
        // Predicated region
        $region64: #{attention_forward.5} parent=50 // pred_check
          %p3729 = pneg %p135
        $region65: #{attention_forward.5} parent=50 // pred_check_branch
          %3731 = sbr.rel (%p3729) target = $region67
        $region66: #{attention_forward.5} parent=50 // pred_region
          %s3732 = smul.u32 16, %s19
          %s3733 = smul.u32 4, %s20
        $region67: #{attention_forward.5} parent=50 // pred_fallthru
          _
        // Predicated region
        $region68: #{attention_forward.5} parent=50 // pred_check
          %p3734 = pneg %p135
        $region69: #{attention_forward.5} parent=50 // pred_check_branch
          %3736 = sbr.rel (%p3734) target = $region71
        $region70: #{attention_forward.5} parent=50 // pred_region
          %s3737 = smul.u32 16, %s19
          %s3738 = smul.u32 4, %s20
          %p3739 = scmp.lt.s32.totalorder %s3737, 15
          %s3740 = scalar_select %p3739, %s3737, 15
          %p3741 = scmp.lt.s32.totalorder %s3738, 3
          %s3742 = scalar_select %p3741, %s3738, 3
          %s3743 = smul.addr %s3740, 4
          %s3744 = sadd.s32 %s3742, %s3743
          %s3745 = smul.addr %s3744, 8
          %s3746 = scalar_lea.vmem %s3, %s3745
        $region71: #{attention_forward.5} parent=50 // pred_fallthru
          _
      $region51: #{attention_forward.5} parent=5 // pred_fallthru
        _
      %p3747 = scmp.le.s32.totalorder 2, %s9
      // Predicated region
      $region72: #{attention_forward.5} parent=5 // pred_check
        %p3748 = pneg %p3747
      $region73: #{attention_forward.5} parent=5 // pred_check_branch
        %3750 = sbr.rel (%p3748) target = $region75
      $region74: #{attention_forward.5} parent=5 // pred_region
        %s3751 = ssub.s32 %s9, 2
      $region75: #{attention_forward.5} parent=5 // pred_fallthru
        _
    $region6: #{attention_forward.5} parent=1 // loop_footer
      %s13 = sadd.s32 1, %s9
    $region7: #{attention_forward.5} parent=1 // loop_footer_branch
      %8 = sbr.rel target = $region3
    $region8: #{attention_forward.5} parent=1 // loop_exit
      _

// kernel: attention_forward.7
$region0: #{attention_forward.7}
  #allocation0 [shape = 'u32[]', space=smem, size = 0x4, offset = 0x4, fixed_abs, tag = 'smem constant byte address 0x4 - core index']
  #allocation1 [shape = 'u32[144,128]{1,0:T(1,128)}', space=vmem, size = 0x12000, scoped, tag = 'internal scratch']
  #allocation2 [shape = 'f32[128,128]{1,0:T(8,128)}', space=vmem, size = 0x10000, scoped, tag = 'scratch operand']
  %s0 = inlined_call_operand.vmem [shape: bf16[128,3072], index: 0, kind: input, shape index: {}]
  %s1 = inlined_call_operand.vmem [shape: bf16[3072,128], index: 1, kind: input, shape index: {}]
  %s2 = inlined_call_operand.vmem [shape: f32[1,128], index: 2, kind: input, shape index: {}]
  %s3 = inlined_call_operand.hbm [shape: f32[128,128], index: 3, kind: output, shape index: {}]
  %s4 = sld [smem:[#allocation0]]
  $region76: #{attention_forward.7} parent=0
    _
  %s6 = ssub.s32 1, %s4
  %s7 = scalar_select 0, %s6, %s4
  $region1: #{attention_forward.7} parent=0
    #allocation3 [shape = 'u8[524288]{0}', space=vmem, size = 0x80000, scoped, tag = 'input window, operand 0']
    #allocation4 [shape = 'u8[65536]{0}', space=vmem, size = 0x10000, scoped, tag = 'output window, operand 0, single buffered']
    #allocation5 [shape = 's32[2]{0}', space=sflag, size = 0x8, scoped, tag = 'scoped memory for attention_forward.7']
    %8 = vsyncpa [#allocation5], 0
    loop: start=0, step=1, limit=5
    $region2: #{attention_forward.7} parent=1 // loop_pre_header
      _
    $region3: #{attention_forward.7} parent=1 // loop_header
      %s10 = sphi 0, %s14
      %p11 = scmp.ge.s32.totalorder %s10, 5
      %s17 = sphi 0, %s36
      %s18 = sphi 0, %s32
      %s19 = sphi 0, %s28
      %s20 = sphi 0, %s17
      %s21 = sphi 0, %s18
      %s22 = sphi 0, %s19
      %s23 = sphi 0, %s20
      %s24 = sphi 0, %s21
      %s25 = sphi 0, %s22
      %s41 = sphi 0, %s43
      %s44 = sphi 0, %s41
      %s45 = sphi 0, %s44
      %s61 = sphi 0, %s45
      %s69 = sphi 0, %s71
      %s72 = sphi 0, %s69
      %s73 = sphi 0, %s72
      %s89 = sphi 0, %s73
      %s95 = sphi 0, %s97
      %s98 = sphi 0, %s95
      %s99 = sphi 0, %s98
      %s115 = sphi 0, %s99
      %s123 = sphi 0, %s125
      %s126 = sphi 0, %s123
      %s127 = sphi 0, %s126
      %s143 = sphi 0, %s127
    $region4: #{attention_forward.7} parent=1 // loop_header_branch
      %13 = sbr.rel (%p11) target = $region8
    $region5: #{attention_forward.7} parent=1 // loop_body
      %s15 = ssub.s32 %s10, 1
      %s16 = ssub.s32 %s10, 2
      %s26 = sadd.s32 1, %s19
      %p27 = scmp.ge.s32.totalorder %s26, 3
      %s28 = scalar_select %p27, 0, %s26
      %s29 = sadd.s32 1, %s18
      %s30 = scalar_select %p27, %s29, %s18
      %p31 = scmp.ge.s32.totalorder %s30, 1
      %s32 = scalar_select %p31, 0, %s30
      %s33 = sadd.s32 1, %s17
      %s34 = scalar_select %p31, %s33, %s17
      %p35 = scmp.ge.s32.totalorder %s34, 1
      %s36 = scalar_select %p35, 0, %s34
      %s37 = ssub.s32 %s17, %s36
      %s38 = ssub.s32 %s19, %s28
      %s39 = sor.u32 %s37, %s38
      %p40 = scmp.eq.s32.totalorder %s39, 0
      %s42 = sadd.s32 %s41, 1
      %s43 = scalar_select %p40, %s41, %s42
      %p46 = pneg %p40
      %p47 = scmp.eq.s32.totalorder %s10, 2
      %p48 = por %p46, %p47
      %p49 = scmp.ne.s32.totalorder %s41, %s44
      %p50 = scmp.eq.s32.totalorder %s10, 0
      %p51 = por %p49, %p50
      %p52 = scmp.ne.s32.totalorder %s41, %s44
      %p53 = scmp.eq.s32.totalorder %s15, 2
      %p54 = por %p52, %p53
      %p55 = scmp.ne.s32.totalorder %s44, %s45
      %p56 = scmp.eq.s32.totalorder %s15, 0
      %p57 = por %p55, %p56
      %p58 = scmp.ne.s32.totalorder %s44, %s45
      %p59 = scmp.eq.s32.totalorder %s16, 2
      %p60 = por %p58, %p59
      %p62 = scmp.ne.s32.totalorder %s45, %s61
      %p63 = scmp.eq.s32.totalorder %s16, 0
      %p64 = por %p62, %p63
      %s65 = ssub.s32 %s19, %s28
      %s66 = ssub.s32 %s18, %s32
      %s67 = sor.u32 %s65, %s66
      %p68 = scmp.eq.s32.totalorder %s67, 0
      %s70 = sadd.s32 %s69, 1
      %s71 = scalar_select %p68, %s69, %s70
      %p74 = pneg %p68
      %p75 = scmp.eq.s32.totalorder %s10, 2
      %p76 = por %p74, %p75
      %p77 = scmp.ne.s32.totalorder %s69, %s72
      %p78 = scmp.eq.s32.totalorder %s10, 0
      %p79 = por %p77, %p78
      %p80 = scmp.ne.s32.totalorder %s69, %s72
      %p81 = scmp.eq.s32.totalorder %s15, 2
      %p82 = por %p80, %p81
      %p83 = scmp.ne.s32.totalorder %s72, %s73
      %p84 = scmp.eq.s32.totalorder %s15, 0
      %p85 = por %p83, %p84
      %p86 = scmp.ne.s32.totalorder %s72, %s73
      %p87 = scmp.eq.s32.totalorder %s16, 2
      %p88 = por %p86, %p87
      %p90 = scmp.ne.s32.totalorder %s73, %s89
      %p91 = scmp.eq.s32.totalorder %s16, 0
      %p92 = por %p90, %p91
      %s93 = ssub.s32 %s18, %s32
      %p94 = scmp.eq.s32.totalorder %s93, 0
      %s96 = sadd.s32 %s95, 1
      %s97 = scalar_select %p94, %s95, %s96
      %p100 = pneg %p94
      %p101 = scmp.eq.s32.totalorder %s10, 2
      %p102 = por %p100, %p101
      %p103 = scmp.ne.s32.totalorder %s95, %s98
      %p104 = scmp.eq.s32.totalorder %s10, 0
      %p105 = por %p103, %p104
      %p106 = scmp.ne.s32.totalorder %s95, %s98
      %p107 = scmp.eq.s32.totalorder %s15, 2
      %p108 = por %p106, %p107
      %p109 = scmp.ne.s32.totalorder %s98, %s99
      %p110 = scmp.eq.s32.totalorder %s15, 0
      %p111 = por %p109, %p110
      %p112 = scmp.ne.s32.totalorder %s98, %s99
      %p113 = scmp.eq.s32.totalorder %s16, 2
      %p114 = por %p112, %p113
      %p116 = scmp.ne.s32.totalorder %s99, %s115
      %p117 = scmp.eq.s32.totalorder %s16, 0
      %p118 = por %p116, %p117
      %s119 = ssub.s32 %s17, %s36
      %s120 = ssub.s32 %s18, %s32
      %s121 = sor.u32 %s119, %s120
      %p122 = scmp.eq.s32.totalorder %s121, 0
      %s124 = sadd.s32 %s123, 1
      %s125 = scalar_select %p122, %s123, %s124
      %p128 = pneg %p122
      %p129 = scmp.eq.s32.totalorder %s10, 2
      %p130 = por %p128, %p129
      %p131 = scmp.ne.s32.totalorder %s123, %s126
      %p132 = scmp.eq.s32.totalorder %s10, 0
      %p133 = por %p131, %p132
      %p134 = scmp.ne.s32.totalorder %s123, %s126
      %p135 = scmp.eq.s32.totalorder %s15, 2
      %p136 = por %p134, %p135
      %p137 = scmp.ne.s32.totalorder %s126, %s127
      %p138 = scmp.eq.s32.totalorder %s15, 0
      %p139 = por %p137, %p138
      %p140 = scmp.ne.s32.totalorder %s126, %s127
      %p141 = scmp.eq.s32.totalorder %s16, 2
      %p142 = por %p140, %p141
      %p144 = scmp.ne.s32.totalorder %s127, %s143
      %p145 = scmp.eq.s32.totalorder %s16, 0
      %p146 = por %p144, %p145
      %p147 = scmp.le.s32.totalorder 1, %s10
      %p148 = scmp.lt.s32.totalorder %s10, 4
      %p149 = pnand %p147, %p148
      %p150 = pneg %p149
      // Predicated region
      $region9: #{attention_forward.7} parent=5 // pred_check
        _
      $region10: #{attention_forward.7} parent=5 // pred_check_branch
        %152 = sbr.rel (%p149) target = $region12
      $region11: #{attention_forward.7} parent=5 // pred_region
        %s153 = ssub.s32 %s10, 1
        // Predicated region
        $region13: #{attention_forward.7} parent=11 // pred_check
          %p154 = pneg %p111
        $region14: #{attention_forward.7} parent=11 // pred_check_branch
          %156 = sbr.rel (%p154) target = $region16
        $region15: #{attention_forward.7} parent=11 // pred_region
          %p157 = scmp.lt.s32.totalorder %s21, 0
          %s158 = scalar_select %p157, %s21, 0
          %s159 = scalar_lea.vmem %s2, %s158
        $region16: #{attention_forward.7} parent=11 // pred_fallthru
          _
      $region12: #{attention_forward.7} parent=5 // pred_fallthru
        _
      %p160 = scmp.lt.s32.totalorder %s10, 3
      // Predicated region
      $region17: #{attention_forward.7} parent=5 // pred_check
        %p161 = pneg %p160
      $region18: #{attention_forward.7} parent=5 // pred_check_branch
        %163 = sbr.rel (%p161) target = $region20
      $region19: #{attention_forward.7} parent=5 // pred_region
        // Predicated region
        $region21: #{attention_forward.7} parent=19 // pred_check
          %p164 = pneg %p51
        $region22: #{attention_forward.7} parent=19 // pred_check_branch
          %166 = sbr.rel (%p164) target = $region24
        $region23: #{attention_forward.7} parent=19 // pred_region
          %s167 = sand.u32 %s41, 1
          %s168 = sand.u32 %s41, 1
          %s169 = smul.addr %s168, 512
          %s170 = scalar_lea.vmem [#allocation3], %s169
          %s171 = smul.u32 16, %s17
          %s172 = smul.u32 8, %s19
          %s173 = smul.addr %s171, 24
          %s174 = sadd.s32 %s172, %s173
          %s175 = smul.addr %s174, 4
          %s176 = scalar_lea.vmem %s0, %s175
          // Predicated region
          $region25: #{attention_forward.7} parent=23 // pred_check
            _
          $region26: #{attention_forward.7} parent=23 // pred_check_branch
            %178 = sbr.rel (0) target = $region28
          $region27: #{attention_forward.7} parent=23 // pred_region
            // Predicated region
            $region29: #{attention_forward.7} parent=27 // pred_check
              _
            $region30: #{attention_forward.7} parent=27 // pred_check_branch
              %180 = sbr.rel (0) target = $region32
            $region31: #{attention_forward.7} parent=27 // pred_region
              loop: start=0, step=1, limit=1
              $region33: #{attention_forward.7} parent=31 // loop_pre_header
                _
              $region34: #{attention_forward.7} parent=31 // loop_header
                %s182 = sphi 0, %s186
                %p183 = scmp.ge.s32.totalorder %s182, 1
                %s187 = sphi %s176, %s176
                %s188 = sphi %s170, %s170
              $region35: #{attention_forward.7} parent=31 // loop_header_branch
                %185 = sbr.rel (%p183) target = $region39
              $region36: #{attention_forward.7} parent=31 // loop_body
                %v189 = vld [vmem:[%s187] sm:$0xff]
                %190 = vst [vmem:[%s188] sm:$0xff] %v189
                %v191 = vld [vmem:[%s187 + $0x8] sm:$0xff]
                %192 = vst [vmem:[%s188 + $0x8] sm:$0xff] %v191
                %v193 = vld [vmem:[%s187 + $0x10] sm:$0xff]
                %194 = vst [vmem:[%s188 + $0x10] sm:$0xff] %v193
                %v195 = vld [vmem:[%s187 + $0x18] sm:$0xff]
                %196 = vst [vmem:[%s188 + $0x18] sm:$0xff] %v195
                %v197 = vld [vmem:[%s187 + $0x60] sm:$0xff]
                %198 = vst [vmem:[%s188 + $0x20] sm:$0xff] %v197
                %v199 = vld [vmem:[%s187 + $0x68] sm:$0xff]
                %200 = vst [vmem:[%s188 + $0x28] sm:$0xff] %v199
                %v201 = vld [vmem:[%s187 + $0x70] sm:$0xff]
                %202 = vst [vmem:[%s188 + $0x30] sm:$0xff] %v201
                %v203 = vld [vmem:[%s187 + $0x78] sm:$0xff]
                %204 = vst [vmem:[%s188 + $0x38] sm:$0xff] %v203
                %v205 = vld [vmem:[%s187 + $0xc0] sm:$0xff]
                %206 = vst [vmem:[%s188 + $0x40] sm:$0xff] %v205
                %v207 = vld [vmem:[%s187 + $0xc8] sm:$0xff]
                %208 = vst [vmem:[%s188 + $0x48] sm:$0xff] %v207
                %v209 = vld [vmem:[%s187 + $0xd0] sm:$0xff]
                %210 = vst [vmem:[%s188 + $0x50] sm:$0xff] %v209
                %v211 = vld [vmem:[%s187 + $0xd8] sm:$0xff]
                %212 = vst [vmem:[%s188 + $0x58] sm:$0xff] %v211
                %v213 = vld [vmem:[%s187 + $0x120] sm:$0xff]
                %214 = vst [vmem:[%s188 + $0x60] sm:$0xff] %v213
                %v215 = vld [vmem:[%s187 + $0x128] sm:$0xff]
                %216 = vst [vmem:[%s188 + $0x68] sm:$0xff] %v215
                %v217 = vld [vmem:[%s187 + $0x130] sm:$0xff]
                %218 = vst [vmem:[%s188 + $0x70] sm:$0xff] %v217
                %v219 = vld [vmem:[%s187 + $0x138] sm:$0xff]
                %220 = vst [vmem:[%s188 + $0x78] sm:$0xff] %v219
                %v221 = vld [vmem:[%s187 + $0x180] sm:$0xff]
                %222 = vst [vmem:[%s188 + $0x80] sm:$0xff] %v221
                %v223 = vld [vmem:[%s187 + $0x188] sm:$0xff]
                %224 = vst [vmem:[%s188 + $0x88] sm:$0xff] %v223
                %v225 = vld [vmem:[%s187 + $0x190] sm:$0xff]
                %226 = vst [vmem:[%s188 + $0x90] sm:$0xff] %v225
                %v227 = vld [vmem:[%s187 + $0x198] sm:$0xff]
                %228 = vst [vmem:[%s188 + $0x98] sm:$0xff] %v227
                %v229 = vld [vmem:[%s187 + $0x1e0] sm:$0xff]
                %230 = vst [vmem:[%s188 + $0xa0] sm:$0xff] %v229
                %v231 = vld [vmem:[%s187 + $0x1e8] sm:$0xff]
                %232 = vst [vmem:[%s188 + $0xa8] sm:$0xff] %v231
                %v233 = vld [vmem:[%s187 + $0x1f0] sm:$0xff]
                %234 = vst [vmem:[%s188 + $0xb0] sm:$0xff] %v233
                %v235 = vld [vmem:[%s187 + $0x1f8] sm:$0xff]
                %236 = vst [vmem:[%s188 + $0xb8] sm:$0xff] %v235
                %v237 = vld [vmem:[%s187 + $0x240] sm:$0xff]
                %238 = vst [vmem:[%s188 + $0xc0] sm:$0xff] %v237
                %v239 = vld [vmem:[%s187 + $0x248] sm:$0xff]
                %240 = vst [vmem:[%s188 + $0xc8] sm:$0xff] %v239
                %v241 = vld [vmem:[%s187 + $0x250] sm:$0xff]
                %242 = vst [vmem:[%s188 + $0xd0] sm:$0xff] %v241
                %v243 = vld [vmem:[%s187 + $0x258] sm:$0xff]
                %244 = vst [vmem:[%s188 + $0xd8] sm:$0xff] %v243
                %v245 = vld [vmem:[%s187 + $0x2a0] sm:$0xff]
                %246 = vst [vmem:[%s188 + $0xe0] sm:$0xff] %v245
                %v247 = vld [vmem:[%s187 + $0x2a8] sm:$0xff]
                %248 = vst [vmem:[%s188 + $0xe8] sm:$0xff] %v247
                %v249 = vld [vmem:[%s187 + $0x2b0] sm:$0xff]
                %250 = vst [vmem:[%s188 + $0xf0] sm:$0xff] %v249
                %v251 = vld [vmem:[%s187 + $0x2b8] sm:$0xff]
                %252 = vst [vmem:[%s188 + $0xf8] sm:$0xff] %v251
                %v253 = vld [vmem:[%s187 + $0x300] sm:$0xff]
                %254 = vst [vmem:[%s188 + $0x100] sm:$0xff] %v253
                %v255 = vld [vmem:[%s187 + $0x308] sm:$0xff]
                %256 = vst [vmem:[%s188 + $0x108] sm:$0xff] %v255
                %v257 = vld [vmem:[%s187 + $0x310] sm:$0xff]
                %258 = vst [vmem:[%s188 + $0x110] sm:$0xff] %v257
                %v259 = vld [vmem:[%s187 + $0x318] sm:$0xff]
                %260 = vst [vmem:[%s188 + $0x118] sm:$0xff] %v259
                %v261 = vld [vmem:[%s187 + $0x360] sm:$0xff]
                %262 = vst [vmem:[%s188 + $0x120] sm:$0xff] %v261
                %v263 = vld [vmem:[%s187 + $0x368] sm:$0xff]
                %264 = vst [vmem:[%s188 + $0x128] sm:$0xff] %v263
                %v265 = vld [vmem:[%s187 + $0x370] sm:$0xff]
                %266 = vst [vmem:[%s188 + $0x130] sm:$0xff] %v265
                %v267 = vld [vmem:[%s187 + $0x378] sm:$0xff]
                %268 = vst [vmem:[%s188 + $0x138] sm:$0xff] %v267
                %v269 = vld [vmem:[%s187 + $0x3c0] sm:$0xff]
                %270 = vst [vmem:[%s188 + $0x140] sm:$0xff] %v269
                %v271 = vld [vmem:[%s187 + $0x3c8] sm:$0xff]
                %272 = vst [vmem:[%s188 + $0x148] sm:$0xff] %v271
                %v273 = vld [vmem:[%s187 + $0x3d0] sm:$0xff]
                %274 = vst [vmem:[%s188 + $0x150] sm:$0xff] %v273
                %v275 = vld [vmem:[%s187 + $0x3d8] sm:$0xff]
                %276 = vst [vmem:[%s188 + $0x158] sm:$0xff] %v275
                %v277 = vld [vmem:[%s187 + $0x420] sm:$0xff]
                %278 = vst [vmem:[%s188 + $0x160] sm:$0xff] %v277
                %v279 = vld [vmem:[%s187 + $0x428] sm:$0xff]
                %280 = vst [vmem:[%s188 + $0x168] sm:$0xff] %v279
                %v281 = vld [vmem:[%s187 + $0x430] sm:$0xff]
                %282 = vst [vmem:[%s188 + $0x170] sm:$0xff] %v281
                %v283 = vld [vmem:[%s187 + $0x438] sm:$0xff]
                %284 = vst [vmem:[%s188 + $0x178] sm:$0xff] %v283
                %v285 = vld [vmem:[%s187 + $0x480] sm:$0xff]
                %286 = vst [vmem:[%s188 + $0x180] sm:$0xff] %v285
                %v287 = vld [vmem:[%s187 + $0x488] sm:$0xff]
                %288 = vst [vmem:[%s188 + $0x188] sm:$0xff] %v287
                %v289 = vld [vmem:[%s187 + $0x490] sm:$0xff]
                %290 = vst [vmem:[%s188 + $0x190] sm:$0xff] %v289
                %v291 = vld [vmem:[%s187 + $0x498] sm:$0xff]
                %292 = vst [vmem:[%s188 + $0x198] sm:$0xff] %v291
                %v293 = vld [vmem:[%s187 + $0x4e0] sm:$0xff]
                %294 = vst [vmem:[%s188 + $0x1a0] sm:$0xff] %v293
                %v295 = vld [vmem:[%s187 + $0x4e8] sm:$0xff]
                %296 = vst [vmem:[%s188 + $0x1a8] sm:$0xff] %v295
                %v297 = vld [vmem:[%s187 + $0x4f0] sm:$0xff]
                %298 = vst [vmem:[%s188 + $0x1b0] sm:$0xff] %v297
                %v299 = vld [vmem:[%s187 + $0x4f8] sm:$0xff]
                %300 = vst [vmem:[%s188 + $0x1b8] sm:$0xff] %v299
                %v301 = vld [vmem:[%s187 + $0x540] sm:$0xff]
                %302 = vst [vmem:[%s188 + $0x1c0] sm:$0xff] %v301
                %v303 = vld [vmem:[%s187 + $0x548] sm:$0xff]
                %304 = vst [vmem:[%s188 + $0x1c8] sm:$0xff] %v303
                %v305 = vld [vmem:[%s187 + $0x550] sm:$0xff]
                %306 = vst [vmem:[%s188 + $0x1d0] sm:$0xff] %v305
                %v307 = vld [vmem:[%s187 + $0x558] sm:$0xff]
                %308 = vst [vmem:[%s188 + $0x1d8] sm:$0xff] %v307
                %v309 = vld [vmem:[%s187 + $0x5a0] sm:$0xff]
                %310 = vst [vmem:[%s188 + $0x1e0] sm:$0xff] %v309
                %v311 = vld [vmem:[%s187 + $0x5a8] sm:$0xff]
                %312 = vst [vmem:[%s188 + $0x1e8] sm:$0xff] %v311
                %v313 = vld [vmem:[%s187 + $0x5b0] sm:$0xff]
                %314 = vst [vmem:[%s188 + $0x1f0] sm:$0xff] %v313
                %v315 = vld [vmem:[%s187 + $0x5b8] sm:$0xff]
                %316 = vst [vmem:[%s188 + $0x1f8] sm:$0xff] %v315
              $region37: #{attention_forward.7} parent=31 // loop_footer
                %s186 = sadd.s32 1, %s182
              $region38: #{attention_forward.7} parent=31 // loop_footer_branch
                %181 = sbr.rel target = $region34
              $region39: #{attention_forward.7} parent=31 // loop_exit
                _
            $region32: #{attention_forward.7} parent=27 // pred_fallthru
              _
            // Predicated region
            $region40: #{attention_forward.7} parent=27 // pred_check
              _
            $region41: #{attention_forward.7} parent=27 // pred_check_branch
              %318 = sbr.rel target = $region43
            $region42: #{attention_forward.7} parent=27 // pred_region
              _
            $region43: #{attention_forward.7} parent=27 // pred_fallthru
              _
          $region28: #{attention_forward.7} parent=23 // pred_fallthru
            _
          %319 = vnop
        $region24: #{attention_forward.7} parent=19 // pred_fallthru
          _
        // Predicated region
        $region44: #{attention_forward.7} parent=19 // pred_check
          %p320 = pneg %p79
        $region45: #{attention_forward.7} parent=19 // pred_check_branch
          %322 = sbr.rel (%p320) target = $region47
        $region46: #{attention_forward.7} parent=19 // pred_region
          %s323 = smul.u32 128, %s19
          %p324 = scmp.lt.s32.totalorder %s323, 383
          %s325 = scalar_select %p324, %s323, 383
          %p326 = scmp.lt.s32.totalorder %s18, 0
          %s327 = scalar_select %p326, %s18, 0
          %s328 = sadd.s32 %s327, %s325
          %s329 = smul.addr %s328, 4
          %s330 = scalar_lea.vmem %s1, %s329
          %s331 = smul.u32 128, %s19
        $region47: #{attention_forward.7} parent=19 // pred_fallthru
          _
      $region20: #{attention_forward.7} parent=5 // pred_fallthru
        _
      %p332 = scmp.le.s32.totalorder 1, %s10
      %p333 = scmp.lt.s32.totalorder %s10, 4
      %p334 = pnand %p332, %p333
      %p335 = pneg %p334
      // Predicated region
      $region48: #{attention_forward.7} parent=5 // pred_check
        _
      $region49: #{attention_forward.7} parent=5 // pred_check_branch
        %337 = sbr.rel (%p334) target = $region51
      $region50: #{attention_forward.7} parent=5 // pred_region
        %s338 = ssub.s32 %s10, 1
        %s339 = sand.u32 %s44, 1
        %s340 = sand.u32 %s44, 1
        %s341 = smul.addr %s340, 512
        %s342 = scalar_lea.vmem [#allocation3], %s341
        // Predicated region
        $region52: #{attention_forward.7} parent=50 // pred_check
          %p343 = pneg %p57
        $region53: #{attention_forward.7} parent=50 // pred_check_branch
          %345 = sbr.rel (%p343) target = $region55
        $region54: #{attention_forward.7} parent=50 // pred_region
          _
        $region55: #{attention_forward.7} parent=50 // pred_fallthru
          _
        %s346 = sand.u32 %s44, 1
        %s347 = sand.u32 %s44, 1
        %s348 = smul.addr %s347, 512
        %s349 = scalar_lea.vmem [#allocation3], %s348
        %p350 = pneg %p57
        %p351 = pneg %p54
        %s352 = smul.u32 128, %s22
        %p353 = scmp.lt.s32.totalorder %s352, 383
        %s354 = scalar_select %p353, %s352, 383
        %p355 = scmp.lt.s32.totalorder %s21, 0
        %s356 = scalar_select %p355, %s21, 0
        %s357 = sadd.s32 %s356, %s354
        %s358 = smul.addr %s357, 4
        %s359 = scalar_lea.vmem %s1, %s358
        %p360 = pneg %p85
        %p361 = pneg %p82
        %p362 = scmp.lt.s32.totalorder %s21, 0
        %s363 = scalar_select %p362, %s21, 0
        %s364 = scalar_lea.vmem %s2, %s363
        %p365 = pneg %p111
        %p366 = pneg %p108
        %p367 = pneg %p139
        %p368 = pneg %p136
        %s369 = smul.u32 16, %s20
        %s370 = smul.u32 8, %s22
        %s371 = smul.u32 128, %s22
        %p372 = scmp.lt.s32.totalorder %s371, 383
        %s373 = scalar_select %p372, %s371, 383
        %p374 = scmp.lt.s32.totalorder %s21, 0
        %s375 = scalar_select %p374, %s21, 0
        %s376 = sadd.s32 %s375, %s373
        %s377 = smul.addr %s376, 4
        %s378 = scalar_lea.vmem %s1, %s377
        %s379 = smul.u32 128, %s22
        %p380 = scmp.lt.s32.totalorder %s21, 0
        %s381 = scalar_select %p380, %s21, 0
        %s382 = scalar_lea.vmem %s2, %s381
        %s383 = smul.u32 16, %s20
        %p385 = scmp.eq.s32.totalorder %s22, 0
        // Predicated region
        $region56: #{attention_forward.7} parent=50 // pred_check
          %p386 = pneg %p385
        $region57: #{attention_forward.7} parent=50 // pred_check_branch
          %388 = sbr.rel (%p386) target = $region59
        $region58: #{attention_forward.7} parent=50 // pred_region
          %389 = vst [vmem:[#allocation2] sm:$0xff] 0.0
          %390 = vst [vmem:[#allocation2 + $0x8] sm:$0xff] 0.0
          %391 = vst [vmem:[#allocation2 + $0x10] sm:$0xff] 0.0
          %392 = vst [vmem:[#allocation2 + $0x18] sm:$0xff] 0.0
          %393 = vst [vmem:[#allocation2 + $0x20] sm:$0xff] 0.0
          %394 = vst [vmem:[#allocation2 + $0x28] sm:$0xff] 0.0
          %395 = vst [vmem:[#allocation2 + $0x30] sm:$0xff] 0.0
          %396 = vst [vmem:[#allocation2 + $0x38] sm:$0xff] 0.0
          %397 = vst [vmem:[#allocation2 + $0x40] sm:$0xff] 0.0
          %398 = vst [vmem:[#allocation2 + $0x48] sm:$0xff] 0.0
          %399 = vst [vmem:[#allocation2 + $0x50] sm:$0xff] 0.0
          %400 = vst [vmem:[#allocation2 + $0x58] sm:$0xff] 0.0
          %401 = vst [vmem:[#allocation2 + $0x60] sm:$0xff] 0.0
          %402 = vst [vmem:[#allocation2 + $0x68] sm:$0xff] 0.0
          %403 = vst [vmem:[#allocation2 + $0x70] sm:$0xff] 0.0
          %404 = vst [vmem:[#allocation2 + $0x78] sm:$0xff] 0.0
        $region59: #{attention_forward.7} parent=50 // pred_fallthru
          _
        %v405 = vld [vmem:[#allocation2] sm:$0xff]
        %v406 = vld [vmem:[#allocation2 + $0x8] sm:$0xff]
        %v407 = vld [vmem:[#allocation2 + $0x10] sm:$0xff]
        %v408 = vld [vmem:[#allocation2 + $0x18] sm:$0xff]
        %v409 = vld [vmem:[#allocation2 + $0x20] sm:$0xff]
        %v410 = vld [vmem:[#allocation2 + $0x28] sm:$0xff]
        %v411 = vld [vmem:[#allocation2 + $0x30] sm:$0xff]
        %v412 = vld [vmem:[#allocation2 + $0x38] sm:$0xff]
        %v413 = vld [vmem:[#allocation2 + $0x40] sm:$0xff]
        %v414 = vld [vmem:[#allocation2 + $0x48] sm:$0xff]
        %v415 = vld [vmem:[#allocation2 + $0x50] sm:$0xff]
        %v416 = vld [vmem:[#allocation2 + $0x58] sm:$0xff]
        %v417 = vld [vmem:[#allocation2 + $0x60] sm:$0xff]
        %v418 = vld [vmem:[#allocation2 + $0x68] sm:$0xff]
        %v419 = vld [vmem:[#allocation2 + $0x70] sm:$0xff]
        %v420 = vld [vmem:[#allocation2 + $0x78] sm:$0xff]
        %v421 = vld [vmem:[%s342] sm:$0xff]
        %v422 = vld [vmem:[%s342 + $0x8] sm:$0xff]
        %v423 = vld [vmem:[%s342 + $0x10] sm:$0xff]
        %v424 = vld [vmem:[%s342 + $0x18] sm:$0xff]
        %v425 = vld [vmem:[%s342 + $0x20] sm:$0xff]
        %v426 = vld [vmem:[%s342 + $0x28] sm:$0xff]
        %v427 = vld [vmem:[%s342 + $0x30] sm:$0xff]
        %v428 = vld [vmem:[%s342 + $0x38] sm:$0xff]
        %v429 = vld [vmem:[%s342 + $0x40] sm:$0xff]
        %v430 = vld [vmem:[%s342 + $0x48] sm:$0xff]
        %v431 = vld [vmem:[%s342 + $0x50] sm:$0xff]
        %v432 = vld [vmem:[%s342 + $0x58] sm:$0xff]
        %v433 = vld [vmem:[%s342 + $0x60] sm:$0xff]
        %v434 = vld [vmem:[%s342 + $0x68] sm:$0xff]
        %v435 = vld [vmem:[%s342 + $0x70] sm:$0xff]
        %v436 = vld [vmem:[%s342 + $0x78] sm:$0xff]
        %v437 = vld [vmem:[%s342 + $0x80] sm:$0xff]
        %v438 = vld [vmem:[%s342 + $0x88] sm:$0xff]
        %v439 = vld [vmem:[%s342 + $0x90] sm:$0xff]
        %v440 = vld [vmem:[%s342 + $0x98] sm:$0xff]
        %v441 = vld [vmem:[%s342 + $0xa0] sm:$0xff]
        %v442 = vld [vmem:[%s342 + $0xa8] sm:$0xff]
        %v443 = vld [vmem:[%s342 + $0xb0] sm:$0xff]
        %v444 = vld [vmem:[%s342 + $0xb8] sm:$0xff]
        %v445 = vld [vmem:[%s342 + $0xc0] sm:$0xff]
        %v446 = vld [vmem:[%s342 + $0xc8] sm:$0xff]
        %v447 = vld [vmem:[%s342 + $0xd0] sm:$0xff]
        %v448 = vld [vmem:[%s342 + $0xd8] sm:$0xff]
        %v449 = vld [vmem:[%s342 + $0xe0] sm:$0xff]
        %v450 = vld [vmem:[%s342 + $0xe8] sm:$0xff]
        %v451 = vld [vmem:[%s342 + $0xf0] sm:$0xff]
        %v452 = vld [vmem:[%s342 + $0xf8] sm:$0xff]
        %v453 = vld [vmem:[%s342 + $0x100] sm:$0xff]
        %v454 = vld [vmem:[%s342 + $0x108] sm:$0xff]
        %v455 = vld [vmem:[%s342 + $0x110] sm:$0xff]
        %v456 = vld [vmem:[%s342 + $0x118] sm:$0xff]
        %v457 = vld [vmem:[%s342 + $0x120] sm:$0xff]
        %v458 = vld [vmem:[%s342 + $0x128] sm:$0xff]
        %v459 = vld [vmem:[%s342 + $0x130] sm:$0xff]
        %v460 = vld [vmem:[%s342 + $0x138] sm:$0xff]
        %v461 = vld [vmem:[%s342 + $0x140] sm:$0xff]
        %v462 = vld [vmem:[%s342 + $0x148] sm:$0xff]
        %v463 = vld [vmem:[%s342 + $0x150] sm:$0xff]
        %v464 = vld [vmem:[%s342 + $0x158] sm:$0xff]
        %v465 = vld [vmem:[%s342 + $0x160] sm:$0xff]
        %v466 = vld [vmem:[%s342 + $0x168] sm:$0xff]
        %v467 = vld [vmem:[%s342 + $0x170] sm:$0xff]
        %v468 = vld [vmem:[%s342 + $0x178] sm:$0xff]
        %v469 = vld [vmem:[%s342 + $0x180] sm:$0xff]
        %v470 = vld [vmem:[%s342 + $0x188] sm:$0xff]
        %v471 = vld [vmem:[%s342 + $0x190] sm:$0xff]
        %v472 = vld [vmem:[%s342 + $0x198] sm:$0xff]
        %v473 = vld [vmem:[%s342 + $0x1a0] sm:$0xff]
        %v474 = vld [vmem:[%s342 + $0x1a8] sm:$0xff]
        %v475 = vld [vmem:[%s342 + $0x1b0] sm:$0xff]
        %v476 = vld [vmem:[%s342 + $0x1b8] sm:$0xff]
        %v477 = vld [vmem:[%s342 + $0x1c0] sm:$0xff]
        %v478 = vld [vmem:[%s342 + $0x1c8] sm:$0xff]
        %v479 = vld [vmem:[%s342 + $0x1d0] sm:$0xff]
        %v480 = vld [vmem:[%s342 + $0x1d8] sm:$0xff]
        %v481 = vld [vmem:[%s342 + $0x1e0] sm:$0xff]
        %v482 = vld [vmem:[%s342 + $0x1e8] sm:$0xff]
        %v483 = vld [vmem:[%s342 + $0x1f0] sm:$0xff]
        %v484 = vld [vmem:[%s342 + $0x1f8] sm:$0xff]
        %v485 = vld [vmem:[%s378] sm:$0xf]
        %v486 = vld [vmem:[%s378 + $0x4] sm:$0xf]
        %v487 = vld [vmem:[%s378 + $0x8] sm:$0xf]
        %v488 = vld [vmem:[%s378 + $0xc] sm:$0xf]
        %v489 = vld [vmem:[%s378 + $0x10] sm:$0xf]
        %v490 = vld [vmem:[%s378 + $0x14] sm:$0xf]
        %v491 = vld [vmem:[%s378 + $0x18] sm:$0xf]
        %v492 = vld [vmem:[%s378 + $0x1c] sm:$0xf]
        %v493 = vld [vmem:[%s378 + $0x20] sm:$0xf]
        %v494 = vld [vmem:[%s378 + $0x24] sm:$0xf]
        %v495 = vld [vmem:[%s378 + $0x28] sm:$0xf]
        %v496 = vld [vmem:[%s378 + $0x2c] sm:$0xf]
        %v497 = vld [vmem:[%s378 + $0x30] sm:$0xf]
        %v498 = vld [vmem:[%s378 + $0x34] sm:$0xf]
        %v499 = vld [vmem:[%s378 + $0x38] sm:$0xf]
        %v500 = vld [vmem:[%s378 + $0x3c] sm:$0xf]
        %v501 = vld [vmem:[%s378 + $0x40] sm:$0xf]
        %v502 = vld [vmem:[%s378 + $0x44] sm:$0xf]
        %v503 = vld [vmem:[%s378 + $0x48] sm:$0xf]
        %v504 = vld [vmem:[%s378 + $0x4c] sm:$0xf]
        %v505 = vld [vmem:[%s378 + $0x50] sm:$0xf]
        %v506 = vld [vmem:[%s378 + $0x54] sm:$0xf]
        %v507 = vld [vmem:[%s378 + $0x58] sm:$0xf]
        %v508 = vld [vmem:[%s378 + $0x5c] sm:$0xf]
        %v509 = vld [vmem:[%s378 + $0x60] sm:$0xf]
        %v510 = vld [vmem:[%s378 + $0x64] sm:$0xf]
        %v511 = vld [vmem:[%s378 + $0x68] sm:$0xf]
        %v512 = vld [vmem:[%s378 + $0x6c] sm:$0xf]
        %v513 = vld [vmem:[%s378 + $0x70] sm:$0xf]
        %v514 = vld [vmem:[%s378 + $0x74] sm:$0xf]
        %v515 = vld [vmem:[%s378 + $0x78] sm:$0xf]
        %v516 = vld [vmem:[%s378 + $0x7c] sm:$0xf]
        %v517 = vld [vmem:[%s378 + $0x80] sm:$0xf]
        %v518 = vld [vmem:[%s378 + $0x84] sm:$0xf]
        %v519 = vld [vmem:[%s378 + $0x88] sm:$0xf]
        %v520 = vld [vmem:[%s378 + $0x8c] sm:$0xf]
        %v521 = vld [vmem:[%s378 + $0x90] sm:$0xf]
        %v522 = vld [vmem:[%s378 + $0x94] sm:$0xf]
        %v523 = vld [vmem:[%s378 + $0x98] sm:$0xf]
        %v524 = vld [vmem:[%s378 + $0x9c] sm:$0xf]
        %v525 = vld [vmem:[%s378 + $0xa0] sm:$0xf]
        %v526 = vld [vmem:[%s378 + $0xa4] sm:$0xf]
        %v527 = vld [vmem:[%s378 + $0xa8] sm:$0xf]
        %v528 = vld [vmem:[%s378 + $0xac] sm:$0xf]
        %v529 = vld [vmem:[%s378 + $0xb0] sm:$0xf]
        %v530 = vld [vmem:[%s378 + $0xb4] sm:$0xf]
        %v531 = vld [vmem:[%s378 + $0xb8] sm:$0xf]
        %v532 = vld [vmem:[%s378 + $0xbc] sm:$0xf]
        %v533 = vld [vmem:[%s378 + $0xc0] sm:$0xf]
        %v534 = vld [vmem:[%s378 + $0xc4] sm:$0xf]
        %v535 = vld [vmem:[%s378 + $0xc8] sm:$0xf]
        %v536 = vld [vmem:[%s378 + $0xcc] sm:$0xf]
        %v537 = vld [vmem:[%s378 + $0xd0] sm:$0xf]
        %v538 = vld [vmem:[%s378 + $0xd4] sm:$0xf]
        %v539 = vld [vmem:[%s378 + $0xd8] sm:$0xf]
        %v540 = vld [vmem:[%s378 + $0xdc] sm:$0xf]
        %v541 = vld [vmem:[%s378 + $0xe0] sm:$0xf]
        %v542 = vld [vmem:[%s378 + $0xe4] sm:$0xf]
        %v543 = vld [vmem:[%s378 + $0xe8] sm:$0xf]
        %v544 = vld [vmem:[%s378 + $0xec] sm:$0xf]
        %v545 = vld [vmem:[%s378 + $0xf0] sm:$0xf]
        %v546 = vld [vmem:[%s378 + $0xf4] sm:$0xf]
        %v547 = vld [vmem:[%s378 + $0xf8] sm:$0xf]
        %v548 = vld [vmem:[%s378 + $0xfc] sm:$0xf]
        %v549 = vld [vmem:[%s378 + $0x100] sm:$0xf]
        %v550 = vld [vmem:[%s378 + $0x104] sm:$0xf]
        %v551 = vld [vmem:[%s378 + $0x108] sm:$0xf]
        %v552 = vld [vmem:[%s378 + $0x10c] sm:$0xf]
        %v553 = vld [vmem:[%s378 + $0x110] sm:$0xf]
        %v554 = vld [vmem:[%s378 + $0x114] sm:$0xf]
        %v555 = vld [vmem:[%s378 + $0x118] sm:$0xf]
        %v556 = vld [vmem:[%s378 + $0x11c] sm:$0xf]
        %v557 = vld [vmem:[%s378 + $0x120] sm:$0xf]
        %v558 = vld [vmem:[%s378 + $0x124] sm:$0xf]
        %v559 = vld [vmem:[%s378 + $0x128] sm:$0xf]
        %v560 = vld [vmem:[%s378 + $0x12c] sm:$0xf]
        %v561 = vld [vmem:[%s378 + $0x130] sm:$0xf]
        %v562 = vld [vmem:[%s378 + $0x134] sm:$0xf]
        %v563 = vld [vmem:[%s378 + $0x138] sm:$0xf]
        %v564 = vld [vmem:[%s378 + $0x13c] sm:$0xf]
        %v565 = vld [vmem:[%s378 + $0x140] sm:$0xf]
        %v566 = vld [vmem:[%s378 + $0x144] sm:$0xf]
        %v567 = vld [vmem:[%s378 + $0x148] sm:$0xf]
        %v568 = vld [vmem:[%s378 + $0x14c] sm:$0xf]
        %v569 = vld [vmem:[%s378 + $0x150] sm:$0xf]
        %v570 = vld [vmem:[%s378 + $0x154] sm:$0xf]
        %v571 = vld [vmem:[%s378 + $0x158] sm:$0xf]
        %v572 = vld [vmem:[%s378 + $0x15c] sm:$0xf]
        %v573 = vld [vmem:[%s378 + $0x160] sm:$0xf]
        %v574 = vld [vmem:[%s378 + $0x164] sm:$0xf]
        %v575 = vld [vmem:[%s378 + $0x168] sm:$0xf]
        %v576 = vld [vmem:[%s378 + $0x16c] sm:$0xf]
        %v577 = vld [vmem:[%s378 + $0x170] sm:$0xf]
        %v578 = vld [vmem:[%s378 + $0x174] sm:$0xf]
        %v579 = vld [vmem:[%s378 + $0x178] sm:$0xf]
        %v580 = vld [vmem:[%s378 + $0x17c] sm:$0xf]
        %v581 = vld [vmem:[%s378 + $0x180] sm:$0xf]
        %v582 = vld [vmem:[%s378 + $0x184] sm:$0xf]
        %v583 = vld [vmem:[%s378 + $0x188] sm:$0xf]
        %v584 = vld [vmem:[%s378 + $0x18c] sm:$0xf]
        %v585 = vld [vmem:[%s378 + $0x190] sm:$0xf]
        %v586 = vld [vmem:[%s378 + $0x194] sm:$0xf]
        %v587 = vld [vmem:[%s378 + $0x198] sm:$0xf]
        %v588 = vld [vmem:[%s378 + $0x19c] sm:$0xf]
        %v589 = vld [vmem:[%s378 + $0x1a0] sm:$0xf]
        %v590 = vld [vmem:[%s378 + $0x1a4] sm:$0xf]
        %v591 = vld [vmem:[%s378 + $0x1a8] sm:$0xf]
        %v592 = vld [vmem:[%s378 + $0x1ac] sm:$0xf]
        %v593 = vld [vmem:[%s378 + $0x1b0] sm:$0xf]
        %v594 = vld [vmem:[%s378 + $0x1b4] sm:$0xf]
        %v595 = vld [vmem:[%s378 + $0x1b8] sm:$0xf]
        %v596 = vld [vmem:[%s378 + $0x1bc] sm:$0xf]
        %v597 = vld [vmem:[%s378 + $0x1c0] sm:$0xf]
        %v598 = vld [vmem:[%s378 + $0x1c4] sm:$0xf]
        %v599 = vld [vmem:[%s378 + $0x1c8] sm:$0xf]
        %v600 = vld [vmem:[%s378 + $0x1cc] sm:$0xf]
        %v601 = vld [vmem:[%s378 + $0x1d0] sm:$0xf]
        %v602 = vld [vmem:[%s378 + $0x1d4] sm:$0xf]
        %v603 = vld [vmem:[%s378 + $0x1d8] sm:$0xf]
        %v604 = vld [vmem:[%s378 + $0x1dc] sm:$0xf]
        %v605 = vld [vmem:[%s378 + $0x1e0] sm:$0xf]
        %v606 = vld [vmem:[%s378 + $0x1e4] sm:$0xf]
        %v607 = vld [vmem:[%s378 + $0x1e8] sm:$0xf]
        %v608 = vld [vmem:[%s378 + $0x1ec] sm:$0xf]
        %v609 = vld [vmem:[%s378 + $0x1f0] sm:$0xf]
        %v610 = vld [vmem:[%s378 + $0x1f4] sm:$0xf]
        %v611 = vld [vmem:[%s378 + $0x1f8] sm:$0xf]
        %v612 = vld [vmem:[%s378 + $0x1fc] sm:$0xf]
        %v677 = vunpack.c.l.b16 %v421
        %v678 = vunpack.c.h.b16 %v421
        %v679 = vunpack.c.l.b16 %v422
        %v680 = vunpack.c.h.b16 %v422
        %v681 = vunpack.c.l.b16 %v423
        %v682 = vunpack.c.h.b16 %v423
        %v683 = vunpack.c.l.b16 %v424
        %v684 = vunpack.c.h.b16 %v424
        %v685 = vunpack.c.l.b16 %v425
        %v686 = vunpack.c.h.b16 %v425
        %v687 = vunpack.c.l.b16 %v426
        %v688 = vunpack.c.h.b16 %v426
        %v689 = vunpack.c.l.b16 %v427
        %v690 = vunpack.c.h.b16 %v427
        %v691 = vunpack.c.l.b16 %v428
        %v692 = vunpack.c.h.b16 %v428
        %v693 = vunpack.c.l.b16 %v429
        %v694 = vunpack.c.h.b16 %v429
        %v695 = vunpack.c.l.b16 %v430
        %v696 = vunpack.c.h.b16 %v430
        %v697 = vunpack.c.l.b16 %v431
        %v698 = vunpack.c.h.b16 %v431
        %v699 = vunpack.c.l.b16 %v432
        %v700 = vunpack.c.h.b16 %v432
        %v701 = vunpack.c.l.b16 %v433
        %v702 = vunpack.c.h.b16 %v433
        %v703 = vunpack.c.l.b16 %v434
        %v704 = vunpack.c.h.b16 %v434
        %v705 = vunpack.c.l.b16 %v435
        %v706 = vunpack.c.h.b16 %v435
        %v707 = vunpack.c.l.b16 %v436
        %v708 = vunpack.c.h.b16 %v436
        %v709 = vunpack.c.l.b16 %v437
        %v710 = vunpack.c.h.b16 %v437
        %v711 = vunpack.c.l.b16 %v438
        %v712 = vunpack.c.h.b16 %v438
        %v713 = vunpack.c.l.b16 %v439
        %v714 = vunpack.c.h.b16 %v439
        %v715 = vunpack.c.l.b16 %v440
        %v716 = vunpack.c.h.b16 %v440
        %v717 = vunpack.c.l.b16 %v441
        %v718 = vunpack.c.h.b16 %v441
        %v719 = vunpack.c.l.b16 %v442
        %v720 = vunpack.c.h.b16 %v442
        %v721 = vunpack.c.l.b16 %v443
        %v722 = vunpack.c.h.b16 %v443
        %v723 = vunpack.c.l.b16 %v444
        %v724 = vunpack.c.h.b16 %v444
        %v725 = vunpack.c.l.b16 %v445
        %v726 = vunpack.c.h.b16 %v445
        %v727 = vunpack.c.l.b16 %v446
        %v728 = vunpack.c.h.b16 %v446
        %v729 = vunpack.c.l.b16 %v447
        %v730 = vunpack.c.h.b16 %v447
        %v731 = vunpack.c.l.b16 %v448
        %v732 = vunpack.c.h.b16 %v448
        %v733 = vunpack.c.l.b16 %v449
        %v734 = vunpack.c.h.b16 %v449
        %v735 = vunpack.c.l.b16 %v450
        %v736 = vunpack.c.h.b16 %v450
        %v737 = vunpack.c.l.b16 %v451
        %v738 = vunpack.c.h.b16 %v451
        %v739 = vunpack.c.l.b16 %v452
        %v740 = vunpack.c.h.b16 %v452
        %v741 = vunpack.c.l.b16 %v453
        %v742 = vunpack.c.h.b16 %v453
        %v743 = vunpack.c.l.b16 %v454
        %v744 = vunpack.c.h.b16 %v454
        %v745 = vunpack.c.l.b16 %v455
        %v746 = vunpack.c.h.b16 %v455
        %v747 = vunpack.c.l.b16 %v456
        %v748 = vunpack.c.h.b16 %v456
        %v749 = vunpack.c.l.b16 %v457
        %v750 = vunpack.c.h.b16 %v457
        %v751 = vunpack.c.l.b16 %v458
        %v752 = vunpack.c.h.b16 %v458
        %v753 = vunpack.c.l.b16 %v459
        %v754 = vunpack.c.h.b16 %v459
        %v755 = vunpack.c.l.b16 %v460
        %v756 = vunpack.c.h.b16 %v460
        %v757 = vunpack.c.l.b16 %v461
        %v758 = vunpack.c.h.b16 %v461
        %v759 = vunpack.c.l.b16 %v462
        %v760 = vunpack.c.h.b16 %v462
        %v761 = vunpack.c.l.b16 %v463
        %v762 = vunpack.c.h.b16 %v463
        %v763 = vunpack.c.l.b16 %v464
        %v764 = vunpack.c.h.b16 %v464
        %v765 = vunpack.c.l.b16 %v465
        %v766 = vunpack.c.h.b16 %v465
        %v767 = vunpack.c.l.b16 %v466
        %v768 = vunpack.c.h.b16 %v466
        %v769 = vunpack.c.l.b16 %v467
        %v770 = vunpack.c.h.b16 %v467
        %v771 = vunpack.c.l.b16 %v468
        %v772 = vunpack.c.h.b16 %v468
        %v773 = vunpack.c.l.b16 %v469
        %v774 = vunpack.c.h.b16 %v469
        %v775 = vunpack.c.l.b16 %v470
        %v776 = vunpack.c.h.b16 %v470
        %v777 = vunpack.c.l.b16 %v471
        %v778 = vunpack.c.h.b16 %v471
        %v779 = vunpack.c.l.b16 %v472
        %v780 = vunpack.c.h.b16 %v472
        %v781 = vunpack.c.l.b16 %v473
        %v782 = vunpack.c.h.b16 %v473
        %v783 = vunpack.c.l.b16 %v474
        %v784 = vunpack.c.h.b16 %v474
        %v785 = vunpack.c.l.b16 %v475
        %v786 = vunpack.c.h.b16 %v475
        %v787 = vunpack.c.l.b16 %v476
        %v788 = vunpack.c.h.b16 %v476
        %v789 = vunpack.c.l.b16 %v477
        %v790 = vunpack.c.h.b16 %v477
        %v791 = vunpack.c.l.b16 %v478
        %v792 = vunpack.c.h.b16 %v478
        %v793 = vunpack.c.l.b16 %v479
        %v794 = vunpack.c.h.b16 %v479
        %v795 = vunpack.c.l.b16 %v480
        %v796 = vunpack.c.h.b16 %v480
        %v797 = vunpack.c.l.b16 %v481
        %v798 = vunpack.c.h.b16 %v481
        %v799 = vunpack.c.l.b16 %v482
        %v800 = vunpack.c.h.b16 %v482
        %v801 = vunpack.c.l.b16 %v483
        %v802 = vunpack.c.h.b16 %v483
        %v803 = vunpack.c.l.b16 %v484
        %v804 = vunpack.c.h.b16 %v484
        %v805 = vpack.c.b16 %v685, %v677
        %v806 = vpack.c.b16 %v686, %v678
        %v807 = vpack.c.b16 %v687, %v679
        %v808 = vpack.c.b16 %v688, %v680
        %v809 = vpack.c.b16 %v689, %v681
        %v810 = vpack.c.b16 %v690, %v682
        %v811 = vpack.c.b16 %v691, %v683
        %v812 = vpack.c.b16 %v692, %v684
        %v813 = vpack.c.b16 %v701, %v693
        %v814 = vpack.c.b16 %v702, %v694
        %v815 = vpack.c.b16 %v703, %v695
        %v816 = vpack.c.b16 %v704, %v696
        %v817 = vpack.c.b16 %v705, %v697
        %v818 = vpack.c.b16 %v706, %v698
        %v819 = vpack.c.b16 %v707, %v699
        %v820 = vpack.c.b16 %v708, %v700
        %v821 = vpack.c.b16 %v717, %v709
        %v822 = vpack.c.b16 %v718, %v710
        %v823 = vpack.c.b16 %v719, %v711
        %v824 = vpack.c.b16 %v720, %v712
        %v825 = vpack.c.b16 %v721, %v713
        %v826 = vpack.c.b16 %v722, %v714
        %v827 = vpack.c.b16 %v723, %v715
        %v828 = vpack.c.b16 %v724, %v716
        %v829 = vpack.c.b16 %v733, %v725
        %v830 = vpack.c.b16 %v734, %v726
        %v831 = vpack.c.b16 %v735, %v727
        %v832 = vpack.c.b16 %v736, %v728
        %v833 = vpack.c.b16 %v737, %v729
        %v834 = vpack.c.b16 %v738, %v730
        %v835 = vpack.c.b16 %v739, %v731
        %v836 = vpack.c.b16 %v740, %v732
        %v837 = vpack.c.b16 %v749, %v741
        %v838 = vpack.c.b16 %v750, %v742
        %v839 = vpack.c.b16 %v751, %v743
        %v840 = vpack.c.b16 %v752, %v744
        %v841 = vpack.c.b16 %v753, %v745
        %v842 = vpack.c.b16 %v754, %v746
        %v843 = vpack.c.b16 %v755, %v747
        %v844 = vpack.c.b16 %v756, %v748
        %v845 = vpack.c.b16 %v765, %v757
        %v846 = vpack.c.b16 %v766, %v758
        %v847 = vpack.c.b16 %v767, %v759
        %v848 = vpack.c.b16 %v768, %v760
        %v849 = vpack.c.b16 %v769, %v761
        %v850 = vpack.c.b16 %v770, %v762
        %v851 = vpack.c.b16 %v771, %v763
        %v852 = vpack.c.b16 %v772, %v764
        %v853 = vpack.c.b16 %v781, %v773
        %v854 = vpack.c.b16 %v782, %v774
        %v855 = vpack.c.b16 %v783, %v775
        %v856 = vpack.c.b16 %v784, %v776
        %v857 = vpack.c.b16 %v785, %v777
        %v858 = vpack.c.b16 %v786, %v778
        %v859 = vpack.c.b16 %v787, %v779
        %v860 = vpack.c.b16 %v788, %v780
        %v861 = vpack.c.b16 %v797, %v789
        %v862 = vpack.c.b16 %v798, %v790
        %v863 = vpack.c.b16 %v799, %v791
        %v864 = vpack.c.b16 %v800, %v792
        %v865 = vpack.c.b16 %v801, %v793
        %v866 = vpack.c.b16 %v802, %v794
        %v867 = vpack.c.b16 %v803, %v795
        %v868 = vpack.c.b16 %v804, %v796
        %v1061 = vunpack.c.l.b16 %v485
        %v1062 = vunpack.c.l.b16 %v486
        %v1063 = vunpack.c.l.b16 %v487
        %v1064 = vunpack.c.l.b16 %v488
        %v1065 = vunpack.c.l.b16 %v489
        %v1066 = vunpack.c.l.b16 %v490
        %v1067 = vunpack.c.l.b16 %v491
        %v1068 = vunpack.c.l.b16 %v492
        %v1069 = vunpack.c.l.b16 %v493
        %v1070 = vunpack.c.l.b16 %v494
        %v1071 = vunpack.c.l.b16 %v495
        %v1072 = vunpack.c.l.b16 %v496
        %v1073 = vunpack.c.l.b16 %v497
        %v1074 = vunpack.c.l.b16 %v498
        %v1075 = vunpack.c.l.b16 %v499
        %v1076 = vunpack.c.l.b16 %v500
        %v1077 = vunpack.c.l.b16 %v501
        %v1078 = vunpack.c.l.b16 %v502
        %v1079 = vunpack.c.l.b16 %v503
        %v1080 = vunpack.c.l.b16 %v504
        %v1081 = vunpack.c.l.b16 %v505
        %v1082 = vunpack.c.l.b16 %v506
        %v1083 = vunpack.c.l.b16 %v507
        %v1084 = vunpack.c.l.b16 %v508
        %v1085 = vunpack.c.l.b16 %v509
        %v1086 = vunpack.c.l.b16 %v510
        %v1087 = vunpack.c.l.b16 %v511
        %v1088 = vunpack.c.l.b16 %v512
        %v1089 = vunpack.c.l.b16 %v513
        %v1090 = vunpack.c.l.b16 %v514
        %v1091 = vunpack.c.l.b16 %v515
        %v1092 = vunpack.c.l.b16 %v516
        %v1093 = vunpack.c.l.b16 %v517
        %v1094 = vunpack.c.l.b16 %v518
        %v1095 = vunpack.c.l.b16 %v519
        %v1096 = vunpack.c.l.b16 %v520
        %v1097 = vunpack.c.l.b16 %v521
        %v1098 = vunpack.c.l.b16 %v522
        %v1099 = vunpack.c.l.b16 %v523
        %v1100 = vunpack.c.l.b16 %v524
        %v1101 = vunpack.c.l.b16 %v525
        %v1102 = vunpack.c.l.b16 %v526
        %v1103 = vunpack.c.l.b16 %v527
        %v1104 = vunpack.c.l.b16 %v528
        %v1105 = vunpack.c.l.b16 %v529
        %v1106 = vunpack.c.l.b16 %v530
        %v1107 = vunpack.c.l.b16 %v531
        %v1108 = vunpack.c.l.b16 %v532
        %v1109 = vunpack.c.l.b16 %v533
        %v1110 = vunpack.c.l.b16 %v534
        %v1111 = vunpack.c.l.b16 %v535
        %v1112 = vunpack.c.l.b16 %v536
        %v1113 = vunpack.c.l.b16 %v537
        %v1114 = vunpack.c.l.b16 %v538
        %v1115 = vunpack.c.l.b16 %v539
        %v1116 = vunpack.c.l.b16 %v540
        %v1117 = vunpack.c.l.b16 %v541
        %v1118 = vunpack.c.l.b16 %v542
        %v1119 = vunpack.c.l.b16 %v543
        %v1120 = vunpack.c.l.b16 %v544
        %v1121 = vunpack.c.l.b16 %v545
        %v1122 = vunpack.c.l.b16 %v546
        %v1123 = vunpack.c.l.b16 %v547
        %v1124 = vunpack.c.l.b16 %v548
        %v1125 = vunpack.c.l.b16 %v549
        %v1126 = vunpack.c.l.b16 %v550
        %v1127 = vunpack.c.l.b16 %v551
        %v1128 = vunpack.c.l.b16 %v552
        %v1129 = vunpack.c.l.b16 %v553
        %v1130 = vunpack.c.l.b16 %v554
        %v1131 = vunpack.c.l.b16 %v555
        %v1132 = vunpack.c.l.b16 %v556
        %v1133 = vunpack.c.l.b16 %v557
        %v1134 = vunpack.c.l.b16 %v558
        %v1135 = vunpack.c.l.b16 %v559
        %v1136 = vunpack.c.l.b16 %v560
        %v1137 = vunpack.c.l.b16 %v561
        %v1138 = vunpack.c.l.b16 %v562
        %v1139 = vunpack.c.l.b16 %v563
        %v1140 = vunpack.c.l.b16 %v564
        %v1141 = vunpack.c.l.b16 %v565
        %v1142 = vunpack.c.l.b16 %v566
        %v1143 = vunpack.c.l.b16 %v567
        %v1144 = vunpack.c.l.b16 %v568
        %v1145 = vunpack.c.l.b16 %v569
        %v1146 = vunpack.c.l.b16 %v570
        %v1147 = vunpack.c.l.b16 %v571
        %v1148 = vunpack.c.l.b16 %v572
        %v1149 = vunpack.c.l.b16 %v573
        %v1150 = vunpack.c.l.b16 %v574
        %v1151 = vunpack.c.l.b16 %v575
        %v1152 = vunpack.c.l.b16 %v576
        %v1153 = vunpack.c.l.b16 %v577
        %v1154 = vunpack.c.l.b16 %v578
        %v1155 = vunpack.c.l.b16 %v579
        %v1156 = vunpack.c.l.b16 %v580
        %v1157 = vunpack.c.l.b16 %v581
        %v1158 = vunpack.c.l.b16 %v582
        %v1159 = vunpack.c.l.b16 %v583
        %v1160 = vunpack.c.l.b16 %v584
        %v1161 = vunpack.c.l.b16 %v585
        %v1162 = vunpack.c.l.b16 %v586
        %v1163 = vunpack.c.l.b16 %v587
        %v1164 = vunpack.c.l.b16 %v588
        %v1165 = vunpack.c.l.b16 %v589
        %v1166 = vunpack.c.l.b16 %v590
        %v1167 = vunpack.c.l.b16 %v591
        %v1168 = vunpack.c.l.b16 %v592
        %v1169 = vunpack.c.l.b16 %v593
        %v1170 = vunpack.c.l.b16 %v594
        %v1171 = vunpack.c.l.b16 %v595
        %v1172 = vunpack.c.l.b16 %v596
        %v1173 = vunpack.c.l.b16 %v597
        %v1174 = vunpack.c.l.b16 %v598
        %v1175 = vunpack.c.l.b16 %v599
        %v1176 = vunpack.c.l.b16 %v600
        %v1177 = vunpack.c.l.b16 %v601
        %v1178 = vunpack.c.l.b16 %v602
        %v1179 = vunpack.c.l.b16 %v603
        %v1180 = vunpack.c.l.b16 %v604
        %v1181 = vunpack.c.l.b16 %v605
        %v1182 = vunpack.c.l.b16 %v606
        %v1183 = vunpack.c.l.b16 %v607
        %v1184 = vunpack.c.l.b16 %v608
        %v1185 = vunpack.c.l.b16 %v609
        %v1186 = vunpack.c.l.b16 %v610
        %v1187 = vunpack.c.l.b16 %v611
        %v1188 = vunpack.c.l.b16 %v612
        %v1189 = vpack.c.b16 %v1062, %v1061
        %v1190 = vpack.c.b16 %v1064, %v1063
        %v1191 = vpack.c.b16 %v1066, %v1065
        %v1192 = vpack.c.b16 %v1068, %v1067
        %v1193 = vpack.c.b16 %v1070, %v1069
        %v1194 = vpack.c.b16 %v1072, %v1071
        %v1195 = vpack.c.b16 %v1074, %v1073
        %v1196 = vpack.c.b16 %v1076, %v1075
        %v1197 = vpack.c.b16 %v1078, %v1077
        %v1198 = vpack.c.b16 %v1080, %v1079
        %v1199 = vpack.c.b16 %v1082, %v1081
        %v1200 = vpack.c.b16 %v1084, %v1083
        %v1201 = vpack.c.b16 %v1086, %v1085
        %v1202 = vpack.c.b16 %v1088, %v1087
        %v1203 = vpack.c.b16 %v1090, %v1089
        %v1204 = vpack.c.b16 %v1092, %v1091
        %v1205 = vpack.c.b16 %v1094, %v1093
        %v1206 = vpack.c.b16 %v1096, %v1095
        %v1207 = vpack.c.b16 %v1098, %v1097
        %v1208 = vpack.c.b16 %v1100, %v1099
        %v1209 = vpack.c.b16 %v1102, %v1101
        %v1210 = vpack.c.b16 %v1104, %v1103
        %v1211 = vpack.c.b16 %v1106, %v1105
        %v1212 = vpack.c.b16 %v1108, %v1107
        %v1213 = vpack.c.b16 %v1110, %v1109
        %v1214 = vpack.c.b16 %v1112, %v1111
        %v1215 = vpack.c.b16 %v1114, %v1113
        %v1216 = vpack.c.b16 %v1116, %v1115
        %v1217 = vpack.c.b16 %v1118, %v1117
        %v1218 = vpack.c.b16 %v1120, %v1119
        %v1219 = vpack.c.b16 %v1122, %v1121
        %v1220 = vpack.c.b16 %v1124, %v1123
        %v1221 = vpack.c.b16 %v1126, %v1125
        %v1222 = vpack.c.b16 %v1128, %v1127
        %v1223 = vpack.c.b16 %v1130, %v1129
        %v1224 = vpack.c.b16 %v1132, %v1131
        %v1225 = vpack.c.b16 %v1134, %v1133
        %v1226 = vpack.c.b16 %v1136, %v1135
        %v1227 = vpack.c.b16 %v1138, %v1137
        %v1228 = vpack.c.b16 %v1140, %v1139
        %v1229 = vpack.c.b16 %v1142, %v1141
        %v1230 = vpack.c.b16 %v1144, %v1143
        %v1231 = vpack.c.b16 %v1146, %v1145
        %v1232 = vpack.c.b16 %v1148, %v1147
        %v1233 = vpack.c.b16 %v1150, %v1149
        %v1234 = vpack.c.b16 %v1152, %v1151
        %v1235 = vpack.c.b16 %v1154, %v1153
        %v1236 = vpack.c.b16 %v1156, %v1155
        %v1237 = vpack.c.b16 %v1158, %v1157
        %v1238 = vpack.c.b16 %v1160, %v1159
        %v1239 = vpack.c.b16 %v1162, %v1161
        %v1240 = vpack.c.b16 %v1164, %v1163
        %v1241 = vpack.c.b16 %v1166, %v1165
        %v1242 = vpack.c.b16 %v1168, %v1167
        %v1243 = vpack.c.b16 %v1170, %v1169
        %v1244 = vpack.c.b16 %v1172, %v1171
        %v1245 = vpack.c.b16 %v1174, %v1173
        %v1246 = vpack.c.b16 %v1176, %v1175
        %v1247 = vpack.c.b16 %v1178, %v1177
        %v1248 = vpack.c.b16 %v1180, %v1179
        %v1249 = vpack.c.b16 %v1182, %v1181
        %v1250 = vpack.c.b16 %v1184, %v1183
        %v1251 = vpack.c.b16 %v1186, %v1185
        %v1252 = vpack.c.b16 %v1188, %v1187
        %1317 = vmatprep.subr.bf16.mxu0 0
        %1318 = vmatpush1.bf16.msra.mxu0 %v1196
        %1319 = vmatprep.subr.bf16.mxu0 0
        %1320 = vmatpush1.bf16.msra.mxu0 %v1195
        %1321 = vmatprep.subr.bf16.mxu0 0
        %1322 = vmatpush1.bf16.msra.mxu0 %v1194
        %1323 = vmatprep.subr.bf16.mxu0 0
        %1324 = vmatpush1.bf16.msra.mxu0 %v1193
        %1325 = vmatprep.subr.bf16.mxu0 0
        %1326 = vmatpush1.bf16.msra.mxu0 %v1192
        %1327 = vmatprep.subr.bf16.mxu0 0
        %1328 = vmatpush1.bf16.msra.mxu0 %v1191
        %1329 = vmatprep.subr.bf16.mxu0 0
        %1330 = vmatpush1.bf16.msra.mxu0 %v1190
        %1331 = vmatprep.subr.bf16.mxu0 0
        %1332 = vmatpush1.bf16.msra.mxu0 %v1189
        %1333 = vmatprep.subr.bf16.mxu0 0
        %1334 = vmatpush2.bf16.msra.mxu0 %v1204
        %1335 = vmatprep.subr.bf16.mxu0 0
        %1336 = vmatpush2.bf16.msra.mxu0 %v1203
        %1337 = vmatprep.subr.bf16.mxu0 0
        %1338 = vmatpush2.bf16.msra.mxu0 %v1202
        %1339 = vmatprep.subr.bf16.mxu0 0
        %1340 = vmatpush2.bf16.msra.mxu0 %v1201
        %1341 = vmatprep.subr.bf16.mxu0 0
        %1342 = vmatpush2.bf16.msra.mxu0 %v1200
        %1343 = vmatprep.subr.bf16.mxu0 0
        %1344 = vmatpush2.bf16.msra.mxu0 %v1199
        %1345 = vmatprep.subr.bf16.mxu0 0
        %1346 = vmatpush2.bf16.msra.mxu0 %v1198
        %1347 = vmatprep.subr.bf16.mxu0 0
        %1348 = vmatpush2.bf16.msra.mxu0 %v1197
        %1349 = vmatprep.mubr.bf16.mxu0 %v806
        %1350 = vmatmul.mubr.bf16.gmra.mxu0 %v805
        %v1351 = vpop.f32.mrf.mxu0
        %v1352 = vadd.f32 0.0, %v1351
        %v1353 = vpop.f32.mrf.mxu0
        %v1354 = vpop.f32.mrf.mxu0
        %v1355 = vadd.f32 0.0, %v1354
        %v1356 = vpop.f32.mrf.mxu0
        %1357 = vmatprep.mubr.bf16.mxu0 %v814
        %1358 = vmatmul.mubr.bf16.gmra.mxu0 %v813
        %v1359 = vpop.f32.mrf.mxu0
        %v1360 = vadd.f32 0.0, %v1359
        %v1361 = vpop.f32.mrf.mxu0
        %v1362 = vpop.f32.mrf.mxu0
        %v1363 = vadd.f32 0.0, %v1362
        %v1364 = vpop.f32.mrf.mxu0
        %1365 = vmatprep.mubr.bf16.mxu0 %v822
        %1366 = vmatmul.mubr.bf16.gmra.mxu0 %v821
        %v1367 = vpop.f32.mrf.mxu0
        %v1368 = vadd.f32 0.0, %v1367
        %v1369 = vpop.f32.mrf.mxu0
        %v1370 = vpop.f32.mrf.mxu0
        %v1371 = vadd.f32 0.0, %v1370
        %v1372 = vpop.f32.mrf.mxu0
        %1373 = vmatprep.mubr.bf16.mxu0 %v830
        %1374 = vmatmul.mubr.bf16.gmra.mxu0 %v829
        %v1375 = vpop.f32.mrf.mxu0
        %v1376 = vadd.f32 0.0, %v1375
        %v1377 = vpop.f32.mrf.mxu0
        %v1378 = vpop.f32.mrf.mxu0
        %v1379 = vadd.f32 0.0, %v1378
        %v1380 = vpop.f32.mrf.mxu0
        %1381 = vmatprep.mubr.bf16.mxu0 %v838
        %1382 = vmatmul.mubr.bf16.gmra.mxu0 %v837
        %v1383 = vpop.f32.mrf.mxu0
        %v1384 = vadd.f32 0.0, %v1383
        %v1385 = vpop.f32.mrf.mxu0
        %v1386 = vpop.f32.mrf.mxu0
        %v1387 = vadd.f32 0.0, %v1386
        %v1388 = vpop.f32.mrf.mxu0
        %1389 = vmatprep.mubr.bf16.mxu0 %v846
        %1390 = vmatmul.mubr.bf16.gmra.mxu0 %v845
        %v1391 = vpop.f32.mrf.mxu0
        %v1392 = vadd.f32 0.0, %v1391
        %v1393 = vpop.f32.mrf.mxu0
        %v1394 = vpop.f32.mrf.mxu0
        %v1395 = vadd.f32 0.0, %v1394
        %v1396 = vpop.f32.mrf.mxu0
        %1397 = vmatprep.mubr.bf16.mxu0 %v854
        %1398 = vmatmul.mubr.bf16.gmra.mxu0 %v853
        %v1399 = vpop.f32.mrf.mxu0
        %v1400 = vadd.f32 0.0, %v1399
        %v1401 = vpop.f32.mrf.mxu0
        %v1402 = vpop.f32.mrf.mxu0
        %v1403 = vadd.f32 0.0, %v1402
        %v1404 = vpop.f32.mrf.mxu0
        %1405 = vmatprep.mubr.bf16.mxu0 %v862
        %1406 = vmatmul.mubr.bf16.gmra.mxu0 %v861
        %v1407 = vpop.f32.mrf.mxu0
        %v1408 = vadd.f32 0.0, %v1407
        %v1409 = vpop.f32.mrf.mxu0
        %v1410 = vpop.f32.mrf.mxu0
        %v1411 = vadd.f32 0.0, %v1410
        %v1412 = vpop.f32.mrf.mxu0
        %1413 = vdwg.mxu0
        %1414 = vmatprep.subr.bf16.mxu0 0
        %1415 = vmatpush1.bf16.msra.mxu0 %v1212
        %1416 = vmatprep.subr.bf16.mxu0 0
        %1417 = vmatpush1.bf16.msra.mxu0 %v1211
        %1418 = vmatprep.subr.bf16.mxu0 0
        %1419 = vmatpush1.bf16.msra.mxu0 %v1210
        %1420 = vmatprep.subr.bf16.mxu0 0
        %1421 = vmatpush1.bf16.msra.mxu0 %v1209
        %1422 = vmatprep.subr.bf16.mxu0 0
        %1423 = vmatpush1.bf16.msra.mxu0 %v1208
        %1424 = vmatprep.subr.bf16.mxu0 0
        %1425 = vmatpush1.bf16.msra.mxu0 %v1207
        %1426 = vmatprep.subr.bf16.mxu0 0
        %1427 = vmatpush1.bf16.msra.mxu0 %v1206
        %1428 = vmatprep.subr.bf16.mxu0 0
        %1429 = vmatpush1.bf16.msra.mxu0 %v1205
        %1430 = vmatprep.subr.bf16.mxu0 0
        %1431 = vmatpush2.bf16.msra.mxu0 %v1220
        %1432 = vmatprep.subr.bf16.mxu0 0
        %1433 = vmatpush2.bf16.msra.mxu0 %v1219
        %1434 = vmatprep.subr.bf16.mxu0 0
        %1435 = vmatpush2.bf16.msra.mxu0 %v1218
        %1436 = vmatprep.subr.bf16.mxu0 0
        %1437 = vmatpush2.bf16.msra.mxu0 %v1217
        %1438 = vmatprep.subr.bf16.mxu0 0
        %1439 = vmatpush2.bf16.msra.mxu0 %v1216
        %1440 = vmatprep.subr.bf16.mxu0 0
        %1441 = vmatpush2.bf16.msra.mxu0 %v1215
        %1442 = vmatprep.subr.bf16.mxu0 0
        %1443 = vmatpush2.bf16.msra.mxu0 %v1214
        %1444 = vmatprep.subr.bf16.mxu0 0
        %1445 = vmatpush2.bf16.msra.mxu0 %v1213
        %1446 = vmatprep.mubr.bf16.mxu0 %v808
        %1447 = vmatmul.mubr.bf16.gmra.mxu0 %v807
        %v1448 = vpop.f32.mrf.mxu0
        %v1449 = vadd.f32 %v1352, %v1448
        %v1450 = vpop.f32.mrf.mxu0
        %v1451 = vpop.f32.mrf.mxu0
        %v1452 = vadd.f32 %v1355, %v1451
        %v1453 = vpop.f32.mrf.mxu0
        %1454 = vmatprep.mubr.bf16.mxu0 %v816
        %1455 = vmatmul.mubr.bf16.gmra.mxu0 %v815
        %v1456 = vpop.f32.mrf.mxu0
        %v1457 = vadd.f32 %v1360, %v1456
        %v1458 = vpop.f32.mrf.mxu0
        %v1459 = vpop.f32.mrf.mxu0
        %v1460 = vadd.f32 %v1363, %v1459
        %v1461 = vpop.f32.mrf.mxu0
        %1462 = vmatprep.mubr.bf16.mxu0 %v824
        %1463 = vmatmul.mubr.bf16.gmra.mxu0 %v823
        %v1464 = vpop.f32.mrf.mxu0
        %v1465 = vadd.f32 %v1368, %v1464
        %v1466 = vpop.f32.mrf.mxu0
        %v1467 = vpop.f32.mrf.mxu0
        %v1468 = vadd.f32 %v1371, %v1467
        %v1469 = vpop.f32.mrf.mxu0
        %1470 = vmatprep.mubr.bf16.mxu0 %v832
        %1471 = vmatmul.mubr.bf16.gmra.mxu0 %v831
        %v1472 = vpop.f32.mrf.mxu0
        %v1473 = vadd.f32 %v1376, %v1472
        %v1474 = vpop.f32.mrf.mxu0
        %v1475 = vpop.f32.mrf.mxu0
        %v1476 = vadd.f32 %v1379, %v1475
        %v1477 = vpop.f32.mrf.mxu0
        %1478 = vmatprep.mubr.bf16.mxu0 %v840
        %1479 = vmatmul.mubr.bf16.gmra.mxu0 %v839
        %v1480 = vpop.f32.mrf.mxu0
        %v1481 = vadd.f32 %v1384, %v1480
        %v1482 = vpop.f32.mrf.mxu0
        %v1483 = vpop.f32.mrf.mxu0
        %v1484 = vadd.f32 %v1387, %v1483
        %v1485 = vpop.f32.mrf.mxu0
        %1486 = vmatprep.mubr.bf16.mxu0 %v848
        %1487 = vmatmul.mubr.bf16.gmra.mxu0 %v847
        %v1488 = vpop.f32.mrf.mxu0
        %v1489 = vadd.f32 %v1392, %v1488
        %v1490 = vpop.f32.mrf.mxu0
        %v1491 = vpop.f32.mrf.mxu0
        %v1492 = vadd.f32 %v1395, %v1491
        %v1493 = vpop.f32.mrf.mxu0
        %1494 = vmatprep.mubr.bf16.mxu0 %v856
        %1495 = vmatmul.mubr.bf16.gmra.mxu0 %v855
        %v1496 = vpop.f32.mrf.mxu0
        %v1497 = vadd.f32 %v1400, %v1496
        %v1498 = vpop.f32.mrf.mxu0
        %v1499 = vpop.f32.mrf.mxu0
        %v1500 = vadd.f32 %v1403, %v1499
        %v1501 = vpop.f32.mrf.mxu0
        %1502 = vmatprep.mubr.bf16.mxu0 %v864
        %1503 = vmatmul.mubr.bf16.gmra.mxu0 %v863
        %v1504 = vpop.f32.mrf.mxu0
        %v1505 = vadd.f32 %v1408, %v1504
        %v1506 = vpop.f32.mrf.mxu0
        %v1507 = vpop.f32.mrf.mxu0
        %v1508 = vadd.f32 %v1411, %v1507
        %v1509 = vpop.f32.mrf.mxu0
        %1510 = vdwg.mxu0
        %1511 = vmatprep.subr.bf16.mxu0 0
        %1512 = vmatpush1.bf16.msra.mxu0 %v1228
        %1513 = vmatprep.subr.bf16.mxu0 0
        %1514 = vmatpush1.bf16.msra.mxu0 %v1227
        %1515 = vmatprep.subr.bf16.mxu0 0
        %1516 = vmatpush1.bf16.msra.mxu0 %v1226
        %1517 = vmatprep.subr.bf16.mxu0 0
        %1518 = vmatpush1.bf16.msra.mxu0 %v1225
        %1519 = vmatprep.subr.bf16.mxu0 0
        %1520 = vmatpush1.bf16.msra.mxu0 %v1224
        %1521 = vmatprep.subr.bf16.mxu0 0
        %1522 = vmatpush1.bf16.msra.mxu0 %v1223
        %1523 = vmatprep.subr.bf16.mxu0 0
        %1524 = vmatpush1.bf16.msra.mxu0 %v1222
        %1525 = vmatprep.subr.bf16.mxu0 0
        %1526 = vmatpush1.bf16.msra.mxu0 %v1221
        %1527 = vmatprep.subr.bf16.mxu0 0
        %1528 = vmatpush2.bf16.msra.mxu0 %v1236
        %1529 = vmatprep.subr.bf16.mxu0 0
        %1530 = vmatpush2.bf16.msra.mxu0 %v1235
        %1531 = vmatprep.subr.bf16.mxu0 0
        %1532 = vmatpush2.bf16.msra.mxu0 %v1234
        %1533 = vmatprep.subr.bf16.mxu0 0
        %1534 = vmatpush2.bf16.msra.mxu0 %v1233
        %1535 = vmatprep.subr.bf16.mxu0 0
        %1536 = vmatpush2.bf16.msra.mxu0 %v1232
        %1537 = vmatprep.subr.bf16.mxu0 0
        %1538 = vmatpush2.bf16.msra.mxu0 %v1231
        %1539 = vmatprep.subr.bf16.mxu0 0
        %1540 = vmatpush2.bf16.msra.mxu0 %v1230
        %1541 = vmatprep.subr.bf16.mxu0 0
        %1542 = vmatpush2.bf16.msra.mxu0 %v1229
        %1543 = vmatprep.mubr.bf16.mxu0 %v810
        %1544 = vmatmul.mubr.bf16.gmra.mxu0 %v809
        %v1545 = vpop.f32.mrf.mxu0
        %v1546 = vadd.f32 %v1449, %v1545
        %v1547 = vpop.f32.mrf.mxu0
        %v1548 = vpop.f32.mrf.mxu0
        %v1549 = vadd.f32 %v1452, %v1548
        %v1550 = vpop.f32.mrf.mxu0
        %1551 = vmatprep.mubr.bf16.mxu0 %v818
        %1552 = vmatmul.mubr.bf16.gmra.mxu0 %v817
        %v1553 = vpop.f32.mrf.mxu0
        %v1554 = vadd.f32 %v1457, %v1553
        %v1555 = vpop.f32.mrf.mxu0
        %v1556 = vpop.f32.mrf.mxu0
        %v1557 = vadd.f32 %v1460, %v1556
        %v1558 = vpop.f32.mrf.mxu0
        %1559 = vmatprep.mubr.bf16.mxu0 %v826
        %1560 = vmatmul.mubr.bf16.gmra.mxu0 %v825
        %v1561 = vpop.f32.mrf.mxu0
        %v1562 = vadd.f32 %v1465, %v1561
        %v1563 = vpop.f32.mrf.mxu0
        %v1564 = vpop.f32.mrf.mxu0
        %v1565 = vadd.f32 %v1468, %v1564
        %v1566 = vpop.f32.mrf.mxu0
        %1567 = vmatprep.mubr.bf16.mxu0 %v834
        %1568 = vmatmul.mubr.bf16.gmra.mxu0 %v833
        %v1569 = vpop.f32.mrf.mxu0
        %v1570 = vadd.f32 %v1473, %v1569
        %v1571 = vpop.f32.mrf.mxu0
        %v1572 = vpop.f32.mrf.mxu0
        %v1573 = vadd.f32 %v1476, %v1572
        %v1574 = vpop.f32.mrf.mxu0
        %1575 = vmatprep.mubr.bf16.mxu0 %v842
        %1576 = vmatmul.mubr.bf16.gmra.mxu0 %v841
        %v1577 = vpop.f32.mrf.mxu0
        %v1578 = vadd.f32 %v1481, %v1577
        %v1579 = vpop.f32.mrf.mxu0
        %v1580 = vpop.f32.mrf.mxu0
        %v1581 = vadd.f32 %v1484, %v1580
        %v1582 = vpop.f32.mrf.mxu0
        %1583 = vmatprep.mubr.bf16.mxu0 %v850
        %1584 = vmatmul.mubr.bf16.gmra.mxu0 %v849
        %v1585 = vpop.f32.mrf.mxu0
        %v1586 = vadd.f32 %v1489, %v1585
        %v1587 = vpop.f32.mrf.mxu0
        %v1588 = vpop.f32.mrf.mxu0
        %v1589 = vadd.f32 %v1492, %v1588
        %v1590 = vpop.f32.mrf.mxu0
        %1591 = vmatprep.mubr.bf16.mxu0 %v858
        %1592 = vmatmul.mubr.bf16.gmra.mxu0 %v857
        %v1593 = vpop.f32.mrf.mxu0
        %v1594 = vadd.f32 %v1497, %v1593
        %v1595 = vpop.f32.mrf.mxu0
        %v1596 = vpop.f32.mrf.mxu0
        %v1597 = vadd.f32 %v1500, %v1596
        %v1598 = vpop.f32.mrf.mxu0
        %1599 = vmatprep.mubr.bf16.mxu0 %v866
        %1600 = vmatmul.mubr.bf16.gmra.mxu0 %v865
        %v1601 = vpop.f32.mrf.mxu0
        %v1602 = vadd.f32 %v1505, %v1601
        %v1603 = vpop.f32.mrf.mxu0
        %v1604 = vpop.f32.mrf.mxu0
        %v1605 = vadd.f32 %v1508, %v1604
        %v1606 = vpop.f32.mrf.mxu0
        %1607 = vdwg.mxu0
        %1608 = vmatprep.subr.bf16.mxu0 0
        %1609 = vmatpush1.bf16.msra.mxu0 %v1244
        %1610 = vmatprep.subr.bf16.mxu0 0
        %1611 = vmatpush1.bf16.msra.mxu0 %v1243
        %1612 = vmatprep.subr.bf16.mxu0 0
        %1613 = vmatpush1.bf16.msra.mxu0 %v1242
        %1614 = vmatprep.subr.bf16.mxu0 0
        %1615 = vmatpush1.bf16.msra.mxu0 %v1241
        %1616 = vmatprep.subr.bf16.mxu0 0
        %1617 = vmatpush1.bf16.msra.mxu0 %v1240
        %1618 = vmatprep.subr.bf16.mxu0 0
        %1619 = vmatpush1.bf16.msra.mxu0 %v1239
        %1620 = vmatprep.subr.bf16.mxu0 0
        %1621 = vmatpush1.bf16.msra.mxu0 %v1238
        %1622 = vmatprep.subr.bf16.mxu0 0
        %1623 = vmatpush1.bf16.msra.mxu0 %v1237
        %1624 = vmatprep.subr.bf16.mxu0 0
        %1625 = vmatpush2.bf16.msra.mxu0 %v1252
        %1626 = vmatprep.subr.bf16.mxu0 0
        %1627 = vmatpush2.bf16.msra.mxu0 %v1251
        %1628 = vmatprep.subr.bf16.mxu0 0
        %1629 = vmatpush2.bf16.msra.mxu0 %v1250
        %1630 = vmatprep.subr.bf16.mxu0 0
        %1631 = vmatpush2.bf16.msra.mxu0 %v1249
        %1632 = vmatprep.subr.bf16.mxu0 0
        %1633 = vmatpush2.bf16.msra.mxu0 %v1248
        %1634 = vmatprep.subr.bf16.mxu0 0
        %1635 = vmatpush2.bf16.msra.mxu0 %v1247
        %1636 = vmatprep.subr.bf16.mxu0 0
        %1637 = vmatpush2.bf16.msra.mxu0 %v1246
        %1638 = vmatprep.subr.bf16.mxu0 0
        %1639 = vmatpush2.bf16.msra.mxu0 %v1245
        %1640 = vmatprep.mubr.bf16.mxu0 %v812
        %1641 = vmatmul.mubr.bf16.gmra.mxu0 %v811
        %v1642 = vpop.f32.mrf.mxu0
        %v1643 = vadd.f32 %v1546, %v1642
        %v1644 = vpop.f32.mrf.mxu0
        %v1645 = vpop.f32.mrf.mxu0
        %v1646 = vadd.f32 %v1549, %v1645
        %v1647 = vpop.f32.mrf.mxu0
        %1648 = vmatprep.mubr.bf16.mxu0 %v820
        %1649 = vmatmul.mubr.bf16.gmra.mxu0 %v819
        %v1650 = vpop.f32.mrf.mxu0
        %v1651 = vadd.f32 %v1554, %v1650
        %v1652 = vpop.f32.mrf.mxu0
        %v1653 = vpop.f32.mrf.mxu0
        %v1654 = vadd.f32 %v1557, %v1653
        %v1655 = vpop.f32.mrf.mxu0
        %1656 = vmatprep.mubr.bf16.mxu0 %v828
        %1657 = vmatmul.mubr.bf16.gmra.mxu0 %v827
        %v1658 = vpop.f32.mrf.mxu0
        %v1659 = vadd.f32 %v1562, %v1658
        %v1660 = vpop.f32.mrf.mxu0
        %v1661 = vpop.f32.mrf.mxu0
        %v1662 = vadd.f32 %v1565, %v1661
        %v1663 = vpop.f32.mrf.mxu0
        %1664 = vmatprep.mubr.bf16.mxu0 %v836
        %1665 = vmatmul.mubr.bf16.gmra.mxu0 %v835
        %v1666 = vpop.f32.mrf.mxu0
        %v1667 = vadd.f32 %v1570, %v1666
        %v1668 = vpop.f32.mrf.mxu0
        %v1669 = vpop.f32.mrf.mxu0
        %v1670 = vadd.f32 %v1573, %v1669
        %v1671 = vpop.f32.mrf.mxu0
        %1672 = vmatprep.mubr.bf16.mxu0 %v844
        %1673 = vmatmul.mubr.bf16.gmra.mxu0 %v843
        %v1674 = vpop.f32.mrf.mxu0
        %v1675 = vadd.f32 %v1578, %v1674
        %v1676 = vpop.f32.mrf.mxu0
        %v1677 = vpop.f32.mrf.mxu0
        %v1678 = vadd.f32 %v1581, %v1677
        %v1679 = vpop.f32.mrf.mxu0
        %1680 = vmatprep.mubr.bf16.mxu0 %v852
        %1681 = vmatmul.mubr.bf16.gmra.mxu0 %v851
        %v1682 = vpop.f32.mrf.mxu0
        %v1683 = vadd.f32 %v1586, %v1682
        %v1684 = vpop.f32.mrf.mxu0
        %v1685 = vpop.f32.mrf.mxu0
        %v1686 = vadd.f32 %v1589, %v1685
        %v1687 = vpop.f32.mrf.mxu0
        %1688 = vmatprep.mubr.bf16.mxu0 %v860
        %1689 = vmatmul.mubr.bf16.gmra.mxu0 %v859
        %v1690 = vpop.f32.mrf.mxu0
        %v1691 = vadd.f32 %v1594, %v1690
        %v1692 = vpop.f32.mrf.mxu0
        %v1693 = vpop.f32.mrf.mxu0
        %v1694 = vadd.f32 %v1597, %v1693
        %v1695 = vpop.f32.mrf.mxu0
        %1696 = vmatprep.mubr.bf16.mxu0 %v868
        %1697 = vmatmul.mubr.bf16.gmra.mxu0 %v867
        %v1698 = vpop.f32.mrf.mxu0
        %v1699 = vadd.f32 %v1602, %v1698
        %v1700 = vpop.f32.mrf.mxu0
        %v1701 = vpop.f32.mrf.mxu0
        %v1702 = vadd.f32 %v1605, %v1701
        %v1703 = vpop.f32.mrf.mxu0
        %1704 = vdwg.mxu0
        %v1705 = vadd.f32 %v405, %v1643
        %v1706 = vadd.f32 %v406, %v1646
        %v1707 = vadd.f32 %v407, %v1651
        %v1708 = vadd.f32 %v408, %v1654
        %v1709 = vadd.f32 %v409, %v1659
        %v1710 = vadd.f32 %v410, %v1662
        %v1711 = vadd.f32 %v411, %v1667
        %v1712 = vadd.f32 %v412, %v1670
        %v1713 = vadd.f32 %v413, %v1675
        %v1714 = vadd.f32 %v414, %v1678
        %v1715 = vadd.f32 %v415, %v1683
        %v1716 = vadd.f32 %v416, %v1686
        %v1717 = vadd.f32 %v417, %v1691
        %v1718 = vadd.f32 %v418, %v1694
        %v1719 = vadd.f32 %v419, %v1699
        %v1720 = vadd.f32 %v420, %v1702
        %1721 = vst [vmem:[#allocation2] sm:$0xff] %v1705
        %1722 = vst [vmem:[#allocation2 + $0x8] sm:$0xff] %v1706
        %1723 = vst [vmem:[#allocation2 + $0x10] sm:$0xff] %v1707
        %1724 = vst [vmem:[#allocation2 + $0x18] sm:$0xff] %v1708
        %1725 = vst [vmem:[#allocation2 + $0x20] sm:$0xff] %v1709
        %1726 = vst [vmem:[#allocation2 + $0x28] sm:$0xff] %v1710
        %1727 = vst [vmem:[#allocation2 + $0x30] sm:$0xff] %v1711
        %1728 = vst [vmem:[#allocation2 + $0x38] sm:$0xff] %v1712
        %1729 = vst [vmem:[#allocation2 + $0x40] sm:$0xff] %v1713
        %1730 = vst [vmem:[#allocation2 + $0x48] sm:$0xff] %v1714
        %1731 = vst [vmem:[#allocation2 + $0x50] sm:$0xff] %v1715
        %1732 = vst [vmem:[#allocation2 + $0x58] sm:$0xff] %v1716
        %1733 = vst [vmem:[#allocation2 + $0x60] sm:$0xff] %v1717
        %1734 = vst [vmem:[#allocation2 + $0x68] sm:$0xff] %v1718
        %1735 = vst [vmem:[#allocation2 + $0x70] sm:$0xff] %v1719
        %1736 = vst [vmem:[#allocation2 + $0x78] sm:$0xff] %v1720
        %p1737 = scmp.eq.s32.totalorder %s22, 2
        // Predicated region
        $region60: #{attention_forward.7} parent=50 // pred_check
          %p1738 = pneg %p1737
        $region61: #{attention_forward.7} parent=50 // pred_check_branch
          %1740 = sbr.rel (%p1738) target = $region63
        $region62: #{attention_forward.7} parent=50 // pred_region
          %v1741 = vld [vmem:[#allocation2] sm:$0xff]
          %v1742 = vld [vmem:[#allocation2 + $0x8] sm:$0xff]
          %v1743 = vld [vmem:[#allocation2 + $0x10] sm:$0xff]
          %v1744 = vld [vmem:[#allocation2 + $0x18] sm:$0xff]
          %v1745 = vld [vmem:[#allocation2 + $0x20] sm:$0xff]
          %v1746 = vld [vmem:[#allocation2 + $0x28] sm:$0xff]
          %v1747 = vld [vmem:[#allocation2 + $0x30] sm:$0xff]
          %v1748 = vld [vmem:[#allocation2 + $0x38] sm:$0xff]
          %v1749 = vld [vmem:[#allocation2 + $0x40] sm:$0xff]
          %v1750 = vld [vmem:[#allocation2 + $0x48] sm:$0xff]
          %v1751 = vld [vmem:[#allocation2 + $0x50] sm:$0xff]
          %v1752 = vld [vmem:[#allocation2 + $0x58] sm:$0xff]
          %v1753 = vld [vmem:[#allocation2 + $0x60] sm:$0xff]
          %v1754 = vld [vmem:[#allocation2 + $0x68] sm:$0xff]
          %v1755 = vld [vmem:[#allocation2 + $0x70] sm:$0xff]
          %v1756 = vld [vmem:[#allocation2 + $0x78] sm:$0xff]
          %v1757 = vld [vmem:[%s382] sm:$0x1]
          %v1759 = vlaneseq
          %v1760 = vshrl.u32 %v1759, 7
          %v1761 = vsub.s32 0, %v1760
          %v1762 = vrot.slane %v1757, %v1761
          %v1764 = vadd.f32 %v1741, %v1762
          %v1765 = vadd.f32 %v1742, %v1762
          %v1766 = vadd.f32 %v1743, %v1762
          %v1767 = vadd.f32 %v1744, %v1762
          %v1768 = vadd.f32 %v1745, %v1762
          %v1769 = vadd.f32 %v1746, %v1762
          %v1770 = vadd.f32 %v1747, %v1762
          %v1771 = vadd.f32 %v1748, %v1762
          %v1772 = vadd.f32 %v1749, %v1762
          %v1773 = vadd.f32 %v1750, %v1762
          %v1774 = vadd.f32 %v1751, %v1762
          %v1775 = vadd.f32 %v1752, %v1762
          %v1776 = vadd.f32 %v1753, %v1762
          %v1777 = vadd.f32 %v1754, %v1762
          %v1778 = vadd.f32 %v1755, %v1762
          %v1779 = vadd.f32 %v1756, %v1762
          %1780 = vst [vmem:[#allocation4] sm:$0xff] %v1764
          %1781 = vst [vmem:[#allocation4 + $0x8] sm:$0xff] %v1765
          %1782 = vst [vmem:[#allocation4 + $0x10] sm:$0xff] %v1766
          %1783 = vst [vmem:[#allocation4 + $0x18] sm:$0xff] %v1767
          %1784 = vst [vmem:[#allocation4 + $0x20] sm:$0xff] %v1768
          %1785 = vst [vmem:[#allocation4 + $0x28] sm:$0xff] %v1769
          %1786 = vst [vmem:[#allocation4 + $0x30] sm:$0xff] %v1770
          %1787 = vst [vmem:[#allocation4 + $0x38] sm:$0xff] %v1771
          %1788 = vst [vmem:[#allocation4 + $0x40] sm:$0xff] %v1772
          %1789 = vst [vmem:[#allocation4 + $0x48] sm:$0xff] %v1773
          %1790 = vst [vmem:[#allocation4 + $0x50] sm:$0xff] %v1774
          %1791 = vst [vmem:[#allocation4 + $0x58] sm:$0xff] %v1775
          %1792 = vst [vmem:[#allocation4 + $0x60] sm:$0xff] %v1776
          %1793 = vst [vmem:[#allocation4 + $0x68] sm:$0xff] %v1777
          %1794 = vst [vmem:[#allocation4 + $0x70] sm:$0xff] %v1778
          %1795 = vst [vmem:[#allocation4 + $0x78] sm:$0xff] %v1779
        $region63: #{attention_forward.7} parent=50 // pred_fallthru
          _
        // Predicated region
        $region64: #{attention_forward.7} parent=50 // pred_check
          %p1796 = pneg %p136
        $region65: #{attention_forward.7} parent=50 // pred_check_branch
          %1798 = sbr.rel (%p1796) target = $region67
        $region66: #{attention_forward.7} parent=50 // pred_region
          %s1799 = smul.u32 16, %s20
          %s1801 = ssub.s32 2048, 2048
          %1802 = vsyncadd [#allocation5], %s1801
          %s1803 = sadd.s32 %s21, %s1799
          %s1804 = smul.addr %s1803, 128
          %s1805 = scalar_lea.hbm %s3, %s1804
          %s1806 = sshll.u32 [#allocation4], 4
          %s1807 = int_to_ptr.vmem [resolvable:$true] %s1806
          %1812 = dma.vmem_to_hbm [thread:$0]  %s1807, 2048, %s1805, [#allocation5], 128, 128, 8
        $region67: #{attention_forward.7} parent=50 // pred_fallthru
          _
        // Predicated region
        $region68: #{attention_forward.7} parent=50 // pred_check
          %p1813 = pneg %p136
        $region69: #{attention_forward.7} parent=50 // pred_check_branch
          %1815 = sbr.rel (%p1813) target = $region71
        $region70: #{attention_forward.7} parent=50 // pred_region
          %1816 = dma.done [#allocation5], 2048
        $region71: #{attention_forward.7} parent=50 // pred_fallthru
          _
      $region51: #{attention_forward.7} parent=5 // pred_fallthru
        _
      %p1817 = scmp.le.s32.totalorder 2, %s10
      // Predicated region
      $region72: #{attention_forward.7} parent=5 // pred_check
        %p1818 = pneg %p1817
      $region73: #{attention_forward.7} parent=5 // pred_check_branch
        %1820 = sbr.rel (%p1818) target = $region75
      $region74: #{attention_forward.7} parent=5 // pred_region
        %s1821 = ssub.s32 %s10, 2
      $region75: #{attention_forward.7} parent=5 // pred_fallthru
        _
    $region6: #{attention_forward.7} parent=1 // loop_footer
      %s14 = sadd.s32 1, %s10
    $region7: #{attention_forward.7} parent=1 // loop_footer_branch
      %9 = sbr.rel target = $region3
    $region8: #{attention_forward.7} parent=1 // loop_exit
      _
    %1822 = vsyncpa [#allocation5], 1
    %s1823 = scalar_lea.sflag [#allocation5], 1
    %1824 = vsyncpa %s1823, 1

</llo_original>
